<compile_context>
chip_gen: v5e
topology: v5e:2x2
jax: 0.10.0
libtpu: 0.0.40
codegen_flags: <defaults>
</compile_context>

<pallas_src>
import jax
import jax.numpy as jnp
from jax import lax
from jax.experimental import pallas as pl
from jax.experimental.pallas import tpu as pltpu

NEG_SLOPE = 0.01  # nn.LeakyReLU(negative_slope=0.01)


def _leaky(y):
    return jnp.where(y >= 0, y, NEG_SLOPE * y)


# ---------------- fused Pallas kernel ----------------
# Shapes (B = batch):
#   xpad : (B, 10, 10, 8)  NHWC input, spatial pad 1, Cin zero-padded 7->8
#   w1   : (9, 8, 32)      conv1 taps (tap t = di*3+dj), each (cin_pad, cout)
#   b1   : (1, 32)
#   w2   : (9, 32, 64)     conv2 taps
#   b2   : (1, 64)
#   fcw1 : (4, 64, 128)    fc1 weight, block k = h*2+w of the 2x2 pooled map, (c, 128)
#   fcb1 : (1, 128)
#   fcw2 : (1, 128)        fc2 weight row
#   fcb2 : (1, 1)
#   out  : (B, 1)
# scratch:
#   y1pad: (B, 6, 6, 32)   pooled conv1 output with zero border (= conv2's padded input)
#   y2   : (4, B, 64)      pooled conv2 output, leading dim = pool position h*2+w
def cnn_fused_kernel(xpad_ref, w1_ref, b1_ref, w2_ref, b2_ref,
                     fcw1_ref, fcb1_ref, fcw2_ref, fcb2_ref,
                     out_ref, y1pad_ref, y2_ref):
    B = out_ref.shape[0]

    w1 = [w1_ref[t] for t in range(9)]     # 9 x (8, 32), loaded once
    w2 = [w2_ref[t] for t in range(9)]     # 9 x (32, 64), loaded once
    b1 = b1_ref[...]
    b2 = b2_ref[...]

    # conv2 reads a zero-padded buffer; zero it once, interior written below.
    y1pad_ref[...] = jnp.zeros_like(y1pad_ref)

    # ---- conv1 (3x3, pad 1) + LeakyReLU + 2x2 maxpool, fully fused ----
    for b in range(B):
        for i in range(4):                        # pooled output row
            rows = []
            for h in (2 * i, 2 * i + 1):          # the two conv rows of this pool window
                acc = None
                for di in range(3):
                    for dj in range(3):
                        lhs = xpad_ref[b, h + di, dj:dj + 8, :]            # (8, 8) [w, cin]
                        p = jnp.dot(lhs, w1[di * 3 + dj],
                                    preferred_element_type=jnp.float32)    # (8, 32)
                        acc = p if acc is None else acc + p
                rows.append(acc)
            hm = jnp.maximum(rows[0], rows[1])     # (8, 32): max over the 2 window rows
            for j in range(4):                     # max over the 2 window cols
                v = jnp.maximum(hm[2 * j:2 * j + 1, :], hm[2 * j + 1:2 * j + 2, :])
                v = _leaky(v + b1)                 # bias + lrelu commute with max
                y1pad_ref[b, 1 + i, 1 + j:2 + j, :] = v                    # (1, 32) interior

    # ---- conv2 (3x3, pad 1) + LeakyReLU + 2x2 maxpool, fully fused ----
    for b in range(B):
        for i in range(2):
            rows = []
            for h in (2 * i, 2 * i + 1):
                acc = None
                for di in range(3):
                    for dj in range(3):
                        lhs = y1pad_ref[b, h + di, dj:dj + 4, :]           # (4, 32)
                        p = jnp.dot(lhs, w2[di * 3 + dj],
                                    preferred_element_type=jnp.float32)    # (4, 64)
                        acc = p if acc is None else acc + p
                rows.append(acc)
            hm = jnp.maximum(rows[0], rows[1])     # (4, 64)
            for j in range(2):
                v = jnp.maximum(hm[2 * j:2 * j + 1, :], hm[2 * j + 1:2 * j + 2, :])
                v = _leaky(v + b2)
                y2_ref[i * 2 + j, b:b + 1, :] = v                          # (1, 64)

    # ---- fc1 + LeakyReLU + fc2 (NHWC flatten handled by pre-permuted fc1 weights) ----
    h1 = None
    for k in range(4):                             # sum over the 4 pooled spatial positions
        p = jnp.dot(y2_ref[k], fcw1_ref[k], preferred_element_type=jnp.float32)  # (B,128)
        h1 = p if h1 is None else h1 + p
    h1 = _leaky(h1 + fcb1_ref[...])
    out = jnp.sum(h1 * fcw2_ref[...], axis=-1, keepdims=True) + fcb2_ref[...]     # (B, 1)
    out_ref[...] = out


def _vmem_specs(n):
    return [pl.BlockSpec(memory_space=pltpu.MemorySpace.VMEM) for _ in range(n)]


# ---------------- one-time weight re-layout (trace-time constant under jit) ----------------

def prepare_params(params):
    # conv weights: (O, I, kh, kw) -> (kh, kw, I, O) -> (tap, cin, cout); pad Cin 7->8.
    w1 = jnp.transpose(params["conv1_w"], (2, 3, 1, 0))                    # (3,3,7,32)
    w1 = jnp.pad(w1, ((0, 0), (0, 0), (0, 1), (0, 0))).reshape(9, 8, 32)
    w2 = jnp.transpose(params["conv2_w"], (2, 3, 1, 0)).reshape(9, 32, 64)
    # fc1: PyTorch flattens NCHW (index = c*4 + h*2 + w); regroup its rows into
    # per-(h,w) blocks of 64 channels so the kernel can consume the NHWC-ordered y2.
    fcw1 = (params["fc1_w"].T                                             # (256,128)
            .reshape(64, 2, 2, 128).transpose(1, 2, 0, 3).reshape(4, 64, 128))
    return {
        "w1": w1, "b1": params["conv1_b"].reshape(1, 32),
        "w2": w2, "b2": params["conv2_b"].reshape(1, 64),
        "fcw1": fcw1, "fcb1": params["fc1_b"].reshape(1, 128),
        "fcw2": params["fc2_w"].reshape(1, 128),
        "fcb2": params["fc2_b"].reshape(1, 1),
    }


def cnn_forward(x_nchw, kp):
    B = x_nchw.shape[0]
    x = jnp.transpose(x_nchw, (0, 2, 3, 1))                    # NCHW -> NHWC (B,8,8,7)
    xpad = jnp.pad(x, ((0, 0), (1, 1), (1, 1), (0, 1)))        # spatial pad 1, Cin 7->8
    out = pl.pallas_call(
        cnn_fused_kernel,
        out_shape=jax.ShapeDtypeStruct((B, 1), jnp.float32),
        in_specs=_vmem_specs(9),
        out_specs=pl.BlockSpec(memory_space=pltpu.MemorySpace.VMEM),
        scratch_shapes=[pltpu.VMEM((B, 6, 6, 32), jnp.float32),
                        pltpu.VMEM((4, B, 64), jnp.float32)],
    )(xpad, kp["w1"], kp["b1"], kp["w2"], kp["b2"],
      kp["fcw1"], kp["fcb1"], kp["fcw2"], kp["fcb2"])
    return out[:, 0]  # .squeeze(1)


# ---------------- deterministic parameter init ----------------

def init_params(key):
    ks = jax.random.split(key, 8)

    def conv_init(k, shape):  # PyTorch-default-style uniform, deterministic
        fan_in = shape[1] * shape[2] * shape[3]
        bound = 1.0 / (fan_in ** 0.5)
        return jax.random.uniform(k, shape, jnp.float32, -bound, bound)

    def xavier_uniform(k, shape):  # init.xavier_uniform_ for Linear weights
        fan_out, fan_in = shape
        lim = (6.0 / (fan_in + fan_out)) ** 0.5
        return jax.random.uniform(k, shape, jnp.float32, -lim, lim)

    def bias_init(k, n, fan_in):
        b = 1.0 / (fan_in ** 0.5)
        return jax.random.uniform(k, (n,), jnp.float32, -b, b)

    return {
        "conv1_w": conv_init(ks[0], (32, 7, 3, 3)),
        "conv1_b": bias_init(ks[1], 32, 7 * 9),
        "conv2_w": conv_init(ks[2], (64, 32, 3, 3)),
        "conv2_b": bias_init(ks[3], 64, 32 * 9),
        "fc1_w": xavier_uniform(ks[4], (128, 256)),
        "fc1_b": bias_init(ks[5], 128, 256),
        "fc2_w": xavier_uniform(ks[6], (1, 128)),
        "fc2_b": bias_init(ks[7], 1, 128),
    }


# ---------------- pure-JAX reference (for correctness check) ----------------

def reference_forward(x, params):
    def conv(x, w, b):
        y = lax.conv_general_dilated(x, w, (1, 1), ((1, 1), (1, 1)),
                                     dimension_numbers=("NCHW", "OIHW", "NCHW"))
        return y + b[None, :, None, None]

    def pool(x):
        return lax.reduce_window(x, -jnp.inf, lax.max, (1, 1, 2, 2), (1, 1, 2, 2), "VALID")

    y = pool(_leaky(conv(x, params["conv1_w"], params["conv1_b"])))
    y = pool(_leaky(conv(y, params["conv2_w"], params["conv2_b"])))
    feat = y.reshape(y.shape[0], -1)
    h = _leaky(feat @ params["fc1_w"].T + params["fc1_b"])
    out = h @ params["fc2_w"].T + params["fc2_b"]
    return out[:, 0]


if __name__ == "__main__":
    key = jax.random.PRNGKey(0)
    pkey, xkey = jax.random.split(key)
    params = init_params(pkey)
    # batch=2, in_channels=7, spatial 8x8 (implied by the 64*2*2 flatten in forward)
    x = jax.random.normal(xkey, (2, 7, 8, 8), jnp.float32)

    kp = prepare_params(params)            # one-time weight re-layout (not per forward)
    fwd = jax.jit(cnn_forward)

    out = jax.block_until_ready(fwd(x, kp))
    ref = jax.block_until_ready(reference_forward(x, params))

    assert out.shape == (2,), out.shape
    if not jnp.allclose(out, ref, rtol=1e-4, atol=1e-4):
        raise AssertionError(f"Pallas output mismatch: {out} vs {ref}")
    print("KERNEL_OK")
</pallas_src>

<mosaic_0001>
module attributes {stable_mosaic.version = 11 : i64} {
  func.func @cnn_fused_kernel(%arg0: memref<2x10x10x8xf32, #tpu.memory_space<vmem>>, %arg1: memref<9x8x32xf32, #tpu.memory_space<vmem>>, %arg2: memref<1x32xf32, #tpu.memory_space<vmem>>, %arg3: memref<9x32x64xf32, #tpu.memory_space<vmem>>, %arg4: memref<1x64xf32, #tpu.memory_space<vmem>>, %arg5: memref<4x64x128xf32, #tpu.memory_space<vmem>>, %arg6: memref<1x128xf32, #tpu.memory_space<vmem>>, %arg7: memref<1x128xf32, #tpu.memory_space<vmem>>, %arg8: memref<1x1xf32, #tpu.memory_space<vmem>>, %arg9: memref<2x1xf32, #tpu.memory_space<vmem>>, %arg10: memref<2x6x6x32xf32, #tpu.memory_space<vmem>>, %arg11: memref<4x2x64xf32, #tpu.memory_space<vmem>>) attributes {dimension_semantics = [], scalar_prefetch = 0 : i64, scratch_operands = 2 : i64, tpu.core_type = #tpu.core_type<tc>} {
    %c0 = arith.constant 0 : index
    %c0_0 = arith.constant 0 : index
    %c0_1 = arith.constant 0 : index
    %0 = vector.load %arg1[%c0, %c0_0, %c0_1] : memref<9x8x32xf32, #tpu.memory_space<vmem>>, vector<1x8x32xf32>
    %1 = vector.shape_cast %0 : vector<1x8x32xf32> to vector<8x32xf32>
    %c1 = arith.constant 1 : index
    %c0_2 = arith.constant 0 : index
    %c0_3 = arith.constant 0 : index
    %2 = vector.load %arg1[%c1, %c0_2, %c0_3] : memref<9x8x32xf32, #tpu.memory_space<vmem>>, vector<1x8x32xf32>
    %3 = vector.shape_cast %2 : vector<1x8x32xf32> to vector<8x32xf32>
    %c2 = arith.constant 2 : index
    %c0_4 = arith.constant 0 : index
    %c0_5 = arith.constant 0 : index
    %4 = vector.load %arg1[%c2, %c0_4, %c0_5] : memref<9x8x32xf32, #tpu.memory_space<vmem>>, vector<1x8x32xf32>
    %5 = vector.shape_cast %4 : vector<1x8x32xf32> to vector<8x32xf32>
    %c3 = arith.constant 3 : index
    %c0_6 = arith.constant 0 : index
    %c0_7 = arith.constant 0 : index
    %6 = vector.load %arg1[%c3, %c0_6, %c0_7] : memref<9x8x32xf32, #tpu.memory_space<vmem>>, vector<1x8x32xf32>
    %7 = vector.shape_cast %6 : vector<1x8x32xf32> to vector<8x32xf32>
    %c4 = arith.constant 4 : index
    %c0_8 = arith.constant 0 : index
    %c0_9 = arith.constant 0 : index
    %8 = vector.load %arg1[%c4, %c0_8, %c0_9] : memref<9x8x32xf32, #tpu.memory_space<vmem>>, vector<1x8x32xf32>
    %9 = vector.shape_cast %8 : vector<1x8x32xf32> to vector<8x32xf32>
    %c5 = arith.constant 5 : index
    %c0_10 = arith.constant 0 : index
    %c0_11 = arith.constant 0 : index
    %10 = vector.load %arg1[%c5, %c0_10, %c0_11] : memref<9x8x32xf32, #tpu.memory_space<vmem>>, vector<1x8x32xf32>
    %11 = vector.shape_cast %10 : vector<1x8x32xf32> to vector<8x32xf32>
    %c6 = arith.constant 6 : index
    %c0_12 = arith.constant 0 : index
    %c0_13 = arith.constant 0 : index
    %12 = vector.load %arg1[%c6, %c0_12, %c0_13] : memref<9x8x32xf32, #tpu.memory_space<vmem>>, vector<1x8x32xf32>
    %13 = vector.shape_cast %12 : vector<1x8x32xf32> to vector<8x32xf32>
    %c7 = arith.constant 7 : index
    %c0_14 = arith.constant 0 : index
    %c0_15 = arith.constant 0 : index
    %14 = vector.load %arg1[%c7, %c0_14, %c0_15] : memref<9x8x32xf32, #tpu.memory_space<vmem>>, vector<1x8x32xf32>
    %15 = vector.shape_cast %14 : vector<1x8x32xf32> to vector<8x32xf32>
    %c8 = arith.constant 8 : index
    %c0_16 = arith.constant 0 : index
    %c0_17 = arith.constant 0 : index
    %16 = vector.load %arg1[%c8, %c0_16, %c0_17] : memref<9x8x32xf32, #tpu.memory_space<vmem>>, vector<1x8x32xf32>
    %17 = vector.shape_cast %16 : vector<1x8x32xf32> to vector<8x32xf32>
    %c0_18 = arith.constant 0 : index
    %c0_19 = arith.constant 0 : index
    %c0_20 = arith.constant 0 : index
    %18 = vector.load %arg3[%c0_18, %c0_19, %c0_20] : memref<9x32x64xf32, #tpu.memory_space<vmem>>, vector<1x32x64xf32>
    %19 = vector.shape_cast %18 : vector<1x32x64xf32> to vector<32x64xf32>
    %c1_21 = arith.constant 1 : index
    %c0_22 = arith.constant 0 : index
    %c0_23 = arith.constant 0 : index
    %20 = vector.load %arg3[%c1_21, %c0_22, %c0_23] : memref<9x32x64xf32, #tpu.memory_space<vmem>>, vector<1x32x64xf32>
    %21 = vector.shape_cast %20 : vector<1x32x64xf32> to vector<32x64xf32>
    %c2_24 = arith.constant 2 : index
    %c0_25 = arith.constant 0 : index
    %c0_26 = arith.constant 0 : index
    %22 = vector.load %arg3[%c2_24, %c0_25, %c0_26] : memref<9x32x64xf32, #tpu.memory_space<vmem>>, vector<1x32x64xf32>
    %23 = vector.shape_cast %22 : vector<1x32x64xf32> to vector<32x64xf32>
    %c3_27 = arith.constant 3 : index
    %c0_28 = arith.constant 0 : index
    %c0_29 = arith.constant 0 : index
    %24 = vector.load %arg3[%c3_27, %c0_28, %c0_29] : memref<9x32x64xf32, #tpu.memory_space<vmem>>, vector<1x32x64xf32>
    %25 = vector.shape_cast %24 : vector<1x32x64xf32> to vector<32x64xf32>
    %c4_30 = arith.constant 4 : index
    %c0_31 = arith.constant 0 : index
    %c0_32 = arith.constant 0 : index
    %26 = vector.load %arg3[%c4_30, %c0_31, %c0_32] : memref<9x32x64xf32, #tpu.memory_space<vmem>>, vector<1x32x64xf32>
    %27 = vector.shape_cast %26 : vector<1x32x64xf32> to vector<32x64xf32>
    %c5_33 = arith.constant 5 : index
    %c0_34 = arith.constant 0 : index
    %c0_35 = arith.constant 0 : index
    %28 = vector.load %arg3[%c5_33, %c0_34, %c0_35] : memref<9x32x64xf32, #tpu.memory_space<vmem>>, vector<1x32x64xf32>
    %29 = vector.shape_cast %28 : vector<1x32x64xf32> to vector<32x64xf32>
    %c6_36 = arith.constant 6 : index
    %c0_37 = arith.constant 0 : index
    %c0_38 = arith.constant 0 : index
    %30 = vector.load %arg3[%c6_36, %c0_37, %c0_38] : memref<9x32x64xf32, #tpu.memory_space<vmem>>, vector<1x32x64xf32>
    %31 = vector.shape_cast %30 : vector<1x32x64xf32> to vector<32x64xf32>
    %c7_39 = arith.constant 7 : index
    %c0_40 = arith.constant 0 : index
    %c0_41 = arith.constant 0 : index
    %32 = vector.load %arg3[%c7_39, %c0_40, %c0_41] : memref<9x32x64xf32, #tpu.memory_space<vmem>>, vector<1x32x64xf32>
    %33 = vector.shape_cast %32 : vector<1x32x64xf32> to vector<32x64xf32>
    %c8_42 = arith.constant 8 : index
    %c0_43 = arith.constant 0 : index
    %c0_44 = arith.constant 0 : index
    %34 = vector.load %arg3[%c8_42, %c0_43, %c0_44] : memref<9x32x64xf32, #tpu.memory_space<vmem>>, vector<1x32x64xf32>
    %35 = vector.shape_cast %34 : vector<1x32x64xf32> to vector<32x64xf32>
    %c0_45 = arith.constant 0 : index
    %c0_46 = arith.constant 0 : index
    %36 = vector.load %arg2[%c0_45, %c0_46] : memref<1x32xf32, #tpu.memory_space<vmem>>, vector<1x32xf32>
    %c0_47 = arith.constant 0 : index
    %c0_48 = arith.constant 0 : index
    %37 = vector.load %arg4[%c0_47, %c0_48] : memref<1x64xf32, #tpu.memory_space<vmem>>, vector<1x64xf32>
    %cst = arith.constant 0.000000e+00 : f32
    %38 = vector.broadcast %cst : f32 to vector<2x6x6x32xf32>
    %c0_49 = arith.constant 0 : index
    %c0_50 = arith.constant 0 : index
    %c0_51 = arith.constant 0 : index
    %c0_52 = arith.constant 0 : index
    %39 = vector.load %arg10[%c0_49, %c0_50, %c0_51, %c0_52] : memref<2x6x6x32xf32, #tpu.memory_space<vmem>>, vector<2x6x6x32xf32>
    tpu.vector_store %arg10[%c0_49, %c0_50, %c0_51, %c0_52], %38 {strides = array<i32>} : memref<2x6x6x32xf32, #tpu.memory_space<vmem>>, vector<2x6x6x32xf32>,
    %c0_53 = arith.constant 0 : index
    %c0_54 = arith.constant 0 : index
    %c0_55 = arith.constant 0 : index
    %c0_56 = arith.constant 0 : index
    %40 = vector.load %arg0[%c0_53, %c0_54, %c0_55, %c0_56] : memref<2x10x10x8xf32, #tpu.memory_space<vmem>>, vector<1x1x8x8xf32>
    %41 = vector.shape_cast %40 : vector<1x1x8x8xf32> to vector<8x8xf32>
    %cst_57 = arith.constant dense<0.000000e+00> : vector<8x32xf32>
    %42 = tpu.matmul %41, %1, %cst_57 {dimension_numbers = #tpu.dot_dimension_numbers<[1], [0], [0], [1], [0, 0, 1, 1], [], []>} : vector<8x8xf32>, vector<8x32xf32>, vector<8x32xf32> -> vector<8x32xf32>
    %c0_58 = arith.constant 0 : index
    %c0_59 = arith.constant 0 : index
    %c1_60 = arith.constant 1 : index
    %c0_61 = arith.constant 0 : index
    %43 = vector.load %arg0[%c0_58, %c0_59, %c1_60, %c0_61] : memref<2x10x10x8xf32, #tpu.memory_space<vmem>>, vector<1x1x8x8xf32>
    %44 = vector.shape_cast %43 : vector<1x1x8x8xf32> to vector<8x8xf32>
    %cst_62 = arith.constant dense<0.000000e+00> : vector<8x32xf32>
    %45 = tpu.matmul %44, %3, %cst_62 {dimension_numbers = #tpu.dot_dimension_numbers<[1], [0], [0], [1], [0, 0, 1, 1], [], []>} : vector<8x8xf32>, vector<8x32xf32>, vector<8x32xf32> -> vector<8x32xf32>
    %46 = arith.addf %42, %45 : vector<8x32xf32>
    %c0_63 = arith.constant 0 : index
    %c0_64 = arith.constant 0 : index
    %c2_65 = arith.constant 2 : index
    %c0_66 = arith.constant 0 : index
    %47 = vector.load %arg0[%c0_63, %c0_64, %c2_65, %c0_66] : memref<2x10x10x8xf32, #tpu.memory_space<vmem>>, vector<1x1x8x8xf32>
    %48 = vector.shape_cast %47 : vector<1x1x8x8xf32> to vector<8x8xf32>
    %cst_67 = arith.constant dense<0.000000e+00> : vector<8x32xf32>
    %49 = tpu.matmul %48, %5, %cst_67 {dimension_numbers = #tpu.dot_dimension_numbers<[1], [0], [0], [1], [0, 0, 1, 1], [], []>} : vector<8x8xf32>, vector<8x32xf32>, vector<8x32xf32> -> vector<8x32xf32>
    %50 = arith.addf %46, %49 : vector<8x32xf32>
    %c0_68 = arith.constant 0 : index
    %c1_69 = arith.constant 1 : index
    %c0_70 = arith.constant 0 : index
    %c0_71 = arith.constant 0 : index
    %51 = vector.load %arg0[%c0_68, %c1_69, %c0_70, %c0_71] : memref<2x10x10x8xf32, #tpu.memory_space<vmem>>, vector<1x1x8x8xf32>
    %52 = vector.shape_cast %51 : vector<1x1x8x8xf32> to vector<8x8xf32>
    %cst_72 = arith.constant dense<0.000000e+00> : vector<8x32xf32>
    %53 = tpu.matmul %52, %7, %cst_72 {dimension_numbers = #tpu.dot_dimension_numbers<[1], [0], [0], [1], [0, 0, 1, 1], [], []>} : vector<8x8xf32>, vector<8x32xf32>, vector<8x32xf32> -> vector<8x32xf32>
    %54 = arith.addf %50, %53 : vector<8x32xf32>
    %c0_73 = arith.constant 0 : index
    %c1_74 = arith.constant 1 : index
    %c1_75 = arith.constant 1 : index
    %c0_76 = arith.constant 0 : index
    %55 = vector.load %arg0[%c0_73, %c1_74, %c1_75, %c0_76] : memref<2x10x10x8xf32, #tpu.memory_space<vmem>>, vector<1x1x8x8xf32>
    %56 = vector.shape_cast %55 : vector<1x1x8x8xf32> to vector<8x8xf32>
    %cst_77 = arith.constant dense<0.000000e+00> : vector<8x32xf32>
    %57 = tpu.matmul %56, %9, %cst_77 {dimension_numbers = #tpu.dot_dimension_numbers<[1], [0], [0], [1], [0, 0, 1, 1], [], []>} : vector<8x8xf32>, vector<8x32xf32>, vector<8x32xf32> -> vector<8x32xf32>
    %58 = arith.addf %54, %57 : vector<8x32xf32>
    %c0_78 = arith.constant 0 : index
    %c1_79 = arith.constant 1 : index
    %c2_80 = arith.constant 2 : index
    %c0_81 = arith.constant 0 : index
    %59 = vector.load %arg0[%c0_78, %c1_79, %c2_80, %c0_81] : memref<2x10x10x8xf32, #tpu.memory_space<vmem>>, vector<1x1x8x8xf32>
    %60 = vector.shape_cast %59 : vector<1x1x8x8xf32> to vector<8x8xf32>
    %cst_82 = arith.constant dense<0.000000e+00> : vector<8x32xf32>
    %61 = tpu.matmul %60, %11, %cst_82 {dimension_numbers = #tpu.dot_dimension_numbers<[1], [0], [0], [1], [0, 0, 1, 1], [], []>} : vector<8x8xf32>, vector<8x32xf32>, vector<8x32xf32> -> vector<8x32xf32>
    %62 = arith.addf %58, %61 : vector<8x32xf32>
    %c0_83 = arith.constant 0 : index
    %c2_84 = arith.constant 2 : index
    %c0_85 = arith.constant 0 : index
    %c0_86 = arith.constant 0 : index
    %63 = vector.load %arg0[%c0_83, %c2_84, %c0_85, %c0_86] : memref<2x10x10x8xf32, #tpu.memory_space<vmem>>, vector<1x1x8x8xf32>
    %64 = vector.shape_cast %63 : vector<1x1x8x8xf32> to vector<8x8xf32>
    %cst_87 = arith.constant dense<0.000000e+00> : vector<8x32xf32>
    %65 = tpu.matmul %64, %13, %cst_87 {dimension_numbers = #tpu.dot_dimension_numbers<[1], [0], [0], [1], [0, 0, 1, 1], [], []>} : vector<8x8xf32>, vector<8x32xf32>, vector<8x32xf32> -> vector<8x32xf32>
    %66 = arith.addf %62, %65 : vector<8x32xf32>
    %c0_88 = arith.constant 0 : index
    %c2_89 = arith.constant 2 : index
    %c1_90 = arith.constant 1 : index
    %c0_91 = arith.constant 0 : index
    %67 = vector.load %arg0[%c0_88, %c2_89, %c1_90, %c0_91] : memref<2x10x10x8xf32, #tpu.memory_space<vmem>>, vector<1x1x8x8xf32>
    %68 = vector.shape_cast %67 : vector<1x1x8x8xf32> to vector<8x8xf32>
    %cst_92 = arith.constant dense<0.000000e+00> : vector<8x32xf32>
    %69 = tpu.matmul %68, %15, %cst_92 {dimension_numbers = #tpu.dot_dimension_numbers<[1], [0], [0], [1], [0, 0, 1, 1], [], []>} : vector<8x8xf32>, vector<8x32xf32>, vector<8x32xf32> -> vector<8x32xf32>
    %70 = arith.addf %66, %69 : vector<8x32xf32>
    %c0_93 = arith.constant 0 : index
    %c2_94 = arith.constant 2 : index
    %c2_95 = arith.constant 2 : index
    %c0_96 = arith.constant 0 : index
    %71 = vector.load %arg0[%c0_93, %c2_94, %c2_95, %c0_96] : memref<2x10x10x8xf32, #tpu.memory_space<vmem>>, vector<1x1x8x8xf32>
    %72 = vector.shape_cast %71 : vector<1x1x8x8xf32> to vector<8x8xf32>
    %cst_97 = arith.constant dense<0.000000e+00> : vector<8x32xf32>
    %73 = tpu.matmul %72, %17, %cst_97 {dimension_numbers = #tpu.dot_dimension_numbers<[1], [0], [0], [1], [0, 0, 1, 1], [], []>} : vector<8x8xf32>, vector<8x32xf32>, vector<8x32xf32> -> vector<8x32xf32>
    %74 = arith.addf %70, %73 : vector<8x32xf32>
    %c0_98 = arith.constant 0 : index
    %c1_99 = arith.constant 1 : index
    %c0_100 = arith.constant 0 : index
    %c0_101 = arith.constant 0 : index
    %75 = vector.load %arg0[%c0_98, %c1_99, %c0_100, %c0_101] : memref<2x10x10x8xf32, #tpu.memory_space<vmem>>, vector<1x1x8x8xf32>
    %76 = vector.shape_cast %75 : vector<1x1x8x8xf32> to vector<8x8xf32>
    %cst_102 = arith.constant dense<0.000000e+00> : vector<8x32xf32>
    %77 = tpu.matmul %76, %1, %cst_102 {dimension_numbers = #tpu.dot_dimension_numbers<[1], [0], [0], [1], [0, 0, 1, 1], [], []>} : vector<8x8xf32>, vector<8x32xf32>, vector<8x32xf32> -> vector<8x32xf32>
    %c0_103 = arith.constant 0 : index
    %c1_104 = arith.constant 1 : index
    %c1_105 = arith.constant 1 : index
    %c0_106 = arith.constant 0 : index
    %78 = vector.load %arg0[%c0_103, %c1_104, %c1_105, %c0_106] : memref<2x10x10x8xf32, #tpu.memory_space<vmem>>, vector<1x1x8x8xf32>
    %79 = vector.shape_cast %78 : vector<1x1x8x8xf32> to vector<8x8xf32>
    %cst_107 = arith.constant dense<0.000000e+00> : vector<8x32xf32>
    %80 = tpu.matmul %79, %3, %cst_107 {dimension_numbers = #tpu.dot_dimension_numbers<[1], [0], [0], [1], [0, 0, 1, 1], [], []>} : vector<8x8xf32>, vector<8x32xf32>, vector<8x32xf32> -> vector<8x32xf32>
    %81 = arith.addf %77, %80 : vector<8x32xf32>
    %c0_108 = arith.constant 0 : index
    %c1_109 = arith.constant 1 : index
    %c2_110 = arith.constant 2 : index
    %c0_111 = arith.constant 0 : index
    %82 = vector.load %arg0[%c0_108, %c1_109, %c2_110, %c0_111] : memref<2x10x10x8xf32, #tpu.memory_space<vmem>>, vector<1x1x8x8xf32>
    %83 = vector.shape_cast %82 : vector<1x1x8x8xf32> to vector<8x8xf32>
    %cst_112 = arith.constant dense<0.000000e+00> : vector<8x32xf32>
    %84 = tpu.matmul %83, %5, %cst_112 {dimension_numbers = #tpu.dot_dimension_numbers<[1], [0], [0], [1], [0, 0, 1, 1], [], []>} : vector<8x8xf32>, vector<8x32xf32>, vector<8x32xf32> -> vector<8x32xf32>
    %85 = arith.addf %81, %84 : vector<8x32xf32>
    %c0_113 = arith.constant 0 : index
    %c2_114 = arith.constant 2 : index
    %c0_115 = arith.constant 0 : index
    %c0_116 = arith.constant 0 : index
    %86 = vector.load %arg0[%c0_113, %c2_114, %c0_115, %c0_116] : memref<2x10x10x8xf32, #tpu.memory_space<vmem>>, vector<1x1x8x8xf32>
    %87 = vector.shape_cast %86 : vector<1x1x8x8xf32> to vector<8x8xf32>
    %cst_117 = arith.constant dense<0.000000e+00> : vector<8x32xf32>
    %88 = tpu.matmul %87, %7, %cst_117 {dimension_numbers = #tpu.dot_dimension_numbers<[1], [0], [0], [1], [0, 0, 1, 1], [], []>} : vector<8x8xf32>, vector<8x32xf32>, vector<8x32xf32> -> vector<8x32xf32>
    %89 = arith.addf %85, %88 : vector<8x32xf32>
    %c0_118 = arith.constant 0 : index
    %c2_119 = arith.constant 2 : index
    %c1_120 = arith.constant 1 : index
    %c0_121 = arith.constant 0 : index
    %90 = vector.load %arg0[%c0_118, %c2_119, %c1_120, %c0_121] : memref<2x10x10x8xf32, #tpu.memory_space<vmem>>, vector<1x1x8x8xf32>
    %91 = vector.shape_cast %90 : vector<1x1x8x8xf32> to vector<8x8xf32>
    %cst_122 = arith.constant dense<0.000000e+00> : vector<8x32xf32>
    %92 = tpu.matmul %91, %9, %cst_122 {dimension_numbers = #tpu.dot_dimension_numbers<[1], [0], [0], [1], [0, 0, 1, 1], [], []>} : vector<8x8xf32>, vector<8x32xf32>, vector<8x32xf32> -> vector<8x32xf32>
    %93 = arith.addf %89, %92 : vector<8x32xf32>
    %c0_123 = arith.constant 0 : index
    %c2_124 = arith.constant 2 : index
    %c2_125 = arith.constant 2 : index
    %c0_126 = arith.constant 0 : index
    %94 = vector.load %arg0[%c0_123, %c2_124, %c2_125, %c0_126] : memref<2x10x10x8xf32, #tpu.memory_space<vmem>>, vector<1x1x8x8xf32>
    %95 = vector.shape_cast %94 : vector<1x1x8x8xf32> to vector<8x8xf32>
    %cst_127 = arith.constant dense<0.000000e+00> : vector<8x32xf32>
    %96 = tpu.matmul %95, %11, %cst_127 {dimension_numbers = #tpu.dot_dimension_numbers<[1], [0], [0], [1], [0, 0, 1, 1], [], []>} : vector<8x8xf32>, vector<8x32xf32>, vector<8x32xf32> -> vector<8x32xf32>
    %97 = arith.addf %93, %96 : vector<8x32xf32>
    %c0_128 = arith.constant 0 : index
    %c3_129 = arith.constant 3 : index
    %c0_130 = arith.constant 0 : index
    %c0_131 = arith.constant 0 : index
    %98 = vector.load %arg0[%c0_128, %c3_129, %c0_130, %c0_131] : memref<2x10x10x8xf32, #tpu.memory_space<vmem>>, vector<1x1x8x8xf32>
    %99 = vector.shape_cast %98 : vector<1x1x8x8xf32> to vector<8x8xf32>
    %cst_132 = arith.constant dense<0.000000e+00> : vector<8x32xf32>
    %100 = tpu.matmul %99, %13, %cst_132 {dimension_numbers = #tpu.dot_dimension_numbers<[1], [0], [0], [1], [0, 0, 1, 1], [], []>} : vector<8x8xf32>, vector<8x32xf32>, vector<8x32xf32> -> vector<8x32xf32>
    %101 = arith.addf %97, %100 : vector<8x32xf32>
    %c0_133 = arith.constant 0 : index
    %c3_134 = arith.constant 3 : index
    %c1_135 = arith.constant 1 : index
    %c0_136 = arith.constant 0 : index
    %102 = vector.load %arg0[%c0_133, %c3_134, %c1_135, %c0_136] : memref<2x10x10x8xf32, #tpu.memory_space<vmem>>, vector<1x1x8x8xf32>
    %103 = vector.shape_cast %102 : vector<1x1x8x8xf32> to vector<8x8xf32>
    %cst_137 = arith.constant dense<0.000000e+00> : vector<8x32xf32>
    %104 = tpu.matmul %103, %15, %cst_137 {dimension_numbers = #tpu.dot_dimension_numbers<[1], [0], [0], [1], [0, 0, 1, 1], [], []>} : vector<8x8xf32>, vector<8x32xf32>, vector<8x32xf32> -> vector<8x32xf32>
    %105 = arith.addf %101, %104 : vector<8x32xf32>
    %c0_138 = arith.constant 0 : index
    %c3_139 = arith.constant 3 : index
    %c2_140 = arith.constant 2 : index
    %c0_141 = arith.constant 0 : index
    %106 = vector.load %arg0[%c0_138, %c3_139, %c2_140, %c0_141] : memref<2x10x10x8xf32, #tpu.memory_space<vmem>>, vector<1x1x8x8xf32>
    %107 = vector.shape_cast %106 : vector<1x1x8x8xf32> to vector<8x8xf32>
    %cst_142 = arith.constant dense<0.000000e+00> : vector<8x32xf32>
    %108 = tpu.matmul %107, %17, %cst_142 {dimension_numbers = #tpu.dot_dimension_numbers<[1], [0], [0], [1], [0, 0, 1, 1], [], []>} : vector<8x8xf32>, vector<8x32xf32>, vector<8x32xf32> -> vector<8x32xf32>
    %109 = arith.addf %105, %108 : vector<8x32xf32>
    %110 = arith.maximumf %74, %109 : vector<8x32xf32>
    %111 = vector.extract_strided_slice %110 {offsets = [0, 0], sizes = [1, 32], strides = [1, 1]} : vector<8x32xf32> to vector<1x32xf32>
    %112 = vector.extract_strided_slice %110 {offsets = [1, 0], sizes = [1, 32], strides = [1, 1]} : vector<8x32xf32> to vector<1x32xf32>
    %113 = arith.maximumf %111, %112 : vector<1x32xf32>
    %114 = arith.addf %113, %36 : vector<1x32xf32>
    %cst_143 = arith.constant 0.000000e+00 : f32
    %115 = vector.broadcast %cst_143 : f32 to vector<1x32xf32>
    %116 = arith.cmpf oge, %114, %115 : vector<1x32xf32>
    %cst_144 = arith.constant 0.00999999977 : f32
    %117 = vector.broadcast %cst_144 : f32 to vector<1x32xf32>
    %118 = arith.mulf %117, %114 : vector<1x32xf32>
    %119 = arith.select %116, %114, %118 : vector<1x32xi1>, vector<1x32xf32>
    %c0_145 = arith.constant 0 : index
    %c1_146 = arith.constant 1 : index
    %c1_147 = arith.constant 1 : index
    %c0_148 = arith.constant 0 : index
    %120 = vector.load %arg10[%c0_145, %c1_146, %c1_147, %c0_148] : memref<2x6x6x32xf32, #tpu.memory_space<vmem>>, vector<1x1x1x32xf32>
    %121 = vector.shape_cast %120 : vector<1x1x1x32xf32> to vector<1x32xf32>
    %122 = vector.shape_cast %119 : vector<1x32xf32> to vector<1x1x1x32xf32>
    tpu.vector_store %arg10[%c0_145, %c1_146, %c1_147, %c0_148], %122 {strides = array<i32>} : memref<2x6x6x32xf32, #tpu.memory_space<vmem>>, vector<1x1x1x32xf32>,
    %123 = vector.extract_strided_slice %110 {offsets = [2, 0], sizes = [1, 32], strides = [1, 1]} : vector<8x32xf32> to vector<1x32xf32>
    %124 = vector.extract_strided_slice %110 {offsets = [3, 0], sizes = [1, 32], strides = [1, 1]} : vector<8x32xf32> to vector<1x32xf32>
    %125 = arith.maximumf %123, %124 : vector<1x32xf32>
    %126 = arith.addf %125, %36 : vector<1x32xf32>
    %cst_149 = arith.constant 0.000000e+00 : f32
    %127 = vector.broadcast %cst_149 : f32 to vector<1x32xf32>
    %128 = arith.cmpf oge, %126, %127 : vector<1x32xf32>
    %cst_150 = arith.constant 0.00999999977 : f32
    %129 = vector.broadcast %cst_150 : f32 to vector<1x32xf32>
    %130 = arith.mulf %129, %126 : vector<1x32xf32>
    %131 = arith.select %128, %126, %130 : vector<1x32xi1>, vector<1x32xf32>
    %c0_151 = arith.constant 0 : index
    %c1_152 = arith.constant 1 : index
    %c2_153 = arith.constant 2 : index
    %c0_154 = arith.constant 0 : index
    %132 = vector.load %arg10[%c0_151, %c1_152, %c2_153, %c0_154] : memref<2x6x6x32xf32, #tpu.memory_space<vmem>>, vector<1x1x1x32xf32>
    %133 = vector.shape_cast %132 : vector<1x1x1x32xf32> to vector<1x32xf32>
    %134 = vector.shape_cast %131 : vector<1x32xf32> to vector<1x1x1x32xf32>
    tpu.vector_store %arg10[%c0_151, %c1_152, %c2_153, %c0_154], %134 {strides = array<i32>} : memref<2x6x6x32xf32, #tpu.memory_space<vmem>>, vector<1x1x1x32xf32>,
    %135 = vector.extract_strided_slice %110 {offsets = [4, 0], sizes = [1, 32], strides = [1, 1]} : vector<8x32xf32> to vector<1x32xf32>
    %136 = vector.extract_strided_slice %110 {offsets = [5, 0], sizes = [1, 32], strides = [1, 1]} : vector<8x32xf32> to vector<1x32xf32>
    %137 = arith.maximumf %135, %136 : vector<1x32xf32>
    %138 = arith.addf %137, %36 : vector<1x32xf32>
    %cst_155 = arith.constant 0.000000e+00 : f32
    %139 = vector.broadcast %cst_155 : f32 to vector<1x32xf32>
    %140 = arith.cmpf oge, %138, %139 : vector<1x32xf32>
    %cst_156 = arith.constant 0.00999999977 : f32
    %141 = vector.broadcast %cst_156 : f32 to vector<1x32xf32>
    %142 = arith.mulf %141, %138 : vector<1x32xf32>
    %143 = arith.select %140, %138, %142 : vector<1x32xi1>, vector<1x32xf32>
    %c0_157 = arith.constant 0 : index
    %c1_158 = arith.constant 1 : index
    %c3_159 = arith.constant 3 : index
    %c0_160 = arith.constant 0 : index
    %144 = vector.load %arg10[%c0_157, %c1_158, %c3_159, %c0_160] : memref<2x6x6x32xf32, #tpu.memory_space<vmem>>, vector<1x1x1x32xf32>
    %145 = vector.shape_cast %144 : vector<1x1x1x32xf32> to vector<1x32xf32>
    %146 = vector.shape_cast %143 : vector<1x32xf32> to vector<1x1x1x32xf32>
    tpu.vector_store %arg10[%c0_157, %c1_158, %c3_159, %c0_160], %146 {strides = array<i32>} : memref<2x6x6x32xf32, #tpu.memory_space<vmem>>, vector<1x1x1x32xf32>,
    %147 = vector.extract_strided_slice %110 {offsets = [6, 0], sizes = [1, 32], strides = [1, 1]} : vector<8x32xf32> to vector<1x32xf32>
    %148 = vector.extract_strided_slice %110 {offsets = [7, 0], sizes = [1, 32], strides = [1, 1]} : vector<8x32xf32> to vector<1x32xf32>
    %149 = arith.maximumf %147, %148 : vector<1x32xf32>
    %150 = arith.addf %149, %36 : vector<1x32xf32>
    %cst_161 = arith.constant 0.000000e+00 : f32
    %151 = vector.broadcast %cst_161 : f32 to vector<1x32xf32>
    %152 = arith.cmpf oge, %150, %151 : vector<1x32xf32>
    %cst_162 = arith.constant 0.00999999977 : f32
    %153 = vector.broadcast %cst_162 : f32 to vector<1x32xf32>
    %154 = arith.mulf %153, %150 : vector<1x32xf32>
    %155 = arith.select %152, %150, %154 : vector<1x32xi1>, vector<1x32xf32>
    %c0_163 = arith.constant 0 : index
    %c1_164 = arith.constant 1 : index
    %c4_165 = arith.constant 4 : index
    %c0_166 = arith.constant 0 : index
    %156 = vector.load %arg10[%c0_163, %c1_164, %c4_165, %c0_166] : memref<2x6x6x32xf32, #tpu.memory_space<vmem>>, vector<1x1x1x32xf32>
    %157 = vector.shape_cast %156 : vector<1x1x1x32xf32> to vector<1x32xf32>
    %158 = vector.shape_cast %155 : vector<1x32xf32> to vector<1x1x1x32xf32>
    tpu.vector_store %arg10[%c0_163, %c1_164, %c4_165, %c0_166], %158 {strides = array<i32>} : memref<2x6x6x32xf32, #tpu.memory_space<vmem>>, vector<1x1x1x32xf32>,
    %c0_167 = arith.constant 0 : index
    %c2_168 = arith.constant 2 : index
    %c0_169 = arith.constant 0 : index
    %c0_170 = arith.constant 0 : index
    %159 = vector.load %arg0[%c0_167, %c2_168, %c0_169, %c0_170] : memref<2x10x10x8xf32, #tpu.memory_space<vmem>>, vector<1x1x8x8xf32>
    %160 = vector.shape_cast %159 : vector<1x1x8x8xf32> to vector<8x8xf32>
    %cst_171 = arith.constant dense<0.000000e+00> : vector<8x32xf32>
    %161 = tpu.matmul %160, %1, %cst_171 {dimension_numbers = #tpu.dot_dimension_numbers<[1], [0], [0], [1], [0, 0, 1, 1], [], []>} : vector<8x8xf32>, vector<8x32xf32>, vector<8x32xf32> -> vector<8x32xf32>
    %c0_172 = arith.constant 0 : index
    %c2_173 = arith.constant 2 : index
    %c1_174 = arith.constant 1 : index
    %c0_175 = arith.constant 0 : index
    %162 = vector.load %arg0[%c0_172, %c2_173, %c1_174, %c0_175] : memref<2x10x10x8xf32, #tpu.memory_space<vmem>>, vector<1x1x8x8xf32>
    %163 = vector.shape_cast %162 : vector<1x1x8x8xf32> to vector<8x8xf32>
    %cst_176 = arith.constant dense<0.000000e+00> : vector<8x32xf32>
    %164 = tpu.matmul %163, %3, %cst_176 {dimension_numbers = #tpu.dot_dimension_numbers<[1], [0], [0], [1], [0, 0, 1, 1], [], []>} : vector<8x8xf32>, vector<8x32xf32>, vector<8x32xf32> -> vector<8x32xf32>
    %165 = arith.addf %161, %164 : vector<8x32xf32>
    %c0_177 = arith.constant 0 : index
    %c2_178 = arith.constant 2 : index
    %c2_179 = arith.constant 2 : index
    %c0_180 = arith.constant 0 : index
    %166 = vector.load %arg0[%c0_177, %c2_178, %c2_179, %c0_180] : memref<2x10x10x8xf32, #tpu.memory_space<vmem>>, vector<1x1x8x8xf32>
    %167 = vector.shape_cast %166 : vector<1x1x8x8xf32> to vector<8x8xf32>
    %cst_181 = arith.constant dense<0.000000e+00> : vector<8x32xf32>
    %168 = tpu.matmul %167, %5, %cst_181 {dimension_numbers = #tpu.dot_dimension_numbers<[1], [0], [0], [1], [0, 0, 1, 1], [], []>} : vector<8x8xf32>, vector<8x32xf32>, vector<8x32xf32> -> vector<8x32xf32>
    %169 = arith.addf %165, %168 : vector<8x32xf32>
    %c0_182 = arith.constant 0 : index
    %c3_183 = arith.constant 3 : index
    %c0_184 = arith.constant 0 : index
    %c0_185 = arith.constant 0 : index
    %170 = vector.load %arg0[%c0_182, %c3_183, %c0_184, %c0_185] : memref<2x10x10x8xf32, #tpu.memory_space<vmem>>, vector<1x1x8x8xf32>
    %171 = vector.shape_cast %170 : vector<1x1x8x8xf32> to vector<8x8xf32>
    %cst_186 = arith.constant dense<0.000000e+00> : vector<8x32xf32>
    %172 = tpu.matmul %171, %7, %cst_186 {dimension_numbers = #tpu.dot_dimension_numbers<[1], [0], [0], [1], [0, 0, 1, 1], [], []>} : vector<8x8xf32>, vector<8x32xf32>, vector<8x32xf32> -> vector<8x32xf32>
    %173 = arith.addf %169, %172 : vector<8x32xf32>
    %c0_187 = arith.constant 0 : index
    %c3_188 = arith.constant 3 : index
    %c1_189 = arith.constant 1 : index
    %c0_190 = arith.constant 0 : index
    %174 = vector.load %arg0[%c0_187, %c3_188, %c1_189, %c0_190] : memref<2x10x10x8xf32, #tpu.memory_space<vmem>>, vector<1x1x8x8xf32>
    %175 = vector.shape_cast %174 : vector<1x1x8x8xf32> to vector<8x8xf32>
    %cst_191 = arith.constant dense<0.000000e+00> : vector<8x32xf32>
    %176 = tpu.matmul %175, %9, %cst_191 {dimension_numbers = #tpu.dot_dimension_numbers<[1], [0], [0], [1], [0, 0, 1, 1], [], []>} : vector<8x8xf32>, vector<8x32xf32>, vector<8x32xf32> -> vector<8x32xf32>
    %177 = arith.addf %173, %176 : vector<8x32xf32>
    %c0_192 = arith.constant 0 : index
    %c3_193 = arith.constant 3 : index
    %c2_194 = arith.constant 2 : index
    %c0_195 = arith.constant 0 : index
    %178 = vector.load %arg0[%c0_192, %c3_193, %c2_194, %c0_195] : memref<2x10x10x8xf32, #tpu.memory_space<vmem>>, vector<1x1x8x8xf32>
    %179 = vector.shape_cast %178 : vector<1x1x8x8xf32> to vector<8x8xf32>
    %cst_196 = arith.constant dense<0.000000e+00> : vector<8x32xf32>
    %180 = tpu.matmul %179, %11, %cst_196 {dimension_numbers = #tpu.dot_dimension_numbers<[1], [0], [0], [1], [0, 0, 1, 1], [], []>} : vector<8x8xf32>, vector<8x32xf32>, vector<8x32xf32> -> vector<8x32xf32>
    %181 = arith.addf %177, %180 : vector<8x32xf32>
    %c0_197 = arith.constant 0 : index
    %c4_198 = arith.constant 4 : index
    %c0_199 = arith.constant 0 : index
    %c0_200 = arith.constant 0 : index
    %182 = vector.load %arg0[%c0_197, %c4_198, %c0_199, %c0_200] : memref<2x10x10x8xf32, #tpu.memory_space<vmem>>, vector<1x1x8x8xf32>
    %183 = vector.shape_cast %182 : vector<1x1x8x8xf32> to vector<8x8xf32>
    %cst_201 = arith.constant dense<0.000000e+00> : vector<8x32xf32>
    %184 = tpu.matmul %183, %13, %cst_201 {dimension_numbers = #tpu.dot_dimension_numbers<[1], [0], [0], [1], [0, 0, 1, 1], [], []>} : vector<8x8xf32>, vector<8x32xf32>, vector<8x32xf32> -> vector<8x32xf32>
    %185 = arith.addf %181, %184 : vector<8x32xf32>
    %c0_202 = arith.constant 0 : index
    %c4_203 = arith.constant 4 : index
    %c1_204 = arith.constant 1 : index
    %c0_205 = arith.constant 0 : index
    %186 = vector.load %arg0[%c0_202, %c4_203, %c1_204, %c0_205] : memref<2x10x10x8xf32, #tpu.memory_space<vmem>>, vector<1x1x8x8xf32>
    %187 = vector.shape_cast %186 : vector<1x1x8x8xf32> to vector<8x8xf32>
    %cst_206 = arith.constant dense<0.000000e+00> : vector<8x32xf32>
    %188 = tpu.matmul %187, %15, %cst_206 {dimension_numbers = #tpu.dot_dimension_numbers<[1], [0], [0], [1], [0, 0, 1, 1], [], []>} : vector<8x8xf32>, vector<8x32xf32>, vector<8x32xf32> -> vector<8x32xf32>
    %189 = arith.addf %185, %188 : vector<8x32xf32>
    %c0_207 = arith.constant 0 : index
    %c4_208 = arith.constant 4 : index
    %c2_209 = arith.constant 2 : index
    %c0_210 = arith.constant 0 : index
    %190 = vector.load %arg0[%c0_207, %c4_208, %c2_209, %c0_210] : memref<2x10x10x8xf32, #tpu.memory_space<vmem>>, vector<1x1x8x8xf32>
    %191 = vector.shape_cast %190 : vector<1x1x8x8xf32> to vector<8x8xf32>
    %cst_211 = arith.constant dense<0.000000e+00> : vector<8x32xf32>
    %192 = tpu.matmul %191, %17, %cst_211 {dimension_numbers = #tpu.dot_dimension_numbers<[1], [0], [0], [1], [0, 0, 1, 1], [], []>} : vector<8x8xf32>, vector<8x32xf32>, vector<8x32xf32> -> vector<8x32xf32>
    %193 = arith.addf %189, %192 : vector<8x32xf32>
    %c0_212 = arith.constant 0 : index
    %c3_213 = arith.constant 3 : index
    %c0_214 = arith.constant 0 : index
    %c0_215 = arith.constant 0 : index
    %194 = vector.load %arg0[%c0_212, %c3_213, %c0_214, %c0_215] : memref<2x10x10x8xf32, #tpu.memory_space<vmem>>, vector<1x1x8x8xf32>
    %195 = vector.shape_cast %194 : vector<1x1x8x8xf32> to vector<8x8xf32>
    %cst_216 = arith.constant dense<0.000000e+00> : vector<8x32xf32>
    %196 = tpu.matmul %195, %1, %cst_216 {dimension_numbers = #tpu.dot_dimension_numbers<[1], [0], [0], [1], [0, 0, 1, 1], [], []>} : vector<8x8xf32>, vector<8x32xf32>, vector<8x32xf32> -> vector<8x32xf32>
    %c0_217 = arith.constant 0 : index
    %c3_218 = arith.constant 3 : index
    %c1_219 = arith.constant 1 : index
    %c0_220 = arith.constant 0 : index
    %197 = vector.load %arg0[%c0_217, %c3_218, %c1_219, %c0_220] : memref<2x10x10x8xf32, #tpu.memory_space<vmem>>, vector<1x1x8x8xf32>
    %198 = vector.shape_cast %197 : vector<1x1x8x8xf32> to vector<8x8xf32>
    %cst_221 = arith.constant dense<0.000000e+00> : vector<8x32xf32>
    %199 = tpu.matmul %198, %3, %cst_221 {dimension_numbers = #tpu.dot_dimension_numbers<[1], [0], [0], [1], [0, 0, 1, 1], [], []>} : vector<8x8xf32>, vector<8x32xf32>, vector<8x32xf32> -> vector<8x32xf32>
    %200 = arith.addf %196, %199 : vector<8x32xf32>
    %c0_222 = arith.constant 0 : index
    %c3_223 = arith.constant 3 : index
    %c2_224 = arith.constant 2 : index
    %c0_225 = arith.constant 0 : index
    %201 = vector.load %arg0[%c0_222, %c3_223, %c2_224, %c0_225] : memref<2x10x10x8xf32, #tpu.memory_space<vmem>>, vector<1x1x8x8xf32>
    %202 = vector.shape_cast %201 : vector<1x1x8x8xf32> to vector<8x8xf32>
    %cst_226 = arith.constant dense<0.000000e+00> : vector<8x32xf32>
    %203 = tpu.matmul %202, %5, %cst_226 {dimension_numbers = #tpu.dot_dimension_numbers<[1], [0], [0], [1], [0, 0, 1, 1], [], []>} : vector<8x8xf32>, vector<8x32xf32>, vector<8x32xf32> -> vector<8x32xf32>
    %204 = arith.addf %200, %203 : vector<8x32xf32>
    %c0_227 = arith.constant 0 : index
    %c4_228 = arith.constant 4 : index
    %c0_229 = arith.constant 0 : index
    %c0_230 = arith.constant 0 : index
    %205 = vector.load %arg0[%c0_227, %c4_228, %c0_229, %c0_230] : memref<2x10x10x8xf32, #tpu.memory_space<vmem>>, vector<1x1x8x8xf32>
    %206 = vector.shape_cast %205 : vector<1x1x8x8xf32> to vector<8x8xf32>
    %cst_231 = arith.constant dense<0.000000e+00> : vector<8x32xf32>
    %207 = tpu.matmul %206, %7, %cst_231 {dimension_numbers = #tpu.dot_dimension_numbers<[1], [0], [0], [1], [0, 0, 1, 1], [], []>} : vector<8x8xf32>, vector<8x32xf32>, vector<8x32xf32> -> vector<8x32xf32>
    %208 = arith.addf %204, %207 : vector<8x32xf32>
    %c0_232 = arith.constant 0 : index
    %c4_233 = arith.constant 4 : index
    %c1_234 = arith.constant 1 : index
    %c0_235 = arith.constant 0 : index
    %209 = vector.load %arg0[%c0_232, %c4_233, %c1_234, %c0_235] : memref<2x10x10x8xf32, #tpu.memory_space<vmem>>, vector<1x1x8x8xf32>
    %210 = vector.shape_cast %209 : vector<1x1x8x8xf32> to vector<8x8xf32>
    %cst_236 = arith.constant dense<0.000000e+00> : vector<8x32xf32>
    %211 = tpu.matmul %210, %9, %cst_236 {dimension_numbers = #tpu.dot_dimension_numbers<[1], [0], [0], [1], [0, 0, 1, 1], [], []>} : vector<8x8xf32>, vector<8x32xf32>, vector<8x32xf32> -> vector<8x32xf32>
    %212 = arith.addf %208, %211 : vector<8x32xf32>
    %c0_237 = arith.constant 0 : index
    %c4_238 = arith.constant 4 : index
    %c2_239 = arith.constant 2 : index
    %c0_240 = arith.constant 0 : index
    %213 = vector.load %arg0[%c0_237, %c4_238, %c2_239, %c0_240] : memref<2x10x10x8xf32, #tpu.memory_space<vmem>>, vector<1x1x8x8xf32>
    %214 = vector.shape_cast %213 : vector<1x1x8x8xf32> to vector<8x8xf32>
    %cst_241 = arith.constant dense<0.000000e+00> : vector<8x32xf32>
    %215 = tpu.matmul %214, %11, %cst_241 {dimension_numbers = #tpu.dot_dimension_numbers<[1], [0], [0], [1], [0, 0, 1, 1], [], []>} : vector<8x8xf32>, vector<8x32xf32>, vector<8x32xf32> -> vector<8x32xf32>
    %216 = arith.addf %212, %215 : vector<8x32xf32>
    %c0_242 = arith.constant 0 : index
    %c5_243 = arith.constant 5 : index
    %c0_244 = arith.constant 0 : index
    %c0_245 = arith.constant 0 : index
    %217 = vector.load %arg0[%c0_242, %c5_243, %c0_244, %c0_245] : memref<2x10x10x8xf32, #tpu.memory_space<vmem>>, vector<1x1x8x8xf32>
    %218 = vector.shape_cast %217 : vector<1x1x8x8xf32> to vector<8x8xf32>
    %cst_246 = arith.constant dense<0.000000e+00> : vector<8x32xf32>
    %219 = tpu.matmul %218, %13, %cst_246 {dimension_numbers = #tpu.dot_dimension_numbers<[1], [0], [0], [1], [0, 0, 1, 1], [], []>} : vector<8x8xf32>, vector<8x32xf32>, vector<8x32xf32> -> vector<8x32xf32>
    %220 = arith.addf %216, %219 : vector<8x32xf32>
    %c0_247 = arith.constant 0 : index
    %c5_248 = arith.constant 5 : index
    %c1_249 = arith.constant 1 : index
    %c0_250 = arith.constant 0 : index
    %221 = vector.load %arg0[%c0_247, %c5_248, %c1_249, %c0_250] : memref<2x10x10x8xf32, #tpu.memory_space<vmem>>, vector<1x1x8x8xf32>
    %222 = vector.shape_cast %221 : vector<1x1x8x8xf32> to vector<8x8xf32>
    %cst_251 = arith.constant dense<0.000000e+00> : vector<8x32xf32>
    %223 = tpu.matmul %222, %15, %cst_251 {dimension_numbers = #tpu.dot_dimension_numbers<[1], [0], [0], [1], [0, 0, 1, 1], [], []>} : vector<8x8xf32>, vector<8x32xf32>, vector<8x32xf32> -> vector<8x32xf32>
    %224 = arith.addf %220, %223 : vector<8x32xf32>
    %c0_252 = arith.constant 0 : index
    %c5_253 = arith.constant 5 : index
    %c2_254 = arith.constant 2 : index
    %c0_255 = arith.constant 0 : index
    %225 = vector.load %arg0[%c0_252, %c5_253, %c2_254, %c0_255] : memref<2x10x10x8xf32, #tpu.memory_space<vmem>>, vector<1x1x8x8xf32>
    %226 = vector.shape_cast %225 : vector<1x1x8x8xf32> to vector<8x8xf32>
    %cst_256 = arith.constant dense<0.000000e+00> : vector<8x32xf32>
    %227 = tpu.matmul %226, %17, %cst_256 {dimension_numbers = #tpu.dot_dimension_numbers<[1], [0], [0], [1], [0, 0, 1, 1], [], []>} : vector<8x8xf32>, vector<8x32xf32>, vector<8x32xf32> -> vector<8x32xf32>
    %228 = arith.addf %224, %227 : vector<8x32xf32>
    %229 = arith.maximumf %193, %228 : vector<8x32xf32>
    %230 = vector.extract_strided_slice %229 {offsets = [0, 0], sizes = [1, 32], strides = [1, 1]} : vector<8x32xf32> to vector<1x32xf32>
    %231 = vector.extract_strided_slice %229 {offsets = [1, 0], sizes = [1, 32], strides = [1, 1]} : vector<8x32xf32> to vector<1x32xf32>
    %232 = arith.maximumf %230, %231 : vector<1x32xf32>
    %233 = arith.addf %232, %36 : vector<1x32xf32>
    %cst_257 = arith.constant 0.000000e+00 : f32
    %234 = vector.broadcast %cst_257 : f32 to vector<1x32xf32>
    %235 = arith.cmpf oge, %233, %234 : vector<1x32xf32>
    %cst_258 = arith.constant 0.00999999977 : f32
    %236 = vector.broadcast %cst_258 : f32 to vector<1x32xf32>
    %237 = arith.mulf %236, %233 : vector<1x32xf32>
    %238 = arith.select %235, %233, %237 : vector<1x32xi1>, vector<1x32xf32>
    %c0_259 = arith.constant 0 : index
    %c2_260 = arith.constant 2 : index
    %c1_261 = arith.constant 1 : index
    %c0_262 = arith.constant 0 : index
    %239 = vector.load %arg10[%c0_259, %c2_260, %c1_261, %c0_262] : memref<2x6x6x32xf32, #tpu.memory_space<vmem>>, vector<1x1x1x32xf32>
    %240 = vector.shape_cast %239 : vector<1x1x1x32xf32> to vector<1x32xf32>
    %241 = vector.shape_cast %238 : vector<1x32xf32> to vector<1x1x1x32xf32>
    tpu.vector_store %arg10[%c0_259, %c2_260, %c1_261, %c0_262], %241 {strides = array<i32>} : memref<2x6x6x32xf32, #tpu.memory_space<vmem>>, vector<1x1x1x32xf32>,
    %242 = vector.extract_strided_slice %229 {offsets = [2, 0], sizes = [1, 32], strides = [1, 1]} : vector<8x32xf32> to vector<1x32xf32>
    %243 = vector.extract_strided_slice %229 {offsets = [3, 0], sizes = [1, 32], strides = [1, 1]} : vector<8x32xf32> to vector<1x32xf32>
    %244 = arith.maximumf %242, %243 : vector<1x32xf32>
    %245 = arith.addf %244, %36 : vector<1x32xf32>
    %cst_263 = arith.constant 0.000000e+00 : f32
    %246 = vector.broadcast %cst_263 : f32 to vector<1x32xf32>
    %247 = arith.cmpf oge, %245, %246 : vector<1x32xf32>
    %cst_264 = arith.constant 0.00999999977 : f32
    %248 = vector.broadcast %cst_264 : f32 to vector<1x32xf32>
    %249 = arith.mulf %248, %245 : vector<1x32xf32>
    %250 = arith.select %247, %245, %249 : vector<1x32xi1>, vector<1x32xf32>
    %c0_265 = arith.constant 0 : index
    %c2_266 = arith.constant 2 : index
    %c2_267 = arith.constant 2 : index
    %c0_268 = arith.constant 0 : index
    %251 = vector.load %arg10[%c0_265, %c2_266, %c2_267, %c0_268] : memref<2x6x6x32xf32, #tpu.memory_space<vmem>>, vector<1x1x1x32xf32>
    %252 = vector.shape_cast %251 : vector<1x1x1x32xf32> to vector<1x32xf32>
    %253 = vector.shape_cast %250 : vector<1x32xf32> to vector<1x1x1x32xf32>
    tpu.vector_store %arg10[%c0_265, %c2_266, %c2_267, %c0_268], %253 {strides = array<i32>} : memref<2x6x6x32xf32, #tpu.memory_space<vmem>>, vector<1x1x1x32xf32>,
    %254 = vector.extract_strided_slice %229 {offsets = [4, 0], sizes = [1, 32], strides = [1, 1]} : vector<8x32xf32> to vector<1x32xf32>
    %255 = vector.extract_strided_slice %229 {offsets = [5, 0], sizes = [1, 32], strides = [1, 1]} : vector<8x32xf32> to vector<1x32xf32>
    %256 = arith.maximumf %254, %255 : vector<1x32xf32>
    %257 = arith.addf %256, %36 : vector<1x32xf32>
    %cst_269 = arith.constant 0.000000e+00 : f32
    %258 = vector.broadcast %cst_269 : f32 to vector<1x32xf32>
    %259 = arith.cmpf oge, %257, %258 : vector<1x32xf32>
    %cst_270 = arith.constant 0.00999999977 : f32
    %260 = vector.broadcast %cst_270 : f32 to vector<1x32xf32>
    %261 = arith.mulf %260, %257 : vector<1x32xf32>
    %262 = arith.select %259, %257, %261 : vector<1x32xi1>, vector<1x32xf32>
    %c0_271 = arith.constant 0 : index
    %c2_272 = arith.constant 2 : index
    %c3_273 = arith.constant 3 : index
    %c0_274 = arith.constant 0 : index
    %263 = vector.load %arg10[%c0_271, %c2_272, %c3_273, %c0_274] : memref<2x6x6x32xf32, #tpu.memory_space<vmem>>, vector<1x1x1x32xf32>
    %264 = vector.shape_cast %263 : vector<1x1x1x32xf32> to vector<1x32xf32>
    %265 = vector.shape_cast %262 : vector<1x32xf32> to vector<1x1x1x32xf32>
    tpu.vector_store %arg10[%c0_271, %c2_272, %c3_273, %c0_274], %265 {strides = array<i32>} : memref<2x6x6x32xf32, #tpu.memory_space<vmem>>, vector<1x1x1x32xf32>,
    %266 = vector.extract_strided_slice %229 {offsets = [6, 0], sizes = [1, 32], strides = [1, 1]} : vector<8x32xf32> to vector<1x32xf32>
    %267 = vector.extract_strided_slice %229 {offsets = [7, 0], sizes = [1, 32], strides = [1, 1]} : vector<8x32xf32> to vector<1x32xf32>
    %268 = arith.maximumf %266, %267 : vector<1x32xf32>
    %269 = arith.addf %268, %36 : vector<1x32xf32>
    %cst_275 = arith.constant 0.000000e+00 : f32
    %270 = vector.broadcast %cst_275 : f32 to vector<1x32xf32>
    %271 = arith.cmpf oge, %269, %270 : vector<1x32xf32>
    %cst_276 = arith.constant 0.00999999977 : f32
    %272 = vector.broadcast %cst_276 : f32 to vector<1x32xf32>
    %273 = arith.mulf %272, %269 : vector<1x32xf32>
    %274 = arith.select %271, %269, %273 : vector<1x32xi1>, vector<1x32xf32>
    %c0_277 = arith.constant 0 : index
    %c2_278 = arith.constant 2 : index
    %c4_279 = arith.constant 4 : index
    %c0_280 = arith.constant 0 : index
    %275 = vector.load %arg10[%c0_277, %c2_278, %c4_279, %c0_280] : memref<2x6x6x32xf32, #tpu.memory_space<vmem>>, vector<1x1x1x32xf32>
    %276 = vector.shape_cast %275 : vector<1x1x1x32xf32> to vector<1x32xf32>
    %277 = vector.shape_cast %274 : vector<1x32xf32> to vector<1x1x1x32xf32>
    tpu.vector_store %arg10[%c0_277, %c2_278, %c4_279, %c0_280], %277 {strides = array<i32>} : memref<2x6x6x32xf32, #tpu.memory_space<vmem>>, vector<1x1x1x32xf32>,
    %c0_281 = arith.constant 0 : index
    %c4_282 = arith.constant 4 : index
    %c0_283 = arith.constant 0 : index
    %c0_284 = arith.constant 0 : index
    %278 = vector.load %arg0[%c0_281, %c4_282, %c0_283, %c0_284] : memref<2x10x10x8xf32, #tpu.memory_space<vmem>>, vector<1x1x8x8xf32>
    %279 = vector.shape_cast %278 : vector<1x1x8x8xf32> to vector<8x8xf32>
    %cst_285 = arith.constant dense<0.000000e+00> : vector<8x32xf32>
    %280 = tpu.matmul %279, %1, %cst_285 {dimension_numbers = #tpu.dot_dimension_numbers<[1], [0], [0], [1], [0, 0, 1, 1], [], []>} : vector<8x8xf32>, vector<8x32xf32>, vector<8x32xf32> -> vector<8x32xf32>
    %c0_286 = arith.constant 0 : index
    %c4_287 = arith.constant 4 : index
    %c1_288 = arith.constant 1 : index
    %c0_289 = arith.constant 0 : index
    %281 = vector.load %arg0[%c0_286, %c4_287, %c1_288, %c0_289] : memref<2x10x10x8xf32, #tpu.memory_space<vmem>>, vector<1x1x8x8xf32>
    %282 = vector.shape_cast %281 : vector<1x1x8x8xf32> to vector<8x8xf32>
    %cst_290 = arith.constant dense<0.000000e+00> : vector<8x32xf32>
    %283 = tpu.matmul %282, %3, %cst_290 {dimension_numbers = #tpu.dot_dimension_numbers<[1], [0], [0], [1], [0, 0, 1, 1], [], []>} : vector<8x8xf32>, vector<8x32xf32>, vector<8x32xf32> -> vector<8x32xf32>
    %284 = arith.addf %280, %283 : vector<8x32xf32>
    %c0_291 = arith.constant 0 : index
    %c4_292 = arith.constant 4 : index
    %c2_293 = arith.constant 2 : index
    %c0_294 = arith.constant 0 : index
    %285 = vector.load %arg0[%c0_291, %c4_292, %c2_293, %c0_294] : memref<2x10x10x8xf32, #tpu.memory_space<vmem>>, vector<1x1x8x8xf32>
    %286 = vector.shape_cast %285 : vector<1x1x8x8xf32> to vector<8x8xf32>
    %cst_295 = arith.constant dense<0.000000e+00> : vector<8x32xf32>
    %287 = tpu.matmul %286, %5, %cst_295 {dimension_numbers = #tpu.dot_dimension_numbers<[1], [0], [0], [1], [0, 0, 1, 1], [], []>} : vector<8x8xf32>, vector<8x32xf32>, vector<8x32xf32> -> vector<8x32xf32>
    %288 = arith.addf %284, %287 : vector<8x32xf32>
    %c0_296 = arith.constant 0 : index
    %c5_297 = arith.constant 5 : index
    %c0_298 = arith.constant 0 : index
    %c0_299 = arith.constant 0 : index
    %289 = vector.load %arg0[%c0_296, %c5_297, %c0_298, %c0_299] : memref<2x10x10x8xf32, #tpu.memory_space<vmem>>, vector<1x1x8x8xf32>
    %290 = vector.shape_cast %289 : vector<1x1x8x8xf32> to vector<8x8xf32>
    %cst_300 = arith.constant dense<0.000000e+00> : vector<8x32xf32>
    %291 = tpu.matmul %290, %7, %cst_300 {dimension_numbers = #tpu.dot_dimension_numbers<[1], [0], [0], [1], [0, 0, 1, 1], [], []>} : vector<8x8xf32>, vector<8x32xf32>, vector<8x32xf32> -> vector<8x32xf32>
    %292 = arith.addf %288, %291 : vector<8x32xf32>
    %c0_301 = arith.constant 0 : index
    %c5_302 = arith.constant 5 : index
    %c1_303 = arith.constant 1 : index
    %c0_304 = arith.constant 0 : index
    %293 = vector.load %arg0[%c0_301, %c5_302, %c1_303, %c0_304] : memref<2x10x10x8xf32, #tpu.memory_space<vmem>>, vector<1x1x8x8xf32>
    %294 = vector.shape_cast %293 : vector<1x1x8x8xf32> to vector<8x8xf32>
    %cst_305 = arith.constant dense<0.000000e+00> : vector<8x32xf32>
    %295 = tpu.matmul %294, %9, %cst_305 {dimension_numbers = #tpu.dot_dimension_numbers<[1], [0], [0], [1], [0, 0, 1, 1], [], []>} : vector<8x8xf32>, vector<8x32xf32>, vector<8x32xf32> -> vector<8x32xf32>
    %296 = arith.addf %292, %295 : vector<8x32xf32>
    %c0_306 = arith.constant 0 : index
    %c5_307 = arith.constant 5 : index
    %c2_308 = arith.constant 2 : index
    %c0_309 = arith.constant 0 : index
    %297 = vector.load %arg0[%c0_306, %c5_307, %c2_308, %c0_309] : memref<2x10x10x8xf32, #tpu.memory_space<vmem>>, vector<1x1x8x8xf32>
    %298 = vector.shape_cast %297 : vector<1x1x8x8xf32> to vector<8x8xf32>
    %cst_310 = arith.constant dense<0.000000e+00> : vector<8x32xf32>
    %299 = tpu.matmul %298, %11, %cst_310 {dimension_numbers = #tpu.dot_dimension_numbers<[1], [0], [0], [1], [0, 0, 1, 1], [], []>} : vector<8x8xf32>, vector<8x32xf32>, vector<8x32xf32> -> vector<8x32xf32>
    %300 = arith.addf %296, %299 : vector<8x32xf32>
    %c0_311 = arith.constant 0 : index
    %c6_312 = arith.constant 6 : index
    %c0_313 = arith.constant 0 : index
    %c0_314 = arith.constant 0 : index
    %301 = vector.load %arg0[%c0_311, %c6_312, %c0_313, %c0_314] : memref<2x10x10x8xf32, #tpu.memory_space<vmem>>, vector<1x1x8x8xf32>
    %302 = vector.shape_cast %301 : vector<1x1x8x8xf32> to vector<8x8xf32>
    %cst_315 = arith.constant dense<0.000000e+00> : vector<8x32xf32>
    %303 = tpu.matmul %302, %13, %cst_315 {dimension_numbers = #tpu.dot_dimension_numbers<[1], [0], [0], [1], [0, 0, 1, 1], [], []>} : vector<8x8xf32>, vector<8x32xf32>, vector<8x32xf32> -> vector<8x32xf32>
    %304 = arith.addf %300, %303 : vector<8x32xf32>
    %c0_316 = arith.constant 0 : index
    %c6_317 = arith.constant 6 : index
    %c1_318 = arith.constant 1 : index
    %c0_319 = arith.constant 0 : index
    %305 = vector.load %arg0[%c0_316, %c6_317, %c1_318, %c0_319] : memref<2x10x10x8xf32, #tpu.memory_space<vmem>>, vector<1x1x8x8xf32>
    %306 = vector.shape_cast %305 : vector<1x1x8x8xf32> to vector<8x8xf32>
    %cst_320 = arith.constant dense<0.000000e+00> : vector<8x32xf32>
    %307 = tpu.matmul %306, %15, %cst_320 {dimension_numbers = #tpu.dot_dimension_numbers<[1], [0], [0], [1], [0, 0, 1, 1], [], []>} : vector<8x8xf32>, vector<8x32xf32>, vector<8x32xf32> -> vector<8x32xf32>
    %308 = arith.addf %304, %307 : vector<8x32xf32>
    %c0_321 = arith.constant 0 : index
    %c6_322 = arith.constant 6 : index
    %c2_323 = arith.constant 2 : index
    %c0_324 = arith.constant 0 : index
    %309 = vector.load %arg0[%c0_321, %c6_322, %c2_323, %c0_324] : memref<2x10x10x8xf32, #tpu.memory_space<vmem>>, vector<1x1x8x8xf32>
    %310 = vector.shape_cast %309 : vector<1x1x8x8xf32> to vector<8x8xf32>
    %cst_325 = arith.constant dense<0.000000e+00> : vector<8x32xf32>
    %311 = tpu.matmul %310, %17, %cst_325 {dimension_numbers = #tpu.dot_dimension_numbers<[1], [0], [0], [1], [0, 0, 1, 1], [], []>} : vector<8x8xf32>, vector<8x32xf32>, vector<8x32xf32> -> vector<8x32xf32>
    %312 = arith.addf %308, %311 : vector<8x32xf32>
    %c0_326 = arith.constant 0 : index
    %c5_327 = arith.constant 5 : index
    %c0_328 = arith.constant 0 : index
    %c0_329 = arith.constant 0 : index
    %313 = vector.load %arg0[%c0_326, %c5_327, %c0_328, %c0_329] : memref<2x10x10x8xf32, #tpu.memory_space<vmem>>, vector<1x1x8x8xf32>
    %314 = vector.shape_cast %313 : vector<1x1x8x8xf32> to vector<8x8xf32>
    %cst_330 = arith.constant dense<0.000000e+00> : vector<8x32xf32>
    %315 = tpu.matmul %314, %1, %cst_330 {dimension_numbers = #tpu.dot_dimension_numbers<[1], [0], [0], [1], [0, 0, 1, 1], [], []>} : vector<8x8xf32>, vector<8x32xf32>, vector<8x32xf32> -> vector<8x32xf32>
    %c0_331 = arith.constant 0 : index
    %c5_332 = arith.constant 5 : index
    %c1_333 = arith.constant 1 : index
    %c0_334 = arith.constant 0 : index
    %316 = vector.load %arg0[%c0_331, %c5_332, %c1_333, %c0_334] : memref<2x10x10x8xf32, #tpu.memory_space<vmem>>, vector<1x1x8x8xf32>
    %317 = vector.shape_cast %316 : vector<1x1x8x8xf32> to vector<8x8xf32>
    %cst_335 = arith.constant dense<0.000000e+00> : vector<8x32xf32>
    %318 = tpu.matmul %317, %3, %cst_335 {dimension_numbers = #tpu.dot_dimension_numbers<[1], [0], [0], [1], [0, 0, 1, 1], [], []>} : vector<8x8xf32>, vector<8x32xf32>, vector<8x32xf32> -> vector<8x32xf32>
    %319 = arith.addf %315, %318 : vector<8x32xf32>
    %c0_336 = arith.constant 0 : index
    %c5_337 = arith.constant 5 : index
    %c2_338 = arith.constant 2 : index
    %c0_339 = arith.constant 0 : index
    %320 = vector.load %arg0[%c0_336, %c5_337, %c2_338, %c0_339] : memref<2x10x10x8xf32, #tpu.memory_space<vmem>>, vector<1x1x8x8xf32>
    %321 = vector.shape_cast %320 : vector<1x1x8x8xf32> to vector<8x8xf32>
    %cst_340 = arith.constant dense<0.000000e+00> : vector<8x32xf32>
    %322 = tpu.matmul %321, %5, %cst_340 {dimension_numbers = #tpu.dot_dimension_numbers<[1], [0], [0], [1], [0, 0, 1, 1], [], []>} : vector<8x8xf32>, vector<8x32xf32>, vector<8x32xf32> -> vector<8x32xf32>
    %323 = arith.addf %319, %322 : vector<8x32xf32>
    %c0_341 = arith.constant 0 : index
    %c6_342 = arith.constant 6 : index
    %c0_343 = arith.constant 0 : index
    %c0_344 = arith.constant 0 : index
    %324 = vector.load %arg0[%c0_341, %c6_342, %c0_343, %c0_344] : memref<2x10x10x8xf32, #tpu.memory_space<vmem>>, vector<1x1x8x8xf32>
    %325 = vector.shape_cast %324 : vector<1x1x8x8xf32> to vector<8x8xf32>
    %cst_345 = arith.constant dense<0.000000e+00> : vector<8x32xf32>
    %326 = tpu.matmul %325, %7, %cst_345 {dimension_numbers = #tpu.dot_dimension_numbers<[1], [0], [0], [1], [0, 0, 1, 1], [], []>} : vector<8x8xf32>, vector<8x32xf32>, vector<8x32xf32> -> vector<8x32xf32>
    %327 = arith.addf %323, %326 : vector<8x32xf32>
    %c0_346 = arith.constant 0 : index
    %c6_347 = arith.constant 6 : index
    %c1_348 = arith.constant 1 : index
    %c0_349 = arith.constant 0 : index
    %328 = vector.load %arg0[%c0_346, %c6_347, %c1_348, %c0_349] : memref<2x10x10x8xf32, #tpu.memory_space<vmem>>, vector<1x1x8x8xf32>
    %329 = vector.shape_cast %328 : vector<1x1x8x8xf32> to vector<8x8xf32>
    %cst_350 = arith.constant dense<0.000000e+00> : vector<8x32xf32>
    %330 = tpu.matmul %329, %9, %cst_350 {dimension_numbers = #tpu.dot_dimension_numbers<[1], [0], [0], [1], [0, 0, 1, 1], [], []>} : vector<8x8xf32>, vector<8x32xf32>, vector<8x32xf32> -> vector<8x32xf32>
    %331 = arith.addf %327, %330 : vector<8x32xf32>
    %c0_351 = arith.constant 0 : index
    %c6_352 = arith.constant 6 : index
    %c2_353 = arith.constant 2 : index
    %c0_354 = arith.constant 0 : index
    %332 = vector.load %arg0[%c0_351, %c6_352, %c2_353, %c0_354] : memref<2x10x10x8xf32, #tpu.memory_space<vmem>>, vector<1x1x8x8xf32>
    %333 = vector.shape_cast %332 : vector<1x1x8x8xf32> to vector<8x8xf32>
    %cst_355 = arith.constant dense<0.000000e+00> : vector<8x32xf32>
    %334 = tpu.matmul %333, %11, %cst_355 {dimension_numbers = #tpu.dot_dimension_numbers<[1], [0], [0], [1], [0, 0, 1, 1], [], []>} : vector<8x8xf32>, vector<8x32xf32>, vector<8x32xf32> -> vector<8x32xf32>
    %335 = arith.addf %331, %334 : vector<8x32xf32>
    %c0_356 = arith.constant 0 : index
    %c7_357 = arith.constant 7 : index
    %c0_358 = arith.constant 0 : index
    %c0_359 = arith.constant 0 : index
    %336 = vector.load %arg0[%c0_356, %c7_357, %c0_358, %c0_359] : memref<2x10x10x8xf32, #tpu.memory_space<vmem>>, vector<1x1x8x8xf32>
    %337 = vector.shape_cast %336 : vector<1x1x8x8xf32> to vector<8x8xf32>
    %cst_360 = arith.constant dense<0.000000e+00> : vector<8x32xf32>
    %338 = tpu.matmul %337, %13, %cst_360 {dimension_numbers = #tpu.dot_dimension_numbers<[1], [0], [0], [1], [0, 0, 1, 1], [], []>} : vector<8x8xf32>, vector<8x32xf32>, vector<8x32xf32> -> vector<8x32xf32>
    %339 = arith.addf %335, %338 : vector<8x32xf32>
    %c0_361 = arith.constant 0 : index
    %c7_362 = arith.constant 7 : index
    %c1_363 = arith.constant 1 : index
    %c0_364 = arith.constant 0 : index
    %340 = vector.load %arg0[%c0_361, %c7_362, %c1_363, %c0_364] : memref<2x10x10x8xf32, #tpu.memory_space<vmem>>, vector<1x1x8x8xf32>
    %341 = vector.shape_cast %340 : vector<1x1x8x8xf32> to vector<8x8xf32>
    %cst_365 = arith.constant dense<0.000000e+00> : vector<8x32xf32>
    %342 = tpu.matmul %341, %15, %cst_365 {dimension_numbers = #tpu.dot_dimension_numbers<[1], [0], [0], [1], [0, 0, 1, 1], [], []>} : vector<8x8xf32>, vector<8x32xf32>, vector<8x32xf32> -> vector<8x32xf32>
    %343 = arith.addf %339, %342 : vector<8x32xf32>
    %c0_366 = arith.constant 0 : index
    %c7_367 = arith.constant 7 : index
    %c2_368 = arith.constant 2 : index
    %c0_369 = arith.constant 0 : index
    %344 = vector.load %arg0[%c0_366, %c7_367, %c2_368, %c0_369] : memref<2x10x10x8xf32, #tpu.memory_space<vmem>>, vector<1x1x8x8xf32>
    %345 = vector.shape_cast %344 : vector<1x1x8x8xf32> to vector<8x8xf32>
    %cst_370 = arith.constant dense<0.000000e+00> : vector<8x32xf32>
    %346 = tpu.matmul %345, %17, %cst_370 {dimension_numbers = #tpu.dot_dimension_numbers<[1], [0], [0], [1], [0, 0, 1, 1], [], []>} : vector<8x8xf32>, vector<8x32xf32>, vector<8x32xf32> -> vector<8x32xf32>
    %347 = arith.addf %343, %346 : vector<8x32xf32>
    %348 = arith.maximumf %312, %347 : vector<8x32xf32>
    %349 = vector.extract_strided_slice %348 {offsets = [0, 0], sizes = [1, 32], strides = [1, 1]} : vector<8x32xf32> to vector<1x32xf32>
    %350 = vector.extract_strided_slice %348 {offsets = [1, 0], sizes = [1, 32], strides = [1, 1]} : vector<8x32xf32> to vector<1x32xf32>
    %351 = arith.maximumf %349, %350 : vector<1x32xf32>
    %352 = arith.addf %351, %36 : vector<1x32xf32>
    %cst_371 = arith.constant 0.000000e+00 : f32
    %353 = vector.broadcast %cst_371 : f32 to vector<1x32xf32>
    %354 = arith.cmpf oge, %352, %353 : vector<1x32xf32>
    %cst_372 = arith.constant 0.00999999977 : f32
    %355 = vector.broadcast %cst_372 : f32 to vector<1x32xf32>
    %356 = arith.mulf %355, %352 : vector<1x32xf32>
    %357 = arith.select %354, %352, %356 : vector<1x32xi1>, vector<1x32xf32>
    %c0_373 = arith.constant 0 : index
    %c3_374 = arith.constant 3 : index
    %c1_375 = arith.constant 1 : index
    %c0_376 = arith.constant 0 : index
    %358 = vector.load %arg10[%c0_373, %c3_374, %c1_375, %c0_376] : memref<2x6x6x32xf32, #tpu.memory_space<vmem>>, vector<1x1x1x32xf32>
    %359 = vector.shape_cast %358 : vector<1x1x1x32xf32> to vector<1x32xf32>
    %360 = vector.shape_cast %357 : vector<1x32xf32> to vector<1x1x1x32xf32>
    tpu.vector_store %arg10[%c0_373, %c3_374, %c1_375, %c0_376], %360 {strides = array<i32>} : memref<2x6x6x32xf32, #tpu.memory_space<vmem>>, vector<1x1x1x32xf32>,
    %361 = vector.extract_strided_slice %348 {offsets = [2, 0], sizes = [1, 32], strides = [1, 1]} : vector<8x32xf32> to vector<1x32xf32>
    %362 = vector.extract_strided_slice %348 {offsets = [3, 0], sizes = [1, 32], strides = [1, 1]} : vector<8x32xf32> to vector<1x32xf32>
    %363 = arith.maximumf %361, %362 : vector<1x32xf32>
    %364 = arith.addf %363, %36 : vector<1x32xf32>
    %cst_377 = arith.constant 0.000000e+00 : f32
    %365 = vector.broadcast %cst_377 : f32 to vector<1x32xf32>
    %366 = arith.cmpf oge, %364, %365 : vector<1x32xf32>
    %cst_378 = arith.constant 0.00999999977 : f32
    %367 = vector.broadcast %cst_378 : f32 to vector<1x32xf32>
    %368 = arith.mulf %367, %364 : vector<1x32xf32>
    %369 = arith.select %366, %364, %368 : vector<1x32xi1>, vector<1x32xf32>
    %c0_379 = arith.constant 0 : index
    %c3_380 = arith.constant 3 : index
    %c2_381 = arith.constant 2 : index
    %c0_382 = arith.constant 0 : index
    %370 = vector.load %arg10[%c0_379, %c3_380, %c2_381, %c0_382] : memref<2x6x6x32xf32, #tpu.memory_space<vmem>>, vector<1x1x1x32xf32>
    %371 = vector.shape_cast %370 : vector<1x1x1x32xf32> to vector<1x32xf32>
    %372 = vector.shape_cast %369 : vector<1x32xf32> to vector<1x1x1x32xf32>
    tpu.vector_store %arg10[%c0_379, %c3_380, %c2_381, %c0_382], %372 {strides = array<i32>} : memref<2x6x6x32xf32, #tpu.memory_space<vmem>>, vector<1x1x1x32xf32>,
    %373 = vector.extract_strided_slice %348 {offsets = [4, 0], sizes = [1, 32], strides = [1, 1]} : vector<8x32xf32> to vector<1x32xf32>
    %374 = vector.extract_strided_slice %348 {offsets = [5, 0], sizes = [1, 32], strides = [1, 1]} : vector<8x32xf32> to vector<1x32xf32>
    %375 = arith.maximumf %373, %374 : vector<1x32xf32>
    %376 = arith.addf %375, %36 : vector<1x32xf32>
    %cst_383 = arith.constant 0.000000e+00 : f32
    %377 = vector.broadcast %cst_383 : f32 to vector<1x32xf32>
    %378 = arith.cmpf oge, %376, %377 : vector<1x32xf32>
    %cst_384 = arith.constant 0.00999999977 : f32
    %379 = vector.broadcast %cst_384 : f32 to vector<1x32xf32>
    %380 = arith.mulf %379, %376 : vector<1x32xf32>
    %381 = arith.select %378, %376, %380 : vector<1x32xi1>, vector<1x32xf32>
    %c0_385 = arith.constant 0 : index
    %c3_386 = arith.constant 3 : index
    %c3_387 = arith.constant 3 : index
    %c0_388 = arith.constant 0 : index
    %382 = vector.load %arg10[%c0_385, %c3_386, %c3_387, %c0_388] : memref<2x6x6x32xf32, #tpu.memory_space<vmem>>, vector<1x1x1x32xf32>
    %383 = vector.shape_cast %382 : vector<1x1x1x32xf32> to vector<1x32xf32>
    %384 = vector.shape_cast %381 : vector<1x32xf32> to vector<1x1x1x32xf32>
    tpu.vector_store %arg10[%c0_385, %c3_386, %c3_387, %c0_388], %384 {strides = array<i32>} : memref<2x6x6x32xf32, #tpu.memory_space<vmem>>, vector<1x1x1x32xf32>,
    %385 = vector.extract_strided_slice %348 {offsets = [6, 0], sizes = [1, 32], strides = [1, 1]} : vector<8x32xf32> to vector<1x32xf32>
    %386 = vector.extract_strided_slice %348 {offsets = [7, 0], sizes = [1, 32], strides = [1, 1]} : vector<8x32xf32> to vector<1x32xf32>
    %387 = arith.maximumf %385, %386 : vector<1x32xf32>
    %388 = arith.addf %387, %36 : vector<1x32xf32>
    %cst_389 = arith.constant 0.000000e+00 : f32
    %389 = vector.broadcast %cst_389 : f32 to vector<1x32xf32>
    %390 = arith.cmpf oge, %388, %389 : vector<1x32xf32>
    %cst_390 = arith.constant 0.00999999977 : f32
    %391 = vector.broadcast %cst_390 : f32 to vector<1x32xf32>
    %392 = arith.mulf %391, %388 : vector<1x32xf32>
    %393 = arith.select %390, %388, %392 : vector<1x32xi1>, vector<1x32xf32>
    %c0_391 = arith.constant 0 : index
    %c3_392 = arith.constant 3 : index
    %c4_393 = arith.constant 4 : index
    %c0_394 = arith.constant 0 : index
    %394 = vector.load %arg10[%c0_391, %c3_392, %c4_393, %c0_394] : memref<2x6x6x32xf32, #tpu.memory_space<vmem>>, vector<1x1x1x32xf32>
    %395 = vector.shape_cast %394 : vector<1x1x1x32xf32> to vector<1x32xf32>
    %396 = vector.shape_cast %393 : vector<1x32xf32> to vector<1x1x1x32xf32>
    tpu.vector_store %arg10[%c0_391, %c3_392, %c4_393, %c0_394], %396 {strides = array<i32>} : memref<2x6x6x32xf32, #tpu.memory_space<vmem>>, vector<1x1x1x32xf32>,
    %c0_395 = arith.constant 0 : index
    %c6_396 = arith.constant 6 : index
    %c0_397 = arith.constant 0 : index
    %c0_398 = arith.constant 0 : index
    %397 = vector.load %arg0[%c0_395, %c6_396, %c0_397, %c0_398] : memref<2x10x10x8xf32, #tpu.memory_space<vmem>>, vector<1x1x8x8xf32>
    %398 = vector.shape_cast %397 : vector<1x1x8x8xf32> to vector<8x8xf32>
    %cst_399 = arith.constant dense<0.000000e+00> : vector<8x32xf32>
    %399 = tpu.matmul %398, %1, %cst_399 {dimension_numbers = #tpu.dot_dimension_numbers<[1], [0], [0], [1], [0, 0, 1, 1], [], []>} : vector<8x8xf32>, vector<8x32xf32>, vector<8x32xf32> -> vector<8x32xf32>
    %c0_400 = arith.constant 0 : index
    %c6_401 = arith.constant 6 : index
    %c1_402 = arith.constant 1 : index
    %c0_403 = arith.constant 0 : index
    %400 = vector.load %arg0[%c0_400, %c6_401, %c1_402, %c0_403] : memref<2x10x10x8xf32, #tpu.memory_space<vmem>>, vector<1x1x8x8xf32>
    %401 = vector.shape_cast %400 : vector<1x1x8x8xf32> to vector<8x8xf32>
    %cst_404 = arith.constant dense<0.000000e+00> : vector<8x32xf32>
    %402 = tpu.matmul %401, %3, %cst_404 {dimension_numbers = #tpu.dot_dimension_numbers<[1], [0], [0], [1], [0, 0, 1, 1], [], []>} : vector<8x8xf32>, vector<8x32xf32>, vector<8x32xf32> -> vector<8x32xf32>
    %403 = arith.addf %399, %402 : vector<8x32xf32>
    %c0_405 = arith.constant 0 : index
    %c6_406 = arith.constant 6 : index
    %c2_407 = arith.constant 2 : index
    %c0_408 = arith.constant 0 : index
    %404 = vector.load %arg0[%c0_405, %c6_406, %c2_407, %c0_408] : memref<2x10x10x8xf32, #tpu.memory_space<vmem>>, vector<1x1x8x8xf32>
    %405 = vector.shape_cast %404 : vector<1x1x8x8xf32> to vector<8x8xf32>
    %cst_409 = arith.constant dense<0.000000e+00> : vector<8x32xf32>
    %406 = tpu.matmul %405, %5, %cst_409 {dimension_numbers = #tpu.dot_dimension_numbers<[1], [0], [0], [1], [0, 0, 1, 1], [], []>} : vector<8x8xf32>, vector<8x32xf32>, vector<8x32xf32> -> vector<8x32xf32>
    %407 = arith.addf %403, %406 : vector<8x32xf32>
    %c0_410 = arith.constant 0 : index
    %c7_411 = arith.constant 7 : index
    %c0_412 = arith.constant 0 : index
    %c0_413 = arith.constant 0 : index
    %408 = vector.load %arg0[%c0_410, %c7_411, %c0_412, %c0_413] : memref<2x10x10x8xf32, #tpu.memory_space<vmem>>, vector<1x1x8x8xf32>
    %409 = vector.shape_cast %408 : vector<1x1x8x8xf32> to vector<8x8xf32>
    %cst_414 = arith.constant dense<0.000000e+00> : vector<8x32xf32>
    %410 = tpu.matmul %409, %7, %cst_414 {dimension_numbers = #tpu.dot_dimension_numbers<[1], [0], [0], [1], [0, 0, 1, 1], [], []>} : vector<8x8xf32>, vector<8x32xf32>, vector<8x32xf32> -> vector<8x32xf32>
    %411 = arith.addf %407, %410 : vector<8x32xf32>
    %c0_415 = arith.constant 0 : index
    %c7_416 = arith.constant 7 : index
    %c1_417 = arith.constant 1 : index
    %c0_418 = arith.constant 0 : index
    %412 = vector.load %arg0[%c0_415, %c7_416, %c1_417, %c0_418] : memref<2x10x10x8xf32, #tpu.memory_space<vmem>>, vector<1x1x8x8xf32>
    %413 = vector.shape_cast %412 : vector<1x1x8x8xf32> to vector<8x8xf32>
    %cst_419 = arith.constant dense<0.000000e+00> : vector<8x32xf32>
    %414 = tpu.matmul %413, %9, %cst_419 {dimension_numbers = #tpu.dot_dimension_numbers<[1], [0], [0], [1], [0, 0, 1, 1], [], []>} : vector<8x8xf32>, vector<8x32xf32>, vector<8x32xf32> -> vector<8x32xf32>
    %415 = arith.addf %411, %414 : vector<8x32xf32>
    %c0_420 = arith.constant 0 : index
    %c7_421 = arith.constant 7 : index
    %c2_422 = arith.constant 2 : index
    %c0_423 = arith.constant 0 : index
    %416 = vector.load %arg0[%c0_420, %c7_421, %c2_422, %c0_423] : memref<2x10x10x8xf32, #tpu.memory_space<vmem>>, vector<1x1x8x8xf32>
    %417 = vector.shape_cast %416 : vector<1x1x8x8xf32> to vector<8x8xf32>
    %cst_424 = arith.constant dense<0.000000e+00> : vector<8x32xf32>
    %418 = tpu.matmul %417, %11, %cst_424 {dimension_numbers = #tpu.dot_dimension_numbers<[1], [0], [0], [1], [0, 0, 1, 1], [], []>} : vector<8x8xf32>, vector<8x32xf32>, vector<8x32xf32> -> vector<8x32xf32>
    %419 = arith.addf %415, %418 : vector<8x32xf32>
    %c0_425 = arith.constant 0 : index
    %c8_426 = arith.constant 8 : index
    %c0_427 = arith.constant 0 : index
    %c0_428 = arith.constant 0 : index
    %420 = vector.load %arg0[%c0_425, %c8_426, %c0_427, %c0_428] : memref<2x10x10x8xf32, #tpu.memory_space<vmem>>, vector<1x1x8x8xf32>
    %421 = vector.shape_cast %420 : vector<1x1x8x8xf32> to vector<8x8xf32>
    %cst_429 = arith.constant dense<0.000000e+00> : vector<8x32xf32>
    %422 = tpu.matmul %421, %13, %cst_429 {dimension_numbers = #tpu.dot_dimension_numbers<[1], [0], [0], [1], [0, 0, 1, 1], [], []>} : vector<8x8xf32>, vector<8x32xf32>, vector<8x32xf32> -> vector<8x32xf32>
    %423 = arith.addf %419, %422 : vector<8x32xf32>
    %c0_430 = arith.constant 0 : index
    %c8_431 = arith.constant 8 : index
    %c1_432 = arith.constant 1 : index
    %c0_433 = arith.constant 0 : index
    %424 = vector.load %arg0[%c0_430, %c8_431, %c1_432, %c0_433] : memref<2x10x10x8xf32, #tpu.memory_space<vmem>>, vector<1x1x8x8xf32>
    %425 = vector.shape_cast %424 : vector<1x1x8x8xf32> to vector<8x8xf32>
    %cst_434 = arith.constant dense<0.000000e+00> : vector<8x32xf32>
    %426 = tpu.matmul %425, %15, %cst_434 {dimension_numbers = #tpu.dot_dimension_numbers<[1], [0], [0], [1], [0, 0, 1, 1], [], []>} : vector<8x8xf32>, vector<8x32xf32>, vector<8x32xf32> -> vector<8x32xf32>
    %427 = arith.addf %423, %426 : vector<8x32xf32>
    %c0_435 = arith.constant 0 : index
    %c8_436 = arith.constant 8 : index
    %c2_437 = arith.constant 2 : index
    %c0_438 = arith.constant 0 : index
    %428 = vector.load %arg0[%c0_435, %c8_436, %c2_437, %c0_438] : memref<2x10x10x8xf32, #tpu.memory_space<vmem>>, vector<1x1x8x8xf32>
    %429 = vector.shape_cast %428 : vector<1x1x8x8xf32> to vector<8x8xf32>
    %cst_439 = arith.constant dense<0.000000e+00> : vector<8x32xf32>
    %430 = tpu.matmul %429, %17, %cst_439 {dimension_numbers = #tpu.dot_dimension_numbers<[1], [0], [0], [1], [0, 0, 1, 1], [], []>} : vector<8x8xf32>, vector<8x32xf32>, vector<8x32xf32> -> vector<8x32xf32>
    %431 = arith.addf %427, %430 : vector<8x32xf32>
    %c0_440 = arith.constant 0 : index
    %c7_441 = arith.constant 7 : index
    %c0_442 = arith.constant 0 : index
    %c0_443 = arith.constant 0 : index
    %432 = vector.load %arg0[%c0_440, %c7_441, %c0_442, %c0_443] : memref<2x10x10x8xf32, #tpu.memory_space<vmem>>, vector<1x1x8x8xf32>
    %433 = vector.shape_cast %432 : vector<1x1x8x8xf32> to vector<8x8xf32>
    %cst_444 = arith.constant dense<0.000000e+00> : vector<8x32xf32>
    %434 = tpu.matmul %433, %1, %cst_444 {dimension_numbers = #tpu.dot_dimension_numbers<[1], [0], [0], [1], [0, 0, 1, 1], [], []>} : vector<8x8xf32>, vector<8x32xf32>, vector<8x32xf32> -> vector<8x32xf32>
    %c0_445 = arith.constant 0 : index
    %c7_446 = arith.constant 7 : index
    %c1_447 = arith.constant 1 : index
    %c0_448 = arith.constant 0 : index
    %435 = vector.load %arg0[%c0_445, %c7_446, %c1_447, %c0_448] : memref<2x10x10x8xf32, #tpu.memory_space<vmem>>, vector<1x1x8x8xf32>
    %436 = vector.shape_cast %435 : vector<1x1x8x8xf32> to vector<8x8xf32>
    %cst_449 = arith.constant dense<0.000000e+00> : vector<8x32xf32>
    %437 = tpu.matmul %436, %3, %cst_449 {dimension_numbers = #tpu.dot_dimension_numbers<[1], [0], [0], [1], [0, 0, 1, 1], [], []>} : vector<8x8xf32>, vector<8x32xf32>, vector<8x32xf32> -> vector<8x32xf32>
    %438 = arith.addf %434, %437 : vector<8x32xf32>
    %c0_450 = arith.constant 0 : index
    %c7_451 = arith.constant 7 : index
    %c2_452 = arith.constant 2 : index
    %c0_453 = arith.constant 0 : index
    %439 = vector.load %arg0[%c0_450, %c7_451, %c2_452, %c0_453] : memref<2x10x10x8xf32, #tpu.memory_space<vmem>>, vector<1x1x8x8xf32>
    %440 = vector.shape_cast %439 : vector<1x1x8x8xf32> to vector<8x8xf32>
    %cst_454 = arith.constant dense<0.000000e+00> : vector<8x32xf32>
    %441 = tpu.matmul %440, %5, %cst_454 {dimension_numbers = #tpu.dot_dimension_numbers<[1], [0], [0], [1], [0, 0, 1, 1], [], []>} : vector<8x8xf32>, vector<8x32xf32>, vector<8x32xf32> -> vector<8x32xf32>
    %442 = arith.addf %438, %441 : vector<8x32xf32>
    %c0_455 = arith.constant 0 : index
    %c8_456 = arith.constant 8 : index
    %c0_457 = arith.constant 0 : index
    %c0_458 = arith.constant 0 : index
    %443 = vector.load %arg0[%c0_455, %c8_456, %c0_457, %c0_458] : memref<2x10x10x8xf32, #tpu.memory_space<vmem>>, vector<1x1x8x8xf32>
    %444 = vector.shape_cast %443 : vector<1x1x8x8xf32> to vector<8x8xf32>
    %cst_459 = arith.constant dense<0.000000e+00> : vector<8x32xf32>
    %445 = tpu.matmul %444, %7, %cst_459 {dimension_numbers = #tpu.dot_dimension_numbers<[1], [0], [0], [1], [0, 0, 1, 1], [], []>} : vector<8x8xf32>, vector<8x32xf32>, vector<8x32xf32> -> vector<8x32xf32>
    %446 = arith.addf %442, %445 : vector<8x32xf32>
    %c0_460 = arith.constant 0 : index
    %c8_461 = arith.constant 8 : index
    %c1_462 = arith.constant 1 : index
    %c0_463 = arith.constant 0 : index
    %447 = vector.load %arg0[%c0_460, %c8_461, %c1_462, %c0_463] : memref<2x10x10x8xf32, #tpu.memory_space<vmem>>, vector<1x1x8x8xf32>
    %448 = vector.shape_cast %447 : vector<1x1x8x8xf32> to vector<8x8xf32>
    %cst_464 = arith.constant dense<0.000000e+00> : vector<8x32xf32>
    %449 = tpu.matmul %448, %9, %cst_464 {dimension_numbers = #tpu.dot_dimension_numbers<[1], [0], [0], [1], [0, 0, 1, 1], [], []>} : vector<8x8xf32>, vector<8x32xf32>, vector<8x32xf32> -> vector<8x32xf32>
    %450 = arith.addf %446, %449 : vector<8x32xf32>
    %c0_465 = arith.constant 0 : index
    %c8_466 = arith.constant 8 : index
    %c2_467 = arith.constant 2 : index
    %c0_468 = arith.constant 0 : index
    %451 = vector.load %arg0[%c0_465, %c8_466, %c2_467, %c0_468] : memref<2x10x10x8xf32, #tpu.memory_space<vmem>>, vector<1x1x8x8xf32>
    %452 = vector.shape_cast %451 : vector<1x1x8x8xf32> to vector<8x8xf32>
    %cst_469 = arith.constant dense<0.000000e+00> : vector<8x32xf32>
    %453 = tpu.matmul %452, %11, %cst_469 {dimension_numbers = #tpu.dot_dimension_numbers<[1], [0], [0], [1], [0, 0, 1, 1], [], []>} : vector<8x8xf32>, vector<8x32xf32>, vector<8x32xf32> -> vector<8x32xf32>
    %454 = arith.addf %450, %453 : vector<8x32xf32>
    %c0_470 = arith.constant 0 : index
    %c9 = arith.constant 9 : index
    %c0_471 = arith.constant 0 : index
    %c0_472 = arith.constant 0 : index
    %455 = vector.load %arg0[%c0_470, %c9, %c0_471, %c0_472] : memref<2x10x10x8xf32, #tpu.memory_space<vmem>>, vector<1x1x8x8xf32>
    %456 = vector.shape_cast %455 : vector<1x1x8x8xf32> to vector<8x8xf32>
    %cst_473 = arith.constant dense<0.000000e+00> : vector<8x32xf32>
    %457 = tpu.matmul %456, %13, %cst_473 {dimension_numbers = #tpu.dot_dimension_numbers<[1], [0], [0], [1], [0, 0, 1, 1], [], []>} : vector<8x8xf32>, vector<8x32xf32>, vector<8x32xf32> -> vector<8x32xf32>
    %458 = arith.addf %454, %457 : vector<8x32xf32>
    %c0_474 = arith.constant 0 : index
    %c9_475 = arith.constant 9 : index
    %c1_476 = arith.constant 1 : index
    %c0_477 = arith.constant 0 : index
    %459 = vector.load %arg0[%c0_474, %c9_475, %c1_476, %c0_477] : memref<2x10x10x8xf32, #tpu.memory_space<vmem>>, vector<1x1x8x8xf32>
    %460 = vector.shape_cast %459 : vector<1x1x8x8xf32> to vector<8x8xf32>
    %cst_478 = arith.constant dense<0.000000e+00> : vector<8x32xf32>
    %461 = tpu.matmul %460, %15, %cst_478 {dimension_numbers = #tpu.dot_dimension_numbers<[1], [0], [0], [1], [0, 0, 1, 1], [], []>} : vector<8x8xf32>, vector<8x32xf32>, vector<8x32xf32> -> vector<8x32xf32>
    %462 = arith.addf %458, %461 : vector<8x32xf32>
    %c0_479 = arith.constant 0 : index
    %c9_480 = arith.constant 9 : index
    %c2_481 = arith.constant 2 : index
    %c0_482 = arith.constant 0 : index
    %463 = vector.load %arg0[%c0_479, %c9_480, %c2_481, %c0_482] : memref<2x10x10x8xf32, #tpu.memory_space<vmem>>, vector<1x1x8x8xf32>
    %464 = vector.shape_cast %463 : vector<1x1x8x8xf32> to vector<8x8xf32>
    %cst_483 = arith.constant dense<0.000000e+00> : vector<8x32xf32>
    %465 = tpu.matmul %464, %17, %cst_483 {dimension_numbers = #tpu.dot_dimension_numbers<[1], [0], [0], [1], [0, 0, 1, 1], [], []>} : vector<8x8xf32>, vector<8x32xf32>, vector<8x32xf32> -> vector<8x32xf32>
    %466 = arith.addf %462, %465 : vector<8x32xf32>
    %467 = arith.maximumf %431, %466 : vector<8x32xf32>
    %468 = vector.extract_strided_slice %467 {offsets = [0, 0], sizes = [1, 32], strides = [1, 1]} : vector<8x32xf32> to vector<1x32xf32>
    %469 = vector.extract_strided_slice %467 {offsets = [1, 0], sizes = [1, 32], strides = [1, 1]} : vector<8x32xf32> to vector<1x32xf32>
    %470 = arith.maximumf %468, %469 : vector<1x32xf32>
    %471 = arith.addf %470, %36 : vector<1x32xf32>
    %cst_484 = arith.constant 0.000000e+00 : f32
    %472 = vector.broadcast %cst_484 : f32 to vector<1x32xf32>
    %473 = arith.cmpf oge, %471, %472 : vector<1x32xf32>
    %cst_485 = arith.constant 0.00999999977 : f32
    %474 = vector.broadcast %cst_485 : f32 to vector<1x32xf32>
    %475 = arith.mulf %474, %471 : vector<1x32xf32>
    %476 = arith.select %473, %471, %475 : vector<1x32xi1>, vector<1x32xf32>
    %c0_486 = arith.constant 0 : index
    %c4_487 = arith.constant 4 : index
    %c1_488 = arith.constant 1 : index
    %c0_489 = arith.constant 0 : index
    %477 = vector.load %arg10[%c0_486, %c4_487, %c1_488, %c0_489] : memref<2x6x6x32xf32, #tpu.memory_space<vmem>>, vector<1x1x1x32xf32>
    %478 = vector.shape_cast %477 : vector<1x1x1x32xf32> to vector<1x32xf32>
    %479 = vector.shape_cast %476 : vector<1x32xf32> to vector<1x1x1x32xf32>
    tpu.vector_store %arg10[%c0_486, %c4_487, %c1_488, %c0_489], %479 {strides = array<i32>} : memref<2x6x6x32xf32, #tpu.memory_space<vmem>>, vector<1x1x1x32xf32>,
    %480 = vector.extract_strided_slice %467 {offsets = [2, 0], sizes = [1, 32], strides = [1, 1]} : vector<8x32xf32> to vector<1x32xf32>
    %481 = vector.extract_strided_slice %467 {offsets = [3, 0], sizes = [1, 32], strides = [1, 1]} : vector<8x32xf32> to vector<1x32xf32>
    %482 = arith.maximumf %480, %481 : vector<1x32xf32>
    %483 = arith.addf %482, %36 : vector<1x32xf32>
    %cst_490 = arith.constant 0.000000e+00 : f32
    %484 = vector.broadcast %cst_490 : f32 to vector<1x32xf32>
    %485 = arith.cmpf oge, %483, %484 : vector<1x32xf32>
    %cst_491 = arith.constant 0.00999999977 : f32
    %486 = vector.broadcast %cst_491 : f32 to vector<1x32xf32>
    %487 = arith.mulf %486, %483 : vector<1x32xf32>
    %488 = arith.select %485, %483, %487 : vector<1x32xi1>, vector<1x32xf32>
    %c0_492 = arith.constant 0 : index
    %c4_493 = arith.constant 4 : index
    %c2_494 = arith.constant 2 : index
    %c0_495 = arith.constant 0 : index
    %489 = vector.load %arg10[%c0_492, %c4_493, %c2_494, %c0_495] : memref<2x6x6x32xf32, #tpu.memory_space<vmem>>, vector<1x1x1x32xf32>
    %490 = vector.shape_cast %489 : vector<1x1x1x32xf32> to vector<1x32xf32>
    %491 = vector.shape_cast %488 : vector<1x32xf32> to vector<1x1x1x32xf32>
    tpu.vector_store %arg10[%c0_492, %c4_493, %c2_494, %c0_495], %491 {strides = array<i32>} : memref<2x6x6x32xf32, #tpu.memory_space<vmem>>, vector<1x1x1x32xf32>,
    %492 = vector.extract_strided_slice %467 {offsets = [4, 0], sizes = [1, 32], strides = [1, 1]} : vector<8x32xf32> to vector<1x32xf32>
    %493 = vector.extract_strided_slice %467 {offsets = [5, 0], sizes = [1, 32], strides = [1, 1]} : vector<8x32xf32> to vector<1x32xf32>
    %494 = arith.maximumf %492, %493 : vector<1x32xf32>
    %495 = arith.addf %494, %36 : vector<1x32xf32>
    %cst_496 = arith.constant 0.000000e+00 : f32
    %496 = vector.broadcast %cst_496 : f32 to vector<1x32xf32>
    %497 = arith.cmpf oge, %495, %496 : vector<1x32xf32>
    %cst_497 = arith.constant 0.00999999977 : f32
    %498 = vector.broadcast %cst_497 : f32 to vector<1x32xf32>
    %499 = arith.mulf %498, %495 : vector<1x32xf32>
    %500 = arith.select %497, %495, %499 : vector<1x32xi1>, vector<1x32xf32>
    %c0_498 = arith.constant 0 : index
    %c4_499 = arith.constant 4 : index
    %c3_500 = arith.constant 3 : index
    %c0_501 = arith.constant 0 : index
    %501 = vector.load %arg10[%c0_498, %c4_499, %c3_500, %c0_501] : memref<2x6x6x32xf32, #tpu.memory_space<vmem>>, vector<1x1x1x32xf32>
    %502 = vector.shape_cast %501 : vector<1x1x1x32xf32> to vector<1x32xf32>
    %503 = vector.shape_cast %500 : vector<1x32xf32> to vector<1x1x1x32xf32>
    tpu.vector_store %arg10[%c0_498, %c4_499, %c3_500, %c0_501], %503 {strides = array<i32>} : memref<2x6x6x32xf32, #tpu.memory_space<vmem>>, vector<1x1x1x32xf32>,
    %504 = vector.extract_strided_slice %467 {offsets = [6, 0], sizes = [1, 32], strides = [1, 1]} : vector<8x32xf32> to vector<1x32xf32>
    %505 = vector.extract_strided_slice %467 {offsets = [7, 0], sizes = [1, 32], strides = [1, 1]} : vector<8x32xf32> to vector<1x32xf32>
    %506 = arith.maximumf %504, %505 : vector<1x32xf32>
    %507 = arith.addf %506, %36 : vector<1x32xf32>
    %cst_502 = arith.constant 0.000000e+00 : f32
    %508 = vector.broadcast %cst_502 : f32 to vector<1x32xf32>
    %509 = arith.cmpf oge, %507, %508 : vector<1x32xf32>
    %cst_503 = arith.constant 0.00999999977 : f32
    %510 = vector.broadcast %cst_503 : f32 to vector<1x32xf32>
    %511 = arith.mulf %510, %507 : vector<1x32xf32>
    %512 = arith.select %509, %507, %511 : vector<1x32xi1>, vector<1x32xf32>
    %c0_504 = arith.constant 0 : index
    %c4_505 = arith.constant 4 : index
    %c4_506 = arith.constant 4 : index
    %c0_507 = arith.constant 0 : index
    %513 = vector.load %arg10[%c0_504, %c4_505, %c4_506, %c0_507] : memref<2x6x6x32xf32, #tpu.memory_space<vmem>>, vector<1x1x1x32xf32>
    %514 = vector.shape_cast %513 : vector<1x1x1x32xf32> to vector<1x32xf32>
    %515 = vector.shape_cast %512 : vector<1x32xf32> to vector<1x1x1x32xf32>
    tpu.vector_store %arg10[%c0_504, %c4_505, %c4_506, %c0_507], %515 {strides = array<i32>} : memref<2x6x6x32xf32, #tpu.memory_space<vmem>>, vector<1x1x1x32xf32>,
    %c1_508 = arith.constant 1 : index
    %c0_509 = arith.constant 0 : index
    %c0_510 = arith.constant 0 : index
    %c0_511 = arith.constant 0 : index
    %516 = vector.load %arg0[%c1_508, %c0_509, %c0_510, %c0_511] : memref<2x10x10x8xf32, #tpu.memory_space<vmem>>, vector<1x1x8x8xf32>
    %517 = vector.shape_cast %516 : vector<1x1x8x8xf32> to vector<8x8xf32>
    %cst_512 = arith.constant dense<0.000000e+00> : vector<8x32xf32>
    %518 = tpu.matmul %517, %1, %cst_512 {dimension_numbers = #tpu.dot_dimension_numbers<[1], [0], [0], [1], [0, 0, 1, 1], [], []>} : vector<8x8xf32>, vector<8x32xf32>, vector<8x32xf32> -> vector<8x32xf32>
    %c1_513 = arith.constant 1 : index
    %c0_514 = arith.constant 0 : index
    %c1_515 = arith.constant 1 : index
    %c0_516 = arith.constant 0 : index
    %519 = vector.load %arg0[%c1_513, %c0_514, %c1_515, %c0_516] : memref<2x10x10x8xf32, #tpu.memory_space<vmem>>, vector<1x1x8x8xf32>
    %520 = vector.shape_cast %519 : vector<1x1x8x8xf32> to vector<8x8xf32>
    %cst_517 = arith.constant dense<0.000000e+00> : vector<8x32xf32>
    %521 = tpu.matmul %520, %3, %cst_517 {dimension_numbers = #tpu.dot_dimension_numbers<[1], [0], [0], [1], [0, 0, 1, 1], [], []>} : vector<8x8xf32>, vector<8x32xf32>, vector<8x32xf32> -> vector<8x32xf32>
    %522 = arith.addf %518, %521 : vector<8x32xf32>
    %c1_518 = arith.constant 1 : index
    %c0_519 = arith.constant 0 : index
    %c2_520 = arith.constant 2 : index
    %c0_521 = arith.constant 0 : index
    %523 = vector.load %arg0[%c1_518, %c0_519, %c2_520, %c0_521] : memref<2x10x10x8xf32, #tpu.memory_space<vmem>>, vector<1x1x8x8xf32>
    %524 = vector.shape_cast %523 : vector<1x1x8x8xf32> to vector<8x8xf32>
    %cst_522 = arith.constant dense<0.000000e+00> : vector<8x32xf32>
    %525 = tpu.matmul %524, %5, %cst_522 {dimension_numbers = #tpu.dot_dimension_numbers<[1], [0], [0], [1], [0, 0, 1, 1], [], []>} : vector<8x8xf32>, vector<8x32xf32>, vector<8x32xf32> -> vector<8x32xf32>
    %526 = arith.addf %522, %525 : vector<8x32xf32>
    %c1_523 = arith.constant 1 : index
    %c1_524 = arith.constant 1 : index
    %c0_525 = arith.constant 0 : index
    %c0_526 = arith.constant 0 : index
    %527 = vector.load %arg0[%c1_523, %c1_524, %c0_525, %c0_526] : memref<2x10x10x8xf32, #tpu.memory_space<vmem>>, vector<1x1x8x8xf32>
    %528 = vector.shape_cast %527 : vector<1x1x8x8xf32> to vector<8x8xf32>
    %cst_527 = arith.constant dense<0.000000e+00> : vector<8x32xf32>
    %529 = tpu.matmul %528, %7, %cst_527 {dimension_numbers = #tpu.dot_dimension_numbers<[1], [0], [0], [1], [0, 0, 1, 1], [], []>} : vector<8x8xf32>, vector<8x32xf32>, vector<8x32xf32> -> vector<8x32xf32>
    %530 = arith.addf %526, %529 : vector<8x32xf32>
    %c1_528 = arith.constant 1 : index
    %c1_529 = arith.constant 1 : index
    %c1_530 = arith.constant 1 : index
    %c0_531 = arith.constant 0 : index
    %531 = vector.load %arg0[%c1_528, %c1_529, %c1_530, %c0_531] : memref<2x10x10x8xf32, #tpu.memory_space<vmem>>, vector<1x1x8x8xf32>
    %532 = vector.shape_cast %531 : vector<1x1x8x8xf32> to vector<8x8xf32>
    %cst_532 = arith.constant dense<0.000000e+00> : vector<8x32xf32>
    %533 = tpu.matmul %532, %9, %cst_532 {dimension_numbers = #tpu.dot_dimension_numbers<[1], [0], [0], [1], [0, 0, 1, 1], [], []>} : vector<8x8xf32>, vector<8x32xf32>, vector<8x32xf32> -> vector<8x32xf32>
    %534 = arith.addf %530, %533 : vector<8x32xf32>
    %c1_533 = arith.constant 1 : index
    %c1_534 = arith.constant 1 : index
    %c2_535 = arith.constant 2 : index
    %c0_536 = arith.constant 0 : index
    %535 = vector.load %arg0[%c1_533, %c1_534, %c2_535, %c0_536] : memref<2x10x10x8xf32, #tpu.memory_space<vmem>>, vector<1x1x8x8xf32>
    %536 = vector.shape_cast %535 : vector<1x1x8x8xf32> to vector<8x8xf32>
    %cst_537 = arith.constant dense<0.000000e+00> : vector<8x32xf32>
    %537 = tpu.matmul %536, %11, %cst_537 {dimension_numbers = #tpu.dot_dimension_numbers<[1], [0], [0], [1], [0, 0, 1, 1], [], []>} : vector<8x8xf32>, vector<8x32xf32>, vector<8x32xf32> -> vector<8x32xf32>
    %538 = arith.addf %534, %537 : vector<8x32xf32>
    %c1_538 = arith.constant 1 : index
    %c2_539 = arith.constant 2 : index
    %c0_540 = arith.constant 0 : index
    %c0_541 = arith.constant 0 : index
    %539 = vector.load %arg0[%c1_538, %c2_539, %c0_540, %c0_541] : memref<2x10x10x8xf32, #tpu.memory_space<vmem>>, vector<1x1x8x8xf32>
    %540 = vector.shape_cast %539 : vector<1x1x8x8xf32> to vector<8x8xf32>
    %cst_542 = arith.constant dense<0.000000e+00> : vector<8x32xf32>
    %541 = tpu.matmul %540, %13, %cst_542 {dimension_numbers = #tpu.dot_dimension_numbers<[1], [0], [0], [1], [0, 0, 1, 1], [], []>} : vector<8x8xf32>, vector<8x32xf32>, vector<8x32xf32> -> vector<8x32xf32>
    %542 = arith.addf %538, %541 : vector<8x32xf32>
    %c1_543 = arith.constant 1 : index
    %c2_544 = arith.constant 2 : index
    %c1_545 = arith.constant 1 : index
    %c0_546 = arith.constant 0 : index
    %543 = vector.load %arg0[%c1_543, %c2_544, %c1_545, %c0_546] : memref<2x10x10x8xf32, #tpu.memory_space<vmem>>, vector<1x1x8x8xf32>
    %544 = vector.shape_cast %543 : vector<1x1x8x8xf32> to vector<8x8xf32>
    %cst_547 = arith.constant dense<0.000000e+00> : vector<8x32xf32>
    %545 = tpu.matmul %544, %15, %cst_547 {dimension_numbers = #tpu.dot_dimension_numbers<[1], [0], [0], [1], [0, 0, 1, 1], [], []>} : vector<8x8xf32>, vector<8x32xf32>, vector<8x32xf32> -> vector<8x32xf32>
    %546 = arith.addf %542, %545 : vector<8x32xf32>
    %c1_548 = arith.constant 1 : index
    %c2_549 = arith.constant 2 : index
    %c2_550 = arith.constant 2 : index
    %c0_551 = arith.constant 0 : index
    %547 = vector.load %arg0[%c1_548, %c2_549, %c2_550, %c0_551] : memref<2x10x10x8xf32, #tpu.memory_space<vmem>>, vector<1x1x8x8xf32>
    %548 = vector.shape_cast %547 : vector<1x1x8x8xf32> to vector<8x8xf32>
    %cst_552 = arith.constant dense<0.000000e+00> : vector<8x32xf32>
    %549 = tpu.matmul %548, %17, %cst_552 {dimension_numbers = #tpu.dot_dimension_numbers<[1], [0], [0], [1], [0, 0, 1, 1], [], []>} : vector<8x8xf32>, vector<8x32xf32>, vector<8x32xf32> -> vector<8x32xf32>
    %550 = arith.addf %546, %549 : vector<8x32xf32>
    %c1_553 = arith.constant 1 : index
    %c1_554 = arith.constant 1 : index
    %c0_555 = arith.constant 0 : index
    %c0_556 = arith.constant 0 : index
    %551 = vector.load %arg0[%c1_553, %c1_554, %c0_555, %c0_556] : memref<2x10x10x8xf32, #tpu.memory_space<vmem>>, vector<1x1x8x8xf32>
    %552 = vector.shape_cast %551 : vector<1x1x8x8xf32> to vector<8x8xf32>
    %cst_557 = arith.constant dense<0.000000e+00> : vector<8x32xf32>
    %553 = tpu.matmul %552, %1, %cst_557 {dimension_numbers = #tpu.dot_dimension_numbers<[1], [0], [0], [1], [0, 0, 1, 1], [], []>} : vector<8x8xf32>, vector<8x32xf32>, vector<8x32xf32> -> vector<8x32xf32>
    %c1_558 = arith.constant 1 : index
    %c1_559 = arith.constant 1 : index
    %c1_560 = arith.constant 1 : index
    %c0_561 = arith.constant 0 : index
    %554 = vector.load %arg0[%c1_558, %c1_559, %c1_560, %c0_561] : memref<2x10x10x8xf32, #tpu.memory_space<vmem>>, vector<1x1x8x8xf32>
    %555 = vector.shape_cast %554 : vector<1x1x8x8xf32> to vector<8x8xf32>
    %cst_562 = arith.constant dense<0.000000e+00> : vector<8x32xf32>
    %556 = tpu.matmul %555, %3, %cst_562 {dimension_numbers = #tpu.dot_dimension_numbers<[1], [0], [0], [1], [0, 0, 1, 1], [], []>} : vector<8x8xf32>, vector<8x32xf32>, vector<8x32xf32> -> vector<8x32xf32>
    %557 = arith.addf %553, %556 : vector<8x32xf32>
    %c1_563 = arith.constant 1 : index
    %c1_564 = arith.constant 1 : index
    %c2_565 = arith.constant 2 : index
    %c0_566 = arith.constant 0 : index
    %558 = vector.load %arg0[%c1_563, %c1_564, %c2_565, %c0_566] : memref<2x10x10x8xf32, #tpu.memory_space<vmem>>, vector<1x1x8x8xf32>
    %559 = vector.shape_cast %558 : vector<1x1x8x8xf32> to vector<8x8xf32>
    %cst_567 = arith.constant dense<0.000000e+00> : vector<8x32xf32>
    %560 = tpu.matmul %559, %5, %cst_567 {dimension_numbers = #tpu.dot_dimension_numbers<[1], [0], [0], [1], [0, 0, 1, 1], [], []>} : vector<8x8xf32>, vector<8x32xf32>, vector<8x32xf32> -> vector<8x32xf32>
    %561 = arith.addf %557, %560 : vector<8x32xf32>
    %c1_568 = arith.constant 1 : index
    %c2_569 = arith.constant 2 : index
    %c0_570 = arith.constant 0 : index
    %c0_571 = arith.constant 0 : index
    %562 = vector.load %arg0[%c1_568, %c2_569, %c0_570, %c0_571] : memref<2x10x10x8xf32, #tpu.memory_space<vmem>>, vector<1x1x8x8xf32>
    %563 = vector.shape_cast %562 : vector<1x1x8x8xf32> to vector<8x8xf32>
    %cst_572 = arith.constant dense<0.000000e+00> : vector<8x32xf32>
    %564 = tpu.matmul %563, %7, %cst_572 {dimension_numbers = #tpu.dot_dimension_numbers<[1], [0], [0], [1], [0, 0, 1, 1], [], []>} : vector<8x8xf32>, vector<8x32xf32>, vector<8x32xf32> -> vector<8x32xf32>
    %565 = arith.addf %561, %564 : vector<8x32xf32>
    %c1_573 = arith.constant 1 : index
    %c2_574 = arith.constant 2 : index
    %c1_575 = arith.constant 1 : index
    %c0_576 = arith.constant 0 : index
    %566 = vector.load %arg0[%c1_573, %c2_574, %c1_575, %c0_576] : memref<2x10x10x8xf32, #tpu.memory_space<vmem>>, vector<1x1x8x8xf32>
    %567 = vector.shape_cast %566 : vector<1x1x8x8xf32> to vector<8x8xf32>
    %cst_577 = arith.constant dense<0.000000e+00> : vector<8x32xf32>
    %568 = tpu.matmul %567, %9, %cst_577 {dimension_numbers = #tpu.dot_dimension_numbers<[1], [0], [0], [1], [0, 0, 1, 1], [], []>} : vector<8x8xf32>, vector<8x32xf32>, vector<8x32xf32> -> vector<8x32xf32>
    %569 = arith.addf %565, %568 : vector<8x32xf32>
    %c1_578 = arith.constant 1 : index
    %c2_579 = arith.constant 2 : index
    %c2_580 = arith.constant 2 : index
    %c0_581 = arith.constant 0 : index
    %570 = vector.load %arg0[%c1_578, %c2_579, %c2_580, %c0_581] : memref<2x10x10x8xf32, #tpu.memory_space<vmem>>, vector<1x1x8x8xf32>
    %571 = vector.shape_cast %570 : vector<1x1x8x8xf32> to vector<8x8xf32>
    %cst_582 = arith.constant dense<0.000000e+00> : vector<8x32xf32>
    %572 = tpu.matmul %571, %11, %cst_582 {dimension_numbers = #tpu.dot_dimension_numbers<[1], [0], [0], [1], [0, 0, 1, 1], [], []>} : vector<8x8xf32>, vector<8x32xf32>, vector<8x32xf32> -> vector<8x32xf32>
    %573 = arith.addf %569, %572 : vector<8x32xf32>
    %c1_583 = arith.constant 1 : index
    %c3_584 = arith.constant 3 : index
    %c0_585 = arith.constant 0 : index
    %c0_586 = arith.constant 0 : index
    %574 = vector.load %arg0[%c1_583, %c3_584, %c0_585, %c0_586] : memref<2x10x10x8xf32, #tpu.memory_space<vmem>>, vector<1x1x8x8xf32>
    %575 = vector.shape_cast %574 : vector<1x1x8x8xf32> to vector<8x8xf32>
    %cst_587 = arith.constant dense<0.000000e+00> : vector<8x32xf32>
    %576 = tpu.matmul %575, %13, %cst_587 {dimension_numbers = #tpu.dot_dimension_numbers<[1], [0], [0], [1], [0, 0, 1, 1], [], []>} : vector<8x8xf32>, vector<8x32xf32>, vector<8x32xf32> -> vector<8x32xf32>
    %577 = arith.addf %573, %576 : vector<8x32xf32>
    %c1_588 = arith.constant 1 : index
    %c3_589 = arith.constant 3 : index
    %c1_590 = arith.constant 1 : index
    %c0_591 = arith.constant 0 : index
    %578 = vector.load %arg0[%c1_588, %c3_589, %c1_590, %c0_591] : memref<2x10x10x8xf32, #tpu.memory_space<vmem>>, vector<1x1x8x8xf32>
    %579 = vector.shape_cast %578 : vector<1x1x8x8xf32> to vector<8x8xf32>
    %cst_592 = arith.constant dense<0.000000e+00> : vector<8x32xf32>
    %580 = tpu.matmul %579, %15, %cst_592 {dimension_numbers = #tpu.dot_dimension_numbers<[1], [0], [0], [1], [0, 0, 1, 1], [], []>} : vector<8x8xf32>, vector<8x32xf32>, vector<8x32xf32> -> vector<8x32xf32>
    %581 = arith.addf %577, %580 : vector<8x32xf32>
    %c1_593 = arith.constant 1 : index
    %c3_594 = arith.constant 3 : index
    %c2_595 = arith.constant 2 : index
    %c0_596 = arith.constant 0 : index
    %582 = vector.load %arg0[%c1_593, %c3_594, %c2_595, %c0_596] : memref<2x10x10x8xf32, #tpu.memory_space<vmem>>, vector<1x1x8x8xf32>
    %583 = vector.shape_cast %582 : vector<1x1x8x8xf32> to vector<8x8xf32>
    %cst_597 = arith.constant dense<0.000000e+00> : vector<8x32xf32>
    %584 = tpu.matmul %583, %17, %cst_597 {dimension_numbers = #tpu.dot_dimension_numbers<[1], [0], [0], [1], [0, 0, 1, 1], [], []>} : vector<8x8xf32>, vector<8x32xf32>, vector<8x32xf32> -> vector<8x32xf32>
    %585 = arith.addf %581, %584 : vector<8x32xf32>
    %586 = arith.maximumf %550, %585 : vector<8x32xf32>
    %587 = vector.extract_strided_slice %586 {offsets = [0, 0], sizes = [1, 32], strides = [1, 1]} : vector<8x32xf32> to vector<1x32xf32>
    %588 = vector.extract_strided_slice %586 {offsets = [1, 0], sizes = [1, 32], strides = [1, 1]} : vector<8x32xf32> to vector<1x32xf32>
    %589 = arith.maximumf %587, %588 : vector<1x32xf32>
    %590 = arith.addf %589, %36 : vector<1x32xf32>
    %cst_598 = arith.constant 0.000000e+00 : f32
    %591 = vector.broadcast %cst_598 : f32 to vector<1x32xf32>
    %592 = arith.cmpf oge, %590, %591 : vector<1x32xf32>
    %cst_599 = arith.constant 0.00999999977 : f32
    %593 = vector.broadcast %cst_599 : f32 to vector<1x32xf32>
    %594 = arith.mulf %593, %590 : vector<1x32xf32>
    %595 = arith.select %592, %590, %594 : vector<1x32xi1>, vector<1x32xf32>
    %c1_600 = arith.constant 1 : index
    %c1_601 = arith.constant 1 : index
    %c1_602 = arith.constant 1 : index
    %c0_603 = arith.constant 0 : index
    %596 = vector.load %arg10[%c1_600, %c1_601, %c1_602, %c0_603] : memref<2x6x6x32xf32, #tpu.memory_space<vmem>>, vector<1x1x1x32xf32>
    %597 = vector.shape_cast %596 : vector<1x1x1x32xf32> to vector<1x32xf32>
    %598 = vector.shape_cast %595 : vector<1x32xf32> to vector<1x1x1x32xf32>
    tpu.vector_store %arg10[%c1_600, %c1_601, %c1_602, %c0_603], %598 {strides = array<i32>} : memref<2x6x6x32xf32, #tpu.memory_space<vmem>>, vector<1x1x1x32xf32>,
    %599 = vector.extract_strided_slice %586 {offsets = [2, 0], sizes = [1, 32], strides = [1, 1]} : vector<8x32xf32> to vector<1x32xf32>
    %600 = vector.extract_strided_slice %586 {offsets = [3, 0], sizes = [1, 32], strides = [1, 1]} : vector<8x32xf32> to vector<1x32xf32>
    %601 = arith.maximumf %599, %600 : vector<1x32xf32>
    %602 = arith.addf %601, %36 : vector<1x32xf32>
    %cst_604 = arith.constant 0.000000e+00 : f32
    %603 = vector.broadcast %cst_604 : f32 to vector<1x32xf32>
    %604 = arith.cmpf oge, %602, %603 : vector<1x32xf32>
    %cst_605 = arith.constant 0.00999999977 : f32
    %605 = vector.broadcast %cst_605 : f32 to vector<1x32xf32>
    %606 = arith.mulf %605, %602 : vector<1x32xf32>
    %607 = arith.select %604, %602, %606 : vector<1x32xi1>, vector<1x32xf32>
    %c1_606 = arith.constant 1 : index
    %c1_607 = arith.constant 1 : index
    %c2_608 = arith.constant 2 : index
    %c0_609 = arith.constant 0 : index
    %608 = vector.load %arg10[%c1_606, %c1_607, %c2_608, %c0_609] : memref<2x6x6x32xf32, #tpu.memory_space<vmem>>, vector<1x1x1x32xf32>
    %609 = vector.shape_cast %608 : vector<1x1x1x32xf32> to vector<1x32xf32>
    %610 = vector.shape_cast %607 : vector<1x32xf32> to vector<1x1x1x32xf32>
    tpu.vector_store %arg10[%c1_606, %c1_607, %c2_608, %c0_609], %610 {strides = array<i32>} : memref<2x6x6x32xf32, #tpu.memory_space<vmem>>, vector<1x1x1x32xf32>,
    %611 = vector.extract_strided_slice %586 {offsets = [4, 0], sizes = [1, 32], strides = [1, 1]} : vector<8x32xf32> to vector<1x32xf32>
    %612 = vector.extract_strided_slice %586 {offsets = [5, 0], sizes = [1, 32], strides = [1, 1]} : vector<8x32xf32> to vector<1x32xf32>
    %613 = arith.maximumf %611, %612 : vector<1x32xf32>
    %614 = arith.addf %613, %36 : vector<1x32xf32>
    %cst_610 = arith.constant 0.000000e+00 : f32
    %615 = vector.broadcast %cst_610 : f32 to vector<1x32xf32>
    %616 = arith.cmpf oge, %614, %615 : vector<1x32xf32>
    %cst_611 = arith.constant 0.00999999977 : f32
    %617 = vector.broadcast %cst_611 : f32 to vector<1x32xf32>
    %618 = arith.mulf %617, %614 : vector<1x32xf32>
    %619 = arith.select %616, %614, %618 : vector<1x32xi1>, vector<1x32xf32>
    %c1_612 = arith.constant 1 : index
    %c1_613 = arith.constant 1 : index
    %c3_614 = arith.constant 3 : index
    %c0_615 = arith.constant 0 : index
    %620 = vector.load %arg10[%c1_612, %c1_613, %c3_614, %c0_615] : memref<2x6x6x32xf32, #tpu.memory_space<vmem>>, vector<1x1x1x32xf32>
    %621 = vector.shape_cast %620 : vector<1x1x1x32xf32> to vector<1x32xf32>
    %622 = vector.shape_cast %619 : vector<1x32xf32> to vector<1x1x1x32xf32>
    tpu.vector_store %arg10[%c1_612, %c1_613, %c3_614, %c0_615], %622 {strides = array<i32>} : memref<2x6x6x32xf32, #tpu.memory_space<vmem>>, vector<1x1x1x32xf32>,
    %623 = vector.extract_strided_slice %586 {offsets = [6, 0], sizes = [1, 32], strides = [1, 1]} : vector<8x32xf32> to vector<1x32xf32>
    %624 = vector.extract_strided_slice %586 {offsets = [7, 0], sizes = [1, 32], strides = [1, 1]} : vector<8x32xf32> to vector<1x32xf32>
    %625 = arith.maximumf %623, %624 : vector<1x32xf32>
    %626 = arith.addf %625, %36 : vector<1x32xf32>
    %cst_616 = arith.constant 0.000000e+00 : f32
    %627 = vector.broadcast %cst_616 : f32 to vector<1x32xf32>
    %628 = arith.cmpf oge, %626, %627 : vector<1x32xf32>
    %cst_617 = arith.constant 0.00999999977 : f32
    %629 = vector.broadcast %cst_617 : f32 to vector<1x32xf32>
    %630 = arith.mulf %629, %626 : vector<1x32xf32>
    %631 = arith.select %628, %626, %630 : vector<1x32xi1>, vector<1x32xf32>
    %c1_618 = arith.constant 1 : index
    %c1_619 = arith.constant 1 : index
    %c4_620 = arith.constant 4 : index
    %c0_621 = arith.constant 0 : index
    %632 = vector.load %arg10[%c1_618, %c1_619, %c4_620, %c0_621] : memref<2x6x6x32xf32, #tpu.memory_space<vmem>>, vector<1x1x1x32xf32>
    %633 = vector.shape_cast %632 : vector<1x1x1x32xf32> to vector<1x32xf32>
    %634 = vector.shape_cast %631 : vector<1x32xf32> to vector<1x1x1x32xf32>
    tpu.vector_store %arg10[%c1_618, %c1_619, %c4_620, %c0_621], %634 {strides = array<i32>} : memref<2x6x6x32xf32, #tpu.memory_space<vmem>>, vector<1x1x1x32xf32>,
    %c1_622 = arith.constant 1 : index
    %c2_623 = arith.constant 2 : index
    %c0_624 = arith.constant 0 : index
    %c0_625 = arith.constant 0 : index
    %635 = vector.load %arg0[%c1_622, %c2_623, %c0_624, %c0_625] : memref<2x10x10x8xf32, #tpu.memory_space<vmem>>, vector<1x1x8x8xf32>
    %636 = vector.shape_cast %635 : vector<1x1x8x8xf32> to vector<8x8xf32>
    %cst_626 = arith.constant dense<0.000000e+00> : vector<8x32xf32>
    %637 = tpu.matmul %636, %1, %cst_626 {dimension_numbers = #tpu.dot_dimension_numbers<[1], [0], [0], [1], [0, 0, 1, 1], [], []>} : vector<8x8xf32>, vector<8x32xf32>, vector<8x32xf32> -> vector<8x32xf32>
    %c1_627 = arith.constant 1 : index
    %c2_628 = arith.constant 2 : index
    %c1_629 = arith.constant 1 : index
    %c0_630 = arith.constant 0 : index
    %638 = vector.load %arg0[%c1_627, %c2_628, %c1_629, %c0_630] : memref<2x10x10x8xf32, #tpu.memory_space<vmem>>, vector<1x1x8x8xf32>
    %639 = vector.shape_cast %638 : vector<1x1x8x8xf32> to vector<8x8xf32>
    %cst_631 = arith.constant dense<0.000000e+00> : vector<8x32xf32>
    %640 = tpu.matmul %639, %3, %cst_631 {dimension_numbers = #tpu.dot_dimension_numbers<[1], [0], [0], [1], [0, 0, 1, 1], [], []>} : vector<8x8xf32>, vector<8x32xf32>, vector<8x32xf32> -> vector<8x32xf32>
    %641 = arith.addf %637, %640 : vector<8x32xf32>
    %c1_632 = arith.constant 1 : index
    %c2_633 = arith.constant 2 : index
    %c2_634 = arith.constant 2 : index
    %c0_635 = arith.constant 0 : index
    %642 = vector.load %arg0[%c1_632, %c2_633, %c2_634, %c0_635] : memref<2x10x10x8xf32, #tpu.memory_space<vmem>>, vector<1x1x8x8xf32>
    %643 = vector.shape_cast %642 : vector<1x1x8x8xf32> to vector<8x8xf32>
    %cst_636 = arith.constant dense<0.000000e+00> : vector<8x32xf32>
    %644 = tpu.matmul %643, %5, %cst_636 {dimension_numbers = #tpu.dot_dimension_numbers<[1], [0], [0], [1], [0, 0, 1, 1], [], []>} : vector<8x8xf32>, vector<8x32xf32>, vector<8x32xf32> -> vector<8x32xf32>
    %645 = arith.addf %641, %644 : vector<8x32xf32>
    %c1_637 = arith.constant 1 : index
    %c3_638 = arith.constant 3 : index
    %c0_639 = arith.constant 0 : index
    %c0_640 = arith.constant 0 : index
    %646 = vector.load %arg0[%c1_637, %c3_638, %c0_639, %c0_640] : memref<2x10x10x8xf32, #tpu.memory_space<vmem>>, vector<1x1x8x8xf32>
    %647 = vector.shape_cast %646 : vector<1x1x8x8xf32> to vector<8x8xf32>
    %cst_641 = arith.constant dense<0.000000e+00> : vector<8x32xf32>
    %648 = tpu.matmul %647, %7, %cst_641 {dimension_numbers = #tpu.dot_dimension_numbers<[1], [0], [0], [1], [0, 0, 1, 1], [], []>} : vector<8x8xf32>, vector<8x32xf32>, vector<8x32xf32> -> vector<8x32xf32>
    %649 = arith.addf %645, %648 : vector<8x32xf32>
    %c1_642 = arith.constant 1 : index
    %c3_643 = arith.constant 3 : index
    %c1_644 = arith.constant 1 : index
    %c0_645 = arith.constant 0 : index
    %650 = vector.load %arg0[%c1_642, %c3_643, %c1_644, %c0_645] : memref<2x10x10x8xf32, #tpu.memory_space<vmem>>, vector<1x1x8x8xf32>
    %651 = vector.shape_cast %650 : vector<1x1x8x8xf32> to vector<8x8xf32>
    %cst_646 = arith.constant dense<0.000000e+00> : vector<8x32xf32>
    %652 = tpu.matmul %651, %9, %cst_646 {dimension_numbers = #tpu.dot_dimension_numbers<[1], [0], [0], [1], [0, 0, 1, 1], [], []>} : vector<8x8xf32>, vector<8x32xf32>, vector<8x32xf32> -> vector<8x32xf32>
    %653 = arith.addf %649, %652 : vector<8x32xf32>
    %c1_647 = arith.constant 1 : index
    %c3_648 = arith.constant 3 : index
    %c2_649 = arith.constant 2 : index
    %c0_650 = arith.constant 0 : index
    %654 = vector.load %arg0[%c1_647, %c3_648, %c2_649, %c0_650] : memref<2x10x10x8xf32, #tpu.memory_space<vmem>>, vector<1x1x8x8xf32>
    %655 = vector.shape_cast %654 : vector<1x1x8x8xf32> to vector<8x8xf32>
    %cst_651 = arith.constant dense<0.000000e+00> : vector<8x32xf32>
    %656 = tpu.matmul %655, %11, %cst_651 {dimension_numbers = #tpu.dot_dimension_numbers<[1], [0], [0], [1], [0, 0, 1, 1], [], []>} : vector<8x8xf32>, vector<8x32xf32>, vector<8x32xf32> -> vector<8x32xf32>
    %657 = arith.addf %653, %656 : vector<8x32xf32>
    %c1_652 = arith.constant 1 : index
    %c4_653 = arith.constant 4 : index
    %c0_654 = arith.constant 0 : index
    %c0_655 = arith.constant 0 : index
    %658 = vector.load %arg0[%c1_652, %c4_653, %c0_654, %c0_655] : memref<2x10x10x8xf32, #tpu.memory_space<vmem>>, vector<1x1x8x8xf32>
    %659 = vector.shape_cast %658 : vector<1x1x8x8xf32> to vector<8x8xf32>
    %cst_656 = arith.constant dense<0.000000e+00> : vector<8x32xf32>
    %660 = tpu.matmul %659, %13, %cst_656 {dimension_numbers = #tpu.dot_dimension_numbers<[1], [0], [0], [1], [0, 0, 1, 1], [], []>} : vector<8x8xf32>, vector<8x32xf32>, vector<8x32xf32> -> vector<8x32xf32>
    %661 = arith.addf %657, %660 : vector<8x32xf32>
    %c1_657 = arith.constant 1 : index
    %c4_658 = arith.constant 4 : index
    %c1_659 = arith.constant 1 : index
    %c0_660 = arith.constant 0 : index
    %662 = vector.load %arg0[%c1_657, %c4_658, %c1_659, %c0_660] : memref<2x10x10x8xf32, #tpu.memory_space<vmem>>, vector<1x1x8x8xf32>
    %663 = vector.shape_cast %662 : vector<1x1x8x8xf32> to vector<8x8xf32>
    %cst_661 = arith.constant dense<0.000000e+00> : vector<8x32xf32>
    %664 = tpu.matmul %663, %15, %cst_661 {dimension_numbers = #tpu.dot_dimension_numbers<[1], [0], [0], [1], [0, 0, 1, 1], [], []>} : vector<8x8xf32>, vector<8x32xf32>, vector<8x32xf32> -> vector<8x32xf32>
    %665 = arith.addf %661, %664 : vector<8x32xf32>
    %c1_662 = arith.constant 1 : index
    %c4_663 = arith.constant 4 : index
    %c2_664 = arith.constant 2 : index
    %c0_665 = arith.constant 0 : index
    %666 = vector.load %arg0[%c1_662, %c4_663, %c2_664, %c0_665] : memref<2x10x10x8xf32, #tpu.memory_space<vmem>>, vector<1x1x8x8xf32>
    %667 = vector.shape_cast %666 : vector<1x1x8x8xf32> to vector<8x8xf32>
    %cst_666 = arith.constant dense<0.000000e+00> : vector<8x32xf32>
    %668 = tpu.matmul %667, %17, %cst_666 {dimension_numbers = #tpu.dot_dimension_numbers<[1], [0], [0], [1], [0, 0, 1, 1], [], []>} : vector<8x8xf32>, vector<8x32xf32>, vector<8x32xf32> -> vector<8x32xf32>
    %669 = arith.addf %665, %668 : vector<8x32xf32>
    %c1_667 = arith.constant 1 : index
    %c3_668 = arith.constant 3 : index
    %c0_669 = arith.constant 0 : index
    %c0_670 = arith.constant 0 : index
    %670 = vector.load %arg0[%c1_667, %c3_668, %c0_669, %c0_670] : memref<2x10x10x8xf32, #tpu.memory_space<vmem>>, vector<1x1x8x8xf32>
    %671 = vector.shape_cast %670 : vector<1x1x8x8xf32> to vector<8x8xf32>
    %cst_671 = arith.constant dense<0.000000e+00> : vector<8x32xf32>
    %672 = tpu.matmul %671, %1, %cst_671 {dimension_numbers = #tpu.dot_dimension_numbers<[1], [0], [0], [1], [0, 0, 1, 1], [], []>} : vector<8x8xf32>, vector<8x32xf32>, vector<8x32xf32> -> vector<8x32xf32>
    %c1_672 = arith.constant 1 : index
    %c3_673 = arith.constant 3 : index
    %c1_674 = arith.constant 1 : index
    %c0_675 = arith.constant 0 : index
    %673 = vector.load %arg0[%c1_672, %c3_673, %c1_674, %c0_675] : memref<2x10x10x8xf32, #tpu.memory_space<vmem>>, vector<1x1x8x8xf32>
    %674 = vector.shape_cast %673 : vector<1x1x8x8xf32> to vector<8x8xf32>
    %cst_676 = arith.constant dense<0.000000e+00> : vector<8x32xf32>
    %675 = tpu.matmul %674, %3, %cst_676 {dimension_numbers = #tpu.dot_dimension_numbers<[1], [0], [0], [1], [0, 0, 1, 1], [], []>} : vector<8x8xf32>, vector<8x32xf32>, vector<8x32xf32> -> vector<8x32xf32>
    %676 = arith.addf %672, %675 : vector<8x32xf32>
    %c1_677 = arith.constant 1 : index
    %c3_678 = arith.constant 3 : index
    %c2_679 = arith.constant 2 : index
    %c0_680 = arith.constant 0 : index
    %677 = vector.load %arg0[%c1_677, %c3_678, %c2_679, %c0_680] : memref<2x10x10x8xf32, #tpu.memory_space<vmem>>, vector<1x1x8x8xf32>
    %678 = vector.shape_cast %677 : vector<1x1x8x8xf32> to vector<8x8xf32>
    %cst_681 = arith.constant dense<0.000000e+00> : vector<8x32xf32>
    %679 = tpu.matmul %678, %5, %cst_681 {dimension_numbers = #tpu.dot_dimension_numbers<[1], [0], [0], [1], [0, 0, 1, 1], [], []>} : vector<8x8xf32>, vector<8x32xf32>, vector<8x32xf32> -> vector<8x32xf32>
    %680 = arith.addf %676, %679 : vector<8x32xf32>
    %c1_682 = arith.constant 1 : index
    %c4_683 = arith.constant 4 : index
    %c0_684 = arith.constant 0 : index
    %c0_685 = arith.constant 0 : index
    %681 = vector.load %arg0[%c1_682, %c4_683, %c0_684, %c0_685] : memref<2x10x10x8xf32, #tpu.memory_space<vmem>>, vector<1x1x8x8xf32>
    %682 = vector.shape_cast %681 : vector<1x1x8x8xf32> to vector<8x8xf32>
    %cst_686 = arith.constant dense<0.000000e+00> : vector<8x32xf32>
    %683 = tpu.matmul %682, %7, %cst_686 {dimension_numbers = #tpu.dot_dimension_numbers<[1], [0], [0], [1], [0, 0, 1, 1], [], []>} : vector<8x8xf32>, vector<8x32xf32>, vector<8x32xf32> -> vector<8x32xf32>
    %684 = arith.addf %680, %683 : vector<8x32xf32>
    %c1_687 = arith.constant 1 : index
    %c4_688 = arith.constant 4 : index
    %c1_689 = arith.constant 1 : index
    %c0_690 = arith.constant 0 : index
    %685 = vector.load %arg0[%c1_687, %c4_688, %c1_689, %c0_690] : memref<2x10x10x8xf32, #tpu.memory_space<vmem>>, vector<1x1x8x8xf32>
    %686 = vector.shape_cast %685 : vector<1x1x8x8xf32> to vector<8x8xf32>
    %cst_691 = arith.constant dense<0.000000e+00> : vector<8x32xf32>
    %687 = tpu.matmul %686, %9, %cst_691 {dimension_numbers = #tpu.dot_dimension_numbers<[1], [0], [0], [1], [0, 0, 1, 1], [], []>} : vector<8x8xf32>, vector<8x32xf32>, vector<8x32xf32> -> vector<8x32xf32>
    %688 = arith.addf %684, %687 : vector<8x32xf32>
    %c1_692 = arith.constant 1 : index
    %c4_693 = arith.constant 4 : index
    %c2_694 = arith.constant 2 : index
    %c0_695 = arith.constant 0 : index
    %689 = vector.load %arg0[%c1_692, %c4_693, %c2_694, %c0_695] : memref<2x10x10x8xf32, #tpu.memory_space<vmem>>, vector<1x1x8x8xf32>
    %690 = vector.shape_cast %689 : vector<1x1x8x8xf32> to vector<8x8xf32>
    %cst_696 = arith.constant dense<0.000000e+00> : vector<8x32xf32>
    %691 = tpu.matmul %690, %11, %cst_696 {dimension_numbers = #tpu.dot_dimension_numbers<[1], [0], [0], [1], [0, 0, 1, 1], [], []>} : vector<8x8xf32>, vector<8x32xf32>, vector<8x32xf32> -> vector<8x32xf32>
    %692 = arith.addf %688, %691 : vector<8x32xf32>
    %c1_697 = arith.constant 1 : index
    %c5_698 = arith.constant 5 : index
    %c0_699 = arith.constant 0 : index
    %c0_700 = arith.constant 0 : index
    %693 = vector.load %arg0[%c1_697, %c5_698, %c0_699, %c0_700] : memref<2x10x10x8xf32, #tpu.memory_space<vmem>>, vector<1x1x8x8xf32>
    %694 = vector.shape_cast %693 : vector<1x1x8x8xf32> to vector<8x8xf32>
    %cst_701 = arith.constant dense<0.000000e+00> : vector<8x32xf32>
    %695 = tpu.matmul %694, %13, %cst_701 {dimension_numbers = #tpu.dot_dimension_numbers<[1], [0], [0], [1], [0, 0, 1, 1], [], []>} : vector<8x8xf32>, vector<8x32xf32>, vector<8x32xf32> -> vector<8x32xf32>
    %696 = arith.addf %692, %695 : vector<8x32xf32>
    %c1_702 = arith.constant 1 : index
    %c5_703 = arith.constant 5 : index
    %c1_704 = arith.constant 1 : index
    %c0_705 = arith.constant 0 : index
    %697 = vector.load %arg0[%c1_702, %c5_703, %c1_704, %c0_705] : memref<2x10x10x8xf32, #tpu.memory_space<vmem>>, vector<1x1x8x8xf32>
    %698 = vector.shape_cast %697 : vector<1x1x8x8xf32> to vector<8x8xf32>
    %cst_706 = arith.constant dense<0.000000e+00> : vector<8x32xf32>
    %699 = tpu.matmul %698, %15, %cst_706 {dimension_numbers = #tpu.dot_dimension_numbers<[1], [0], [0], [1], [0, 0, 1, 1], [], []>} : vector<8x8xf32>, vector<8x32xf32>, vector<8x32xf32> -> vector<8x32xf32>
    %700 = arith.addf %696, %699 : vector<8x32xf32>
    %c1_707 = arith.constant 1 : index
    %c5_708 = arith.constant 5 : index
    %c2_709 = arith.constant 2 : index
    %c0_710 = arith.constant 0 : index
    %701 = vector.load %arg0[%c1_707, %c5_708, %c2_709, %c0_710] : memref<2x10x10x8xf32, #tpu.memory_space<vmem>>, vector<1x1x8x8xf32>
    %702 = vector.shape_cast %701 : vector<1x1x8x8xf32> to vector<8x8xf32>
    %cst_711 = arith.constant dense<0.000000e+00> : vector<8x32xf32>
    %703 = tpu.matmul %702, %17, %cst_711 {dimension_numbers = #tpu.dot_dimension_numbers<[1], [0], [0], [1], [0, 0, 1, 1], [], []>} : vector<8x8xf32>, vector<8x32xf32>, vector<8x32xf32> -> vector<8x32xf32>
    %704 = arith.addf %700, %703 : vector<8x32xf32>
    %705 = arith.maximumf %669, %704 : vector<8x32xf32>
    %706 = vector.extract_strided_slice %705 {offsets = [0, 0], sizes = [1, 32], strides = [1, 1]} : vector<8x32xf32> to vector<1x32xf32>
    %707 = vector.extract_strided_slice %705 {offsets = [1, 0], sizes = [1, 32], strides = [1, 1]} : vector<8x32xf32> to vector<1x32xf32>
    %708 = arith.maximumf %706, %707 : vector<1x32xf32>
    %709 = arith.addf %708, %36 : vector<1x32xf32>
    %cst_712 = arith.constant 0.000000e+00 : f32
    %710 = vector.broadcast %cst_712 : f32 to vector<1x32xf32>
    %711 = arith.cmpf oge, %709, %710 : vector<1x32xf32>
    %cst_713 = arith.constant 0.00999999977 : f32
    %712 = vector.broadcast %cst_713 : f32 to vector<1x32xf32>
    %713 = arith.mulf %712, %709 : vector<1x32xf32>
    %714 = arith.select %711, %709, %713 : vector<1x32xi1>, vector<1x32xf32>
    %c1_714 = arith.constant 1 : index
    %c2_715 = arith.constant 2 : index
    %c1_716 = arith.constant 1 : index
    %c0_717 = arith.constant 0 : index
    %715 = vector.load %arg10[%c1_714, %c2_715, %c1_716, %c0_717] : memref<2x6x6x32xf32, #tpu.memory_space<vmem>>, vector<1x1x1x32xf32>
    %716 = vector.shape_cast %715 : vector<1x1x1x32xf32> to vector<1x32xf32>
    %717 = vector.shape_cast %714 : vector<1x32xf32> to vector<1x1x1x32xf32>
    tpu.vector_store %arg10[%c1_714, %c2_715, %c1_716, %c0_717], %717 {strides = array<i32>} : memref<2x6x6x32xf32, #tpu.memory_space<vmem>>, vector<1x1x1x32xf32>,
    %718 = vector.extract_strided_slice %705 {offsets = [2, 0], sizes = [1, 32], strides = [1, 1]} : vector<8x32xf32> to vector<1x32xf32>
    %719 = vector.extract_strided_slice %705 {offsets = [3, 0], sizes = [1, 32], strides = [1, 1]} : vector<8x32xf32> to vector<1x32xf32>
    %720 = arith.maximumf %718, %719 : vector<1x32xf32>
    %721 = arith.addf %720, %36 : vector<1x32xf32>
    %cst_718 = arith.constant 0.000000e+00 : f32
    %722 = vector.broadcast %cst_718 : f32 to vector<1x32xf32>
    %723 = arith.cmpf oge, %721, %722 : vector<1x32xf32>
    %cst_719 = arith.constant 0.00999999977 : f32
    %724 = vector.broadcast %cst_719 : f32 to vector<1x32xf32>
    %725 = arith.mulf %724, %721 : vector<1x32xf32>
    %726 = arith.select %723, %721, %725 : vector<1x32xi1>, vector<1x32xf32>
    %c1_720 = arith.constant 1 : index
    %c2_721 = arith.constant 2 : index
    %c2_722 = arith.constant 2 : index
    %c0_723 = arith.constant 0 : index
    %727 = vector.load %arg10[%c1_720, %c2_721, %c2_722, %c0_723] : memref<2x6x6x32xf32, #tpu.memory_space<vmem>>, vector<1x1x1x32xf32>
    %728 = vector.shape_cast %727 : vector<1x1x1x32xf32> to vector<1x32xf32>
    %729 = vector.shape_cast %726 : vector<1x32xf32> to vector<1x1x1x32xf32>
    tpu.vector_store %arg10[%c1_720, %c2_721, %c2_722, %c0_723], %729 {strides = array<i32>} : memref<2x6x6x32xf32, #tpu.memory_space<vmem>>, vector<1x1x1x32xf32>,
    %730 = vector.extract_strided_slice %705 {offsets = [4, 0], sizes = [1, 32], strides = [1, 1]} : vector<8x32xf32> to vector<1x32xf32>
    %731 = vector.extract_strided_slice %705 {offsets = [5, 0], sizes = [1, 32], strides = [1, 1]} : vector<8x32xf32> to vector<1x32xf32>
    %732 = arith.maximumf %730, %731 : vector<1x32xf32>
    %733 = arith.addf %732, %36 : vector<1x32xf32>
    %cst_724 = arith.constant 0.000000e+00 : f32
    %734 = vector.broadcast %cst_724 : f32 to vector<1x32xf32>
    %735 = arith.cmpf oge, %733, %734 : vector<1x32xf32>
    %cst_725 = arith.constant 0.00999999977 : f32
    %736 = vector.broadcast %cst_725 : f32 to vector<1x32xf32>
    %737 = arith.mulf %736, %733 : vector<1x32xf32>
    %738 = arith.select %735, %733, %737 : vector<1x32xi1>, vector<1x32xf32>
    %c1_726 = arith.constant 1 : index
    %c2_727 = arith.constant 2 : index
    %c3_728 = arith.constant 3 : index
    %c0_729 = arith.constant 0 : index
    %739 = vector.load %arg10[%c1_726, %c2_727, %c3_728, %c0_729] : memref<2x6x6x32xf32, #tpu.memory_space<vmem>>, vector<1x1x1x32xf32>
    %740 = vector.shape_cast %739 : vector<1x1x1x32xf32> to vector<1x32xf32>
    %741 = vector.shape_cast %738 : vector<1x32xf32> to vector<1x1x1x32xf32>
    tpu.vector_store %arg10[%c1_726, %c2_727, %c3_728, %c0_729], %741 {strides = array<i32>} : memref<2x6x6x32xf32, #tpu.memory_space<vmem>>, vector<1x1x1x32xf32>,
    %742 = vector.extract_strided_slice %705 {offsets = [6, 0], sizes = [1, 32], strides = [1, 1]} : vector<8x32xf32> to vector<1x32xf32>
    %743 = vector.extract_strided_slice %705 {offsets = [7, 0], sizes = [1, 32], strides = [1, 1]} : vector<8x32xf32> to vector<1x32xf32>
    %744 = arith.maximumf %742, %743 : vector<1x32xf32>
    %745 = arith.addf %744, %36 : vector<1x32xf32>
    %cst_730 = arith.constant 0.000000e+00 : f32
    %746 = vector.broadcast %cst_730 : f32 to vector<1x32xf32>
    %747 = arith.cmpf oge, %745, %746 : vector<1x32xf32>
    %cst_731 = arith.constant 0.00999999977 : f32
    %748 = vector.broadcast %cst_731 : f32 to vector<1x32xf32>
    %749 = arith.mulf %748, %745 : vector<1x32xf32>
    %750 = arith.select %747, %745, %749 : vector<1x32xi1>, vector<1x32xf32>
    %c1_732 = arith.constant 1 : index
    %c2_733 = arith.constant 2 : index
    %c4_734 = arith.constant 4 : index
    %c0_735 = arith.constant 0 : index
    %751 = vector.load %arg10[%c1_732, %c2_733, %c4_734, %c0_735] : memref<2x6x6x32xf32, #tpu.memory_space<vmem>>, vector<1x1x1x32xf32>
    %752 = vector.shape_cast %751 : vector<1x1x1x32xf32> to vector<1x32xf32>
    %753 = vector.shape_cast %750 : vector<1x32xf32> to vector<1x1x1x32xf32>
    tpu.vector_store %arg10[%c1_732, %c2_733, %c4_734, %c0_735], %753 {strides = array<i32>} : memref<2x6x6x32xf32, #tpu.memory_space<vmem>>, vector<1x1x1x32xf32>,
    %c1_736 = arith.constant 1 : index
    %c4_737 = arith.constant 4 : index
    %c0_738 = arith.constant 0 : index
    %c0_739 = arith.constant 0 : index
    %754 = vector.load %arg0[%c1_736, %c4_737, %c0_738, %c0_739] : memref<2x10x10x8xf32, #tpu.memory_space<vmem>>, vector<1x1x8x8xf32>
    %755 = vector.shape_cast %754 : vector<1x1x8x8xf32> to vector<8x8xf32>
    %cst_740 = arith.constant dense<0.000000e+00> : vector<8x32xf32>
    %756 = tpu.matmul %755, %1, %cst_740 {dimension_numbers = #tpu.dot_dimension_numbers<[1], [0], [0], [1], [0, 0, 1, 1], [], []>} : vector<8x8xf32>, vector<8x32xf32>, vector<8x32xf32> -> vector<8x32xf32>
    %c1_741 = arith.constant 1 : index
    %c4_742 = arith.constant 4 : index
    %c1_743 = arith.constant 1 : index
    %c0_744 = arith.constant 0 : index
    %757 = vector.load %arg0[%c1_741, %c4_742, %c1_743, %c0_744] : memref<2x10x10x8xf32, #tpu.memory_space<vmem>>, vector<1x1x8x8xf32>
    %758 = vector.shape_cast %757 : vector<1x1x8x8xf32> to vector<8x8xf32>
    %cst_745 = arith.constant dense<0.000000e+00> : vector<8x32xf32>
    %759 = tpu.matmul %758, %3, %cst_745 {dimension_numbers = #tpu.dot_dimension_numbers<[1], [0], [0], [1], [0, 0, 1, 1], [], []>} : vector<8x8xf32>, vector<8x32xf32>, vector<8x32xf32> -> vector<8x32xf32>
    %760 = arith.addf %756, %759 : vector<8x32xf32>
    %c1_746 = arith.constant 1 : index
    %c4_747 = arith.constant 4 : index
    %c2_748 = arith.constant 2 : index
    %c0_749 = arith.constant 0 : index
    %761 = vector.load %arg0[%c1_746, %c4_747, %c2_748, %c0_749] : memref<2x10x10x8xf32, #tpu.memory_space<vmem>>, vector<1x1x8x8xf32>
    %762 = vector.shape_cast %761 : vector<1x1x8x8xf32> to vector<8x8xf32>
    %cst_750 = arith.constant dense<0.000000e+00> : vector<8x32xf32>
    %763 = tpu.matmul %762, %5, %cst_750 {dimension_numbers = #tpu.dot_dimension_numbers<[1], [0], [0], [1], [0, 0, 1, 1], [], []>} : vector<8x8xf32>, vector<8x32xf32>, vector<8x32xf32> -> vector<8x32xf32>
    %764 = arith.addf %760, %763 : vector<8x32xf32>
    %c1_751 = arith.constant 1 : index
    %c5_752 = arith.constant 5 : index
    %c0_753 = arith.constant 0 : index
    %c0_754 = arith.constant 0 : index
    %765 = vector.load %arg0[%c1_751, %c5_752, %c0_753, %c0_754] : memref<2x10x10x8xf32, #tpu.memory_space<vmem>>, vector<1x1x8x8xf32>
    %766 = vector.shape_cast %765 : vector<1x1x8x8xf32> to vector<8x8xf32>
    %cst_755 = arith.constant dense<0.000000e+00> : vector<8x32xf32>
    %767 = tpu.matmul %766, %7, %cst_755 {dimension_numbers = #tpu.dot_dimension_numbers<[1], [0], [0], [1], [0, 0, 1, 1], [], []>} : vector<8x8xf32>, vector<8x32xf32>, vector<8x32xf32> -> vector<8x32xf32>
    %768 = arith.addf %764, %767 : vector<8x32xf32>
    %c1_756 = arith.constant 1 : index
    %c5_757 = arith.constant 5 : index
    %c1_758 = arith.constant 1 : index
    %c0_759 = arith.constant 0 : index
    %769 = vector.load %arg0[%c1_756, %c5_757, %c1_758, %c0_759] : memref<2x10x10x8xf32, #tpu.memory_space<vmem>>, vector<1x1x8x8xf32>
    %770 = vector.shape_cast %769 : vector<1x1x8x8xf32> to vector<8x8xf32>
    %cst_760 = arith.constant dense<0.000000e+00> : vector<8x32xf32>
    %771 = tpu.matmul %770, %9, %cst_760 {dimension_numbers = #tpu.dot_dimension_numbers<[1], [0], [0], [1], [0, 0, 1, 1], [], []>} : vector<8x8xf32>, vector<8x32xf32>, vector<8x32xf32> -> vector<8x32xf32>
    %772 = arith.addf %768, %771 : vector<8x32xf32>
    %c1_761 = arith.constant 1 : index
    %c5_762 = arith.constant 5 : index
    %c2_763 = arith.constant 2 : index
    %c0_764 = arith.constant 0 : index
    %773 = vector.load %arg0[%c1_761, %c5_762, %c2_763, %c0_764] : memref<2x10x10x8xf32, #tpu.memory_space<vmem>>, vector<1x1x8x8xf32>
    %774 = vector.shape_cast %773 : vector<1x1x8x8xf32> to vector<8x8xf32>
    %cst_765 = arith.constant dense<0.000000e+00> : vector<8x32xf32>
    %775 = tpu.matmul %774, %11, %cst_765 {dimension_numbers = #tpu.dot_dimension_numbers<[1], [0], [0], [1], [0, 0, 1, 1], [], []>} : vector<8x8xf32>, vector<8x32xf32>, vector<8x32xf32> -> vector<8x32xf32>
    %776 = arith.addf %772, %775 : vector<8x32xf32>
    %c1_766 = arith.constant 1 : index
    %c6_767 = arith.constant 6 : index
    %c0_768 = arith.constant 0 : index
    %c0_769 = arith.constant 0 : index
    %777 = vector.load %arg0[%c1_766, %c6_767, %c0_768, %c0_769] : memref<2x10x10x8xf32, #tpu.memory_space<vmem>>, vector<1x1x8x8xf32>
    %778 = vector.shape_cast %777 : vector<1x1x8x8xf32> to vector<8x8xf32>
    %cst_770 = arith.constant dense<0.000000e+00> : vector<8x32xf32>
    %779 = tpu.matmul %778, %13, %cst_770 {dimension_numbers = #tpu.dot_dimension_numbers<[1], [0], [0], [1], [0, 0, 1, 1], [], []>} : vector<8x8xf32>, vector<8x32xf32>, vector<8x32xf32> -> vector<8x32xf32>
    %780 = arith.addf %776, %779 : vector<8x32xf32>
    %c1_771 = arith.constant 1 : index
    %c6_772 = arith.constant 6 : index
    %c1_773 = arith.constant 1 : index
    %c0_774 = arith.constant 0 : index
    %781 = vector.load %arg0[%c1_771, %c6_772, %c1_773, %c0_774] : memref<2x10x10x8xf32, #tpu.memory_space<vmem>>, vector<1x1x8x8xf32>
    %782 = vector.shape_cast %781 : vector<1x1x8x8xf32> to vector<8x8xf32>
    %cst_775 = arith.constant dense<0.000000e+00> : vector<8x32xf32>
    %783 = tpu.matmul %782, %15, %cst_775 {dimension_numbers = #tpu.dot_dimension_numbers<[1], [0], [0], [1], [0, 0, 1, 1], [], []>} : vector<8x8xf32>, vector<8x32xf32>, vector<8x32xf32> -> vector<8x32xf32>
    %784 = arith.addf %780, %783 : vector<8x32xf32>
    %c1_776 = arith.constant 1 : index
    %c6_777 = arith.constant 6 : index
    %c2_778 = arith.constant 2 : index
    %c0_779 = arith.constant 0 : index
    %785 = vector.load %arg0[%c1_776, %c6_777, %c2_778, %c0_779] : memref<2x10x10x8xf32, #tpu.memory_space<vmem>>, vector<1x1x8x8xf32>
    %786 = vector.shape_cast %785 : vector<1x1x8x8xf32> to vector<8x8xf32>
    %cst_780 = arith.constant dense<0.000000e+00> : vector<8x32xf32>
    %787 = tpu.matmul %786, %17, %cst_780 {dimension_numbers = #tpu.dot_dimension_numbers<[1], [0], [0], [1], [0, 0, 1, 1], [], []>} : vector<8x8xf32>, vector<8x32xf32>, vector<8x32xf32> -> vector<8x32xf32>
    %788 = arith.addf %784, %787 : vector<8x32xf32>
    %c1_781 = arith.constant 1 : index
    %c5_782 = arith.constant 5 : index
    %c0_783 = arith.constant 0 : index
    %c0_784 = arith.constant 0 : index
    %789 = vector.load %arg0[%c1_781, %c5_782, %c0_783, %c0_784] : memref<2x10x10x8xf32, #tpu.memory_space<vmem>>, vector<1x1x8x8xf32>
    %790 = vector.shape_cast %789 : vector<1x1x8x8xf32> to vector<8x8xf32>
    %cst_785 = arith.constant dense<0.000000e+00> : vector<8x32xf32>
    %791 = tpu.matmul %790, %1, %cst_785 {dimension_numbers = #tpu.dot_dimension_numbers<[1], [0], [0], [1], [0, 0, 1, 1], [], []>} : vector<8x8xf32>, vector<8x32xf32>, vector<8x32xf32> -> vector<8x32xf32>
    %c1_786 = arith.constant 1 : index
    %c5_787 = arith.constant 5 : index
    %c1_788 = arith.constant 1 : index
    %c0_789 = arith.constant 0 : index
    %792 = vector.load %arg0[%c1_786, %c5_787, %c1_788, %c0_789] : memref<2x10x10x8xf32, #tpu.memory_space<vmem>>, vector<1x1x8x8xf32>
    %793 = vector.shape_cast %792 : vector<1x1x8x8xf32> to vector<8x8xf32>
    %cst_790 = arith.constant dense<0.000000e+00> : vector<8x32xf32>
    %794 = tpu.matmul %793, %3, %cst_790 {dimension_numbers = #tpu.dot_dimension_numbers<[1], [0], [0], [1], [0, 0, 1, 1], [], []>} : vector<8x8xf32>, vector<8x32xf32>, vector<8x32xf32> -> vector<8x32xf32>
    %795 = arith.addf %791, %794 : vector<8x32xf32>
    %c1_791 = arith.constant 1 : index
    %c5_792 = arith.constant 5 : index
    %c2_793 = arith.constant 2 : index
    %c0_794 = arith.constant 0 : index
    %796 = vector.load %arg0[%c1_791, %c5_792, %c2_793, %c0_794] : memref<2x10x10x8xf32, #tpu.memory_space<vmem>>, vector<1x1x8x8xf32>
    %797 = vector.shape_cast %796 : vector<1x1x8x8xf32> to vector<8x8xf32>
    %cst_795 = arith.constant dense<0.000000e+00> : vector<8x32xf32>
    %798 = tpu.matmul %797, %5, %cst_795 {dimension_numbers = #tpu.dot_dimension_numbers<[1], [0], [0], [1], [0, 0, 1, 1], [], []>} : vector<8x8xf32>, vector<8x32xf32>, vector<8x32xf32> -> vector<8x32xf32>
    %799 = arith.addf %795, %798 : vector<8x32xf32>
    %c1_796 = arith.constant 1 : index
    %c6_797 = arith.constant 6 : index
    %c0_798 = arith.constant 0 : index
    %c0_799 = arith.constant 0 : index
    %800 = vector.load %arg0[%c1_796, %c6_797, %c0_798, %c0_799] : memref<2x10x10x8xf32, #tpu.memory_space<vmem>>, vector<1x1x8x8xf32>
    %801 = vector.shape_cast %800 : vector<1x1x8x8xf32> to vector<8x8xf32>
    %cst_800 = arith.constant dense<0.000000e+00> : vector<8x32xf32>
    %802 = tpu.matmul %801, %7, %cst_800 {dimension_numbers = #tpu.dot_dimension_numbers<[1], [0], [0], [1], [0, 0, 1, 1], [], []>} : vector<8x8xf32>, vector<8x32xf32>, vector<8x32xf32> -> vector<8x32xf32>
    %803 = arith.addf %799, %802 : vector<8x32xf32>
    %c1_801 = arith.constant 1 : index
    %c6_802 = arith.constant 6 : index
    %c1_803 = arith.constant 1 : index
    %c0_804 = arith.constant 0 : index
    %804 = vector.load %arg0[%c1_801, %c6_802, %c1_803, %c0_804] : memref<2x10x10x8xf32, #tpu.memory_space<vmem>>, vector<1x1x8x8xf32>
    %805 = vector.shape_cast %804 : vector<1x1x8x8xf32> to vector<8x8xf32>
    %cst_805 = arith.constant dense<0.000000e+00> : vector<8x32xf32>
    %806 = tpu.matmul %805, %9, %cst_805 {dimension_numbers = #tpu.dot_dimension_numbers<[1], [0], [0], [1], [0, 0, 1, 1], [], []>} : vector<8x8xf32>, vector<8x32xf32>, vector<8x32xf32> -> vector<8x32xf32>
    %807 = arith.addf %803, %806 : vector<8x32xf32>
    %c1_806 = arith.constant 1 : index
    %c6_807 = arith.constant 6 : index
    %c2_808 = arith.constant 2 : index
    %c0_809 = arith.constant 0 : index
    %808 = vector.load %arg0[%c1_806, %c6_807, %c2_808, %c0_809] : memref<2x10x10x8xf32, #tpu.memory_space<vmem>>, vector<1x1x8x8xf32>
    %809 = vector.shape_cast %808 : vector<1x1x8x8xf32> to vector<8x8xf32>
    %cst_810 = arith.constant dense<0.000000e+00> : vector<8x32xf32>
    %810 = tpu.matmul %809, %11, %cst_810 {dimension_numbers = #tpu.dot_dimension_numbers<[1], [0], [0], [1], [0, 0, 1, 1], [], []>} : vector<8x8xf32>, vector<8x32xf32>, vector<8x32xf32> -> vector<8x32xf32>
    %811 = arith.addf %807, %810 : vector<8x32xf32>
    %c1_811 = arith.constant 1 : index
    %c7_812 = arith.constant 7 : index
    %c0_813 = arith.constant 0 : index
    %c0_814 = arith.constant 0 : index
    %812 = vector.load %arg0[%c1_811, %c7_812, %c0_813, %c0_814] : memref<2x10x10x8xf32, #tpu.memory_space<vmem>>, vector<1x1x8x8xf32>
    %813 = vector.shape_cast %812 : vector<1x1x8x8xf32> to vector<8x8xf32>
    %cst_815 = arith.constant dense<0.000000e+00> : vector<8x32xf32>
    %814 = tpu.matmul %813, %13, %cst_815 {dimension_numbers = #tpu.dot_dimension_numbers<[1], [0], [0], [1], [0, 0, 1, 1], [], []>} : vector<8x8xf32>, vector<8x32xf32>, vector<8x32xf32> -> vector<8x32xf32>
    %815 = arith.addf %811, %814 : vector<8x32xf32>
    %c1_816 = arith.constant 1 : index
    %c7_817 = arith.constant 7 : index
    %c1_818 = arith.constant 1 : index
    %c0_819 = arith.constant 0 : index
    %816 = vector.load %arg0[%c1_816, %c7_817, %c1_818, %c0_819] : memref<2x10x10x8xf32, #tpu.memory_space<vmem>>, vector<1x1x8x8xf32>
    %817 = vector.shape_cast %816 : vector<1x1x8x8xf32> to vector<8x8xf32>
    %cst_820 = arith.constant dense<0.000000e+00> : vector<8x32xf32>
    %818 = tpu.matmul %817, %15, %cst_820 {dimension_numbers = #tpu.dot_dimension_numbers<[1], [0], [0], [1], [0, 0, 1, 1], [], []>} : vector<8x8xf32>, vector<8x32xf32>, vector<8x32xf32> -> vector<8x32xf32>
    %819 = arith.addf %815, %818 : vector<8x32xf32>
    %c1_821 = arith.constant 1 : index
    %c7_822 = arith.constant 7 : index
    %c2_823 = arith.constant 2 : index
    %c0_824 = arith.constant 0 : index
    %820 = vector.load %arg0[%c1_821, %c7_822, %c2_823, %c0_824] : memref<2x10x10x8xf32, #tpu.memory_space<vmem>>, vector<1x1x8x8xf32>
    %821 = vector.shape_cast %820 : vector<1x1x8x8xf32> to vector<8x8xf32>
    %cst_825 = arith.constant dense<0.000000e+00> : vector<8x32xf32>
    %822 = tpu.matmul %821, %17, %cst_825 {dimension_numbers = #tpu.dot_dimension_numbers<[1], [0], [0], [1], [0, 0, 1, 1], [], []>} : vector<8x8xf32>, vector<8x32xf32>, vector<8x32xf32> -> vector<8x32xf32>
    %823 = arith.addf %819, %822 : vector<8x32xf32>
    %824 = arith.maximumf %788, %823 : vector<8x32xf32>
    %825 = vector.extract_strided_slice %824 {offsets = [0, 0], sizes = [1, 32], strides = [1, 1]} : vector<8x32xf32> to vector<1x32xf32>
    %826 = vector.extract_strided_slice %824 {offsets = [1, 0], sizes = [1, 32], strides = [1, 1]} : vector<8x32xf32> to vector<1x32xf32>
    %827 = arith.maximumf %825, %826 : vector<1x32xf32>
    %828 = arith.addf %827, %36 : vector<1x32xf32>
    %cst_826 = arith.constant 0.000000e+00 : f32
    %829 = vector.broadcast %cst_826 : f32 to vector<1x32xf32>
    %830 = arith.cmpf oge, %828, %829 : vector<1x32xf32>
    %cst_827 = arith.constant 0.00999999977 : f32
    %831 = vector.broadcast %cst_827 : f32 to vector<1x32xf32>
    %832 = arith.mulf %831, %828 : vector<1x32xf32>
    %833 = arith.select %830, %828, %832 : vector<1x32xi1>, vector<1x32xf32>
    %c1_828 = arith.constant 1 : index
    %c3_829 = arith.constant 3 : index
    %c1_830 = arith.constant 1 : index
    %c0_831 = arith.constant 0 : index
    %834 = vector.load %arg10[%c1_828, %c3_829, %c1_830, %c0_831] : memref<2x6x6x32xf32, #tpu.memory_space<vmem>>, vector<1x1x1x32xf32>
    %835 = vector.shape_cast %834 : vector<1x1x1x32xf32> to vector<1x32xf32>
    %836 = vector.shape_cast %833 : vector<1x32xf32> to vector<1x1x1x32xf32>
    tpu.vector_store %arg10[%c1_828, %c3_829, %c1_830, %c0_831], %836 {strides = array<i32>} : memref<2x6x6x32xf32, #tpu.memory_space<vmem>>, vector<1x1x1x32xf32>,
    %837 = vector.extract_strided_slice %824 {offsets = [2, 0], sizes = [1, 32], strides = [1, 1]} : vector<8x32xf32> to vector<1x32xf32>
    %838 = vector.extract_strided_slice %824 {offsets = [3, 0], sizes = [1, 32], strides = [1, 1]} : vector<8x32xf32> to vector<1x32xf32>
    %839 = arith.maximumf %837, %838 : vector<1x32xf32>
    %840 = arith.addf %839, %36 : vector<1x32xf32>
    %cst_832 = arith.constant 0.000000e+00 : f32
    %841 = vector.broadcast %cst_832 : f32 to vector<1x32xf32>
    %842 = arith.cmpf oge, %840, %841 : vector<1x32xf32>
    %cst_833 = arith.constant 0.00999999977 : f32
    %843 = vector.broadcast %cst_833 : f32 to vector<1x32xf32>
    %844 = arith.mulf %843, %840 : vector<1x32xf32>
    %845 = arith.select %842, %840, %844 : vector<1x32xi1>, vector<1x32xf32>
    %c1_834 = arith.constant 1 : index
    %c3_835 = arith.constant 3 : index
    %c2_836 = arith.constant 2 : index
    %c0_837 = arith.constant 0 : index
    %846 = vector.load %arg10[%c1_834, %c3_835, %c2_836, %c0_837] : memref<2x6x6x32xf32, #tpu.memory_space<vmem>>, vector<1x1x1x32xf32>
    %847 = vector.shape_cast %846 : vector<1x1x1x32xf32> to vector<1x32xf32>
    %848 = vector.shape_cast %845 : vector<1x32xf32> to vector<1x1x1x32xf32>
    tpu.vector_store %arg10[%c1_834, %c3_835, %c2_836, %c0_837], %848 {strides = array<i32>} : memref<2x6x6x32xf32, #tpu.memory_space<vmem>>, vector<1x1x1x32xf32>,
    %849 = vector.extract_strided_slice %824 {offsets = [4, 0], sizes = [1, 32], strides = [1, 1]} : vector<8x32xf32> to vector<1x32xf32>
    %850 = vector.extract_strided_slice %824 {offsets = [5, 0], sizes = [1, 32], strides = [1, 1]} : vector<8x32xf32> to vector<1x32xf32>
    %851 = arith.maximumf %849, %850 : vector<1x32xf32>
    %852 = arith.addf %851, %36 : vector<1x32xf32>
    %cst_838 = arith.constant 0.000000e+00 : f32
    %853 = vector.broadcast %cst_838 : f32 to vector<1x32xf32>
    %854 = arith.cmpf oge, %852, %853 : vector<1x32xf32>
    %cst_839 = arith.constant 0.00999999977 : f32
    %855 = vector.broadcast %cst_839 : f32 to vector<1x32xf32>
    %856 = arith.mulf %855, %852 : vector<1x32xf32>
    %857 = arith.select %854, %852, %856 : vector<1x32xi1>, vector<1x32xf32>
    %c1_840 = arith.constant 1 : index
    %c3_841 = arith.constant 3 : index
    %c3_842 = arith.constant 3 : index
    %c0_843 = arith.constant 0 : index
    %858 = vector.load %arg10[%c1_840, %c3_841, %c3_842, %c0_843] : memref<2x6x6x32xf32, #tpu.memory_space<vmem>>, vector<1x1x1x32xf32>
    %859 = vector.shape_cast %858 : vector<1x1x1x32xf32> to vector<1x32xf32>
    %860 = vector.shape_cast %857 : vector<1x32xf32> to vector<1x1x1x32xf32>
    tpu.vector_store %arg10[%c1_840, %c3_841, %c3_842, %c0_843], %860 {strides = array<i32>} : memref<2x6x6x32xf32, #tpu.memory_space<vmem>>, vector<1x1x1x32xf32>,
    %861 = vector.extract_strided_slice %824 {offsets = [6, 0], sizes = [1, 32], strides = [1, 1]} : vector<8x32xf32> to vector<1x32xf32>
    %862 = vector.extract_strided_slice %824 {offsets = [7, 0], sizes = [1, 32], strides = [1, 1]} : vector<8x32xf32> to vector<1x32xf32>
    %863 = arith.maximumf %861, %862 : vector<1x32xf32>
    %864 = arith.addf %863, %36 : vector<1x32xf32>
    %cst_844 = arith.constant 0.000000e+00 : f32
    %865 = vector.broadcast %cst_844 : f32 to vector<1x32xf32>
    %866 = arith.cmpf oge, %864, %865 : vector<1x32xf32>
    %cst_845 = arith.constant 0.00999999977 : f32
    %867 = vector.broadcast %cst_845 : f32 to vector<1x32xf32>
    %868 = arith.mulf %867, %864 : vector<1x32xf32>
    %869 = arith.select %866, %864, %868 : vector<1x32xi1>, vector<1x32xf32>
    %c1_846 = arith.constant 1 : index
    %c3_847 = arith.constant 3 : index
    %c4_848 = arith.constant 4 : index
    %c0_849 = arith.constant 0 : index
    %870 = vector.load %arg10[%c1_846, %c3_847, %c4_848, %c0_849] : memref<2x6x6x32xf32, #tpu.memory_space<vmem>>, vector<1x1x1x32xf32>
    %871 = vector.shape_cast %870 : vector<1x1x1x32xf32> to vector<1x32xf32>
    %872 = vector.shape_cast %869 : vector<1x32xf32> to vector<1x1x1x32xf32>
    tpu.vector_store %arg10[%c1_846, %c3_847, %c4_848, %c0_849], %872 {strides = array<i32>} : memref<2x6x6x32xf32, #tpu.memory_space<vmem>>, vector<1x1x1x32xf32>,
    %c1_850 = arith.constant 1 : index
    %c6_851 = arith.constant 6 : index
    %c0_852 = arith.constant 0 : index
    %c0_853 = arith.constant 0 : index
    %873 = vector.load %arg0[%c1_850, %c6_851, %c0_852, %c0_853] : memref<2x10x10x8xf32, #tpu.memory_space<vmem>>, vector<1x1x8x8xf32>
    %874 = vector.shape_cast %873 : vector<1x1x8x8xf32> to vector<8x8xf32>
    %cst_854 = arith.constant dense<0.000000e+00> : vector<8x32xf32>
    %875 = tpu.matmul %874, %1, %cst_854 {dimension_numbers = #tpu.dot_dimension_numbers<[1], [0], [0], [1], [0, 0, 1, 1], [], []>} : vector<8x8xf32>, vector<8x32xf32>, vector<8x32xf32> -> vector<8x32xf32>
    %c1_855 = arith.constant 1 : index
    %c6_856 = arith.constant 6 : index
    %c1_857 = arith.constant 1 : index
    %c0_858 = arith.constant 0 : index
    %876 = vector.load %arg0[%c1_855, %c6_856, %c1_857, %c0_858] : memref<2x10x10x8xf32, #tpu.memory_space<vmem>>, vector<1x1x8x8xf32>
    %877 = vector.shape_cast %876 : vector<1x1x8x8xf32> to vector<8x8xf32>
    %cst_859 = arith.constant dense<0.000000e+00> : vector<8x32xf32>
    %878 = tpu.matmul %877, %3, %cst_859 {dimension_numbers = #tpu.dot_dimension_numbers<[1], [0], [0], [1], [0, 0, 1, 1], [], []>} : vector<8x8xf32>, vector<8x32xf32>, vector<8x32xf32> -> vector<8x32xf32>
    %879 = arith.addf %875, %878 : vector<8x32xf32>
    %c1_860 = arith.constant 1 : index
    %c6_861 = arith.constant 6 : index
    %c2_862 = arith.constant 2 : index
    %c0_863 = arith.constant 0 : index
    %880 = vector.load %arg0[%c1_860, %c6_861, %c2_862, %c0_863] : memref<2x10x10x8xf32, #tpu.memory_space<vmem>>, vector<1x1x8x8xf32>
    %881 = vector.shape_cast %880 : vector<1x1x8x8xf32> to vector<8x8xf32>
    %cst_864 = arith.constant dense<0.000000e+00> : vector<8x32xf32>
    %882 = tpu.matmul %881, %5, %cst_864 {dimension_numbers = #tpu.dot_dimension_numbers<[1], [0], [0], [1], [0, 0, 1, 1], [], []>} : vector<8x8xf32>, vector<8x32xf32>, vector<8x32xf32> -> vector<8x32xf32>
    %883 = arith.addf %879, %882 : vector<8x32xf32>
    %c1_865 = arith.constant 1 : index
    %c7_866 = arith.constant 7 : index
    %c0_867 = arith.constant 0 : index
    %c0_868 = arith.constant 0 : index
    %884 = vector.load %arg0[%c1_865, %c7_866, %c0_867, %c0_868] : memref<2x10x10x8xf32, #tpu.memory_space<vmem>>, vector<1x1x8x8xf32>
    %885 = vector.shape_cast %884 : vector<1x1x8x8xf32> to vector<8x8xf32>
    %cst_869 = arith.constant dense<0.000000e+00> : vector<8x32xf32>
    %886 = tpu.matmul %885, %7, %cst_869 {dimension_numbers = #tpu.dot_dimension_numbers<[1], [0], [0], [1], [0, 0, 1, 1], [], []>} : vector<8x8xf32>, vector<8x32xf32>, vector<8x32xf32> -> vector<8x32xf32>
    %887 = arith.addf %883, %886 : vector<8x32xf32>
    %c1_870 = arith.constant 1 : index
    %c7_871 = arith.constant 7 : index
    %c1_872 = arith.constant 1 : index
    %c0_873 = arith.constant 0 : index
    %888 = vector.load %arg0[%c1_870, %c7_871, %c1_872, %c0_873] : memref<2x10x10x8xf32, #tpu.memory_space<vmem>>, vector<1x1x8x8xf32>
    %889 = vector.shape_cast %888 : vector<1x1x8x8xf32> to vector<8x8xf32>
    %cst_874 = arith.constant dense<0.000000e+00> : vector<8x32xf32>
    %890 = tpu.matmul %889, %9, %cst_874 {dimension_numbers = #tpu.dot_dimension_numbers<[1], [0], [0], [1], [0, 0, 1, 1], [], []>} : vector<8x8xf32>, vector<8x32xf32>, vector<8x32xf32> -> vector<8x32xf32>
    %891 = arith.addf %887, %890 : vector<8x32xf32>
    %c1_875 = arith.constant 1 : index
    %c7_876 = arith.constant 7 : index
    %c2_877 = arith.constant 2 : index
    %c0_878 = arith.constant 0 : index
    %892 = vector.load %arg0[%c1_875, %c7_876, %c2_877, %c0_878] : memref<2x10x10x8xf32, #tpu.memory_space<vmem>>, vector<1x1x8x8xf32>
    %893 = vector.shape_cast %892 : vector<1x1x8x8xf32> to vector<8x8xf32>
    %cst_879 = arith.constant dense<0.000000e+00> : vector<8x32xf32>
    %894 = tpu.matmul %893, %11, %cst_879 {dimension_numbers = #tpu.dot_dimension_numbers<[1], [0], [0], [1], [0, 0, 1, 1], [], []>} : vector<8x8xf32>, vector<8x32xf32>, vector<8x32xf32> -> vector<8x32xf32>
    %895 = arith.addf %891, %894 : vector<8x32xf32>
    %c1_880 = arith.constant 1 : index
    %c8_881 = arith.constant 8 : index
    %c0_882 = arith.constant 0 : index
    %c0_883 = arith.constant 0 : index
    %896 = vector.load %arg0[%c1_880, %c8_881, %c0_882, %c0_883] : memref<2x10x10x8xf32, #tpu.memory_space<vmem>>, vector<1x1x8x8xf32>
    %897 = vector.shape_cast %896 : vector<1x1x8x8xf32> to vector<8x8xf32>
    %cst_884 = arith.constant dense<0.000000e+00> : vector<8x32xf32>
    %898 = tpu.matmul %897, %13, %cst_884 {dimension_numbers = #tpu.dot_dimension_numbers<[1], [0], [0], [1], [0, 0, 1, 1], [], []>} : vector<8x8xf32>, vector<8x32xf32>, vector<8x32xf32> -> vector<8x32xf32>
    %899 = arith.addf %895, %898 : vector<8x32xf32>
    %c1_885 = arith.constant 1 : index
    %c8_886 = arith.constant 8 : index
    %c1_887 = arith.constant 1 : index
    %c0_888 = arith.constant 0 : index
    %900 = vector.load %arg0[%c1_885, %c8_886, %c1_887, %c0_888] : memref<2x10x10x8xf32, #tpu.memory_space<vmem>>, vector<1x1x8x8xf32>
    %901 = vector.shape_cast %900 : vector<1x1x8x8xf32> to vector<8x8xf32>
    %cst_889 = arith.constant dense<0.000000e+00> : vector<8x32xf32>
    %902 = tpu.matmul %901, %15, %cst_889 {dimension_numbers = #tpu.dot_dimension_numbers<[1], [0], [0], [1], [0, 0, 1, 1], [], []>} : vector<8x8xf32>, vector<8x32xf32>, vector<8x32xf32> -> vector<8x32xf32>
    %903 = arith.addf %899, %902 : vector<8x32xf32>
    %c1_890 = arith.constant 1 : index
    %c8_891 = arith.constant 8 : index
    %c2_892 = arith.constant 2 : index
    %c0_893 = arith.constant 0 : index
    %904 = vector.load %arg0[%c1_890, %c8_891, %c2_892, %c0_893] : memref<2x10x10x8xf32, #tpu.memory_space<vmem>>, vector<1x1x8x8xf32>
    %905 = vector.shape_cast %904 : vector<1x1x8x8xf32> to vector<8x8xf32>
    %cst_894 = arith.constant dense<0.000000e+00> : vector<8x32xf32>
    %906 = tpu.matmul %905, %17, %cst_894 {dimension_numbers = #tpu.dot_dimension_numbers<[1], [0], [0], [1], [0, 0, 1, 1], [], []>} : vector<8x8xf32>, vector<8x32xf32>, vector<8x32xf32> -> vector<8x32xf32>
    %907 = arith.addf %903, %906 : vector<8x32xf32>
    %c1_895 = arith.constant 1 : index
    %c7_896 = arith.constant 7 : index
    %c0_897 = arith.constant 0 : index
    %c0_898 = arith.constant 0 : index
    %908 = vector.load %arg0[%c1_895, %c7_896, %c0_897, %c0_898] : memref<2x10x10x8xf32, #tpu.memory_space<vmem>>, vector<1x1x8x8xf32>
    %909 = vector.shape_cast %908 : vector<1x1x8x8xf32> to vector<8x8xf32>
    %cst_899 = arith.constant dense<0.000000e+00> : vector<8x32xf32>
    %910 = tpu.matmul %909, %1, %cst_899 {dimension_numbers = #tpu.dot_dimension_numbers<[1], [0], [0], [1], [0, 0, 1, 1], [], []>} : vector<8x8xf32>, vector<8x32xf32>, vector<8x32xf32> -> vector<8x32xf32>
    %c1_900 = arith.constant 1 : index
    %c7_901 = arith.constant 7 : index
    %c1_902 = arith.constant 1 : index
    %c0_903 = arith.constant 0 : index
    %911 = vector.load %arg0[%c1_900, %c7_901, %c1_902, %c0_903] : memref<2x10x10x8xf32, #tpu.memory_space<vmem>>, vector<1x1x8x8xf32>
    %912 = vector.shape_cast %911 : vector<1x1x8x8xf32> to vector<8x8xf32>
    %cst_904 = arith.constant dense<0.000000e+00> : vector<8x32xf32>
    %913 = tpu.matmul %912, %3, %cst_904 {dimension_numbers = #tpu.dot_dimension_numbers<[1], [0], [0], [1], [0, 0, 1, 1], [], []>} : vector<8x8xf32>, vector<8x32xf32>, vector<8x32xf32> -> vector<8x32xf32>
    %914 = arith.addf %910, %913 : vector<8x32xf32>
    %c1_905 = arith.constant 1 : index
    %c7_906 = arith.constant 7 : index
    %c2_907 = arith.constant 2 : index
    %c0_908 = arith.constant 0 : index
    %915 = vector.load %arg0[%c1_905, %c7_906, %c2_907, %c0_908] : memref<2x10x10x8xf32, #tpu.memory_space<vmem>>, vector<1x1x8x8xf32>
    %916 = vector.shape_cast %915 : vector<1x1x8x8xf32> to vector<8x8xf32>
    %cst_909 = arith.constant dense<0.000000e+00> : vector<8x32xf32>
    %917 = tpu.matmul %916, %5, %cst_909 {dimension_numbers = #tpu.dot_dimension_numbers<[1], [0], [0], [1], [0, 0, 1, 1], [], []>} : vector<8x8xf32>, vector<8x32xf32>, vector<8x32xf32> -> vector<8x32xf32>
    %918 = arith.addf %914, %917 : vector<8x32xf32>
    %c1_910 = arith.constant 1 : index
    %c8_911 = arith.constant 8 : index
    %c0_912 = arith.constant 0 : index
    %c0_913 = arith.constant 0 : index
    %919 = vector.load %arg0[%c1_910, %c8_911, %c0_912, %c0_913] : memref<2x10x10x8xf32, #tpu.memory_space<vmem>>, vector<1x1x8x8xf32>
    %920 = vector.shape_cast %919 : vector<1x1x8x8xf32> to vector<8x8xf32>
    %cst_914 = arith.constant dense<0.000000e+00> : vector<8x32xf32>
    %921 = tpu.matmul %920, %7, %cst_914 {dimension_numbers = #tpu.dot_dimension_numbers<[1], [0], [0], [1], [0, 0, 1, 1], [], []>} : vector<8x8xf32>, vector<8x32xf32>, vector<8x32xf32> -> vector<8x32xf32>
    %922 = arith.addf %918, %921 : vector<8x32xf32>
    %c1_915 = arith.constant 1 : index
    %c8_916 = arith.constant 8 : index
    %c1_917 = arith.constant 1 : index
    %c0_918 = arith.constant 0 : index
    %923 = vector.load %arg0[%c1_915, %c8_916, %c1_917, %c0_918] : memref<2x10x10x8xf32, #tpu.memory_space<vmem>>, vector<1x1x8x8xf32>
    %924 = vector.shape_cast %923 : vector<1x1x8x8xf32> to vector<8x8xf32>
    %cst_919 = arith.constant dense<0.000000e+00> : vector<8x32xf32>
    %925 = tpu.matmul %924, %9, %cst_919 {dimension_numbers = #tpu.dot_dimension_numbers<[1], [0], [0], [1], [0, 0, 1, 1], [], []>} : vector<8x8xf32>, vector<8x32xf32>, vector<8x32xf32> -> vector<8x32xf32>
    %926 = arith.addf %922, %925 : vector<8x32xf32>
    %c1_920 = arith.constant 1 : index
    %c8_921 = arith.constant 8 : index
    %c2_922 = arith.constant 2 : index
    %c0_923 = arith.constant 0 : index
    %927 = vector.load %arg0[%c1_920, %c8_921, %c2_922, %c0_923] : memref<2x10x10x8xf32, #tpu.memory_space<vmem>>, vector<1x1x8x8xf32>
    %928 = vector.shape_cast %927 : vector<1x1x8x8xf32> to vector<8x8xf32>
    %cst_924 = arith.constant dense<0.000000e+00> : vector<8x32xf32>
    %929 = tpu.matmul %928, %11, %cst_924 {dimension_numbers = #tpu.dot_dimension_numbers<[1], [0], [0], [1], [0, 0, 1, 1], [], []>} : vector<8x8xf32>, vector<8x32xf32>, vector<8x32xf32> -> vector<8x32xf32>
    %930 = arith.addf %926, %929 : vector<8x32xf32>
    %c1_925 = arith.constant 1 : index
    %c9_926 = arith.constant 9 : index
    %c0_927 = arith.constant 0 : index
    %c0_928 = arith.constant 0 : index
    %931 = vector.load %arg0[%c1_925, %c9_926, %c0_927, %c0_928] : memref<2x10x10x8xf32, #tpu.memory_space<vmem>>, vector<1x1x8x8xf32>
    %932 = vector.shape_cast %931 : vector<1x1x8x8xf32> to vector<8x8xf32>
    %cst_929 = arith.constant dense<0.000000e+00> : vector<8x32xf32>
    %933 = tpu.matmul %932, %13, %cst_929 {dimension_numbers = #tpu.dot_dimension_numbers<[1], [0], [0], [1], [0, 0, 1, 1], [], []>} : vector<8x8xf32>, vector<8x32xf32>, vector<8x32xf32> -> vector<8x32xf32>
    %934 = arith.addf %930, %933 : vector<8x32xf32>
    %c1_930 = arith.constant 1 : index
    %c9_931 = arith.constant 9 : index
    %c1_932 = arith.constant 1 : index
    %c0_933 = arith.constant 0 : index
    %935 = vector.load %arg0[%c1_930, %c9_931, %c1_932, %c0_933] : memref<2x10x10x8xf32, #tpu.memory_space<vmem>>, vector<1x1x8x8xf32>
    %936 = vector.shape_cast %935 : vector<1x1x8x8xf32> to vector<8x8xf32>
    %cst_934 = arith.constant dense<0.000000e+00> : vector<8x32xf32>
    %937 = tpu.matmul %936, %15, %cst_934 {dimension_numbers = #tpu.dot_dimension_numbers<[1], [0], [0], [1], [0, 0, 1, 1], [], []>} : vector<8x8xf32>, vector<8x32xf32>, vector<8x32xf32> -> vector<8x32xf32>
    %938 = arith.addf %934, %937 : vector<8x32xf32>
    %c1_935 = arith.constant 1 : index
    %c9_936 = arith.constant 9 : index
    %c2_937 = arith.constant 2 : index
    %c0_938 = arith.constant 0 : index
    %939 = vector.load %arg0[%c1_935, %c9_936, %c2_937, %c0_938] : memref<2x10x10x8xf32, #tpu.memory_space<vmem>>, vector<1x1x8x8xf32>
    %940 = vector.shape_cast %939 : vector<1x1x8x8xf32> to vector<8x8xf32>
    %cst_939 = arith.constant dense<0.000000e+00> : vector<8x32xf32>
    %941 = tpu.matmul %940, %17, %cst_939 {dimension_numbers = #tpu.dot_dimension_numbers<[1], [0], [0], [1], [0, 0, 1, 1], [], []>} : vector<8x8xf32>, vector<8x32xf32>, vector<8x32xf32> -> vector<8x32xf32>
    %942 = arith.addf %938, %941 : vector<8x32xf32>
    %943 = arith.maximumf %907, %942 : vector<8x32xf32>
    %944 = vector.extract_strided_slice %943 {offsets = [0, 0], sizes = [1, 32], strides = [1, 1]} : vector<8x32xf32> to vector<1x32xf32>
    %945 = vector.extract_strided_slice %943 {offsets = [1, 0], sizes = [1, 32], strides = [1, 1]} : vector<8x32xf32> to vector<1x32xf32>
    %946 = arith.maximumf %944, %945 : vector<1x32xf32>
    %947 = arith.addf %946, %36 : vector<1x32xf32>
    %cst_940 = arith.constant 0.000000e+00 : f32
    %948 = vector.broadcast %cst_940 : f32 to vector<1x32xf32>
    %949 = arith.cmpf oge, %947, %948 : vector<1x32xf32>
    %cst_941 = arith.constant 0.00999999977 : f32
    %950 = vector.broadcast %cst_941 : f32 to vector<1x32xf32>
    %951 = arith.mulf %950, %947 : vector<1x32xf32>
    %952 = arith.select %949, %947, %951 : vector<1x32xi1>, vector<1x32xf32>
    %c1_942 = arith.constant 1 : index
    %c4_943 = arith.constant 4 : index
    %c1_944 = arith.constant 1 : index
    %c0_945 = arith.constant 0 : index
    %953 = vector.load %arg10[%c1_942, %c4_943, %c1_944, %c0_945] : memref<2x6x6x32xf32, #tpu.memory_space<vmem>>, vector<1x1x1x32xf32>
    %954 = vector.shape_cast %953 : vector<1x1x1x32xf32> to vector<1x32xf32>
    %955 = vector.shape_cast %952 : vector<1x32xf32> to vector<1x1x1x32xf32>
    tpu.vector_store %arg10[%c1_942, %c4_943, %c1_944, %c0_945], %955 {strides = array<i32>} : memref<2x6x6x32xf32, #tpu.memory_space<vmem>>, vector<1x1x1x32xf32>,
    %956 = vector.extract_strided_slice %943 {offsets = [2, 0], sizes = [1, 32], strides = [1, 1]} : vector<8x32xf32> to vector<1x32xf32>
    %957 = vector.extract_strided_slice %943 {offsets = [3, 0], sizes = [1, 32], strides = [1, 1]} : vector<8x32xf32> to vector<1x32xf32>
    %958 = arith.maximumf %956, %957 : vector<1x32xf32>
    %959 = arith.addf %958, %36 : vector<1x32xf32>
    %cst_946 = arith.constant 0.000000e+00 : f32
    %960 = vector.broadcast %cst_946 : f32 to vector<1x32xf32>
    %961 = arith.cmpf oge, %959, %960 : vector<1x32xf32>
    %cst_947 = arith.constant 0.00999999977 : f32
    %962 = vector.broadcast %cst_947 : f32 to vector<1x32xf32>
    %963 = arith.mulf %962, %959 : vector<1x32xf32>
    %964 = arith.select %961, %959, %963 : vector<1x32xi1>, vector<1x32xf32>
    %c1_948 = arith.constant 1 : index
    %c4_949 = arith.constant 4 : index
    %c2_950 = arith.constant 2 : index
    %c0_951 = arith.constant 0 : index
    %965 = vector.load %arg10[%c1_948, %c4_949, %c2_950, %c0_951] : memref<2x6x6x32xf32, #tpu.memory_space<vmem>>, vector<1x1x1x32xf32>
    %966 = vector.shape_cast %965 : vector<1x1x1x32xf32> to vector<1x32xf32>
    %967 = vector.shape_cast %964 : vector<1x32xf32> to vector<1x1x1x32xf32>
    tpu.vector_store %arg10[%c1_948, %c4_949, %c2_950, %c0_951], %967 {strides = array<i32>} : memref<2x6x6x32xf32, #tpu.memory_space<vmem>>, vector<1x1x1x32xf32>,
    %968 = vector.extract_strided_slice %943 {offsets = [4, 0], sizes = [1, 32], strides = [1, 1]} : vector<8x32xf32> to vector<1x32xf32>
    %969 = vector.extract_strided_slice %943 {offsets = [5, 0], sizes = [1, 32], strides = [1, 1]} : vector<8x32xf32> to vector<1x32xf32>
    %970 = arith.maximumf %968, %969 : vector<1x32xf32>
    %971 = arith.addf %970, %36 : vector<1x32xf32>
    %cst_952 = arith.constant 0.000000e+00 : f32
    %972 = vector.broadcast %cst_952 : f32 to vector<1x32xf32>
    %973 = arith.cmpf oge, %971, %972 : vector<1x32xf32>
    %cst_953 = arith.constant 0.00999999977 : f32
    %974 = vector.broadcast %cst_953 : f32 to vector<1x32xf32>
    %975 = arith.mulf %974, %971 : vector<1x32xf32>
    %976 = arith.select %973, %971, %975 : vector<1x32xi1>, vector<1x32xf32>
    %c1_954 = arith.constant 1 : index
    %c4_955 = arith.constant 4 : index
    %c3_956 = arith.constant 3 : index
    %c0_957 = arith.constant 0 : index
    %977 = vector.load %arg10[%c1_954, %c4_955, %c3_956, %c0_957] : memref<2x6x6x32xf32, #tpu.memory_space<vmem>>, vector<1x1x1x32xf32>
    %978 = vector.shape_cast %977 : vector<1x1x1x32xf32> to vector<1x32xf32>
    %979 = vector.shape_cast %976 : vector<1x32xf32> to vector<1x1x1x32xf32>
    tpu.vector_store %arg10[%c1_954, %c4_955, %c3_956, %c0_957], %979 {strides = array<i32>} : memref<2x6x6x32xf32, #tpu.memory_space<vmem>>, vector<1x1x1x32xf32>,
    %980 = vector.extract_strided_slice %943 {offsets = [6, 0], sizes = [1, 32], strides = [1, 1]} : vector<8x32xf32> to vector<1x32xf32>
    %981 = vector.extract_strided_slice %943 {offsets = [7, 0], sizes = [1, 32], strides = [1, 1]} : vector<8x32xf32> to vector<1x32xf32>
    %982 = arith.maximumf %980, %981 : vector<1x32xf32>
    %983 = arith.addf %982, %36 : vector<1x32xf32>
    %cst_958 = arith.constant 0.000000e+00 : f32
    %984 = vector.broadcast %cst_958 : f32 to vector<1x32xf32>
    %985 = arith.cmpf oge, %983, %984 : vector<1x32xf32>
    %cst_959 = arith.constant 0.00999999977 : f32
    %986 = vector.broadcast %cst_959 : f32 to vector<1x32xf32>
    %987 = arith.mulf %986, %983 : vector<1x32xf32>
    %988 = arith.select %985, %983, %987 : vector<1x32xi1>, vector<1x32xf32>
    %c1_960 = arith.constant 1 : index
    %c4_961 = arith.constant 4 : index
    %c4_962 = arith.constant 4 : index
    %c0_963 = arith.constant 0 : index
    %989 = vector.load %arg10[%c1_960, %c4_961, %c4_962, %c0_963] : memref<2x6x6x32xf32, #tpu.memory_space<vmem>>, vector<1x1x1x32xf32>
    %990 = vector.shape_cast %989 : vector<1x1x1x32xf32> to vector<1x32xf32>
    %991 = vector.shape_cast %988 : vector<1x32xf32> to vector<1x1x1x32xf32>
    tpu.vector_store %arg10[%c1_960, %c4_961, %c4_962, %c0_963], %991 {strides = array<i32>} : memref<2x6x6x32xf32, #tpu.memory_space<vmem>>, vector<1x1x1x32xf32>,
    %c0_964 = arith.constant 0 : index
    %c0_965 = arith.constant 0 : index
    %c0_966 = arith.constant 0 : index
    %c0_967 = arith.constant 0 : index
    %992 = vector.load %arg10[%c0_964, %c0_965, %c0_966, %c0_967] : memref<2x6x6x32xf32, #tpu.memory_space<vmem>>, vector<1x1x4x32xf32>
    %993 = vector.shape_cast %992 : vector<1x1x4x32xf32> to vector<4x32xf32>
    %cst_968 = arith.constant dense<0.000000e+00> : vector<4x64xf32>
    %994 = tpu.matmul %993, %19, %cst_968 {dimension_numbers = #tpu.dot_dimension_numbers<[1], [0], [0], [1], [0, 0, 1, 1], [], []>} : vector<4x32xf32>, vector<32x64xf32>, vector<4x64xf32> -> vector<4x64xf32>
    %c0_969 = arith.constant 0 : index
    %c0_970 = arith.constant 0 : index
    %c1_971 = arith.constant 1 : index
    %c0_972 = arith.constant 0 : index
    %995 = vector.load %arg10[%c0_969, %c0_970, %c1_971, %c0_972] : memref<2x6x6x32xf32, #tpu.memory_space<vmem>>, vector<1x1x4x32xf32>
    %996 = vector.shape_cast %995 : vector<1x1x4x32xf32> to vector<4x32xf32>
    %cst_973 = arith.constant dense<0.000000e+00> : vector<4x64xf32>
    %997 = tpu.matmul %996, %21, %cst_973 {dimension_numbers = #tpu.dot_dimension_numbers<[1], [0], [0], [1], [0, 0, 1, 1], [], []>} : vector<4x32xf32>, vector<32x64xf32>, vector<4x64xf32> -> vector<4x64xf32>
    %998 = arith.addf %994, %997 : vector<4x64xf32>
    %c0_974 = arith.constant 0 : index
    %c0_975 = arith.constant 0 : index
    %c2_976 = arith.constant 2 : index
    %c0_977 = arith.constant 0 : index
    %999 = vector.load %arg10[%c0_974, %c0_975, %c2_976, %c0_977] : memref<2x6x6x32xf32, #tpu.memory_space<vmem>>, vector<1x1x4x32xf32>
    %1000 = vector.shape_cast %999 : vector<1x1x4x32xf32> to vector<4x32xf32>
    %cst_978 = arith.constant dense<0.000000e+00> : vector<4x64xf32>
    %1001 = tpu.matmul %1000, %23, %cst_978 {dimension_numbers = #tpu.dot_dimension_numbers<[1], [0], [0], [1], [0, 0, 1, 1], [], []>} : vector<4x32xf32>, vector<32x64xf32>, vector<4x64xf32> -> vector<4x64xf32>
    %1002 = arith.addf %998, %1001 : vector<4x64xf32>
    %c0_979 = arith.constant 0 : index
    %c1_980 = arith.constant 1 : index
    %c0_981 = arith.constant 0 : index
    %c0_982 = arith.constant 0 : index
    %1003 = vector.load %arg10[%c0_979, %c1_980, %c0_981, %c0_982] : memref<2x6x6x32xf32, #tpu.memory_space<vmem>>, vector<1x1x4x32xf32>
    %1004 = vector.shape_cast %1003 : vector<1x1x4x32xf32> to vector<4x32xf32>
    %cst_983 = arith.constant dense<0.000000e+00> : vector<4x64xf32>
    %1005 = tpu.matmul %1004, %25, %cst_983 {dimension_numbers = #tpu.dot_dimension_numbers<[1], [0], [0], [1], [0, 0, 1, 1], [], []>} : vector<4x32xf32>, vector<32x64xf32>, vector<4x64xf32> -> vector<4x64xf32>
    %1006 = arith.addf %1002, %1005 : vector<4x64xf32>
    %c0_984 = arith.constant 0 : index
    %c1_985 = arith.constant 1 : index
    %c1_986 = arith.constant 1 : index
    %c0_987 = arith.constant 0 : index
    %1007 = vector.load %arg10[%c0_984, %c1_985, %c1_986, %c0_987] : memref<2x6x6x32xf32, #tpu.memory_space<vmem>>, vector<1x1x4x32xf32>
    %1008 = vector.shape_cast %1007 : vector<1x1x4x32xf32> to vector<4x32xf32>
    %cst_988 = arith.constant dense<0.000000e+00> : vector<4x64xf32>
    %1009 = tpu.matmul %1008, %27, %cst_988 {dimension_numbers = #tpu.dot_dimension_numbers<[1], [0], [0], [1], [0, 0, 1, 1], [], []>} : vector<4x32xf32>, vector<32x64xf32>, vector<4x64xf32> -> vector<4x64xf32>
    %1010 = arith.addf %1006, %1009 : vector<4x64xf32>
    %c0_989 = arith.constant 0 : index
    %c1_990 = arith.constant 1 : index
    %c2_991 = arith.constant 2 : index
    %c0_992 = arith.constant 0 : index
    %1011 = vector.load %arg10[%c0_989, %c1_990, %c2_991, %c0_992] : memref<2x6x6x32xf32, #tpu.memory_space<vmem>>, vector<1x1x4x32xf32>
    %1012 = vector.shape_cast %1011 : vector<1x1x4x32xf32> to vector<4x32xf32>
    %cst_993 = arith.constant dense<0.000000e+00> : vector<4x64xf32>
    %1013 = tpu.matmul %1012, %29, %cst_993 {dimension_numbers = #tpu.dot_dimension_numbers<[1], [0], [0], [1], [0, 0, 1, 1], [], []>} : vector<4x32xf32>, vector<32x64xf32>, vector<4x64xf32> -> vector<4x64xf32>
    %1014 = arith.addf %1010, %1013 : vector<4x64xf32>
    %c0_994 = arith.constant 0 : index
    %c2_995 = arith.constant 2 : index
    %c0_996 = arith.constant 0 : index
    %c0_997 = arith.constant 0 : index
    %1015 = vector.load %arg10[%c0_994, %c2_995, %c0_996, %c0_997] : memref<2x6x6x32xf32, #tpu.memory_space<vmem>>, vector<1x1x4x32xf32>
    %1016 = vector.shape_cast %1015 : vector<1x1x4x32xf32> to vector<4x32xf32>
    %cst_998 = arith.constant dense<0.000000e+00> : vector<4x64xf32>
    %1017 = tpu.matmul %1016, %31, %cst_998 {dimension_numbers = #tpu.dot_dimension_numbers<[1], [0], [0], [1], [0, 0, 1, 1], [], []>} : vector<4x32xf32>, vector<32x64xf32>, vector<4x64xf32> -> vector<4x64xf32>
    %1018 = arith.addf %1014, %1017 : vector<4x64xf32>
    %c0_999 = arith.constant 0 : index
    %c2_1000 = arith.constant 2 : index
    %c1_1001 = arith.constant 1 : index
    %c0_1002 = arith.constant 0 : index
    %1019 = vector.load %arg10[%c0_999, %c2_1000, %c1_1001, %c0_1002] : memref<2x6x6x32xf32, #tpu.memory_space<vmem>>, vector<1x1x4x32xf32>
    %1020 = vector.shape_cast %1019 : vector<1x1x4x32xf32> to vector<4x32xf32>
    %cst_1003 = arith.constant dense<0.000000e+00> : vector<4x64xf32>
    %1021 = tpu.matmul %1020, %33, %cst_1003 {dimension_numbers = #tpu.dot_dimension_numbers<[1], [0], [0], [1], [0, 0, 1, 1], [], []>} : vector<4x32xf32>, vector<32x64xf32>, vector<4x64xf32> -> vector<4x64xf32>
    %1022 = arith.addf %1018, %1021 : vector<4x64xf32>
    %c0_1004 = arith.constant 0 : index
    %c2_1005 = arith.constant 2 : index
    %c2_1006 = arith.constant 2 : index
    %c0_1007 = arith.constant 0 : index
    %1023 = vector.load %arg10[%c0_1004, %c2_1005, %c2_1006, %c0_1007] : memref<2x6x6x32xf32, #tpu.memory_space<vmem>>, vector<1x1x4x32xf32>
    %1024 = vector.shape_cast %1023 : vector<1x1x4x32xf32> to vector<4x32xf32>
    %cst_1008 = arith.constant dense<0.000000e+00> : vector<4x64xf32>
    %1025 = tpu.matmul %1024, %35, %cst_1008 {dimension_numbers = #tpu.dot_dimension_numbers<[1], [0], [0], [1], [0, 0, 1, 1], [], []>} : vector<4x32xf32>, vector<32x64xf32>, vector<4x64xf32> -> vector<4x64xf32>
    %1026 = arith.addf %1022, %1025 : vector<4x64xf32>
    %c0_1009 = arith.constant 0 : index
    %c1_1010 = arith.constant 1 : index
    %c0_1011 = arith.constant 0 : index
    %c0_1012 = arith.constant 0 : index
    %1027 = vector.load %arg10[%c0_1009, %c1_1010, %c0_1011, %c0_1012] : memref<2x6x6x32xf32, #tpu.memory_space<vmem>>, vector<1x1x4x32xf32>
    %1028 = vector.shape_cast %1027 : vector<1x1x4x32xf32> to vector<4x32xf32>
    %cst_1013 = arith.constant dense<0.000000e+00> : vector<4x64xf32>
    %1029 = tpu.matmul %1028, %19, %cst_1013 {dimension_numbers = #tpu.dot_dimension_numbers<[1], [0], [0], [1], [0, 0, 1, 1], [], []>} : vector<4x32xf32>, vector<32x64xf32>, vector<4x64xf32> -> vector<4x64xf32>
    %c0_1014 = arith.constant 0 : index
    %c1_1015 = arith.constant 1 : index
    %c1_1016 = arith.constant 1 : index
    %c0_1017 = arith.constant 0 : index
    %1030 = vector.load %arg10[%c0_1014, %c1_1015, %c1_1016, %c0_1017] : memref<2x6x6x32xf32, #tpu.memory_space<vmem>>, vector<1x1x4x32xf32>
    %1031 = vector.shape_cast %1030 : vector<1x1x4x32xf32> to vector<4x32xf32>
    %cst_1018 = arith.constant dense<0.000000e+00> : vector<4x64xf32>
    %1032 = tpu.matmul %1031, %21, %cst_1018 {dimension_numbers = #tpu.dot_dimension_numbers<[1], [0], [0], [1], [0, 0, 1, 1], [], []>} : vector<4x32xf32>, vector<32x64xf32>, vector<4x64xf32> -> vector<4x64xf32>
    %1033 = arith.addf %1029, %1032 : vector<4x64xf32>
    %c0_1019 = arith.constant 0 : index
    %c1_1020 = arith.constant 1 : index
    %c2_1021 = arith.constant 2 : index
    %c0_1022 = arith.constant 0 : index
    %1034 = vector.load %arg10[%c0_1019, %c1_1020, %c2_1021, %c0_1022] : memref<2x6x6x32xf32, #tpu.memory_space<vmem>>, vector<1x1x4x32xf32>
    %1035 = vector.shape_cast %1034 : vector<1x1x4x32xf32> to vector<4x32xf32>
    %cst_1023 = arith.constant dense<0.000000e+00> : vector<4x64xf32>
    %1036 = tpu.matmul %1035, %23, %cst_1023 {dimension_numbers = #tpu.dot_dimension_numbers<[1], [0], [0], [1], [0, 0, 1, 1], [], []>} : vector<4x32xf32>, vector<32x64xf32>, vector<4x64xf32> -> vector<4x64xf32>
    %1037 = arith.addf %1033, %1036 : vector<4x64xf32>
    %c0_1024 = arith.constant 0 : index
    %c2_1025 = arith.constant 2 : index
    %c0_1026 = arith.constant 0 : index
    %c0_1027 = arith.constant 0 : index
    %1038 = vector.load %arg10[%c0_1024, %c2_1025, %c0_1026, %c0_1027] : memref<2x6x6x32xf32, #tpu.memory_space<vmem>>, vector<1x1x4x32xf32>
    %1039 = vector.shape_cast %1038 : vector<1x1x4x32xf32> to vector<4x32xf32>
    %cst_1028 = arith.constant dense<0.000000e+00> : vector<4x64xf32>
    %1040 = tpu.matmul %1039, %25, %cst_1028 {dimension_numbers = #tpu.dot_dimension_numbers<[1], [0], [0], [1], [0, 0, 1, 1], [], []>} : vector<4x32xf32>, vector<32x64xf32>, vector<4x64xf32> -> vector<4x64xf32>
    %1041 = arith.addf %1037, %1040 : vector<4x64xf32>
    %c0_1029 = arith.constant 0 : index
    %c2_1030 = arith.constant 2 : index
    %c1_1031 = arith.constant 1 : index
    %c0_1032 = arith.constant 0 : index
    %1042 = vector.load %arg10[%c0_1029, %c2_1030, %c1_1031, %c0_1032] : memref<2x6x6x32xf32, #tpu.memory_space<vmem>>, vector<1x1x4x32xf32>
    %1043 = vector.shape_cast %1042 : vector<1x1x4x32xf32> to vector<4x32xf32>
    %cst_1033 = arith.constant dense<0.000000e+00> : vector<4x64xf32>
    %1044 = tpu.matmul %1043, %27, %cst_1033 {dimension_numbers = #tpu.dot_dimension_numbers<[1], [0], [0], [1], [0, 0, 1, 1], [], []>} : vector<4x32xf32>, vector<32x64xf32>, vector<4x64xf32> -> vector<4x64xf32>
    %1045 = arith.addf %1041, %1044 : vector<4x64xf32>
    %c0_1034 = arith.constant 0 : index
    %c2_1035 = arith.constant 2 : index
    %c2_1036 = arith.constant 2 : index
    %c0_1037 = arith.constant 0 : index
    %1046 = vector.load %arg10[%c0_1034, %c2_1035, %c2_1036, %c0_1037] : memref<2x6x6x32xf32, #tpu.memory_space<vmem>>, vector<1x1x4x32xf32>
    %1047 = vector.shape_cast %1046 : vector<1x1x4x32xf32> to vector<4x32xf32>
    %cst_1038 = arith.constant dense<0.000000e+00> : vector<4x64xf32>
    %1048 = tpu.matmul %1047, %29, %cst_1038 {dimension_numbers = #tpu.dot_dimension_numbers<[1], [0], [0], [1], [0, 0, 1, 1], [], []>} : vector<4x32xf32>, vector<32x64xf32>, vector<4x64xf32> -> vector<4x64xf32>
    %1049 = arith.addf %1045, %1048 : vector<4x64xf32>
    %c0_1039 = arith.constant 0 : index
    %c3_1040 = arith.constant 3 : index
    %c0_1041 = arith.constant 0 : index
    %c0_1042 = arith.constant 0 : index
    %1050 = vector.load %arg10[%c0_1039, %c3_1040, %c0_1041, %c0_1042] : memref<2x6x6x32xf32, #tpu.memory_space<vmem>>, vector<1x1x4x32xf32>
    %1051 = vector.shape_cast %1050 : vector<1x1x4x32xf32> to vector<4x32xf32>
    %cst_1043 = arith.constant dense<0.000000e+00> : vector<4x64xf32>
    %1052 = tpu.matmul %1051, %31, %cst_1043 {dimension_numbers = #tpu.dot_dimension_numbers<[1], [0], [0], [1], [0, 0, 1, 1], [], []>} : vector<4x32xf32>, vector<32x64xf32>, vector<4x64xf32> -> vector<4x64xf32>
    %1053 = arith.addf %1049, %1052 : vector<4x64xf32>
    %c0_1044 = arith.constant 0 : index
    %c3_1045 = arith.constant 3 : index
    %c1_1046 = arith.constant 1 : index
    %c0_1047 = arith.constant 0 : index
    %1054 = vector.load %arg10[%c0_1044, %c3_1045, %c1_1046, %c0_1047] : memref<2x6x6x32xf32, #tpu.memory_space<vmem>>, vector<1x1x4x32xf32>
    %1055 = vector.shape_cast %1054 : vector<1x1x4x32xf32> to vector<4x32xf32>
    %cst_1048 = arith.constant dense<0.000000e+00> : vector<4x64xf32>
    %1056 = tpu.matmul %1055, %33, %cst_1048 {dimension_numbers = #tpu.dot_dimension_numbers<[1], [0], [0], [1], [0, 0, 1, 1], [], []>} : vector<4x32xf32>, vector<32x64xf32>, vector<4x64xf32> -> vector<4x64xf32>
    %1057 = arith.addf %1053, %1056 : vector<4x64xf32>
    %c0_1049 = arith.constant 0 : index
    %c3_1050 = arith.constant 3 : index
    %c2_1051 = arith.constant 2 : index
    %c0_1052 = arith.constant 0 : index
    %1058 = vector.load %arg10[%c0_1049, %c3_1050, %c2_1051, %c0_1052] : memref<2x6x6x32xf32, #tpu.memory_space<vmem>>, vector<1x1x4x32xf32>
    %1059 = vector.shape_cast %1058 : vector<1x1x4x32xf32> to vector<4x32xf32>
    %cst_1053 = arith.constant dense<0.000000e+00> : vector<4x64xf32>
    %1060 = tpu.matmul %1059, %35, %cst_1053 {dimension_numbers = #tpu.dot_dimension_numbers<[1], [0], [0], [1], [0, 0, 1, 1], [], []>} : vector<4x32xf32>, vector<32x64xf32>, vector<4x64xf32> -> vector<4x64xf32>
    %1061 = arith.addf %1057, %1060 : vector<4x64xf32>
    %1062 = arith.maximumf %1026, %1061 : vector<4x64xf32>
    %1063 = vector.extract_strided_slice %1062 {offsets = [0, 0], sizes = [1, 64], strides = [1, 1]} : vector<4x64xf32> to vector<1x64xf32>
    %1064 = vector.extract_strided_slice %1062 {offsets = [1, 0], sizes = [1, 64], strides = [1, 1]} : vector<4x64xf32> to vector<1x64xf32>
    %1065 = arith.maximumf %1063, %1064 : vector<1x64xf32>
    %1066 = arith.addf %1065, %37 : vector<1x64xf32>
    %cst_1054 = arith.constant 0.000000e+00 : f32
    %1067 = vector.broadcast %cst_1054 : f32 to vector<1x64xf32>
    %1068 = arith.cmpf oge, %1066, %1067 : vector<1x64xf32>
    %cst_1055 = arith.constant 0.00999999977 : f32
    %1069 = vector.broadcast %cst_1055 : f32 to vector<1x64xf32>
    %1070 = arith.mulf %1069, %1066 : vector<1x64xf32>
    %1071 = arith.select %1068, %1066, %1070 : vector<1x64xi1>, vector<1x64xf32>
    %c0_1056 = arith.constant 0 : index
    %c0_1057 = arith.constant 0 : index
    %c0_1058 = arith.constant 0 : index
    %1072 = vector.load %arg11[%c0_1056, %c0_1057, %c0_1058] : memref<4x2x64xf32, #tpu.memory_space<vmem>>, vector<1x1x64xf32>
    %1073 = vector.shape_cast %1072 : vector<1x1x64xf32> to vector<1x64xf32>
    %1074 = vector.shape_cast %1071 : vector<1x64xf32> to vector<1x1x64xf32>
    tpu.vector_store %arg11[%c0_1056, %c0_1057, %c0_1058], %1074 {strides = array<i32>} : memref<4x2x64xf32, #tpu.memory_space<vmem>>, vector<1x1x64xf32>,
    %1075 = vector.extract_strided_slice %1062 {offsets = [2, 0], sizes = [1, 64], strides = [1, 1]} : vector<4x64xf32> to vector<1x64xf32>
    %1076 = vector.extract_strided_slice %1062 {offsets = [3, 0], sizes = [1, 64], strides = [1, 1]} : vector<4x64xf32> to vector<1x64xf32>
    %1077 = arith.maximumf %1075, %1076 : vector<1x64xf32>
    %1078 = arith.addf %1077, %37 : vector<1x64xf32>
    %cst_1059 = arith.constant 0.000000e+00 : f32
    %1079 = vector.broadcast %cst_1059 : f32 to vector<1x64xf32>
    %1080 = arith.cmpf oge, %1078, %1079 : vector<1x64xf32>
    %cst_1060 = arith.constant 0.00999999977 : f32
    %1081 = vector.broadcast %cst_1060 : f32 to vector<1x64xf32>
    %1082 = arith.mulf %1081, %1078 : vector<1x64xf32>
    %1083 = arith.select %1080, %1078, %1082 : vector<1x64xi1>, vector<1x64xf32>
    %c1_1061 = arith.constant 1 : index
    %c0_1062 = arith.constant 0 : index
    %c0_1063 = arith.constant 0 : index
    %1084 = vector.load %arg11[%c1_1061, %c0_1062, %c0_1063] : memref<4x2x64xf32, #tpu.memory_space<vmem>>, vector<1x1x64xf32>
    %1085 = vector.shape_cast %1084 : vector<1x1x64xf32> to vector<1x64xf32>
    %1086 = vector.shape_cast %1083 : vector<1x64xf32> to vector<1x1x64xf32>
    tpu.vector_store %arg11[%c1_1061, %c0_1062, %c0_1063], %1086 {strides = array<i32>} : memref<4x2x64xf32, #tpu.memory_space<vmem>>, vector<1x1x64xf32>,
    %c0_1064 = arith.constant 0 : index
    %c2_1065 = arith.constant 2 : index
    %c0_1066 = arith.constant 0 : index
    %c0_1067 = arith.constant 0 : index
    %1087 = vector.load %arg10[%c0_1064, %c2_1065, %c0_1066, %c0_1067] : memref<2x6x6x32xf32, #tpu.memory_space<vmem>>, vector<1x1x4x32xf32>
    %1088 = vector.shape_cast %1087 : vector<1x1x4x32xf32> to vector<4x32xf32>
    %cst_1068 = arith.constant dense<0.000000e+00> : vector<4x64xf32>
    %1089 = tpu.matmul %1088, %19, %cst_1068 {dimension_numbers = #tpu.dot_dimension_numbers<[1], [0], [0], [1], [0, 0, 1, 1], [], []>} : vector<4x32xf32>, vector<32x64xf32>, vector<4x64xf32> -> vector<4x64xf32>
    %c0_1069 = arith.constant 0 : index
    %c2_1070 = arith.constant 2 : index
    %c1_1071 = arith.constant 1 : index
    %c0_1072 = arith.constant 0 : index
    %1090 = vector.load %arg10[%c0_1069, %c2_1070, %c1_1071, %c0_1072] : memref<2x6x6x32xf32, #tpu.memory_space<vmem>>, vector<1x1x4x32xf32>
    %1091 = vector.shape_cast %1090 : vector<1x1x4x32xf32> to vector<4x32xf32>
    %cst_1073 = arith.constant dense<0.000000e+00> : vector<4x64xf32>
    %1092 = tpu.matmul %1091, %21, %cst_1073 {dimension_numbers = #tpu.dot_dimension_numbers<[1], [0], [0], [1], [0, 0, 1, 1], [], []>} : vector<4x32xf32>, vector<32x64xf32>, vector<4x64xf32> -> vector<4x64xf32>
    %1093 = arith.addf %1089, %1092 : vector<4x64xf32>
    %c0_1074 = arith.constant 0 : index
    %c2_1075 = arith.constant 2 : index
    %c2_1076 = arith.constant 2 : index
    %c0_1077 = arith.constant 0 : index
    %1094 = vector.load %arg10[%c0_1074, %c2_1075, %c2_1076, %c0_1077] : memref<2x6x6x32xf32, #tpu.memory_space<vmem>>, vector<1x1x4x32xf32>
    %1095 = vector.shape_cast %1094 : vector<1x1x4x32xf32> to vector<4x32xf32>
    %cst_1078 = arith.constant dense<0.000000e+00> : vector<4x64xf32>
    %1096 = tpu.matmul %1095, %23, %cst_1078 {dimension_numbers = #tpu.dot_dimension_numbers<[1], [0], [0], [1], [0, 0, 1, 1], [], []>} : vector<4x32xf32>, vector<32x64xf32>, vector<4x64xf32> -> vector<4x64xf32>
    %1097 = arith.addf %1093, %1096 : vector<4x64xf32>
    %c0_1079 = arith.constant 0 : index
    %c3_1080 = arith.constant 3 : index
    %c0_1081 = arith.constant 0 : index
    %c0_1082 = arith.constant 0 : index
    %1098 = vector.load %arg10[%c0_1079, %c3_1080, %c0_1081, %c0_1082] : memref<2x6x6x32xf32, #tpu.memory_space<vmem>>, vector<1x1x4x32xf32>
    %1099 = vector.shape_cast %1098 : vector<1x1x4x32xf32> to vector<4x32xf32>
    %cst_1083 = arith.constant dense<0.000000e+00> : vector<4x64xf32>
    %1100 = tpu.matmul %1099, %25, %cst_1083 {dimension_numbers = #tpu.dot_dimension_numbers<[1], [0], [0], [1], [0, 0, 1, 1], [], []>} : vector<4x32xf32>, vector<32x64xf32>, vector<4x64xf32> -> vector<4x64xf32>
    %1101 = arith.addf %1097, %1100 : vector<4x64xf32>
    %c0_1084 = arith.constant 0 : index
    %c3_1085 = arith.constant 3 : index
    %c1_1086 = arith.constant 1 : index
    %c0_1087 = arith.constant 0 : index
    %1102 = vector.load %arg10[%c0_1084, %c3_1085, %c1_1086, %c0_1087] : memref<2x6x6x32xf32, #tpu.memory_space<vmem>>, vector<1x1x4x32xf32>
    %1103 = vector.shape_cast %1102 : vector<1x1x4x32xf32> to vector<4x32xf32>
    %cst_1088 = arith.constant dense<0.000000e+00> : vector<4x64xf32>
    %1104 = tpu.matmul %1103, %27, %cst_1088 {dimension_numbers = #tpu.dot_dimension_numbers<[1], [0], [0], [1], [0, 0, 1, 1], [], []>} : vector<4x32xf32>, vector<32x64xf32>, vector<4x64xf32> -> vector<4x64xf32>
    %1105 = arith.addf %1101, %1104 : vector<4x64xf32>
    %c0_1089 = arith.constant 0 : index
    %c3_1090 = arith.constant 3 : index
    %c2_1091 = arith.constant 2 : index
    %c0_1092 = arith.constant 0 : index
    %1106 = vector.load %arg10[%c0_1089, %c3_1090, %c2_1091, %c0_1092] : memref<2x6x6x32xf32, #tpu.memory_space<vmem>>, vector<1x1x4x32xf32>
    %1107 = vector.shape_cast %1106 : vector<1x1x4x32xf32> to vector<4x32xf32>
    %cst_1093 = arith.constant dense<0.000000e+00> : vector<4x64xf32>
    %1108 = tpu.matmul %1107, %29, %cst_1093 {dimension_numbers = #tpu.dot_dimension_numbers<[1], [0], [0], [1], [0, 0, 1, 1], [], []>} : vector<4x32xf32>, vector<32x64xf32>, vector<4x64xf32> -> vector<4x64xf32>
    %1109 = arith.addf %1105, %1108 : vector<4x64xf32>
    %c0_1094 = arith.constant 0 : index
    %c4_1095 = arith.constant 4 : index
    %c0_1096 = arith.constant 0 : index
    %c0_1097 = arith.constant 0 : index
    %1110 = vector.load %arg10[%c0_1094, %c4_1095, %c0_1096, %c0_1097] : memref<2x6x6x32xf32, #tpu.memory_space<vmem>>, vector<1x1x4x32xf32>
    %1111 = vector.shape_cast %1110 : vector<1x1x4x32xf32> to vector<4x32xf32>
    %cst_1098 = arith.constant dense<0.000000e+00> : vector<4x64xf32>
    %1112 = tpu.matmul %1111, %31, %cst_1098 {dimension_numbers = #tpu.dot_dimension_numbers<[1], [0], [0], [1], [0, 0, 1, 1], [], []>} : vector<4x32xf32>, vector<32x64xf32>, vector<4x64xf32> -> vector<4x64xf32>
    %1113 = arith.addf %1109, %1112 : vector<4x64xf32>
    %c0_1099 = arith.constant 0 : index
    %c4_1100 = arith.constant 4 : index
    %c1_1101 = arith.constant 1 : index
    %c0_1102 = arith.constant 0 : index
    %1114 = vector.load %arg10[%c0_1099, %c4_1100, %c1_1101, %c0_1102] : memref<2x6x6x32xf32, #tpu.memory_space<vmem>>, vector<1x1x4x32xf32>
    %1115 = vector.shape_cast %1114 : vector<1x1x4x32xf32> to vector<4x32xf32>
    %cst_1103 = arith.constant dense<0.000000e+00> : vector<4x64xf32>
    %1116 = tpu.matmul %1115, %33, %cst_1103 {dimension_numbers = #tpu.dot_dimension_numbers<[1], [0], [0], [1], [0, 0, 1, 1], [], []>} : vector<4x32xf32>, vector<32x64xf32>, vector<4x64xf32> -> vector<4x64xf32>
    %1117 = arith.addf %1113, %1116 : vector<4x64xf32>
    %c0_1104 = arith.constant 0 : index
    %c4_1105 = arith.constant 4 : index
    %c2_1106 = arith.constant 2 : index
    %c0_1107 = arith.constant 0 : index
    %1118 = vector.load %arg10[%c0_1104, %c4_1105, %c2_1106, %c0_1107] : memref<2x6x6x32xf32, #tpu.memory_space<vmem>>, vector<1x1x4x32xf32>
    %1119 = vector.shape_cast %1118 : vector<1x1x4x32xf32> to vector<4x32xf32>
    %cst_1108 = arith.constant dense<0.000000e+00> : vector<4x64xf32>
    %1120 = tpu.matmul %1119, %35, %cst_1108 {dimension_numbers = #tpu.dot_dimension_numbers<[1], [0], [0], [1], [0, 0, 1, 1], [], []>} : vector<4x32xf32>, vector<32x64xf32>, vector<4x64xf32> -> vector<4x64xf32>
    %1121 = arith.addf %1117, %1120 : vector<4x64xf32>
    %c0_1109 = arith.constant 0 : index
    %c3_1110 = arith.constant 3 : index
    %c0_1111 = arith.constant 0 : index
    %c0_1112 = arith.constant 0 : index
    %1122 = vector.load %arg10[%c0_1109, %c3_1110, %c0_1111, %c0_1112] : memref<2x6x6x32xf32, #tpu.memory_space<vmem>>, vector<1x1x4x32xf32>
    %1123 = vector.shape_cast %1122 : vector<1x1x4x32xf32> to vector<4x32xf32>
    %cst_1113 = arith.constant dense<0.000000e+00> : vector<4x64xf32>
    %1124 = tpu.matmul %1123, %19, %cst_1113 {dimension_numbers = #tpu.dot_dimension_numbers<[1], [0], [0], [1], [0, 0, 1, 1], [], []>} : vector<4x32xf32>, vector<32x64xf32>, vector<4x64xf32> -> vector<4x64xf32>
    %c0_1114 = arith.constant 0 : index
    %c3_1115 = arith.constant 3 : index
    %c1_1116 = arith.constant 1 : index
    %c0_1117 = arith.constant 0 : index
    %1125 = vector.load %arg10[%c0_1114, %c3_1115, %c1_1116, %c0_1117] : memref<2x6x6x32xf32, #tpu.memory_space<vmem>>, vector<1x1x4x32xf32>
    %1126 = vector.shape_cast %1125 : vector<1x1x4x32xf32> to vector<4x32xf32>
    %cst_1118 = arith.constant dense<0.000000e+00> : vector<4x64xf32>
    %1127 = tpu.matmul %1126, %21, %cst_1118 {dimension_numbers = #tpu.dot_dimension_numbers<[1], [0], [0], [1], [0, 0, 1, 1], [], []>} : vector<4x32xf32>, vector<32x64xf32>, vector<4x64xf32> -> vector<4x64xf32>
    %1128 = arith.addf %1124, %1127 : vector<4x64xf32>
    %c0_1119 = arith.constant 0 : index
    %c3_1120 = arith.constant 3 : index
    %c2_1121 = arith.constant 2 : index
    %c0_1122 = arith.constant 0 : index
    %1129 = vector.load %arg10[%c0_1119, %c3_1120, %c2_1121, %c0_1122] : memref<2x6x6x32xf32, #tpu.memory_space<vmem>>, vector<1x1x4x32xf32>
    %1130 = vector.shape_cast %1129 : vector<1x1x4x32xf32> to vector<4x32xf32>
    %cst_1123 = arith.constant dense<0.000000e+00> : vector<4x64xf32>
    %1131 = tpu.matmul %1130, %23, %cst_1123 {dimension_numbers = #tpu.dot_dimension_numbers<[1], [0], [0], [1], [0, 0, 1, 1], [], []>} : vector<4x32xf32>, vector<32x64xf32>, vector<4x64xf32> -> vector<4x64xf32>
    %1132 = arith.addf %1128, %1131 : vector<4x64xf32>
    %c0_1124 = arith.constant 0 : index
    %c4_1125 = arith.constant 4 : index
    %c0_1126 = arith.constant 0 : index
    %c0_1127 = arith.constant 0 : index
    %1133 = vector.load %arg10[%c0_1124, %c4_1125, %c0_1126, %c0_1127] : memref<2x6x6x32xf32, #tpu.memory_space<vmem>>, vector<1x1x4x32xf32>
    %1134 = vector.shape_cast %1133 : vector<1x1x4x32xf32> to vector<4x32xf32>
    %cst_1128 = arith.constant dense<0.000000e+00> : vector<4x64xf32>
    %1135 = tpu.matmul %1134, %25, %cst_1128 {dimension_numbers = #tpu.dot_dimension_numbers<[1], [0], [0], [1], [0, 0, 1, 1], [], []>} : vector<4x32xf32>, vector<32x64xf32>, vector<4x64xf32> -> vector<4x64xf32>
    %1136 = arith.addf %1132, %1135 : vector<4x64xf32>
    %c0_1129 = arith.constant 0 : index
    %c4_1130 = arith.constant 4 : index
    %c1_1131 = arith.constant 1 : index
    %c0_1132 = arith.constant 0 : index
    %1137 = vector.load %arg10[%c0_1129, %c4_1130, %c1_1131, %c0_1132] : memref<2x6x6x32xf32, #tpu.memory_space<vmem>>, vector<1x1x4x32xf32>
    %1138 = vector.shape_cast %1137 : vector<1x1x4x32xf32> to vector<4x32xf32>
    %cst_1133 = arith.constant dense<0.000000e+00> : vector<4x64xf32>
    %1139 = tpu.matmul %1138, %27, %cst_1133 {dimension_numbers = #tpu.dot_dimension_numbers<[1], [0], [0], [1], [0, 0, 1, 1], [], []>} : vector<4x32xf32>, vector<32x64xf32>, vector<4x64xf32> -> vector<4x64xf32>
    %1140 = arith.addf %1136, %1139 : vector<4x64xf32>
    %c0_1134 = arith.constant 0 : index
    %c4_1135 = arith.constant 4 : index
    %c2_1136 = arith.constant 2 : index
    %c0_1137 = arith.constant 0 : index
    %1141 = vector.load %arg10[%c0_1134, %c4_1135, %c2_1136, %c0_1137] : memref<2x6x6x32xf32, #tpu.memory_space<vmem>>, vector<1x1x4x32xf32>
    %1142 = vector.shape_cast %1141 : vector<1x1x4x32xf32> to vector<4x32xf32>
    %cst_1138 = arith.constant dense<0.000000e+00> : vector<4x64xf32>
    %1143 = tpu.matmul %1142, %29, %cst_1138 {dimension_numbers = #tpu.dot_dimension_numbers<[1], [0], [0], [1], [0, 0, 1, 1], [], []>} : vector<4x32xf32>, vector<32x64xf32>, vector<4x64xf32> -> vector<4x64xf32>
    %1144 = arith.addf %1140, %1143 : vector<4x64xf32>
    %c0_1139 = arith.constant 0 : index
    %c5_1140 = arith.constant 5 : index
    %c0_1141 = arith.constant 0 : index
    %c0_1142 = arith.constant 0 : index
    %1145 = vector.load %arg10[%c0_1139, %c5_1140, %c0_1141, %c0_1142] : memref<2x6x6x32xf32, #tpu.memory_space<vmem>>, vector<1x1x4x32xf32>
    %1146 = vector.shape_cast %1145 : vector<1x1x4x32xf32> to vector<4x32xf32>
    %cst_1143 = arith.constant dense<0.000000e+00> : vector<4x64xf32>
    %1147 = tpu.matmul %1146, %31, %cst_1143 {dimension_numbers = #tpu.dot_dimension_numbers<[1], [0], [0], [1], [0, 0, 1, 1], [], []>} : vector<4x32xf32>, vector<32x64xf32>, vector<4x64xf32> -> vector<4x64xf32>
    %1148 = arith.addf %1144, %1147 : vector<4x64xf32>
    %c0_1144 = arith.constant 0 : index
    %c5_1145 = arith.constant 5 : index
    %c1_1146 = arith.constant 1 : index
    %c0_1147 = arith.constant 0 : index
    %1149 = vector.load %arg10[%c0_1144, %c5_1145, %c1_1146, %c0_1147] : memref<2x6x6x32xf32, #tpu.memory_space<vmem>>, vector<1x1x4x32xf32>
    %1150 = vector.shape_cast %1149 : vector<1x1x4x32xf32> to vector<4x32xf32>
    %cst_1148 = arith.constant dense<0.000000e+00> : vector<4x64xf32>
    %1151 = tpu.matmul %1150, %33, %cst_1148 {dimension_numbers = #tpu.dot_dimension_numbers<[1], [0], [0], [1], [0, 0, 1, 1], [], []>} : vector<4x32xf32>, vector<32x64xf32>, vector<4x64xf32> -> vector<4x64xf32>
    %1152 = arith.addf %1148, %1151 : vector<4x64xf32>
    %c0_1149 = arith.constant 0 : index
    %c5_1150 = arith.constant 5 : index
    %c2_1151 = arith.constant 2 : index
    %c0_1152 = arith.constant 0 : index
    %1153 = vector.load %arg10[%c0_1149, %c5_1150, %c2_1151, %c0_1152] : memref<2x6x6x32xf32, #tpu.memory_space<vmem>>, vector<1x1x4x32xf32>
    %1154 = vector.shape_cast %1153 : vector<1x1x4x32xf32> to vector<4x32xf32>
    %cst_1153 = arith.constant dense<0.000000e+00> : vector<4x64xf32>
    %1155 = tpu.matmul %1154, %35, %cst_1153 {dimension_numbers = #tpu.dot_dimension_numbers<[1], [0], [0], [1], [0, 0, 1, 1], [], []>} : vector<4x32xf32>, vector<32x64xf32>, vector<4x64xf32> -> vector<4x64xf32>
    %1156 = arith.addf %1152, %1155 : vector<4x64xf32>
    %1157 = arith.maximumf %1121, %1156 : vector<4x64xf32>
    %1158 = vector.extract_strided_slice %1157 {offsets = [0, 0], sizes = [1, 64], strides = [1, 1]} : vector<4x64xf32> to vector<1x64xf32>
    %1159 = vector.extract_strided_slice %1157 {offsets = [1, 0], sizes = [1, 64], strides = [1, 1]} : vector<4x64xf32> to vector<1x64xf32>
    %1160 = arith.maximumf %1158, %1159 : vector<1x64xf32>
    %1161 = arith.addf %1160, %37 : vector<1x64xf32>
    %cst_1154 = arith.constant 0.000000e+00 : f32
    %1162 = vector.broadcast %cst_1154 : f32 to vector<1x64xf32>
    %1163 = arith.cmpf oge, %1161, %1162 : vector<1x64xf32>
    %cst_1155 = arith.constant 0.00999999977 : f32
    %1164 = vector.broadcast %cst_1155 : f32 to vector<1x64xf32>
    %1165 = arith.mulf %1164, %1161 : vector<1x64xf32>
    %1166 = arith.select %1163, %1161, %1165 : vector<1x64xi1>, vector<1x64xf32>
    %c2_1156 = arith.constant 2 : index
    %c0_1157 = arith.constant 0 : index
    %c0_1158 = arith.constant 0 : index
    %1167 = vector.load %arg11[%c2_1156, %c0_1157, %c0_1158] : memref<4x2x64xf32, #tpu.memory_space<vmem>>, vector<1x1x64xf32>
    %1168 = vector.shape_cast %1167 : vector<1x1x64xf32> to vector<1x64xf32>
    %1169 = vector.shape_cast %1166 : vector<1x64xf32> to vector<1x1x64xf32>
    tpu.vector_store %arg11[%c2_1156, %c0_1157, %c0_1158], %1169 {strides = array<i32>} : memref<4x2x64xf32, #tpu.memory_space<vmem>>, vector<1x1x64xf32>,
    %1170 = vector.extract_strided_slice %1157 {offsets = [2, 0], sizes = [1, 64], strides = [1, 1]} : vector<4x64xf32> to vector<1x64xf32>
    %1171 = vector.extract_strided_slice %1157 {offsets = [3, 0], sizes = [1, 64], strides = [1, 1]} : vector<4x64xf32> to vector<1x64xf32>
    %1172 = arith.maximumf %1170, %1171 : vector<1x64xf32>
    %1173 = arith.addf %1172, %37 : vector<1x64xf32>
    %cst_1159 = arith.constant 0.000000e+00 : f32
    %1174 = vector.broadcast %cst_1159 : f32 to vector<1x64xf32>
    %1175 = arith.cmpf oge, %1173, %1174 : vector<1x64xf32>
    %cst_1160 = arith.constant 0.00999999977 : f32
    %1176 = vector.broadcast %cst_1160 : f32 to vector<1x64xf32>
    %1177 = arith.mulf %1176, %1173 : vector<1x64xf32>
    %1178 = arith.select %1175, %1173, %1177 : vector<1x64xi1>, vector<1x64xf32>
    %c3_1161 = arith.constant 3 : index
    %c0_1162 = arith.constant 0 : index
    %c0_1163 = arith.constant 0 : index
    %1179 = vector.load %arg11[%c3_1161, %c0_1162, %c0_1163] : memref<4x2x64xf32, #tpu.memory_space<vmem>>, vector<1x1x64xf32>
    %1180 = vector.shape_cast %1179 : vector<1x1x64xf32> to vector<1x64xf32>
    %1181 = vector.shape_cast %1178 : vector<1x64xf32> to vector<1x1x64xf32>
    tpu.vector_store %arg11[%c3_1161, %c0_1162, %c0_1163], %1181 {strides = array<i32>} : memref<4x2x64xf32, #tpu.memory_space<vmem>>, vector<1x1x64xf32>,
    %c1_1164 = arith.constant 1 : index
    %c0_1165 = arith.constant 0 : index
    %c0_1166 = arith.constant 0 : index
    %c0_1167 = arith.constant 0 : index
    %1182 = vector.load %arg10[%c1_1164, %c0_1165, %c0_1166, %c0_1167] : memref<2x6x6x32xf32, #tpu.memory_space<vmem>>, vector<1x1x4x32xf32>
    %1183 = vector.shape_cast %1182 : vector<1x1x4x32xf32> to vector<4x32xf32>
    %cst_1168 = arith.constant dense<0.000000e+00> : vector<4x64xf32>
    %1184 = tpu.matmul %1183, %19, %cst_1168 {dimension_numbers = #tpu.dot_dimension_numbers<[1], [0], [0], [1], [0, 0, 1, 1], [], []>} : vector<4x32xf32>, vector<32x64xf32>, vector<4x64xf32> -> vector<4x64xf32>
    %c1_1169 = arith.constant 1 : index
    %c0_1170 = arith.constant 0 : index
    %c1_1171 = arith.constant 1 : index
    %c0_1172 = arith.constant 0 : index
    %1185 = vector.load %arg10[%c1_1169, %c0_1170, %c1_1171, %c0_1172] : memref<2x6x6x32xf32, #tpu.memory_space<vmem>>, vector<1x1x4x32xf32>
    %1186 = vector.shape_cast %1185 : vector<1x1x4x32xf32> to vector<4x32xf32>
    %cst_1173 = arith.constant dense<0.000000e+00> : vector<4x64xf32>
    %1187 = tpu.matmul %1186, %21, %cst_1173 {dimension_numbers = #tpu.dot_dimension_numbers<[1], [0], [0], [1], [0, 0, 1, 1], [], []>} : vector<4x32xf32>, vector<32x64xf32>, vector<4x64xf32> -> vector<4x64xf32>
    %1188 = arith.addf %1184, %1187 : vector<4x64xf32>
    %c1_1174 = arith.constant 1 : index
    %c0_1175 = arith.constant 0 : index
    %c2_1176 = arith.constant 2 : index
    %c0_1177 = arith.constant 0 : index
    %1189 = vector.load %arg10[%c1_1174, %c0_1175, %c2_1176, %c0_1177] : memref<2x6x6x32xf32, #tpu.memory_space<vmem>>, vector<1x1x4x32xf32>
    %1190 = vector.shape_cast %1189 : vector<1x1x4x32xf32> to vector<4x32xf32>
    %cst_1178 = arith.constant dense<0.000000e+00> : vector<4x64xf32>
    %1191 = tpu.matmul %1190, %23, %cst_1178 {dimension_numbers = #tpu.dot_dimension_numbers<[1], [0], [0], [1], [0, 0, 1, 1], [], []>} : vector<4x32xf32>, vector<32x64xf32>, vector<4x64xf32> -> vector<4x64xf32>
    %1192 = arith.addf %1188, %1191 : vector<4x64xf32>
    %c1_1179 = arith.constant 1 : index
    %c1_1180 = arith.constant 1 : index
    %c0_1181 = arith.constant 0 : index
    %c0_1182 = arith.constant 0 : index
    %1193 = vector.load %arg10[%c1_1179, %c1_1180, %c0_1181, %c0_1182] : memref<2x6x6x32xf32, #tpu.memory_space<vmem>>, vector<1x1x4x32xf32>
    %1194 = vector.shape_cast %1193 : vector<1x1x4x32xf32> to vector<4x32xf32>
    %cst_1183 = arith.constant dense<0.000000e+00> : vector<4x64xf32>
    %1195 = tpu.matmul %1194, %25, %cst_1183 {dimension_numbers = #tpu.dot_dimension_numbers<[1], [0], [0], [1], [0, 0, 1, 1], [], []>} : vector<4x32xf32>, vector<32x64xf32>, vector<4x64xf32> -> vector<4x64xf32>
    %1196 = arith.addf %1192, %1195 : vector<4x64xf32>
    %c1_1184 = arith.constant 1 : index
    %c1_1185 = arith.constant 1 : index
    %c1_1186 = arith.constant 1 : index
    %c0_1187 = arith.constant 0 : index
    %1197 = vector.load %arg10[%c1_1184, %c1_1185, %c1_1186, %c0_1187] : memref<2x6x6x32xf32, #tpu.memory_space<vmem>>, vector<1x1x4x32xf32>
    %1198 = vector.shape_cast %1197 : vector<1x1x4x32xf32> to vector<4x32xf32>
    %cst_1188 = arith.constant dense<0.000000e+00> : vector<4x64xf32>
    %1199 = tpu.matmul %1198, %27, %cst_1188 {dimension_numbers = #tpu.dot_dimension_numbers<[1], [0], [0], [1], [0, 0, 1, 1], [], []>} : vector<4x32xf32>, vector<32x64xf32>, vector<4x64xf32> -> vector<4x64xf32>
    %1200 = arith.addf %1196, %1199 : vector<4x64xf32>
    %c1_1189 = arith.constant 1 : index
    %c1_1190 = arith.constant 1 : index
    %c2_1191 = arith.constant 2 : index
    %c0_1192 = arith.constant 0 : index
    %1201 = vector.load %arg10[%c1_1189, %c1_1190, %c2_1191, %c0_1192] : memref<2x6x6x32xf32, #tpu.memory_space<vmem>>, vector<1x1x4x32xf32>
    %1202 = vector.shape_cast %1201 : vector<1x1x4x32xf32> to vector<4x32xf32>
    %cst_1193 = arith.constant dense<0.000000e+00> : vector<4x64xf32>
    %1203 = tpu.matmul %1202, %29, %cst_1193 {dimension_numbers = #tpu.dot_dimension_numbers<[1], [0], [0], [1], [0, 0, 1, 1], [], []>} : vector<4x32xf32>, vector<32x64xf32>, vector<4x64xf32> -> vector<4x64xf32>
    %1204 = arith.addf %1200, %1203 : vector<4x64xf32>
    %c1_1194 = arith.constant 1 : index
    %c2_1195 = arith.constant 2 : index
    %c0_1196 = arith.constant 0 : index
    %c0_1197 = arith.constant 0 : index
    %1205 = vector.load %arg10[%c1_1194, %c2_1195, %c0_1196, %c0_1197] : memref<2x6x6x32xf32, #tpu.memory_space<vmem>>, vector<1x1x4x32xf32>
    %1206 = vector.shape_cast %1205 : vector<1x1x4x32xf32> to vector<4x32xf32>
    %cst_1198 = arith.constant dense<0.000000e+00> : vector<4x64xf32>
    %1207 = tpu.matmul %1206, %31, %cst_1198 {dimension_numbers = #tpu.dot_dimension_numbers<[1], [0], [0], [1], [0, 0, 1, 1], [], []>} : vector<4x32xf32>, vector<32x64xf32>, vector<4x64xf32> -> vector<4x64xf32>
    %1208 = arith.addf %1204, %1207 : vector<4x64xf32>
    %c1_1199 = arith.constant 1 : index
    %c2_1200 = arith.constant 2 : index
    %c1_1201 = arith.constant 1 : index
    %c0_1202 = arith.constant 0 : index
    %1209 = vector.load %arg10[%c1_1199, %c2_1200, %c1_1201, %c0_1202] : memref<2x6x6x32xf32, #tpu.memory_space<vmem>>, vector<1x1x4x32xf32>
    %1210 = vector.shape_cast %1209 : vector<1x1x4x32xf32> to vector<4x32xf32>
    %cst_1203 = arith.constant dense<0.000000e+00> : vector<4x64xf32>
    %1211 = tpu.matmul %1210, %33, %cst_1203 {dimension_numbers = #tpu.dot_dimension_numbers<[1], [0], [0], [1], [0, 0, 1, 1], [], []>} : vector<4x32xf32>, vector<32x64xf32>, vector<4x64xf32> -> vector<4x64xf32>
    %1212 = arith.addf %1208, %1211 : vector<4x64xf32>
    %c1_1204 = arith.constant 1 : index
    %c2_1205 = arith.constant 2 : index
    %c2_1206 = arith.constant 2 : index
    %c0_1207 = arith.constant 0 : index
    %1213 = vector.load %arg10[%c1_1204, %c2_1205, %c2_1206, %c0_1207] : memref<2x6x6x32xf32, #tpu.memory_space<vmem>>, vector<1x1x4x32xf32>
    %1214 = vector.shape_cast %1213 : vector<1x1x4x32xf32> to vector<4x32xf32>
    %cst_1208 = arith.constant dense<0.000000e+00> : vector<4x64xf32>
    %1215 = tpu.matmul %1214, %35, %cst_1208 {dimension_numbers = #tpu.dot_dimension_numbers<[1], [0], [0], [1], [0, 0, 1, 1], [], []>} : vector<4x32xf32>, vector<32x64xf32>, vector<4x64xf32> -> vector<4x64xf32>
    %1216 = arith.addf %1212, %1215 : vector<4x64xf32>
    %c1_1209 = arith.constant 1 : index
    %c1_1210 = arith.constant 1 : index
    %c0_1211 = arith.constant 0 : index
    %c0_1212 = arith.constant 0 : index
    %1217 = vector.load %arg10[%c1_1209, %c1_1210, %c0_1211, %c0_1212] : memref<2x6x6x32xf32, #tpu.memory_space<vmem>>, vector<1x1x4x32xf32>
    %1218 = vector.shape_cast %1217 : vector<1x1x4x32xf32> to vector<4x32xf32>
    %cst_1213 = arith.constant dense<0.000000e+00> : vector<4x64xf32>
    %1219 = tpu.matmul %1218, %19, %cst_1213 {dimension_numbers = #tpu.dot_dimension_numbers<[1], [0], [0], [1], [0, 0, 1, 1], [], []>} : vector<4x32xf32>, vector<32x64xf32>, vector<4x64xf32> -> vector<4x64xf32>
    %c1_1214 = arith.constant 1 : index
    %c1_1215 = arith.constant 1 : index
    %c1_1216 = arith.constant 1 : index
    %c0_1217 = arith.constant 0 : index
    %1220 = vector.load %arg10[%c1_1214, %c1_1215, %c1_1216, %c0_1217] : memref<2x6x6x32xf32, #tpu.memory_space<vmem>>, vector<1x1x4x32xf32>
    %1221 = vector.shape_cast %1220 : vector<1x1x4x32xf32> to vector<4x32xf32>
    %cst_1218 = arith.constant dense<0.000000e+00> : vector<4x64xf32>
    %1222 = tpu.matmul %1221, %21, %cst_1218 {dimension_numbers = #tpu.dot_dimension_numbers<[1], [0], [0], [1], [0, 0, 1, 1], [], []>} : vector<4x32xf32>, vector<32x64xf32>, vector<4x64xf32> -> vector<4x64xf32>
    %1223 = arith.addf %1219, %1222 : vector<4x64xf32>
    %c1_1219 = arith.constant 1 : index
    %c1_1220 = arith.constant 1 : index
    %c2_1221 = arith.constant 2 : index
    %c0_1222 = arith.constant 0 : index
    %1224 = vector.load %arg10[%c1_1219, %c1_1220, %c2_1221, %c0_1222] : memref<2x6x6x32xf32, #tpu.memory_space<vmem>>, vector<1x1x4x32xf32>
    %1225 = vector.shape_cast %1224 : vector<1x1x4x32xf32> to vector<4x32xf32>
    %cst_1223 = arith.constant dense<0.000000e+00> : vector<4x64xf32>
    %1226 = tpu.matmul %1225, %23, %cst_1223 {dimension_numbers = #tpu.dot_dimension_numbers<[1], [0], [0], [1], [0, 0, 1, 1], [], []>} : vector<4x32xf32>, vector<32x64xf32>, vector<4x64xf32> -> vector<4x64xf32>
    %1227 = arith.addf %1223, %1226 : vector<4x64xf32>
    %c1_1224 = arith.constant 1 : index
    %c2_1225 = arith.constant 2 : index
    %c0_1226 = arith.constant 0 : index
    %c0_1227 = arith.constant 0 : index
    %1228 = vector.load %arg10[%c1_1224, %c2_1225, %c0_1226, %c0_1227] : memref<2x6x6x32xf32, #tpu.memory_space<vmem>>, vector<1x1x4x32xf32>
    %1229 = vector.shape_cast %1228 : vector<1x1x4x32xf32> to vector<4x32xf32>
    %cst_1228 = arith.constant dense<0.000000e+00> : vector<4x64xf32>
    %1230 = tpu.matmul %1229, %25, %cst_1228 {dimension_numbers = #tpu.dot_dimension_numbers<[1], [0], [0], [1], [0, 0, 1, 1], [], []>} : vector<4x32xf32>, vector<32x64xf32>, vector<4x64xf32> -> vector<4x64xf32>
    %1231 = arith.addf %1227, %1230 : vector<4x64xf32>
    %c1_1229 = arith.constant 1 : index
    %c2_1230 = arith.constant 2 : index
    %c1_1231 = arith.constant 1 : index
    %c0_1232 = arith.constant 0 : index
    %1232 = vector.load %arg10[%c1_1229, %c2_1230, %c1_1231, %c0_1232] : memref<2x6x6x32xf32, #tpu.memory_space<vmem>>, vector<1x1x4x32xf32>
    %1233 = vector.shape_cast %1232 : vector<1x1x4x32xf32> to vector<4x32xf32>
    %cst_1233 = arith.constant dense<0.000000e+00> : vector<4x64xf32>
    %1234 = tpu.matmul %1233, %27, %cst_1233 {dimension_numbers = #tpu.dot_dimension_numbers<[1], [0], [0], [1], [0, 0, 1, 1], [], []>} : vector<4x32xf32>, vector<32x64xf32>, vector<4x64xf32> -> vector<4x64xf32>
    %1235 = arith.addf %1231, %1234 : vector<4x64xf32>
    %c1_1234 = arith.constant 1 : index
    %c2_1235 = arith.constant 2 : index
    %c2_1236 = arith.constant 2 : index
    %c0_1237 = arith.constant 0 : index
    %1236 = vector.load %arg10[%c1_1234, %c2_1235, %c2_1236, %c0_1237] : memref<2x6x6x32xf32, #tpu.memory_space<vmem>>, vector<1x1x4x32xf32>
    %1237 = vector.shape_cast %1236 : vector<1x1x4x32xf32> to vector<4x32xf32>
    %cst_1238 = arith.constant dense<0.000000e+00> : vector<4x64xf32>
    %1238 = tpu.matmul %1237, %29, %cst_1238 {dimension_numbers = #tpu.dot_dimension_numbers<[1], [0], [0], [1], [0, 0, 1, 1], [], []>} : vector<4x32xf32>, vector<32x64xf32>, vector<4x64xf32> -> vector<4x64xf32>
    %1239 = arith.addf %1235, %1238 : vector<4x64xf32>
    %c1_1239 = arith.constant 1 : index
    %c3_1240 = arith.constant 3 : index
    %c0_1241 = arith.constant 0 : index
    %c0_1242 = arith.constant 0 : index
    %1240 = vector.load %arg10[%c1_1239, %c3_1240, %c0_1241, %c0_1242] : memref<2x6x6x32xf32, #tpu.memory_space<vmem>>, vector<1x1x4x32xf32>
    %1241 = vector.shape_cast %1240 : vector<1x1x4x32xf32> to vector<4x32xf32>
    %cst_1243 = arith.constant dense<0.000000e+00> : vector<4x64xf32>
    %1242 = tpu.matmul %1241, %31, %cst_1243 {dimension_numbers = #tpu.dot_dimension_numbers<[1], [0], [0], [1], [0, 0, 1, 1], [], []>} : vector<4x32xf32>, vector<32x64xf32>, vector<4x64xf32> -> vector<4x64xf32>
    %1243 = arith.addf %1239, %1242 : vector<4x64xf32>
    %c1_1244 = arith.constant 1 : index
    %c3_1245 = arith.constant 3 : index
    %c1_1246 = arith.constant 1 : index
    %c0_1247 = arith.constant 0 : index
    %1244 = vector.load %arg10[%c1_1244, %c3_1245, %c1_1246, %c0_1247] : memref<2x6x6x32xf32, #tpu.memory_space<vmem>>, vector<1x1x4x32xf32>
    %1245 = vector.shape_cast %1244 : vector<1x1x4x32xf32> to vector<4x32xf32>
    %cst_1248 = arith.constant dense<0.000000e+00> : vector<4x64xf32>
    %1246 = tpu.matmul %1245, %33, %cst_1248 {dimension_numbers = #tpu.dot_dimension_numbers<[1], [0], [0], [1], [0, 0, 1, 1], [], []>} : vector<4x32xf32>, vector<32x64xf32>, vector<4x64xf32> -> vector<4x64xf32>
    %1247 = arith.addf %1243, %1246 : vector<4x64xf32>
    %c1_1249 = arith.constant 1 : index
    %c3_1250 = arith.constant 3 : index
    %c2_1251 = arith.constant 2 : index
    %c0_1252 = arith.constant 0 : index
    %1248 = vector.load %arg10[%c1_1249, %c3_1250, %c2_1251, %c0_1252] : memref<2x6x6x32xf32, #tpu.memory_space<vmem>>, vector<1x1x4x32xf32>
    %1249 = vector.shape_cast %1248 : vector<1x1x4x32xf32> to vector<4x32xf32>
    %cst_1253 = arith.constant dense<0.000000e+00> : vector<4x64xf32>
    %1250 = tpu.matmul %1249, %35, %cst_1253 {dimension_numbers = #tpu.dot_dimension_numbers<[1], [0], [0], [1], [0, 0, 1, 1], [], []>} : vector<4x32xf32>, vector<32x64xf32>, vector<4x64xf32> -> vector<4x64xf32>
    %1251 = arith.addf %1247, %1250 : vector<4x64xf32>
    %1252 = arith.maximumf %1216, %1251 : vector<4x64xf32>
    %1253 = vector.extract_strided_slice %1252 {offsets = [0, 0], sizes = [1, 64], strides = [1, 1]} : vector<4x64xf32> to vector<1x64xf32>
    %1254 = vector.extract_strided_slice %1252 {offsets = [1, 0], sizes = [1, 64], strides = [1, 1]} : vector<4x64xf32> to vector<1x64xf32>
    %1255 = arith.maximumf %1253, %1254 : vector<1x64xf32>
    %1256 = arith.addf %1255, %37 : vector<1x64xf32>
    %cst_1254 = arith.constant 0.000000e+00 : f32
    %1257 = vector.broadcast %cst_1254 : f32 to vector<1x64xf32>
    %1258 = arith.cmpf oge, %1256, %1257 : vector<1x64xf32>
    %cst_1255 = arith.constant 0.00999999977 : f32
    %1259 = vector.broadcast %cst_1255 : f32 to vector<1x64xf32>
    %1260 = arith.mulf %1259, %1256 : vector<1x64xf32>
    %1261 = arith.select %1258, %1256, %1260 : vector<1x64xi1>, vector<1x64xf32>
    %c0_1256 = arith.constant 0 : index
    %c1_1257 = arith.constant 1 : index
    %c0_1258 = arith.constant 0 : index
    %1262 = vector.load %arg11[%c0_1256, %c1_1257, %c0_1258] : memref<4x2x64xf32, #tpu.memory_space<vmem>>, vector<1x1x64xf32>
    %1263 = vector.shape_cast %1262 : vector<1x1x64xf32> to vector<1x64xf32>
    %1264 = vector.shape_cast %1261 : vector<1x64xf32> to vector<1x1x64xf32>
    tpu.vector_store %arg11[%c0_1256, %c1_1257, %c0_1258], %1264 {strides = array<i32>} : memref<4x2x64xf32, #tpu.memory_space<vmem>>, vector<1x1x64xf32>,
    %1265 = vector.extract_strided_slice %1252 {offsets = [2, 0], sizes = [1, 64], strides = [1, 1]} : vector<4x64xf32> to vector<1x64xf32>
    %1266 = vector.extract_strided_slice %1252 {offsets = [3, 0], sizes = [1, 64], strides = [1, 1]} : vector<4x64xf32> to vector<1x64xf32>
    %1267 = arith.maximumf %1265, %1266 : vector<1x64xf32>
    %1268 = arith.addf %1267, %37 : vector<1x64xf32>
    %cst_1259 = arith.constant 0.000000e+00 : f32
    %1269 = vector.broadcast %cst_1259 : f32 to vector<1x64xf32>
    %1270 = arith.cmpf oge, %1268, %1269 : vector<1x64xf32>
    %cst_1260 = arith.constant 0.00999999977 : f32
    %1271 = vector.broadcast %cst_1260 : f32 to vector<1x64xf32>
    %1272 = arith.mulf %1271, %1268 : vector<1x64xf32>
    %1273 = arith.select %1270, %1268, %1272 : vector<1x64xi1>, vector<1x64xf32>
    %c1_1261 = arith.constant 1 : index
    %c1_1262 = arith.constant 1 : index
    %c0_1263 = arith.constant 0 : index
    %1274 = vector.load %arg11[%c1_1261, %c1_1262, %c0_1263] : memref<4x2x64xf32, #tpu.memory_space<vmem>>, vector<1x1x64xf32>
    %1275 = vector.shape_cast %1274 : vector<1x1x64xf32> to vector<1x64xf32>
    %1276 = vector.shape_cast %1273 : vector<1x64xf32> to vector<1x1x64xf32>
    tpu.vector_store %arg11[%c1_1261, %c1_1262, %c0_1263], %1276 {strides = array<i32>} : memref<4x2x64xf32, #tpu.memory_space<vmem>>, vector<1x1x64xf32>,
    %c1_1264 = arith.constant 1 : index
    %c2_1265 = arith.constant 2 : index
    %c0_1266 = arith.constant 0 : index
    %c0_1267 = arith.constant 0 : index
    %1277 = vector.load %arg10[%c1_1264, %c2_1265, %c0_1266, %c0_1267] : memref<2x6x6x32xf32, #tpu.memory_space<vmem>>, vector<1x1x4x32xf32>
    %1278 = vector.shape_cast %1277 : vector<1x1x4x32xf32> to vector<4x32xf32>
    %cst_1268 = arith.constant dense<0.000000e+00> : vector<4x64xf32>
    %1279 = tpu.matmul %1278, %19, %cst_1268 {dimension_numbers = #tpu.dot_dimension_numbers<[1], [0], [0], [1], [0, 0, 1, 1], [], []>} : vector<4x32xf32>, vector<32x64xf32>, vector<4x64xf32> -> vector<4x64xf32>
    %c1_1269 = arith.constant 1 : index
    %c2_1270 = arith.constant 2 : index
    %c1_1271 = arith.constant 1 : index
    %c0_1272 = arith.constant 0 : index
    %1280 = vector.load %arg10[%c1_1269, %c2_1270, %c1_1271, %c0_1272] : memref<2x6x6x32xf32, #tpu.memory_space<vmem>>, vector<1x1x4x32xf32>
    %1281 = vector.shape_cast %1280 : vector<1x1x4x32xf32> to vector<4x32xf32>
    %cst_1273 = arith.constant dense<0.000000e+00> : vector<4x64xf32>
    %1282 = tpu.matmul %1281, %21, %cst_1273 {dimension_numbers = #tpu.dot_dimension_numbers<[1], [0], [0], [1], [0, 0, 1, 1], [], []>} : vector<4x32xf32>, vector<32x64xf32>, vector<4x64xf32> -> vector<4x64xf32>
    %1283 = arith.addf %1279, %1282 : vector<4x64xf32>
    %c1_1274 = arith.constant 1 : index
    %c2_1275 = arith.constant 2 : index
    %c2_1276 = arith.constant 2 : index
    %c0_1277 = arith.constant 0 : index
    %1284 = vector.load %arg10[%c1_1274, %c2_1275, %c2_1276, %c0_1277] : memref<2x6x6x32xf32, #tpu.memory_space<vmem>>, vector<1x1x4x32xf32>
    %1285 = vector.shape_cast %1284 : vector<1x1x4x32xf32> to vector<4x32xf32>
    %cst_1278 = arith.constant dense<0.000000e+00> : vector<4x64xf32>
    %1286 = tpu.matmul %1285, %23, %cst_1278 {dimension_numbers = #tpu.dot_dimension_numbers<[1], [0], [0], [1], [0, 0, 1, 1], [], []>} : vector<4x32xf32>, vector<32x64xf32>, vector<4x64xf32> -> vector<4x64xf32>
    %1287 = arith.addf %1283, %1286 : vector<4x64xf32>
    %c1_1279 = arith.constant 1 : index
    %c3_1280 = arith.constant 3 : index
    %c0_1281 = arith.constant 0 : index
    %c0_1282 = arith.constant 0 : index
    %1288 = vector.load %arg10[%c1_1279, %c3_1280, %c0_1281, %c0_1282] : memref<2x6x6x32xf32, #tpu.memory_space<vmem>>, vector<1x1x4x32xf32>
    %1289 = vector.shape_cast %1288 : vector<1x1x4x32xf32> to vector<4x32xf32>
    %cst_1283 = arith.constant dense<0.000000e+00> : vector<4x64xf32>
    %1290 = tpu.matmul %1289, %25, %cst_1283 {dimension_numbers = #tpu.dot_dimension_numbers<[1], [0], [0], [1], [0, 0, 1, 1], [], []>} : vector<4x32xf32>, vector<32x64xf32>, vector<4x64xf32> -> vector<4x64xf32>
    %1291 = arith.addf %1287, %1290 : vector<4x64xf32>
    %c1_1284 = arith.constant 1 : index
    %c3_1285 = arith.constant 3 : index
    %c1_1286 = arith.constant 1 : index
    %c0_1287 = arith.constant 0 : index
    %1292 = vector.load %arg10[%c1_1284, %c3_1285, %c1_1286, %c0_1287] : memref<2x6x6x32xf32, #tpu.memory_space<vmem>>, vector<1x1x4x32xf32>
    %1293 = vector.shape_cast %1292 : vector<1x1x4x32xf32> to vector<4x32xf32>
    %cst_1288 = arith.constant dense<0.000000e+00> : vector<4x64xf32>
    %1294 = tpu.matmul %1293, %27, %cst_1288 {dimension_numbers = #tpu.dot_dimension_numbers<[1], [0], [0], [1], [0, 0, 1, 1], [], []>} : vector<4x32xf32>, vector<32x64xf32>, vector<4x64xf32> -> vector<4x64xf32>
    %1295 = arith.addf %1291, %1294 : vector<4x64xf32>
    %c1_1289 = arith.constant 1 : index
    %c3_1290 = arith.constant 3 : index
    %c2_1291 = arith.constant 2 : index
    %c0_1292 = arith.constant 0 : index
    %1296 = vector.load %arg10[%c1_1289, %c3_1290, %c2_1291, %c0_1292] : memref<2x6x6x32xf32, #tpu.memory_space<vmem>>, vector<1x1x4x32xf32>
    %1297 = vector.shape_cast %1296 : vector<1x1x4x32xf32> to vector<4x32xf32>
    %cst_1293 = arith.constant dense<0.000000e+00> : vector<4x64xf32>
    %1298 = tpu.matmul %1297, %29, %cst_1293 {dimension_numbers = #tpu.dot_dimension_numbers<[1], [0], [0], [1], [0, 0, 1, 1], [], []>} : vector<4x32xf32>, vector<32x64xf32>, vector<4x64xf32> -> vector<4x64xf32>
    %1299 = arith.addf %1295, %1298 : vector<4x64xf32>
    %c1_1294 = arith.constant 1 : index
    %c4_1295 = arith.constant 4 : index
    %c0_1296 = arith.constant 0 : index
    %c0_1297 = arith.constant 0 : index
    %1300 = vector.load %arg10[%c1_1294, %c4_1295, %c0_1296, %c0_1297] : memref<2x6x6x32xf32, #tpu.memory_space<vmem>>, vector<1x1x4x32xf32>
    %1301 = vector.shape_cast %1300 : vector<1x1x4x32xf32> to vector<4x32xf32>
    %cst_1298 = arith.constant dense<0.000000e+00> : vector<4x64xf32>
    %1302 = tpu.matmul %1301, %31, %cst_1298 {dimension_numbers = #tpu.dot_dimension_numbers<[1], [0], [0], [1], [0, 0, 1, 1], [], []>} : vector<4x32xf32>, vector<32x64xf32>, vector<4x64xf32> -> vector<4x64xf32>
    %1303 = arith.addf %1299, %1302 : vector<4x64xf32>
    %c1_1299 = arith.constant 1 : index
    %c4_1300 = arith.constant 4 : index
    %c1_1301 = arith.constant 1 : index
    %c0_1302 = arith.constant 0 : index
    %1304 = vector.load %arg10[%c1_1299, %c4_1300, %c1_1301, %c0_1302] : memref<2x6x6x32xf32, #tpu.memory_space<vmem>>, vector<1x1x4x32xf32>
    %1305 = vector.shape_cast %1304 : vector<1x1x4x32xf32> to vector<4x32xf32>
    %cst_1303 = arith.constant dense<0.000000e+00> : vector<4x64xf32>
    %1306 = tpu.matmul %1305, %33, %cst_1303 {dimension_numbers = #tpu.dot_dimension_numbers<[1], [0], [0], [1], [0, 0, 1, 1], [], []>} : vector<4x32xf32>, vector<32x64xf32>, vector<4x64xf32> -> vector<4x64xf32>
    %1307 = arith.addf %1303, %1306 : vector<4x64xf32>
    %c1_1304 = arith.constant 1 : index
    %c4_1305 = arith.constant 4 : index
    %c2_1306 = arith.constant 2 : index
    %c0_1307 = arith.constant 0 : index
    %1308 = vector.load %arg10[%c1_1304, %c4_1305, %c2_1306, %c0_1307] : memref<2x6x6x32xf32, #tpu.memory_space<vmem>>, vector<1x1x4x32xf32>
    %1309 = vector.shape_cast %1308 : vector<1x1x4x32xf32> to vector<4x32xf32>
    %cst_1308 = arith.constant dense<0.000000e+00> : vector<4x64xf32>
    %1310 = tpu.matmul %1309, %35, %cst_1308 {dimension_numbers = #tpu.dot_dimension_numbers<[1], [0], [0], [1], [0, 0, 1, 1], [], []>} : vector<4x32xf32>, vector<32x64xf32>, vector<4x64xf32> -> vector<4x64xf32>
    %1311 = arith.addf %1307, %1310 : vector<4x64xf32>
    %c1_1309 = arith.constant 1 : index
    %c3_1310 = arith.constant 3 : index
    %c0_1311 = arith.constant 0 : index
    %c0_1312 = arith.constant 0 : index
    %1312 = vector.load %arg10[%c1_1309, %c3_1310, %c0_1311, %c0_1312] : memref<2x6x6x32xf32, #tpu.memory_space<vmem>>, vector<1x1x4x32xf32>
    %1313 = vector.shape_cast %1312 : vector<1x1x4x32xf32> to vector<4x32xf32>
    %cst_1313 = arith.constant dense<0.000000e+00> : vector<4x64xf32>
    %1314 = tpu.matmul %1313, %19, %cst_1313 {dimension_numbers = #tpu.dot_dimension_numbers<[1], [0], [0], [1], [0, 0, 1, 1], [], []>} : vector<4x32xf32>, vector<32x64xf32>, vector<4x64xf32> -> vector<4x64xf32>
    %c1_1314 = arith.constant 1 : index
    %c3_1315 = arith.constant 3 : index
    %c1_1316 = arith.constant 1 : index
    %c0_1317 = arith.constant 0 : index
    %1315 = vector.load %arg10[%c1_1314, %c3_1315, %c1_1316, %c0_1317] : memref<2x6x6x32xf32, #tpu.memory_space<vmem>>, vector<1x1x4x32xf32>
    %1316 = vector.shape_cast %1315 : vector<1x1x4x32xf32> to vector<4x32xf32>
    %cst_1318 = arith.constant dense<0.000000e+00> : vector<4x64xf32>
    %1317 = tpu.matmul %1316, %21, %cst_1318 {dimension_numbers = #tpu.dot_dimension_numbers<[1], [0], [0], [1], [0, 0, 1, 1], [], []>} : vector<4x32xf32>, vector<32x64xf32>, vector<4x64xf32> -> vector<4x64xf32>
    %1318 = arith.addf %1314, %1317 : vector<4x64xf32>
    %c1_1319 = arith.constant 1 : index
    %c3_1320 = arith.constant 3 : index
    %c2_1321 = arith.constant 2 : index
    %c0_1322 = arith.constant 0 : index
    %1319 = vector.load %arg10[%c1_1319, %c3_1320, %c2_1321, %c0_1322] : memref<2x6x6x32xf32, #tpu.memory_space<vmem>>, vector<1x1x4x32xf32>
    %1320 = vector.shape_cast %1319 : vector<1x1x4x32xf32> to vector<4x32xf32>
    %cst_1323 = arith.constant dense<0.000000e+00> : vector<4x64xf32>
    %1321 = tpu.matmul %1320, %23, %cst_1323 {dimension_numbers = #tpu.dot_dimension_numbers<[1], [0], [0], [1], [0, 0, 1, 1], [], []>} : vector<4x32xf32>, vector<32x64xf32>, vector<4x64xf32> -> vector<4x64xf32>
    %1322 = arith.addf %1318, %1321 : vector<4x64xf32>
    %c1_1324 = arith.constant 1 : index
    %c4_1325 = arith.constant 4 : index
    %c0_1326 = arith.constant 0 : index
    %c0_1327 = arith.constant 0 : index
    %1323 = vector.load %arg10[%c1_1324, %c4_1325, %c0_1326, %c0_1327] : memref<2x6x6x32xf32, #tpu.memory_space<vmem>>, vector<1x1x4x32xf32>
    %1324 = vector.shape_cast %1323 : vector<1x1x4x32xf32> to vector<4x32xf32>
    %cst_1328 = arith.constant dense<0.000000e+00> : vector<4x64xf32>
    %1325 = tpu.matmul %1324, %25, %cst_1328 {dimension_numbers = #tpu.dot_dimension_numbers<[1], [0], [0], [1], [0, 0, 1, 1], [], []>} : vector<4x32xf32>, vector<32x64xf32>, vector<4x64xf32> -> vector<4x64xf32>
    %1326 = arith.addf %1322, %1325 : vector<4x64xf32>
    %c1_1329 = arith.constant 1 : index
    %c4_1330 = arith.constant 4 : index
    %c1_1331 = arith.constant 1 : index
    %c0_1332 = arith.constant 0 : index
    %1327 = vector.load %arg10[%c1_1329, %c4_1330, %c1_1331, %c0_1332] : memref<2x6x6x32xf32, #tpu.memory_space<vmem>>, vector<1x1x4x32xf32>
    %1328 = vector.shape_cast %1327 : vector<1x1x4x32xf32> to vector<4x32xf32>
    %cst_1333 = arith.constant dense<0.000000e+00> : vector<4x64xf32>
    %1329 = tpu.matmul %1328, %27, %cst_1333 {dimension_numbers = #tpu.dot_dimension_numbers<[1], [0], [0], [1], [0, 0, 1, 1], [], []>} : vector<4x32xf32>, vector<32x64xf32>, vector<4x64xf32> -> vector<4x64xf32>
    %1330 = arith.addf %1326, %1329 : vector<4x64xf32>
    %c1_1334 = arith.constant 1 : index
    %c4_1335 = arith.constant 4 : index
    %c2_1336 = arith.constant 2 : index
    %c0_1337 = arith.constant 0 : index
    %1331 = vector.load %arg10[%c1_1334, %c4_1335, %c2_1336, %c0_1337] : memref<2x6x6x32xf32, #tpu.memory_space<vmem>>, vector<1x1x4x32xf32>
    %1332 = vector.shape_cast %1331 : vector<1x1x4x32xf32> to vector<4x32xf32>
    %cst_1338 = arith.constant dense<0.000000e+00> : vector<4x64xf32>
    %1333 = tpu.matmul %1332, %29, %cst_1338 {dimension_numbers = #tpu.dot_dimension_numbers<[1], [0], [0], [1], [0, 0, 1, 1], [], []>} : vector<4x32xf32>, vector<32x64xf32>, vector<4x64xf32> -> vector<4x64xf32>
    %1334 = arith.addf %1330, %1333 : vector<4x64xf32>
    %c1_1339 = arith.constant 1 : index
    %c5_1340 = arith.constant 5 : index
    %c0_1341 = arith.constant 0 : index
    %c0_1342 = arith.constant 0 : index
    %1335 = vector.load %arg10[%c1_1339, %c5_1340, %c0_1341, %c0_1342] : memref<2x6x6x32xf32, #tpu.memory_space<vmem>>, vector<1x1x4x32xf32>
    %1336 = vector.shape_cast %1335 : vector<1x1x4x32xf32> to vector<4x32xf32>
    %cst_1343 = arith.constant dense<0.000000e+00> : vector<4x64xf32>
    %1337 = tpu.matmul %1336, %31, %cst_1343 {dimension_numbers = #tpu.dot_dimension_numbers<[1], [0], [0], [1], [0, 0, 1, 1], [], []>} : vector<4x32xf32>, vector<32x64xf32>, vector<4x64xf32> -> vector<4x64xf32>
    %1338 = arith.addf %1334, %1337 : vector<4x64xf32>
    %c1_1344 = arith.constant 1 : index
    %c5_1345 = arith.constant 5 : index
    %c1_1346 = arith.constant 1 : index
    %c0_1347 = arith.constant 0 : index
    %1339 = vector.load %arg10[%c1_1344, %c5_1345, %c1_1346, %c0_1347] : memref<2x6x6x32xf32, #tpu.memory_space<vmem>>, vector<1x1x4x32xf32>
    %1340 = vector.shape_cast %1339 : vector<1x1x4x32xf32> to vector<4x32xf32>
    %cst_1348 = arith.constant dense<0.000000e+00> : vector<4x64xf32>
    %1341 = tpu.matmul %1340, %33, %cst_1348 {dimension_numbers = #tpu.dot_dimension_numbers<[1], [0], [0], [1], [0, 0, 1, 1], [], []>} : vector<4x32xf32>, vector<32x64xf32>, vector<4x64xf32> -> vector<4x64xf32>
    %1342 = arith.addf %1338, %1341 : vector<4x64xf32>
    %c1_1349 = arith.constant 1 : index
    %c5_1350 = arith.constant 5 : index
    %c2_1351 = arith.constant 2 : index
    %c0_1352 = arith.constant 0 : index
    %1343 = vector.load %arg10[%c1_1349, %c5_1350, %c2_1351, %c0_1352] : memref<2x6x6x32xf32, #tpu.memory_space<vmem>>, vector<1x1x4x32xf32>
    %1344 = vector.shape_cast %1343 : vector<1x1x4x32xf32> to vector<4x32xf32>
    %cst_1353 = arith.constant dense<0.000000e+00> : vector<4x64xf32>
    %1345 = tpu.matmul %1344, %35, %cst_1353 {dimension_numbers = #tpu.dot_dimension_numbers<[1], [0], [0], [1], [0, 0, 1, 1], [], []>} : vector<4x32xf32>, vector<32x64xf32>, vector<4x64xf32> -> vector<4x64xf32>
    %1346 = arith.addf %1342, %1345 : vector<4x64xf32>
    %1347 = arith.maximumf %1311, %1346 : vector<4x64xf32>
    %1348 = vector.extract_strided_slice %1347 {offsets = [0, 0], sizes = [1, 64], strides = [1, 1]} : vector<4x64xf32> to vector<1x64xf32>
    %1349 = vector.extract_strided_slice %1347 {offsets = [1, 0], sizes = [1, 64], strides = [1, 1]} : vector<4x64xf32> to vector<1x64xf32>
    %1350 = arith.maximumf %1348, %1349 : vector<1x64xf32>
    %1351 = arith.addf %1350, %37 : vector<1x64xf32>
    %cst_1354 = arith.constant 0.000000e+00 : f32
    %1352 = vector.broadcast %cst_1354 : f32 to vector<1x64xf32>
    %1353 = arith.cmpf oge, %1351, %1352 : vector<1x64xf32>
    %cst_1355 = arith.constant 0.00999999977 : f32
    %1354 = vector.broadcast %cst_1355 : f32 to vector<1x64xf32>
    %1355 = arith.mulf %1354, %1351 : vector<1x64xf32>
    %1356 = arith.select %1353, %1351, %1355 : vector<1x64xi1>, vector<1x64xf32>
    %c2_1356 = arith.constant 2 : index
    %c1_1357 = arith.constant 1 : index
    %c0_1358 = arith.constant 0 : index
    %1357 = vector.load %arg11[%c2_1356, %c1_1357, %c0_1358] : memref<4x2x64xf32, #tpu.memory_space<vmem>>, vector<1x1x64xf32>
    %1358 = vector.shape_cast %1357 : vector<1x1x64xf32> to vector<1x64xf32>
    %1359 = vector.shape_cast %1356 : vector<1x64xf32> to vector<1x1x64xf32>
    tpu.vector_store %arg11[%c2_1356, %c1_1357, %c0_1358], %1359 {strides = array<i32>} : memref<4x2x64xf32, #tpu.memory_space<vmem>>, vector<1x1x64xf32>,
    %1360 = vector.extract_strided_slice %1347 {offsets = [2, 0], sizes = [1, 64], strides = [1, 1]} : vector<4x64xf32> to vector<1x64xf32>
    %1361 = vector.extract_strided_slice %1347 {offsets = [3, 0], sizes = [1, 64], strides = [1, 1]} : vector<4x64xf32> to vector<1x64xf32>
    %1362 = arith.maximumf %1360, %1361 : vector<1x64xf32>
    %1363 = arith.addf %1362, %37 : vector<1x64xf32>
    %cst_1359 = arith.constant 0.000000e+00 : f32
    %1364 = vector.broadcast %cst_1359 : f32 to vector<1x64xf32>
    %1365 = arith.cmpf oge, %1363, %1364 : vector<1x64xf32>
    %cst_1360 = arith.constant 0.00999999977 : f32
    %1366 = vector.broadcast %cst_1360 : f32 to vector<1x64xf32>
    %1367 = arith.mulf %1366, %1363 : vector<1x64xf32>
    %1368 = arith.select %1365, %1363, %1367 : vector<1x64xi1>, vector<1x64xf32>
    %c3_1361 = arith.constant 3 : index
    %c1_1362 = arith.constant 1 : index
    %c0_1363 = arith.constant 0 : index
    %1369 = vector.load %arg11[%c3_1361, %c1_1362, %c0_1363] : memref<4x2x64xf32, #tpu.memory_space<vmem>>, vector<1x1x64xf32>
    %1370 = vector.shape_cast %1369 : vector<1x1x64xf32> to vector<1x64xf32>
    %1371 = vector.shape_cast %1368 : vector<1x64xf32> to vector<1x1x64xf32>
    tpu.vector_store %arg11[%c3_1361, %c1_1362, %c0_1363], %1371 {strides = array<i32>} : memref<4x2x64xf32, #tpu.memory_space<vmem>>, vector<1x1x64xf32>,
    %c0_1364 = arith.constant 0 : index
    %c0_1365 = arith.constant 0 : index
    %c0_1366 = arith.constant 0 : index
    %1372 = vector.load %arg11[%c0_1364, %c0_1365, %c0_1366] : memref<4x2x64xf32, #tpu.memory_space<vmem>>, vector<1x2x64xf32>
    %1373 = vector.shape_cast %1372 : vector<1x2x64xf32> to vector<2x64xf32>
    %c0_1367 = arith.constant 0 : index
    %c0_1368 = arith.constant 0 : index
    %c0_1369 = arith.constant 0 : index
    %1374 = vector.load %arg5[%c0_1367, %c0_1368, %c0_1369] : memref<4x64x128xf32, #tpu.memory_space<vmem>>, vector<1x64x128xf32>
    %1375 = vector.shape_cast %1374 : vector<1x64x128xf32> to vector<64x128xf32>
    %cst_1370 = arith.constant dense<0.000000e+00> : vector<2x128xf32>
    %1376 = tpu.matmul %1373, %1375, %cst_1370 {dimension_numbers = #tpu.dot_dimension_numbers<[1], [0], [0], [1], [0, 0, 1, 1], [], []>} : vector<2x64xf32>, vector<64x128xf32>, vector<2x128xf32> -> vector<2x128xf32>
    %c1_1371 = arith.constant 1 : index
    %c0_1372 = arith.constant 0 : index
    %c0_1373 = arith.constant 0 : index
    %1377 = vector.load %arg11[%c1_1371, %c0_1372, %c0_1373] : memref<4x2x64xf32, #tpu.memory_space<vmem>>, vector<1x2x64xf32>
    %1378 = vector.shape_cast %1377 : vector<1x2x64xf32> to vector<2x64xf32>
    %c1_1374 = arith.constant 1 : index
    %c0_1375 = arith.constant 0 : index
    %c0_1376 = arith.constant 0 : index
    %1379 = vector.load %arg5[%c1_1374, %c0_1375, %c0_1376] : memref<4x64x128xf32, #tpu.memory_space<vmem>>, vector<1x64x128xf32>
    %1380 = vector.shape_cast %1379 : vector<1x64x128xf32> to vector<64x128xf32>
    %cst_1377 = arith.constant dense<0.000000e+00> : vector<2x128xf32>
    %1381 = tpu.matmul %1378, %1380, %cst_1377 {dimension_numbers = #tpu.dot_dimension_numbers<[1], [0], [0], [1], [0, 0, 1, 1], [], []>} : vector<2x64xf32>, vector<64x128xf32>, vector<2x128xf32> -> vector<2x128xf32>
    %1382 = arith.addf %1376, %1381 : vector<2x128xf32>
    %c2_1378 = arith.constant 2 : index
    %c0_1379 = arith.constant 0 : index
    %c0_1380 = arith.constant 0 : index
    %1383 = vector.load %arg11[%c2_1378, %c0_1379, %c0_1380] : memref<4x2x64xf32, #tpu.memory_space<vmem>>, vector<1x2x64xf32>
    %1384 = vector.shape_cast %1383 : vector<1x2x64xf32> to vector<2x64xf32>
    %c2_1381 = arith.constant 2 : index
    %c0_1382 = arith.constant 0 : index
    %c0_1383 = arith.constant 0 : index
    %1385 = vector.load %arg5[%c2_1381, %c0_1382, %c0_1383] : memref<4x64x128xf32, #tpu.memory_space<vmem>>, vector<1x64x128xf32>
    %1386 = vector.shape_cast %1385 : vector<1x64x128xf32> to vector<64x128xf32>
    %cst_1384 = arith.constant dense<0.000000e+00> : vector<2x128xf32>
    %1387 = tpu.matmul %1384, %1386, %cst_1384 {dimension_numbers = #tpu.dot_dimension_numbers<[1], [0], [0], [1], [0, 0, 1, 1], [], []>} : vector<2x64xf32>, vector<64x128xf32>, vector<2x128xf32> -> vector<2x128xf32>
    %1388 = arith.addf %1382, %1387 : vector<2x128xf32>
    %c3_1385 = arith.constant 3 : index
    %c0_1386 = arith.constant 0 : index
    %c0_1387 = arith.constant 0 : index
    %1389 = vector.load %arg11[%c3_1385, %c0_1386, %c0_1387] : memref<4x2x64xf32, #tpu.memory_space<vmem>>, vector<1x2x64xf32>
    %1390 = vector.shape_cast %1389 : vector<1x2x64xf32> to vector<2x64xf32>
    %c3_1388 = arith.constant 3 : index
    %c0_1389 = arith.constant 0 : index
    %c0_1390 = arith.constant 0 : index
    %1391 = vector.load %arg5[%c3_1388, %c0_1389, %c0_1390] : memref<4x64x128xf32, #tpu.memory_space<vmem>>, vector<1x64x128xf32>
    %1392 = vector.shape_cast %1391 : vector<1x64x128xf32> to vector<64x128xf32>
    %cst_1391 = arith.constant dense<0.000000e+00> : vector<2x128xf32>
    %1393 = tpu.matmul %1390, %1392, %cst_1391 {dimension_numbers = #tpu.dot_dimension_numbers<[1], [0], [0], [1], [0, 0, 1, 1], [], []>} : vector<2x64xf32>, vector<64x128xf32>, vector<2x128xf32> -> vector<2x128xf32>
    %1394 = arith.addf %1388, %1393 : vector<2x128xf32>
    %c0_1392 = arith.constant 0 : index
    %c0_1393 = arith.constant 0 : index
    %1395 = vector.load %arg6[%c0_1392, %c0_1393] : memref<1x128xf32, #tpu.memory_space<vmem>>, vector<1x128xf32>
    %1396 = vector.broadcast %1395 : vector<1x128xf32> to vector<2x128xf32>
    %1397 = arith.addf %1394, %1396 : vector<2x128xf32>
    %cst_1394 = arith.constant 0.000000e+00 : f32
    %1398 = vector.broadcast %cst_1394 : f32 to vector<2x128xf32>
    %1399 = arith.cmpf oge, %1397, %1398 : vector<2x128xf32>
    %cst_1395 = arith.constant 0.00999999977 : f32
    %1400 = vector.broadcast %cst_1395 : f32 to vector<2x128xf32>
    %1401 = arith.mulf %1400, %1397 : vector<2x128xf32>
    %1402 = arith.select %1399, %1397, %1401 : vector<2x128xi1>, vector<2x128xf32>
    %c0_1396 = arith.constant 0 : index
    %c0_1397 = arith.constant 0 : index
    %1403 = vector.load %arg7[%c0_1396, %c0_1397] : memref<1x128xf32, #tpu.memory_space<vmem>>, vector<1x128xf32>
    %1404 = vector.broadcast %1403 : vector<1x128xf32> to vector<2x128xf32>
    %1405 = arith.mulf %1402, %1404 : vector<2x128xf32>
    %cst_1398 = arith.constant dense<0.000000e+00> : vector<2xf32>
    %1406 = vector.multi_reduction <add>, %1405, %cst_1398 [1] : vector<2x128xf32> to vector<2xf32>
    %1407 = vector.shape_cast %1406 : vector<2xf32> to vector<2x1xf32>
    %c0_1399 = arith.constant 0 : index
    %c0_1400 = arith.constant 0 : index
    %1408 = vector.load %arg8[%c0_1399, %c0_1400] : memref<1x1xf32, #tpu.memory_space<vmem>>, vector<1x1xf32>
    %1409 = vector.broadcast %1408 : vector<1x1xf32> to vector<2x1xf32>
    %1410 = arith.addf %1407, %1409 : vector<2x1xf32>
    %c0_1401 = arith.constant 0 : index
    %c0_1402 = arith.constant 0 : index
    %1411 = vector.load %arg9[%c0_1401, %c0_1402] : memref<2x1xf32, #tpu.memory_space<vmem>>, vector<2x1xf32>
    tpu.vector_store %arg9[%c0_1401, %c0_1402], %1410 {strides = array<i32>} : memref<2x1xf32, #tpu.memory_space<vmem>>, vector<2x1xf32>,
    return
  }
}

</mosaic_0001>

<llo_original>
// kernel: cnn_forward.1
$region0: #{cnn_forward.1}
  #allocation0 [shape = 'u32[]', space=smem, size = 0x4, offset = 0x4, fixed_abs, tag = 'smem constant byte address 0x4 - core index']
  #allocation1 [shape = 'u32[72,128]{1,0:T(1,128)}', space=vmem, size = 0x9000, scoped, tag = 'internal scratch']
  #allocation2 [shape = 'f32[2,6,6,32]{3,2,1,0:T(8,128)}', space=vmem, size = 0xc000, scoped, tag = 'scratch operand']
  #allocation3 [shape = 'f32[4,2,64]{2,1,0:T(2,128)}', space=vmem, size = 0x1000, scoped, tag = 'scratch operand']
  #allocation4 [shape = 'f32[1,1]{1,0:T(1,128)S(1)}', space=vmem, size = 0x200, scoped, tag = 'scoped memory for cnn_forward.1']
  %s0 = inlined_call_operand.vmem [shape: f32[2,10,10,8], index: 0, kind: input, shape index: {}]
  %s1 = inlined_call_operand.vmem [shape: f32[9,8,32], index: 1, kind: input, shape index: {}]
  %s2 = inlined_call_operand.vmem [shape: f32[1,32], index: 2, kind: input, shape index: {}]
  %s3 = inlined_call_operand.vmem [shape: f32[9,32,64], index: 3, kind: input, shape index: {}]
  %s4 = inlined_call_operand.vmem [shape: f32[1,64], index: 4, kind: input, shape index: {}]
  %s5 = inlined_call_operand.vmem [shape: f32[4,64,128], index: 5, kind: input, shape index: {}]
  %s6 = inlined_call_operand.vmem [shape: f32[1,128], index: 6, kind: input, shape index: {}]
  %s7 = inlined_call_operand.vmem [shape: f32[1,128], index: 7, kind: input, shape index: {}]
  %s8 = inlined_call_operand.<no memory space> [shape: f32[1,1], index: 8, kind: input, shape index: {}]
  %s9 = inlined_call_operand.vmem [shape: f32[2,1], index: 9, kind: output, shape index: {}]
  %s10 = sld [smem:[#allocation0]]
  $region46: #{cnn_forward.1} parent=0
    _
  %s12 = ssub.s32 1, %s10
  %s13 = scalar_select 0, %s12, %s10
  %v14 = vstv %s8
  %15 = vst [vmem:[#allocation4] sm:$0x1] %v14
  // Predicated region
  $region2: #{cnn_forward.1} parent=0 // pred_check
    _
  $region3: #{cnn_forward.1} parent=0 // pred_check_branch
    %17 = sbr.rel (0) target = $region5
  $region4: #{cnn_forward.1} parent=0 // pred_region
    _
  $region5: #{cnn_forward.1} parent=0 // pred_fallthru
    _
  // Predicated region
  $region6: #{cnn_forward.1} parent=0 // pred_check
    _
  $region7: #{cnn_forward.1} parent=0 // pred_check_branch
    %19 = sbr.rel (0) target = $region9
  $region8: #{cnn_forward.1} parent=0 // pred_region
    _
  $region9: #{cnn_forward.1} parent=0 // pred_fallthru
    _
  // Predicated region
  $region10: #{cnn_forward.1} parent=0 // pred_check
    _
  $region11: #{cnn_forward.1} parent=0 // pred_check_branch
    %21 = sbr.rel (0) target = $region13
  $region12: #{cnn_forward.1} parent=0 // pred_region
    _
  $region13: #{cnn_forward.1} parent=0 // pred_fallthru
    _
  // Predicated region
  $region14: #{cnn_forward.1} parent=0 // pred_check
    _
  $region15: #{cnn_forward.1} parent=0 // pred_check_branch
    %23 = sbr.rel (0) target = $region17
  $region16: #{cnn_forward.1} parent=0 // pred_region
    _
  $region17: #{cnn_forward.1} parent=0 // pred_fallthru
    _
  // Predicated region
  $region18: #{cnn_forward.1} parent=0 // pred_check
    _
  $region19: #{cnn_forward.1} parent=0 // pred_check_branch
    %25 = sbr.rel (0) target = $region21
  $region20: #{cnn_forward.1} parent=0 // pred_region
    _
  $region21: #{cnn_forward.1} parent=0 // pred_fallthru
    _
  // Predicated region
  $region22: #{cnn_forward.1} parent=0 // pred_check
    _
  $region23: #{cnn_forward.1} parent=0 // pred_check_branch
    %27 = sbr.rel (0) target = $region25
  $region24: #{cnn_forward.1} parent=0 // pred_region
    _
  $region25: #{cnn_forward.1} parent=0 // pred_fallthru
    _
  // Predicated region
  $region26: #{cnn_forward.1} parent=0 // pred_check
    _
  $region27: #{cnn_forward.1} parent=0 // pred_check_branch
    %29 = sbr.rel (0) target = $region29
  $region28: #{cnn_forward.1} parent=0 // pred_region
    _
  $region29: #{cnn_forward.1} parent=0 // pred_fallthru
    _
  // Predicated region
  $region30: #{cnn_forward.1} parent=0 // pred_check
    _
  $region31: #{cnn_forward.1} parent=0 // pred_check_branch
    %31 = sbr.rel (0) target = $region33
  $region32: #{cnn_forward.1} parent=0 // pred_region
    _
  $region33: #{cnn_forward.1} parent=0 // pred_fallthru
    _
  // Predicated region
  $region34: #{cnn_forward.1} parent=0 // pred_check
    _
  $region35: #{cnn_forward.1} parent=0 // pred_check_branch
    %33 = sbr.rel (0) target = $region37
  $region36: #{cnn_forward.1} parent=0 // pred_region
    _
  $region37: #{cnn_forward.1} parent=0 // pred_fallthru
    _
  %v34 = vld [vmem:[%s1] sm:$0xff]
  %s35 = scalar_lea.vmem %s1, 8
  %v36 = vld [vmem:[%s35] sm:$0xff]
  %s37 = scalar_lea.vmem %s1, 16
  %v38 = vld [vmem:[%s37] sm:$0xff]
  %s39 = scalar_lea.vmem %s1, 24
  %v40 = vld [vmem:[%s39] sm:$0xff]
  %s41 = scalar_lea.vmem %s1, 32
  %v42 = vld [vmem:[%s41] sm:$0xff]
  %s43 = scalar_lea.vmem %s1, 40
  %v44 = vld [vmem:[%s43] sm:$0xff]
  %s45 = scalar_lea.vmem %s1, 48
  %v46 = vld [vmem:[%s45] sm:$0xff]
  %s47 = scalar_lea.vmem %s1, 56
  %v48 = vld [vmem:[%s47] sm:$0xff]
  %s49 = scalar_lea.vmem %s1, 64
  %v50 = vld [vmem:[%s49] sm:$0xff]
  %v51 = vld [vmem:[%s3] sm:$0xff]
  %v52 = vld [vmem:[%s3 + $0x8] sm:$0xff]
  %v53 = vld [vmem:[%s3 + $0x10] sm:$0xff]
  %v54 = vld [vmem:[%s3 + $0x18] sm:$0xff]
  %s55 = scalar_lea.vmem %s3, 32
  %v56 = vld [vmem:[%s55] sm:$0xff]
  %v57 = vld [vmem:[%s55 + $0x8] sm:$0xff]
  %v58 = vld [vmem:[%s55 + $0x10] sm:$0xff]
  %v59 = vld [vmem:[%s55 + $0x18] sm:$0xff]
  %s60 = scalar_lea.vmem %s3, 64
  %v61 = vld [vmem:[%s60] sm:$0xff]
  %v62 = vld [vmem:[%s60 + $0x8] sm:$0xff]
  %v63 = vld [vmem:[%s60 + $0x10] sm:$0xff]
  %v64 = vld [vmem:[%s60 + $0x18] sm:$0xff]
  %s65 = scalar_lea.vmem %s3, 96
  %v66 = vld [vmem:[%s65] sm:$0xff]
  %v67 = vld [vmem:[%s65 + $0x8] sm:$0xff]
  %v68 = vld [vmem:[%s65 + $0x10] sm:$0xff]
  %v69 = vld [vmem:[%s65 + $0x18] sm:$0xff]
  %s70 = scalar_lea.vmem %s3, 128
  %v71 = vld [vmem:[%s70] sm:$0xff]
  %v72 = vld [vmem:[%s70 + $0x8] sm:$0xff]
  %v73 = vld [vmem:[%s70 + $0x10] sm:$0xff]
  %v74 = vld [vmem:[%s70 + $0x18] sm:$0xff]
  %s75 = scalar_lea.vmem %s3, 160
  %v76 = vld [vmem:[%s75] sm:$0xff]
  %v77 = vld [vmem:[%s75 + $0x8] sm:$0xff]
  %v78 = vld [vmem:[%s75 + $0x10] sm:$0xff]
  %v79 = vld [vmem:[%s75 + $0x18] sm:$0xff]
  %s80 = scalar_lea.vmem %s3, 192
  %v81 = vld [vmem:[%s80] sm:$0xff]
  %v82 = vld [vmem:[%s80 + $0x8] sm:$0xff]
  %v83 = vld [vmem:[%s80 + $0x10] sm:$0xff]
  %v84 = vld [vmem:[%s80 + $0x18] sm:$0xff]
  %s85 = scalar_lea.vmem %s3, 224
  %v86 = vld [vmem:[%s85] sm:$0xff]
  %v87 = vld [vmem:[%s85 + $0x8] sm:$0xff]
  %v88 = vld [vmem:[%s85 + $0x10] sm:$0xff]
  %v89 = vld [vmem:[%s85 + $0x18] sm:$0xff]
  %s90 = scalar_lea.vmem %s3, 256
  %v91 = vld [vmem:[%s90] sm:$0xff]
  %v92 = vld [vmem:[%s90 + $0x8] sm:$0xff]
  %v93 = vld [vmem:[%s90 + $0x10] sm:$0xff]
  %v94 = vld [vmem:[%s90 + $0x18] sm:$0xff]
  %v95 = vld [vmem:[%s2] sm:$0x1]
  %v96 = vld [vmem:[%s4] sm:$0x1]
  %vm97 = vcmask 259072
  %98 = vst.msk [vmem:[#allocation2] sm:$0x3f] %vm97, 0.0
  %99 = vst.msk [vmem:[#allocation2 + $0x8] sm:$0x3f] %vm97, 0.0
  %100 = vst.msk [vmem:[#allocation2 + $0x10] sm:$0x3f] %vm97, 0.0
  %101 = vst.msk [vmem:[#allocation2 + $0x18] sm:$0x3f] %vm97, 0.0
  %102 = vst.msk [vmem:[#allocation2 + $0x20] sm:$0x3f] %vm97, 0.0
  %103 = vst.msk [vmem:[#allocation2 + $0x28] sm:$0x3f] %vm97, 0.0
  %104 = vst.msk [vmem:[#allocation2 + $0x30] sm:$0x3f] %vm97, 0.0
  %105 = vst.msk [vmem:[#allocation2 + $0x38] sm:$0x3f] %vm97, 0.0
  %106 = vst.msk [vmem:[#allocation2 + $0x40] sm:$0x3f] %vm97, 0.0
  %107 = vst.msk [vmem:[#allocation2 + $0x48] sm:$0x3f] %vm97, 0.0
  %108 = vst.msk [vmem:[#allocation2 + $0x50] sm:$0x3f] %vm97, 0.0
  %109 = vst.msk [vmem:[#allocation2 + $0x58] sm:$0x3f] %vm97, 0.0
  %v110 = vld [vmem:[%s0] sm:$0xff]
  %v111 = vld [vmem:[%s0 + $0x1] sm:$0xff]
  %vm112 = vcmask 64512
  %v114 = vsel %vm112, %v111, 0
  %116 = vmatpush.msra.mxu0 0.0
  %117 = vmatpush.msra.mxu0 0.0
  %118 = vmatpush.msra.mxu0 0.0
  %119 = vmatpush.msra.mxu0 0.0
  %120 = vmatpush.msra.mxu0 0.0
  %121 = vmatpush.msra.mxu0 0.0
  %122 = vmatpush.msra.mxu0 0.0
  %123 = vmatpush.msra.mxu0 0.0
  %124 = vmatpush.msra.mxu0 0.0
  %125 = vmatpush.msra.mxu0 0.0
  %126 = vmatpush.msra.mxu0 0.0
  %127 = vmatpush.msra.mxu0 0.0
  %128 = vmatpush.msra.mxu0 0.0
  %129 = vmatpush.msra.mxu0 0.0
  %130 = vmatpush.msra.mxu0 0.0
  %131 = vmatpush.msra.mxu0 %v36
  %132 = vmatmul.f32.gmra.mxu0 %v114
  %v133 = vpop.f32.mrf.mxu0
  %v134 = vadd.f32 0.0, %v133
  %135 = vdwg.mxu0
  %v137 = vsel %vm112, %v110, 0
  %139 = vmatpush.msra.mxu0 0.0
  %140 = vmatpush.msra.mxu0 0.0
  %141 = vmatpush.msra.mxu0 0.0
  %142 = vmatpush.msra.mxu0 0.0
  %143 = vmatpush.msra.mxu0 0.0
  %144 = vmatpush.msra.mxu0 0.0
  %145 = vmatpush.msra.mxu0 0.0
  %146 = vmatpush.msra.mxu0 0.0
  %147 = vmatpush.msra.mxu0 0.0
  %148 = vmatpush.msra.mxu0 0.0
  %149 = vmatpush.msra.mxu0 0.0
  %150 = vmatpush.msra.mxu0 0.0
  %151 = vmatpush.msra.mxu0 0.0
  %152 = vmatpush.msra.mxu0 0.0
  %153 = vmatpush.msra.mxu0 0.0
  %154 = vmatpush.msra.mxu0 %v34
  %155 = vmatmul.f32.gmra.mxu0 %v137
  %v156 = vpop.f32.mrf.mxu0
  %v157 = vadd.f32 %v134, %v156
  %158 = vdwg.mxu0
  %v159 = vld [vmem:[%s0 + $0x2] sm:$0xff]
  %v161 = vsel %vm112, %v159, 0
  %163 = vmatpush.msra.mxu0 0.0
  %164 = vmatpush.msra.mxu0 0.0
  %165 = vmatpush.msra.mxu0 0.0
  %166 = vmatpush.msra.mxu0 0.0
  %167 = vmatpush.msra.mxu0 0.0
  %168 = vmatpush.msra.mxu0 0.0
  %169 = vmatpush.msra.mxu0 0.0
  %170 = vmatpush.msra.mxu0 0.0
  %171 = vmatpush.msra.mxu0 0.0
  %172 = vmatpush.msra.mxu0 0.0
  %173 = vmatpush.msra.mxu0 0.0
  %174 = vmatpush.msra.mxu0 0.0
  %175 = vmatpush.msra.mxu0 0.0
  %176 = vmatpush.msra.mxu0 0.0
  %177 = vmatpush.msra.mxu0 0.0
  %178 = vmatpush.msra.mxu0 %v38
  %179 = vmatmul.f32.gmra.mxu0 %v161
  %v180 = vpop.f32.mrf.mxu0
  %v181 = vadd.f32 0.0, %v180
  %182 = vdwg.mxu0
  %v183 = vadd.f32 %v157, %v181
  %s184 = scalar_lea.vmem %s0, 16
  %v185 = vld [vmem:[%s184] sm:$0xff]
  %v187 = vsel %vm112, %v185, 0
  %189 = vmatpush.msra.mxu0 0.0
  %190 = vmatpush.msra.mxu0 0.0
  %191 = vmatpush.msra.mxu0 0.0
  %192 = vmatpush.msra.mxu0 0.0
  %193 = vmatpush.msra.mxu0 0.0
  %194 = vmatpush.msra.mxu0 0.0
  %195 = vmatpush.msra.mxu0 0.0
  %196 = vmatpush.msra.mxu0 0.0
  %197 = vmatpush.msra.mxu0 0.0
  %198 = vmatpush.msra.mxu0 0.0
  %199 = vmatpush.msra.mxu0 0.0
  %200 = vmatpush.msra.mxu0 0.0
  %201 = vmatpush.msra.mxu0 0.0
  %202 = vmatpush.msra.mxu0 0.0
  %203 = vmatpush.msra.mxu0 0.0
  %204 = vmatpush.msra.mxu0 %v40
  %205 = vmatmul.f32.gmra.mxu0 %v187
  %v206 = vpop.f32.mrf.mxu0
  %v207 = vadd.f32 0.0, %v206
  %208 = vdwg.mxu0
  %v209 = vadd.f32 %v183, %v207
  %v210 = vld [vmem:[%s184 + $0x1] sm:$0xff]
  %v212 = vsel %vm112, %v210, 0
  %214 = vmatpush.msra.mxu0 0.0
  %215 = vmatpush.msra.mxu0 0.0
  %216 = vmatpush.msra.mxu0 0.0
  %217 = vmatpush.msra.mxu0 0.0
  %218 = vmatpush.msra.mxu0 0.0
  %219 = vmatpush.msra.mxu0 0.0
  %220 = vmatpush.msra.mxu0 0.0
  %221 = vmatpush.msra.mxu0 0.0
  %222 = vmatpush.msra.mxu0 0.0
  %223 = vmatpush.msra.mxu0 0.0
  %224 = vmatpush.msra.mxu0 0.0
  %225 = vmatpush.msra.mxu0 0.0
  %226 = vmatpush.msra.mxu0 0.0
  %227 = vmatpush.msra.mxu0 0.0
  %228 = vmatpush.msra.mxu0 0.0
  %229 = vmatpush.msra.mxu0 %v42
  %230 = vmatmul.f32.gmra.mxu0 %v212
  %v231 = vpop.f32.mrf.mxu0
  %v232 = vadd.f32 0.0, %v231
  %233 = vdwg.mxu0
  %v234 = vadd.f32 %v209, %v232
  %v235 = vld [vmem:[%s184 + $0x2] sm:$0xff]
  %v237 = vsel %vm112, %v235, 0
  %239 = vmatpush.msra.mxu0 0.0
  %240 = vmatpush.msra.mxu0 0.0
  %241 = vmatpush.msra.mxu0 0.0
  %242 = vmatpush.msra.mxu0 0.0
  %243 = vmatpush.msra.mxu0 0.0
  %244 = vmatpush.msra.mxu0 0.0
  %245 = vmatpush.msra.mxu0 0.0
  %246 = vmatpush.msra.mxu0 0.0
  %247 = vmatpush.msra.mxu0 0.0
  %248 = vmatpush.msra.mxu0 0.0
  %249 = vmatpush.msra.mxu0 0.0
  %250 = vmatpush.msra.mxu0 0.0
  %251 = vmatpush.msra.mxu0 0.0
  %252 = vmatpush.msra.mxu0 0.0
  %253 = vmatpush.msra.mxu0 0.0
  %254 = vmatpush.msra.mxu0 %v44
  %255 = vmatmul.f32.gmra.mxu0 %v237
  %v256 = vpop.f32.mrf.mxu0
  %v257 = vadd.f32 0.0, %v256
  %258 = vdwg.mxu0
  %v259 = vadd.f32 %v234, %v257
  %s260 = scalar_lea.vmem %s0, 32
  %v261 = vld [vmem:[%s260] sm:$0xff]
  %v263 = vsel %vm112, %v261, 0
  %265 = vmatpush.msra.mxu0 0.0
  %266 = vmatpush.msra.mxu0 0.0
  %267 = vmatpush.msra.mxu0 0.0
  %268 = vmatpush.msra.mxu0 0.0
  %269 = vmatpush.msra.mxu0 0.0
  %270 = vmatpush.msra.mxu0 0.0
  %271 = vmatpush.msra.mxu0 0.0
  %272 = vmatpush.msra.mxu0 0.0
  %273 = vmatpush.msra.mxu0 0.0
  %274 = vmatpush.msra.mxu0 0.0
  %275 = vmatpush.msra.mxu0 0.0
  %276 = vmatpush.msra.mxu0 0.0
  %277 = vmatpush.msra.mxu0 0.0
  %278 = vmatpush.msra.mxu0 0.0
  %279 = vmatpush.msra.mxu0 0.0
  %280 = vmatpush.msra.mxu0 %v46
  %281 = vmatmul.f32.gmra.mxu0 %v263
  %v282 = vpop.f32.mrf.mxu0
  %v283 = vadd.f32 0.0, %v282
  %284 = vdwg.mxu0
  %v285 = vadd.f32 %v259, %v283
  %v286 = vld [vmem:[%s260 + $0x1] sm:$0xff]
  %v288 = vsel %vm112, %v286, 0
  %290 = vmatpush.msra.mxu0 0.0
  %291 = vmatpush.msra.mxu0 0.0
  %292 = vmatpush.msra.mxu0 0.0
  %293 = vmatpush.msra.mxu0 0.0
  %294 = vmatpush.msra.mxu0 0.0
  %295 = vmatpush.msra.mxu0 0.0
  %296 = vmatpush.msra.mxu0 0.0
  %297 = vmatpush.msra.mxu0 0.0
  %298 = vmatpush.msra.mxu0 0.0
  %299 = vmatpush.msra.mxu0 0.0
  %300 = vmatpush.msra.mxu0 0.0
  %301 = vmatpush.msra.mxu0 0.0
  %302 = vmatpush.msra.mxu0 0.0
  %303 = vmatpush.msra.mxu0 0.0
  %304 = vmatpush.msra.mxu0 0.0
  %305 = vmatpush.msra.mxu0 %v48
  %306 = vmatmul.f32.gmra.mxu0 %v288
  %v307 = vpop.f32.mrf.mxu0
  %v308 = vadd.f32 0.0, %v307
  %309 = vdwg.mxu0
  %v310 = vadd.f32 %v285, %v308
  %v311 = vld [vmem:[%s260 + $0x2] sm:$0xff]
  %v313 = vsel %vm112, %v311, 0
  %315 = vmatpush.msra.mxu0 0.0
  %316 = vmatpush.msra.mxu0 0.0
  %317 = vmatpush.msra.mxu0 0.0
  %318 = vmatpush.msra.mxu0 0.0
  %319 = vmatpush.msra.mxu0 0.0
  %320 = vmatpush.msra.mxu0 0.0
  %321 = vmatpush.msra.mxu0 0.0
  %322 = vmatpush.msra.mxu0 0.0
  %323 = vmatpush.msra.mxu0 0.0
  %324 = vmatpush.msra.mxu0 0.0
  %325 = vmatpush.msra.mxu0 0.0
  %326 = vmatpush.msra.mxu0 0.0
  %327 = vmatpush.msra.mxu0 0.0
  %328 = vmatpush.msra.mxu0 0.0
  %329 = vmatpush.msra.mxu0 0.0
  %330 = vmatpush.msra.mxu0 %v50
  %331 = vmatmul.f32.gmra.mxu0 %v313
  %v332 = vpop.f32.mrf.mxu0
  %v333 = vadd.f32 0.0, %v332
  %334 = vdwg.mxu0
  %v335 = vadd.f32 %v310, %v333
  %336 = vmatpush.msra.mxu0 0.0
  %337 = vmatpush.msra.mxu0 0.0
  %338 = vmatpush.msra.mxu0 0.0
  %339 = vmatpush.msra.mxu0 0.0
  %340 = vmatpush.msra.mxu0 0.0
  %341 = vmatpush.msra.mxu0 0.0
  %342 = vmatpush.msra.mxu0 0.0
  %343 = vmatpush.msra.mxu0 0.0
  %344 = vmatpush.msra.mxu0 0.0
  %345 = vmatpush.msra.mxu0 0.0
  %346 = vmatpush.msra.mxu0 0.0
  %347 = vmatpush.msra.mxu0 0.0
  %348 = vmatpush.msra.mxu0 0.0
  %349 = vmatpush.msra.mxu0 0.0
  %350 = vmatpush.msra.mxu0 0.0
  %351 = vmatpush.msra.mxu0 %v36
  %352 = vmatmul.f32.gmra.mxu0 %v212
  %v353 = vpop.f32.mrf.mxu0
  %v354 = vadd.f32 0.0, %v353
  %355 = vdwg.mxu0
  %356 = vmatpush.msra.mxu0 0.0
  %357 = vmatpush.msra.mxu0 0.0
  %358 = vmatpush.msra.mxu0 0.0
  %359 = vmatpush.msra.mxu0 0.0
  %360 = vmatpush.msra.mxu0 0.0
  %361 = vmatpush.msra.mxu0 0.0
  %362 = vmatpush.msra.mxu0 0.0
  %363 = vmatpush.msra.mxu0 0.0
  %364 = vmatpush.msra.mxu0 0.0
  %365 = vmatpush.msra.mxu0 0.0
  %366 = vmatpush.msra.mxu0 0.0
  %367 = vmatpush.msra.mxu0 0.0
  %368 = vmatpush.msra.mxu0 0.0
  %369 = vmatpush.msra.mxu0 0.0
  %370 = vmatpush.msra.mxu0 0.0
  %371 = vmatpush.msra.mxu0 %v34
  %372 = vmatmul.f32.gmra.mxu0 %v187
  %v373 = vpop.f32.mrf.mxu0
  %v374 = vadd.f32 %v354, %v373
  %375 = vdwg.mxu0
  %376 = vmatpush.msra.mxu0 0.0
  %377 = vmatpush.msra.mxu0 0.0
  %378 = vmatpush.msra.mxu0 0.0
  %379 = vmatpush.msra.mxu0 0.0
  %380 = vmatpush.msra.mxu0 0.0
  %381 = vmatpush.msra.mxu0 0.0
  %382 = vmatpush.msra.mxu0 0.0
  %383 = vmatpush.msra.mxu0 0.0
  %384 = vmatpush.msra.mxu0 0.0
  %385 = vmatpush.msra.mxu0 0.0
  %386 = vmatpush.msra.mxu0 0.0
  %387 = vmatpush.msra.mxu0 0.0
  %388 = vmatpush.msra.mxu0 0.0
  %389 = vmatpush.msra.mxu0 0.0
  %390 = vmatpush.msra.mxu0 0.0
  %391 = vmatpush.msra.mxu0 %v38
  %392 = vmatmul.f32.gmra.mxu0 %v237
  %v393 = vpop.f32.mrf.mxu0
  %v394 = vadd.f32 0.0, %v393
  %395 = vdwg.mxu0
  %v396 = vadd.f32 %v374, %v394
  %397 = vmatpush.msra.mxu0 0.0
  %398 = vmatpush.msra.mxu0 0.0
  %399 = vmatpush.msra.mxu0 0.0
  %400 = vmatpush.msra.mxu0 0.0
  %401 = vmatpush.msra.mxu0 0.0
  %402 = vmatpush.msra.mxu0 0.0
  %403 = vmatpush.msra.mxu0 0.0
  %404 = vmatpush.msra.mxu0 0.0
  %405 = vmatpush.msra.mxu0 0.0
  %406 = vmatpush.msra.mxu0 0.0
  %407 = vmatpush.msra.mxu0 0.0
  %408 = vmatpush.msra.mxu0 0.0
  %409 = vmatpush.msra.mxu0 0.0
  %410 = vmatpush.msra.mxu0 0.0
  %411 = vmatpush.msra.mxu0 0.0
  %412 = vmatpush.msra.mxu0 %v40
  %413 = vmatmul.f32.gmra.mxu0 %v263
  %v414 = vpop.f32.mrf.mxu0
  %v415 = vadd.f32 0.0, %v414
  %416 = vdwg.mxu0
  %v417 = vadd.f32 %v396, %v415
  %418 = vmatpush.msra.mxu0 0.0
  %419 = vmatpush.msra.mxu0 0.0
  %420 = vmatpush.msra.mxu0 0.0
  %421 = vmatpush.msra.mxu0 0.0
  %422 = vmatpush.msra.mxu0 0.0
  %423 = vmatpush.msra.mxu0 0.0
  %424 = vmatpush.msra.mxu0 0.0
  %425 = vmatpush.msra.mxu0 0.0
  %426 = vmatpush.msra.mxu0 0.0
  %427 = vmatpush.msra.mxu0 0.0
  %428 = vmatpush.msra.mxu0 0.0
  %429 = vmatpush.msra.mxu0 0.0
  %430 = vmatpush.msra.mxu0 0.0
  %431 = vmatpush.msra.mxu0 0.0
  %432 = vmatpush.msra.mxu0 0.0
  %433 = vmatpush.msra.mxu0 %v42
  %434 = vmatmul.f32.gmra.mxu0 %v288
  %v435 = vpop.f32.mrf.mxu0
  %v436 = vadd.f32 0.0, %v435
  %437 = vdwg.mxu0
  %v438 = vadd.f32 %v417, %v436
  %439 = vmatpush.msra.mxu0 0.0
  %440 = vmatpush.msra.mxu0 0.0
  %441 = vmatpush.msra.mxu0 0.0
  %442 = vmatpush.msra.mxu0 0.0
  %443 = vmatpush.msra.mxu0 0.0
  %444 = vmatpush.msra.mxu0 0.0
  %445 = vmatpush.msra.mxu0 0.0
  %446 = vmatpush.msra.mxu0 0.0
  %447 = vmatpush.msra.mxu0 0.0
  %448 = vmatpush.msra.mxu0 0.0
  %449 = vmatpush.msra.mxu0 0.0
  %450 = vmatpush.msra.mxu0 0.0
  %451 = vmatpush.msra.mxu0 0.0
  %452 = vmatpush.msra.mxu0 0.0
  %453 = vmatpush.msra.mxu0 0.0
  %454 = vmatpush.msra.mxu0 %v44
  %455 = vmatmul.f32.gmra.mxu0 %v313
  %v456 = vpop.f32.mrf.mxu0
  %v457 = vadd.f32 0.0, %v456
  %458 = vdwg.mxu0
  %v459 = vadd.f32 %v438, %v457
  %s460 = scalar_lea.vmem %s0, 48
  %v461 = vld [vmem:[%s460] sm:$0xff]
  %v463 = vsel %vm112, %v461, 0
  %465 = vmatpush.msra.mxu0 0.0
  %466 = vmatpush.msra.mxu0 0.0
  %467 = vmatpush.msra.mxu0 0.0
  %468 = vmatpush.msra.mxu0 0.0
  %469 = vmatpush.msra.mxu0 0.0
  %470 = vmatpush.msra.mxu0 0.0
  %471 = vmatpush.msra.mxu0 0.0
  %472 = vmatpush.msra.mxu0 0.0
  %473 = vmatpush.msra.mxu0 0.0
  %474 = vmatpush.msra.mxu0 0.0
  %475 = vmatpush.msra.mxu0 0.0
  %476 = vmatpush.msra.mxu0 0.0
  %477 = vmatpush.msra.mxu0 0.0
  %478 = vmatpush.msra.mxu0 0.0
  %479 = vmatpush.msra.mxu0 0.0
  %480 = vmatpush.msra.mxu0 %v46
  %481 = vmatmul.f32.gmra.mxu0 %v463
  %v482 = vpop.f32.mrf.mxu0
  %v483 = vadd.f32 0.0, %v482
  %484 = vdwg.mxu0
  %v485 = vadd.f32 %v459, %v483
  %v486 = vld [vmem:[%s460 + $0x1] sm:$0xff]
  %v488 = vsel %vm112, %v486, 0
  %490 = vmatpush.msra.mxu0 0.0
  %491 = vmatpush.msra.mxu0 0.0
  %492 = vmatpush.msra.mxu0 0.0
  %493 = vmatpush.msra.mxu0 0.0
  %494 = vmatpush.msra.mxu0 0.0
  %495 = vmatpush.msra.mxu0 0.0
  %496 = vmatpush.msra.mxu0 0.0
  %497 = vmatpush.msra.mxu0 0.0
  %498 = vmatpush.msra.mxu0 0.0
  %499 = vmatpush.msra.mxu0 0.0
  %500 = vmatpush.msra.mxu0 0.0
  %501 = vmatpush.msra.mxu0 0.0
  %502 = vmatpush.msra.mxu0 0.0
  %503 = vmatpush.msra.mxu0 0.0
  %504 = vmatpush.msra.mxu0 0.0
  %505 = vmatpush.msra.mxu0 %v48
  %506 = vmatmul.f32.gmra.mxu0 %v488
  %v507 = vpop.f32.mrf.mxu0
  %v508 = vadd.f32 0.0, %v507
  %509 = vdwg.mxu0
  %v510 = vadd.f32 %v485, %v508
  %v511 = vld [vmem:[%s460 + $0x2] sm:$0xff]
  %v513 = vsel %vm112, %v511, 0
  %515 = vmatpush.msra.mxu0 0.0
  %516 = vmatpush.msra.mxu0 0.0
  %517 = vmatpush.msra.mxu0 0.0
  %518 = vmatpush.msra.mxu0 0.0
  %519 = vmatpush.msra.mxu0 0.0
  %520 = vmatpush.msra.mxu0 0.0
  %521 = vmatpush.msra.mxu0 0.0
  %522 = vmatpush.msra.mxu0 0.0
  %523 = vmatpush.msra.mxu0 0.0
  %524 = vmatpush.msra.mxu0 0.0
  %525 = vmatpush.msra.mxu0 0.0
  %526 = vmatpush.msra.mxu0 0.0
  %527 = vmatpush.msra.mxu0 0.0
  %528 = vmatpush.msra.mxu0 0.0
  %529 = vmatpush.msra.mxu0 0.0
  %530 = vmatpush.msra.mxu0 %v50
  %531 = vmatmul.f32.gmra.mxu0 %v513
  %v532 = vpop.f32.mrf.mxu0
  %v533 = vadd.f32 0.0, %v532
  %534 = vdwg.mxu0
  %v535 = vadd.f32 %v510, %v533
  %v536 = vmax.f32 %v335, %v535
  %v538 = vrot.slane %v536, 1
  %v540 = vmax.f32 %v536, %v538
  %v541 = vadd.f32 %v540, %v95
  %vm542 = vcmp.ge.f32.partialorder %v541, 0.0
  %v543 = vmul.f32 %v541, 0.01
  %v544 = vsel %vm542, %v541, %v543
  %s545 = scalar_lea.vmem [#allocation2], 8
  %vm546 = vcmask 253952
  %547 = vst.msk [vmem:[%s545 + $0x1] sm:$0x1] %vm546, %v544
  %v549 = vperm.slane %v95, 0
  %v551 = vadd.f32 %v540, %v549
  %vm552 = vcmp.ge.f32.partialorder %v551, 0.0
  %v553 = vmul.f32 %v551, 0.01
  %v554 = vsel %vm552, %v551, %v553
  %vm555 = vcmask 256002
  %556 = vst.msk [vmem:[%s545] sm:$0x4] %vm555, %v554
  %vm557 = vcmask 258052
  %558 = vst.msk [vmem:[%s545 - $0x1] sm:$0x10] %vm557, %v554
  %vm559 = vcmask 260102
  %560 = vst.msk [vmem:[%s545 - $0x2] sm:$0x40] %vm559, %v554
  %v561 = vld [vmem:[%s260] sm:$0xff]
  %v562 = vld [vmem:[%s260 + $0x1] sm:$0xff]
  %v564 = vsel %vm112, %v562, 0
  %566 = vmatpush.msra.mxu0 0.0
  %567 = vmatpush.msra.mxu0 0.0
  %568 = vmatpush.msra.mxu0 0.0
  %569 = vmatpush.msra.mxu0 0.0
  %570 = vmatpush.msra.mxu0 0.0
  %571 = vmatpush.msra.mxu0 0.0
  %572 = vmatpush.msra.mxu0 0.0
  %573 = vmatpush.msra.mxu0 0.0
  %574 = vmatpush.msra.mxu0 0.0
  %575 = vmatpush.msra.mxu0 0.0
  %576 = vmatpush.msra.mxu0 0.0
  %577 = vmatpush.msra.mxu0 0.0
  %578 = vmatpush.msra.mxu0 0.0
  %579 = vmatpush.msra.mxu0 0.0
  %580 = vmatpush.msra.mxu0 0.0
  %581 = vmatpush.msra.mxu0 %v36
  %582 = vmatmul.f32.gmra.mxu0 %v564
  %v583 = vpop.f32.mrf.mxu0
  %v584 = vadd.f32 0.0, %v583
  %585 = vdwg.mxu0
  %v587 = vsel %vm112, %v561, 0
  %589 = vmatpush.msra.mxu0 0.0
  %590 = vmatpush.msra.mxu0 0.0
  %591 = vmatpush.msra.mxu0 0.0
  %592 = vmatpush.msra.mxu0 0.0
  %593 = vmatpush.msra.mxu0 0.0
  %594 = vmatpush.msra.mxu0 0.0
  %595 = vmatpush.msra.mxu0 0.0
  %596 = vmatpush.msra.mxu0 0.0
  %597 = vmatpush.msra.mxu0 0.0
  %598 = vmatpush.msra.mxu0 0.0
  %599 = vmatpush.msra.mxu0 0.0
  %600 = vmatpush.msra.mxu0 0.0
  %601 = vmatpush.msra.mxu0 0.0
  %602 = vmatpush.msra.mxu0 0.0
  %603 = vmatpush.msra.mxu0 0.0
  %604 = vmatpush.msra.mxu0 %v34
  %605 = vmatmul.f32.gmra.mxu0 %v587
  %v606 = vpop.f32.mrf.mxu0
  %v607 = vadd.f32 %v584, %v606
  %608 = vdwg.mxu0
  %v609 = vld [vmem:[%s260 + $0x2] sm:$0xff]
  %v611 = vsel %vm112, %v609, 0
  %613 = vmatpush.msra.mxu0 0.0
  %614 = vmatpush.msra.mxu0 0.0
  %615 = vmatpush.msra.mxu0 0.0
  %616 = vmatpush.msra.mxu0 0.0
  %617 = vmatpush.msra.mxu0 0.0
  %618 = vmatpush.msra.mxu0 0.0
  %619 = vmatpush.msra.mxu0 0.0
  %620 = vmatpush.msra.mxu0 0.0
  %621 = vmatpush.msra.mxu0 0.0
  %622 = vmatpush.msra.mxu0 0.0
  %623 = vmatpush.msra.mxu0 0.0
  %624 = vmatpush.msra.mxu0 0.0
  %625 = vmatpush.msra.mxu0 0.0
  %626 = vmatpush.msra.mxu0 0.0
  %627 = vmatpush.msra.mxu0 0.0
  %628 = vmatpush.msra.mxu0 %v38
  %629 = vmatmul.f32.gmra.mxu0 %v611
  %v630 = vpop.f32.mrf.mxu0
  %v631 = vadd.f32 0.0, %v630
  %632 = vdwg.mxu0
  %v633 = vadd.f32 %v607, %v631
  %v634 = vld [vmem:[%s460] sm:$0xff]
  %v636 = vsel %vm112, %v634, 0
  %638 = vmatpush.msra.mxu0 0.0
  %639 = vmatpush.msra.mxu0 0.0
  %640 = vmatpush.msra.mxu0 0.0
  %641 = vmatpush.msra.mxu0 0.0
  %642 = vmatpush.msra.mxu0 0.0
  %643 = vmatpush.msra.mxu0 0.0
  %644 = vmatpush.msra.mxu0 0.0
  %645 = vmatpush.msra.mxu0 0.0
  %646 = vmatpush.msra.mxu0 0.0
  %647 = vmatpush.msra.mxu0 0.0
  %648 = vmatpush.msra.mxu0 0.0
  %649 = vmatpush.msra.mxu0 0.0
  %650 = vmatpush.msra.mxu0 0.0
  %651 = vmatpush.msra.mxu0 0.0
  %652 = vmatpush.msra.mxu0 0.0
  %653 = vmatpush.msra.mxu0 %v40
  %654 = vmatmul.f32.gmra.mxu0 %v636
  %v655 = vpop.f32.mrf.mxu0
  %v656 = vadd.f32 0.0, %v655
  %657 = vdwg.mxu0
  %v658 = vadd.f32 %v633, %v656
  %v659 = vld [vmem:[%s460 + $0x1] sm:$0xff]
  %v661 = vsel %vm112, %v659, 0
  %663 = vmatpush.msra.mxu0 0.0
  %664 = vmatpush.msra.mxu0 0.0
  %665 = vmatpush.msra.mxu0 0.0
  %666 = vmatpush.msra.mxu0 0.0
  %667 = vmatpush.msra.mxu0 0.0
  %668 = vmatpush.msra.mxu0 0.0
  %669 = vmatpush.msra.mxu0 0.0
  %670 = vmatpush.msra.mxu0 0.0
  %671 = vmatpush.msra.mxu0 0.0
  %672 = vmatpush.msra.mxu0 0.0
  %673 = vmatpush.msra.mxu0 0.0
  %674 = vmatpush.msra.mxu0 0.0
  %675 = vmatpush.msra.mxu0 0.0
  %676 = vmatpush.msra.mxu0 0.0
  %677 = vmatpush.msra.mxu0 0.0
  %678 = vmatpush.msra.mxu0 %v42
  %679 = vmatmul.f32.gmra.mxu0 %v661
  %v680 = vpop.f32.mrf.mxu0
  %v681 = vadd.f32 0.0, %v680
  %682 = vdwg.mxu0
  %v683 = vadd.f32 %v658, %v681
  %v684 = vld [vmem:[%s460 + $0x2] sm:$0xff]
  %v686 = vsel %vm112, %v684, 0
  %688 = vmatpush.msra.mxu0 0.0
  %689 = vmatpush.msra.mxu0 0.0
  %690 = vmatpush.msra.mxu0 0.0
  %691 = vmatpush.msra.mxu0 0.0
  %692 = vmatpush.msra.mxu0 0.0
  %693 = vmatpush.msra.mxu0 0.0
  %694 = vmatpush.msra.mxu0 0.0
  %695 = vmatpush.msra.mxu0 0.0
  %696 = vmatpush.msra.mxu0 0.0
  %697 = vmatpush.msra.mxu0 0.0
  %698 = vmatpush.msra.mxu0 0.0
  %699 = vmatpush.msra.mxu0 0.0
  %700 = vmatpush.msra.mxu0 0.0
  %701 = vmatpush.msra.mxu0 0.0
  %702 = vmatpush.msra.mxu0 0.0
  %703 = vmatpush.msra.mxu0 %v44
  %704 = vmatmul.f32.gmra.mxu0 %v686
  %v705 = vpop.f32.mrf.mxu0
  %v706 = vadd.f32 0.0, %v705
  %707 = vdwg.mxu0
  %v708 = vadd.f32 %v683, %v706
  %s709 = scalar_lea.vmem %s0, 64
  %v710 = vld [vmem:[%s709] sm:$0xff]
  %v712 = vsel %vm112, %v710, 0
  %714 = vmatpush.msra.mxu0 0.0
  %715 = vmatpush.msra.mxu0 0.0
  %716 = vmatpush.msra.mxu0 0.0
  %717 = vmatpush.msra.mxu0 0.0
  %718 = vmatpush.msra.mxu0 0.0
  %719 = vmatpush.msra.mxu0 0.0
  %720 = vmatpush.msra.mxu0 0.0
  %721 = vmatpush.msra.mxu0 0.0
  %722 = vmatpush.msra.mxu0 0.0
  %723 = vmatpush.msra.mxu0 0.0
  %724 = vmatpush.msra.mxu0 0.0
  %725 = vmatpush.msra.mxu0 0.0
  %726 = vmatpush.msra.mxu0 0.0
  %727 = vmatpush.msra.mxu0 0.0
  %728 = vmatpush.msra.mxu0 0.0
  %729 = vmatpush.msra.mxu0 %v46
  %730 = vmatmul.f32.gmra.mxu0 %v712
  %v731 = vpop.f32.mrf.mxu0
  %v732 = vadd.f32 0.0, %v731
  %733 = vdwg.mxu0
  %v734 = vadd.f32 %v708, %v732
  %v735 = vld [vmem:[%s709 + $0x1] sm:$0xff]
  %v737 = vsel %vm112, %v735, 0
  %739 = vmatpush.msra.mxu0 0.0
  %740 = vmatpush.msra.mxu0 0.0
  %741 = vmatpush.msra.mxu0 0.0
  %742 = vmatpush.msra.mxu0 0.0
  %743 = vmatpush.msra.mxu0 0.0
  %744 = vmatpush.msra.mxu0 0.0
  %745 = vmatpush.msra.mxu0 0.0
  %746 = vmatpush.msra.mxu0 0.0
  %747 = vmatpush.msra.mxu0 0.0
  %748 = vmatpush.msra.mxu0 0.0
  %749 = vmatpush.msra.mxu0 0.0
  %750 = vmatpush.msra.mxu0 0.0
  %751 = vmatpush.msra.mxu0 0.0
  %752 = vmatpush.msra.mxu0 0.0
  %753 = vmatpush.msra.mxu0 0.0
  %754 = vmatpush.msra.mxu0 %v48
  %755 = vmatmul.f32.gmra.mxu0 %v737
  %v756 = vpop.f32.mrf.mxu0
  %v757 = vadd.f32 0.0, %v756
  %758 = vdwg.mxu0
  %v759 = vadd.f32 %v734, %v757
  %v760 = vld [vmem:[%s709 + $0x2] sm:$0xff]
  %v762 = vsel %vm112, %v760, 0
  %764 = vmatpush.msra.mxu0 0.0
  %765 = vmatpush.msra.mxu0 0.0
  %766 = vmatpush.msra.mxu0 0.0
  %767 = vmatpush.msra.mxu0 0.0
  %768 = vmatpush.msra.mxu0 0.0
  %769 = vmatpush.msra.mxu0 0.0
  %770 = vmatpush.msra.mxu0 0.0
  %771 = vmatpush.msra.mxu0 0.0
  %772 = vmatpush.msra.mxu0 0.0
  %773 = vmatpush.msra.mxu0 0.0
  %774 = vmatpush.msra.mxu0 0.0
  %775 = vmatpush.msra.mxu0 0.0
  %776 = vmatpush.msra.mxu0 0.0
  %777 = vmatpush.msra.mxu0 0.0
  %778 = vmatpush.msra.mxu0 0.0
  %779 = vmatpush.msra.mxu0 %v50
  %780 = vmatmul.f32.gmra.mxu0 %v762
  %v781 = vpop.f32.mrf.mxu0
  %v782 = vadd.f32 0.0, %v781
  %783 = vdwg.mxu0
  %v784 = vadd.f32 %v759, %v782
  %785 = vmatpush.msra.mxu0 0.0
  %786 = vmatpush.msra.mxu0 0.0
  %787 = vmatpush.msra.mxu0 0.0
  %788 = vmatpush.msra.mxu0 0.0
  %789 = vmatpush.msra.mxu0 0.0
  %790 = vmatpush.msra.mxu0 0.0
  %791 = vmatpush.msra.mxu0 0.0
  %792 = vmatpush.msra.mxu0 0.0
  %793 = vmatpush.msra.mxu0 0.0
  %794 = vmatpush.msra.mxu0 0.0
  %795 = vmatpush.msra.mxu0 0.0
  %796 = vmatpush.msra.mxu0 0.0
  %797 = vmatpush.msra.mxu0 0.0
  %798 = vmatpush.msra.mxu0 0.0
  %799 = vmatpush.msra.mxu0 0.0
  %800 = vmatpush.msra.mxu0 %v36
  %801 = vmatmul.f32.gmra.mxu0 %v661
  %v802 = vpop.f32.mrf.mxu0
  %v803 = vadd.f32 0.0, %v802
  %804 = vdwg.mxu0
  %805 = vmatpush.msra.mxu0 0.0
  %806 = vmatpush.msra.mxu0 0.0
  %807 = vmatpush.msra.mxu0 0.0
  %808 = vmatpush.msra.mxu0 0.0
  %809 = vmatpush.msra.mxu0 0.0
  %810 = vmatpush.msra.mxu0 0.0
  %811 = vmatpush.msra.mxu0 0.0
  %812 = vmatpush.msra.mxu0 0.0
  %813 = vmatpush.msra.mxu0 0.0
  %814 = vmatpush.msra.mxu0 0.0
  %815 = vmatpush.msra.mxu0 0.0
  %816 = vmatpush.msra.mxu0 0.0
  %817 = vmatpush.msra.mxu0 0.0
  %818 = vmatpush.msra.mxu0 0.0
  %819 = vmatpush.msra.mxu0 0.0
  %820 = vmatpush.msra.mxu0 %v34
  %821 = vmatmul.f32.gmra.mxu0 %v636
  %v822 = vpop.f32.mrf.mxu0
  %v823 = vadd.f32 %v803, %v822
  %824 = vdwg.mxu0
  %825 = vmatpush.msra.mxu0 0.0
  %826 = vmatpush.msra.mxu0 0.0
  %827 = vmatpush.msra.mxu0 0.0
  %828 = vmatpush.msra.mxu0 0.0
  %829 = vmatpush.msra.mxu0 0.0
  %830 = vmatpush.msra.mxu0 0.0
  %831 = vmatpush.msra.mxu0 0.0
  %832 = vmatpush.msra.mxu0 0.0
  %833 = vmatpush.msra.mxu0 0.0
  %834 = vmatpush.msra.mxu0 0.0
  %835 = vmatpush.msra.mxu0 0.0
  %836 = vmatpush.msra.mxu0 0.0
  %837 = vmatpush.msra.mxu0 0.0
  %838 = vmatpush.msra.mxu0 0.0
  %839 = vmatpush.msra.mxu0 0.0
  %840 = vmatpush.msra.mxu0 %v38
  %841 = vmatmul.f32.gmra.mxu0 %v686
  %v842 = vpop.f32.mrf.mxu0
  %v843 = vadd.f32 0.0, %v842
  %844 = vdwg.mxu0
  %v845 = vadd.f32 %v823, %v843
  %846 = vmatpush.msra.mxu0 0.0
  %847 = vmatpush.msra.mxu0 0.0
  %848 = vmatpush.msra.mxu0 0.0
  %849 = vmatpush.msra.mxu0 0.0
  %850 = vmatpush.msra.mxu0 0.0
  %851 = vmatpush.msra.mxu0 0.0
  %852 = vmatpush.msra.mxu0 0.0
  %853 = vmatpush.msra.mxu0 0.0
  %854 = vmatpush.msra.mxu0 0.0
  %855 = vmatpush.msra.mxu0 0.0
  %856 = vmatpush.msra.mxu0 0.0
  %857 = vmatpush.msra.mxu0 0.0
  %858 = vmatpush.msra.mxu0 0.0
  %859 = vmatpush.msra.mxu0 0.0
  %860 = vmatpush.msra.mxu0 0.0
  %861 = vmatpush.msra.mxu0 %v40
  %862 = vmatmul.f32.gmra.mxu0 %v712
  %v863 = vpop.f32.mrf.mxu0
  %v864 = vadd.f32 0.0, %v863
  %865 = vdwg.mxu0
  %v866 = vadd.f32 %v845, %v864
  %867 = vmatpush.msra.mxu0 0.0
  %868 = vmatpush.msra.mxu0 0.0
  %869 = vmatpush.msra.mxu0 0.0
  %870 = vmatpush.msra.mxu0 0.0
  %871 = vmatpush.msra.mxu0 0.0
  %872 = vmatpush.msra.mxu0 0.0
  %873 = vmatpush.msra.mxu0 0.0
  %874 = vmatpush.msra.mxu0 0.0
  %875 = vmatpush.msra.mxu0 0.0
  %876 = vmatpush.msra.mxu0 0.0
  %877 = vmatpush.msra.mxu0 0.0
  %878 = vmatpush.msra.mxu0 0.0
  %879 = vmatpush.msra.mxu0 0.0
  %880 = vmatpush.msra.mxu0 0.0
  %881 = vmatpush.msra.mxu0 0.0
  %882 = vmatpush.msra.mxu0 %v42
  %883 = vmatmul.f32.gmra.mxu0 %v737
  %v884 = vpop.f32.mrf.mxu0
  %v885 = vadd.f32 0.0, %v884
  %886 = vdwg.mxu0
  %v887 = vadd.f32 %v866, %v885
  %888 = vmatpush.msra.mxu0 0.0
  %889 = vmatpush.msra.mxu0 0.0
  %890 = vmatpush.msra.mxu0 0.0
  %891 = vmatpush.msra.mxu0 0.0
  %892 = vmatpush.msra.mxu0 0.0
  %893 = vmatpush.msra.mxu0 0.0
  %894 = vmatpush.msra.mxu0 0.0
  %895 = vmatpush.msra.mxu0 0.0
  %896 = vmatpush.msra.mxu0 0.0
  %897 = vmatpush.msra.mxu0 0.0
  %898 = vmatpush.msra.mxu0 0.0
  %899 = vmatpush.msra.mxu0 0.0
  %900 = vmatpush.msra.mxu0 0.0
  %901 = vmatpush.msra.mxu0 0.0
  %902 = vmatpush.msra.mxu0 0.0
  %903 = vmatpush.msra.mxu0 %v44
  %904 = vmatmul.f32.gmra.mxu0 %v762
  %v905 = vpop.f32.mrf.mxu0
  %v906 = vadd.f32 0.0, %v905
  %907 = vdwg.mxu0
  %v908 = vadd.f32 %v887, %v906
  %s909 = scalar_lea.vmem %s0, 80
  %v910 = vld [vmem:[%s909] sm:$0xff]
  %v912 = vsel %vm112, %v910, 0
  %914 = vmatpush.msra.mxu0 0.0
  %915 = vmatpush.msra.mxu0 0.0
  %916 = vmatpush.msra.mxu0 0.0
  %917 = vmatpush.msra.mxu0 0.0
  %918 = vmatpush.msra.mxu0 0.0
  %919 = vmatpush.msra.mxu0 0.0
  %920 = vmatpush.msra.mxu0 0.0
  %921 = vmatpush.msra.mxu0 0.0
  %922 = vmatpush.msra.mxu0 0.0
  %923 = vmatpush.msra.mxu0 0.0
  %924 = vmatpush.msra.mxu0 0.0
  %925 = vmatpush.msra.mxu0 0.0
  %926 = vmatpush.msra.mxu0 0.0
  %927 = vmatpush.msra.mxu0 0.0
  %928 = vmatpush.msra.mxu0 0.0
  %929 = vmatpush.msra.mxu0 %v46
  %930 = vmatmul.f32.gmra.mxu0 %v912
  %v931 = vpop.f32.mrf.mxu0
  %v932 = vadd.f32 0.0, %v931
  %933 = vdwg.mxu0
  %v934 = vadd.f32 %v908, %v932
  %v935 = vld [vmem:[%s909 + $0x1] sm:$0xff]
  %v937 = vsel %vm112, %v935, 0
  %939 = vmatpush.msra.mxu0 0.0
  %940 = vmatpush.msra.mxu0 0.0
  %941 = vmatpush.msra.mxu0 0.0
  %942 = vmatpush.msra.mxu0 0.0
  %943 = vmatpush.msra.mxu0 0.0
  %944 = vmatpush.msra.mxu0 0.0
  %945 = vmatpush.msra.mxu0 0.0
  %946 = vmatpush.msra.mxu0 0.0
  %947 = vmatpush.msra.mxu0 0.0
  %948 = vmatpush.msra.mxu0 0.0
  %949 = vmatpush.msra.mxu0 0.0
  %950 = vmatpush.msra.mxu0 0.0
  %951 = vmatpush.msra.mxu0 0.0
  %952 = vmatpush.msra.mxu0 0.0
  %953 = vmatpush.msra.mxu0 0.0
  %954 = vmatpush.msra.mxu0 %v48
  %955 = vmatmul.f32.gmra.mxu0 %v937
  %v956 = vpop.f32.mrf.mxu0
  %v957 = vadd.f32 0.0, %v956
  %958 = vdwg.mxu0
  %v959 = vadd.f32 %v934, %v957
  %v960 = vld [vmem:[%s909 + $0x2] sm:$0xff]
  %v962 = vsel %vm112, %v960, 0
  %964 = vmatpush.msra.mxu0 0.0
  %965 = vmatpush.msra.mxu0 0.0
  %966 = vmatpush.msra.mxu0 0.0
  %967 = vmatpush.msra.mxu0 0.0
  %968 = vmatpush.msra.mxu0 0.0
  %969 = vmatpush.msra.mxu0 0.0
  %970 = vmatpush.msra.mxu0 0.0
  %971 = vmatpush.msra.mxu0 0.0
  %972 = vmatpush.msra.mxu0 0.0
  %973 = vmatpush.msra.mxu0 0.0
  %974 = vmatpush.msra.mxu0 0.0
  %975 = vmatpush.msra.mxu0 0.0
  %976 = vmatpush.msra.mxu0 0.0
  %977 = vmatpush.msra.mxu0 0.0
  %978 = vmatpush.msra.mxu0 0.0
  %979 = vmatpush.msra.mxu0 %v50
  %980 = vmatmul.f32.gmra.mxu0 %v962
  %v981 = vpop.f32.mrf.mxu0
  %v982 = vadd.f32 0.0, %v981
  %983 = vdwg.mxu0
  %v984 = vadd.f32 %v959, %v982
  %v985 = vmax.f32 %v784, %v984
  %v987 = vrot.slane %v985, 1
  %v989 = vmax.f32 %v985, %v987
  %v990 = vadd.f32 %v989, %v95
  %vm991 = vcmp.ge.f32.partialorder %v990, 0.0
  %v992 = vmul.f32 %v990, 0.01
  %v993 = vsel %vm991, %v990, %v992
  %s994 = scalar_lea.vmem [#allocation2], 16
  %995 = vst.msk [vmem:[%s994 + $0x1] sm:$0x1] %vm546, %v993
  %v996 = vadd.f32 %v989, %v549
  %vm997 = vcmp.ge.f32.partialorder %v996, 0.0
  %v998 = vmul.f32 %v996, 0.01
  %v999 = vsel %vm997, %v996, %v998
  %1000 = vst.msk [vmem:[%s994] sm:$0x4] %vm555, %v999
  %1001 = vst.msk [vmem:[%s994 - $0x1] sm:$0x10] %vm557, %v999
  %1002 = vst.msk [vmem:[%s994 - $0x2] sm:$0x40] %vm559, %v999
  %v1003 = vld [vmem:[%s709] sm:$0xff]
  %v1004 = vld [vmem:[%s709 + $0x1] sm:$0xff]
  %v1006 = vsel %vm112, %v1004, 0
  %1008 = vmatpush.msra.mxu0 0.0
  %1009 = vmatpush.msra.mxu0 0.0
  %1010 = vmatpush.msra.mxu0 0.0
  %1011 = vmatpush.msra.mxu0 0.0
  %1012 = vmatpush.msra.mxu0 0.0
  %1013 = vmatpush.msra.mxu0 0.0
  %1014 = vmatpush.msra.mxu0 0.0
  %1015 = vmatpush.msra.mxu0 0.0
  %1016 = vmatpush.msra.mxu0 0.0
  %1017 = vmatpush.msra.mxu0 0.0
  %1018 = vmatpush.msra.mxu0 0.0
  %1019 = vmatpush.msra.mxu0 0.0
  %1020 = vmatpush.msra.mxu0 0.0
  %1021 = vmatpush.msra.mxu0 0.0
  %1022 = vmatpush.msra.mxu0 0.0
  %1023 = vmatpush.msra.mxu0 %v36
  %1024 = vmatmul.f32.gmra.mxu0 %v1006
  %v1025 = vpop.f32.mrf.mxu0
  %v1026 = vadd.f32 0.0, %v1025
  %1027 = vdwg.mxu0
  %v1029 = vsel %vm112, %v1003, 0
  %1031 = vmatpush.msra.mxu0 0.0
  %1032 = vmatpush.msra.mxu0 0.0
  %1033 = vmatpush.msra.mxu0 0.0
  %1034 = vmatpush.msra.mxu0 0.0
  %1035 = vmatpush.msra.mxu0 0.0
  %1036 = vmatpush.msra.mxu0 0.0
  %1037 = vmatpush.msra.mxu0 0.0
  %1038 = vmatpush.msra.mxu0 0.0
  %1039 = vmatpush.msra.mxu0 0.0
  %1040 = vmatpush.msra.mxu0 0.0
  %1041 = vmatpush.msra.mxu0 0.0
  %1042 = vmatpush.msra.mxu0 0.0
  %1043 = vmatpush.msra.mxu0 0.0
  %1044 = vmatpush.msra.mxu0 0.0
  %1045 = vmatpush.msra.mxu0 0.0
  %1046 = vmatpush.msra.mxu0 %v34
  %1047 = vmatmul.f32.gmra.mxu0 %v1029
  %v1048 = vpop.f32.mrf.mxu0
  %v1049 = vadd.f32 %v1026, %v1048
  %1050 = vdwg.mxu0
  %v1051 = vld [vmem:[%s709 + $0x2] sm:$0xff]
  %v1053 = vsel %vm112, %v1051, 0
  %1055 = vmatpush.msra.mxu0 0.0
  %1056 = vmatpush.msra.mxu0 0.0
  %1057 = vmatpush.msra.mxu0 0.0
  %1058 = vmatpush.msra.mxu0 0.0
  %1059 = vmatpush.msra.mxu0 0.0
  %1060 = vmatpush.msra.mxu0 0.0
  %1061 = vmatpush.msra.mxu0 0.0
  %1062 = vmatpush.msra.mxu0 0.0
  %1063 = vmatpush.msra.mxu0 0.0
  %1064 = vmatpush.msra.mxu0 0.0
  %1065 = vmatpush.msra.mxu0 0.0
  %1066 = vmatpush.msra.mxu0 0.0
  %1067 = vmatpush.msra.mxu0 0.0
  %1068 = vmatpush.msra.mxu0 0.0
  %1069 = vmatpush.msra.mxu0 0.0
  %1070 = vmatpush.msra.mxu0 %v38
  %1071 = vmatmul.f32.gmra.mxu0 %v1053
  %v1072 = vpop.f32.mrf.mxu0
  %v1073 = vadd.f32 0.0, %v1072
  %1074 = vdwg.mxu0
  %v1075 = vadd.f32 %v1049, %v1073
  %v1076 = vld [vmem:[%s909] sm:$0xff]
  %v1078 = vsel %vm112, %v1076, 0
  %1080 = vmatpush.msra.mxu0 0.0
  %1081 = vmatpush.msra.mxu0 0.0
  %1082 = vmatpush.msra.mxu0 0.0
  %1083 = vmatpush.msra.mxu0 0.0
  %1084 = vmatpush.msra.mxu0 0.0
  %1085 = vmatpush.msra.mxu0 0.0
  %1086 = vmatpush.msra.mxu0 0.0
  %1087 = vmatpush.msra.mxu0 0.0
  %1088 = vmatpush.msra.mxu0 0.0
  %1089 = vmatpush.msra.mxu0 0.0
  %1090 = vmatpush.msra.mxu0 0.0
  %1091 = vmatpush.msra.mxu0 0.0
  %1092 = vmatpush.msra.mxu0 0.0
  %1093 = vmatpush.msra.mxu0 0.0
  %1094 = vmatpush.msra.mxu0 0.0
  %1095 = vmatpush.msra.mxu0 %v40
  %1096 = vmatmul.f32.gmra.mxu0 %v1078
  %v1097 = vpop.f32.mrf.mxu0
  %v1098 = vadd.f32 0.0, %v1097
  %1099 = vdwg.mxu0
  %v1100 = vadd.f32 %v1075, %v1098
  %v1101 = vld [vmem:[%s909 + $0x1] sm:$0xff]
  %v1103 = vsel %vm112, %v1101, 0
  %1105 = vmatpush.msra.mxu0 0.0
  %1106 = vmatpush.msra.mxu0 0.0
  %1107 = vmatpush.msra.mxu0 0.0
  %1108 = vmatpush.msra.mxu0 0.0
  %1109 = vmatpush.msra.mxu0 0.0
  %1110 = vmatpush.msra.mxu0 0.0
  %1111 = vmatpush.msra.mxu0 0.0
  %1112 = vmatpush.msra.mxu0 0.0
  %1113 = vmatpush.msra.mxu0 0.0
  %1114 = vmatpush.msra.mxu0 0.0
  %1115 = vmatpush.msra.mxu0 0.0
  %1116 = vmatpush.msra.mxu0 0.0
  %1117 = vmatpush.msra.mxu0 0.0
  %1118 = vmatpush.msra.mxu0 0.0
  %1119 = vmatpush.msra.mxu0 0.0
  %1120 = vmatpush.msra.mxu0 %v42
  %1121 = vmatmul.f32.gmra.mxu0 %v1103
  %v1122 = vpop.f32.mrf.mxu0
  %v1123 = vadd.f32 0.0, %v1122
  %1124 = vdwg.mxu0
  %v1125 = vadd.f32 %v1100, %v1123
  %v1126 = vld [vmem:[%s909 + $0x2] sm:$0xff]
  %v1128 = vsel %vm112, %v1126, 0
  %1130 = vmatpush.msra.mxu0 0.0
  %1131 = vmatpush.msra.mxu0 0.0
  %1132 = vmatpush.msra.mxu0 0.0
  %1133 = vmatpush.msra.mxu0 0.0
  %1134 = vmatpush.msra.mxu0 0.0
  %1135 = vmatpush.msra.mxu0 0.0
  %1136 = vmatpush.msra.mxu0 0.0
  %1137 = vmatpush.msra.mxu0 0.0
  %1138 = vmatpush.msra.mxu0 0.0
  %1139 = vmatpush.msra.mxu0 0.0
  %1140 = vmatpush.msra.mxu0 0.0
  %1141 = vmatpush.msra.mxu0 0.0
  %1142 = vmatpush.msra.mxu0 0.0
  %1143 = vmatpush.msra.mxu0 0.0
  %1144 = vmatpush.msra.mxu0 0.0
  %1145 = vmatpush.msra.mxu0 %v44
  %1146 = vmatmul.f32.gmra.mxu0 %v1128
  %v1147 = vpop.f32.mrf.mxu0
  %v1148 = vadd.f32 0.0, %v1147
  %1149 = vdwg.mxu0
  %v1150 = vadd.f32 %v1125, %v1148
  %s1151 = scalar_lea.vmem %s0, 96
  %v1152 = vld [vmem:[%s1151] sm:$0xff]
  %v1154 = vsel %vm112, %v1152, 0
  %1156 = vmatpush.msra.mxu0 0.0
  %1157 = vmatpush.msra.mxu0 0.0
  %1158 = vmatpush.msra.mxu0 0.0
  %1159 = vmatpush.msra.mxu0 0.0
  %1160 = vmatpush.msra.mxu0 0.0
  %1161 = vmatpush.msra.mxu0 0.0
  %1162 = vmatpush.msra.mxu0 0.0
  %1163 = vmatpush.msra.mxu0 0.0
  %1164 = vmatpush.msra.mxu0 0.0
  %1165 = vmatpush.msra.mxu0 0.0
  %1166 = vmatpush.msra.mxu0 0.0
  %1167 = vmatpush.msra.mxu0 0.0
  %1168 = vmatpush.msra.mxu0 0.0
  %1169 = vmatpush.msra.mxu0 0.0
  %1170 = vmatpush.msra.mxu0 0.0
  %1171 = vmatpush.msra.mxu0 %v46
  %1172 = vmatmul.f32.gmra.mxu0 %v1154
  %v1173 = vpop.f32.mrf.mxu0
  %v1174 = vadd.f32 0.0, %v1173
  %1175 = vdwg.mxu0
  %v1176 = vadd.f32 %v1150, %v1174
  %v1177 = vld [vmem:[%s1151 + $0x1] sm:$0xff]
  %v1179 = vsel %vm112, %v1177, 0
  %1181 = vmatpush.msra.mxu0 0.0
  %1182 = vmatpush.msra.mxu0 0.0
  %1183 = vmatpush.msra.mxu0 0.0
  %1184 = vmatpush.msra.mxu0 0.0
  %1185 = vmatpush.msra.mxu0 0.0
  %1186 = vmatpush.msra.mxu0 0.0
  %1187 = vmatpush.msra.mxu0 0.0
  %1188 = vmatpush.msra.mxu0 0.0
  %1189 = vmatpush.msra.mxu0 0.0
  %1190 = vmatpush.msra.mxu0 0.0
  %1191 = vmatpush.msra.mxu0 0.0
  %1192 = vmatpush.msra.mxu0 0.0
  %1193 = vmatpush.msra.mxu0 0.0
  %1194 = vmatpush.msra.mxu0 0.0
  %1195 = vmatpush.msra.mxu0 0.0
  %1196 = vmatpush.msra.mxu0 %v48
  %1197 = vmatmul.f32.gmra.mxu0 %v1179
  %v1198 = vpop.f32.mrf.mxu0
  %v1199 = vadd.f32 0.0, %v1198
  %1200 = vdwg.mxu0
  %v1201 = vadd.f32 %v1176, %v1199
  %v1202 = vld [vmem:[%s1151 + $0x2] sm:$0xff]
  %v1204 = vsel %vm112, %v1202, 0
  %1206 = vmatpush.msra.mxu0 0.0
  %1207 = vmatpush.msra.mxu0 0.0
  %1208 = vmatpush.msra.mxu0 0.0
  %1209 = vmatpush.msra.mxu0 0.0
  %1210 = vmatpush.msra.mxu0 0.0
  %1211 = vmatpush.msra.mxu0 0.0
  %1212 = vmatpush.msra.mxu0 0.0
  %1213 = vmatpush.msra.mxu0 0.0
  %1214 = vmatpush.msra.mxu0 0.0
  %1215 = vmatpush.msra.mxu0 0.0
  %1216 = vmatpush.msra.mxu0 0.0
  %1217 = vmatpush.msra.mxu0 0.0
  %1218 = vmatpush.msra.mxu0 0.0
  %1219 = vmatpush.msra.mxu0 0.0
  %1220 = vmatpush.msra.mxu0 0.0
  %1221 = vmatpush.msra.mxu0 %v50
  %1222 = vmatmul.f32.gmra.mxu0 %v1204
  %v1223 = vpop.f32.mrf.mxu0
  %v1224 = vadd.f32 0.0, %v1223
  %1225 = vdwg.mxu0
  %v1226 = vadd.f32 %v1201, %v1224
  %1227 = vmatpush.msra.mxu0 0.0
  %1228 = vmatpush.msra.mxu0 0.0
  %1229 = vmatpush.msra.mxu0 0.0
  %1230 = vmatpush.msra.mxu0 0.0
  %1231 = vmatpush.msra.mxu0 0.0
  %1232 = vmatpush.msra.mxu0 0.0
  %1233 = vmatpush.msra.mxu0 0.0
  %1234 = vmatpush.msra.mxu0 0.0
  %1235 = vmatpush.msra.mxu0 0.0
  %1236 = vmatpush.msra.mxu0 0.0
  %1237 = vmatpush.msra.mxu0 0.0
  %1238 = vmatpush.msra.mxu0 0.0
  %1239 = vmatpush.msra.mxu0 0.0
  %1240 = vmatpush.msra.mxu0 0.0
  %1241 = vmatpush.msra.mxu0 0.0
  %1242 = vmatpush.msra.mxu0 %v36
  %1243 = vmatmul.f32.gmra.mxu0 %v1103
  %v1244 = vpop.f32.mrf.mxu0
  %v1245 = vadd.f32 0.0, %v1244
  %1246 = vdwg.mxu0
  %1247 = vmatpush.msra.mxu0 0.0
  %1248 = vmatpush.msra.mxu0 0.0
  %1249 = vmatpush.msra.mxu0 0.0
  %1250 = vmatpush.msra.mxu0 0.0
  %1251 = vmatpush.msra.mxu0 0.0
  %1252 = vmatpush.msra.mxu0 0.0
  %1253 = vmatpush.msra.mxu0 0.0
  %1254 = vmatpush.msra.mxu0 0.0
  %1255 = vmatpush.msra.mxu0 0.0
  %1256 = vmatpush.msra.mxu0 0.0
  %1257 = vmatpush.msra.mxu0 0.0
  %1258 = vmatpush.msra.mxu0 0.0
  %1259 = vmatpush.msra.mxu0 0.0
  %1260 = vmatpush.msra.mxu0 0.0
  %1261 = vmatpush.msra.mxu0 0.0
  %1262 = vmatpush.msra.mxu0 %v34
  %1263 = vmatmul.f32.gmra.mxu0 %v1078
  %v1264 = vpop.f32.mrf.mxu0
  %v1265 = vadd.f32 %v1245, %v1264
  %1266 = vdwg.mxu0
  %1267 = vmatpush.msra.mxu0 0.0
  %1268 = vmatpush.msra.mxu0 0.0
  %1269 = vmatpush.msra.mxu0 0.0
  %1270 = vmatpush.msra.mxu0 0.0
  %1271 = vmatpush.msra.mxu0 0.0
  %1272 = vmatpush.msra.mxu0 0.0
  %1273 = vmatpush.msra.mxu0 0.0
  %1274 = vmatpush.msra.mxu0 0.0
  %1275 = vmatpush.msra.mxu0 0.0
  %1276 = vmatpush.msra.mxu0 0.0
  %1277 = vmatpush.msra.mxu0 0.0
  %1278 = vmatpush.msra.mxu0 0.0
  %1279 = vmatpush.msra.mxu0 0.0
  %1280 = vmatpush.msra.mxu0 0.0
  %1281 = vmatpush.msra.mxu0 0.0
  %1282 = vmatpush.msra.mxu0 %v38
  %1283 = vmatmul.f32.gmra.mxu0 %v1128
  %v1284 = vpop.f32.mrf.mxu0
  %v1285 = vadd.f32 0.0, %v1284
  %1286 = vdwg.mxu0
  %v1287 = vadd.f32 %v1265, %v1285
  %1288 = vmatpush.msra.mxu0 0.0
  %1289 = vmatpush.msra.mxu0 0.0
  %1290 = vmatpush.msra.mxu0 0.0
  %1291 = vmatpush.msra.mxu0 0.0
  %1292 = vmatpush.msra.mxu0 0.0
  %1293 = vmatpush.msra.mxu0 0.0
  %1294 = vmatpush.msra.mxu0 0.0
  %1295 = vmatpush.msra.mxu0 0.0
  %1296 = vmatpush.msra.mxu0 0.0
  %1297 = vmatpush.msra.mxu0 0.0
  %1298 = vmatpush.msra.mxu0 0.0
  %1299 = vmatpush.msra.mxu0 0.0
  %1300 = vmatpush.msra.mxu0 0.0
  %1301 = vmatpush.msra.mxu0 0.0
  %1302 = vmatpush.msra.mxu0 0.0
  %1303 = vmatpush.msra.mxu0 %v40
  %1304 = vmatmul.f32.gmra.mxu0 %v1154
  %v1305 = vpop.f32.mrf.mxu0
  %v1306 = vadd.f32 0.0, %v1305
  %1307 = vdwg.mxu0
  %v1308 = vadd.f32 %v1287, %v1306
  %1309 = vmatpush.msra.mxu0 0.0
  %1310 = vmatpush.msra.mxu0 0.0
  %1311 = vmatpush.msra.mxu0 0.0
  %1312 = vmatpush.msra.mxu0 0.0
  %1313 = vmatpush.msra.mxu0 0.0
  %1314 = vmatpush.msra.mxu0 0.0
  %1315 = vmatpush.msra.mxu0 0.0
  %1316 = vmatpush.msra.mxu0 0.0
  %1317 = vmatpush.msra.mxu0 0.0
  %1318 = vmatpush.msra.mxu0 0.0
  %1319 = vmatpush.msra.mxu0 0.0
  %1320 = vmatpush.msra.mxu0 0.0
  %1321 = vmatpush.msra.mxu0 0.0
  %1322 = vmatpush.msra.mxu0 0.0
  %1323 = vmatpush.msra.mxu0 0.0
  %1324 = vmatpush.msra.mxu0 %v42
  %1325 = vmatmul.f32.gmra.mxu0 %v1179
  %v1326 = vpop.f32.mrf.mxu0
  %v1327 = vadd.f32 0.0, %v1326
  %1328 = vdwg.mxu0
  %v1329 = vadd.f32 %v1308, %v1327
  %1330 = vmatpush.msra.mxu0 0.0
  %1331 = vmatpush.msra.mxu0 0.0
  %1332 = vmatpush.msra.mxu0 0.0
  %1333 = vmatpush.msra.mxu0 0.0
  %1334 = vmatpush.msra.mxu0 0.0
  %1335 = vmatpush.msra.mxu0 0.0
  %1336 = vmatpush.msra.mxu0 0.0
  %1337 = vmatpush.msra.mxu0 0.0
  %1338 = vmatpush.msra.mxu0 0.0
  %1339 = vmatpush.msra.mxu0 0.0
  %1340 = vmatpush.msra.mxu0 0.0
  %1341 = vmatpush.msra.mxu0 0.0
  %1342 = vmatpush.msra.mxu0 0.0
  %1343 = vmatpush.msra.mxu0 0.0
  %1344 = vmatpush.msra.mxu0 0.0
  %1345 = vmatpush.msra.mxu0 %v44
  %1346 = vmatmul.f32.gmra.mxu0 %v1204
  %v1347 = vpop.f32.mrf.mxu0
  %v1348 = vadd.f32 0.0, %v1347
  %1349 = vdwg.mxu0
  %v1350 = vadd.f32 %v1329, %v1348
  %s1351 = scalar_lea.vmem %s0, 112
  %v1352 = vld [vmem:[%s1351] sm:$0xff]
  %v1354 = vsel %vm112, %v1352, 0
  %1356 = vmatpush.msra.mxu0 0.0
  %1357 = vmatpush.msra.mxu0 0.0
  %1358 = vmatpush.msra.mxu0 0.0
  %1359 = vmatpush.msra.mxu0 0.0
  %1360 = vmatpush.msra.mxu0 0.0
  %1361 = vmatpush.msra.mxu0 0.0
  %1362 = vmatpush.msra.mxu0 0.0
  %1363 = vmatpush.msra.mxu0 0.0
  %1364 = vmatpush.msra.mxu0 0.0
  %1365 = vmatpush.msra.mxu0 0.0
  %1366 = vmatpush.msra.mxu0 0.0
  %1367 = vmatpush.msra.mxu0 0.0
  %1368 = vmatpush.msra.mxu0 0.0
  %1369 = vmatpush.msra.mxu0 0.0
  %1370 = vmatpush.msra.mxu0 0.0
  %1371 = vmatpush.msra.mxu0 %v46
  %1372 = vmatmul.f32.gmra.mxu0 %v1354
  %v1373 = vpop.f32.mrf.mxu0
  %v1374 = vadd.f32 0.0, %v1373
  %1375 = vdwg.mxu0
  %v1376 = vadd.f32 %v1350, %v1374
  %v1377 = vld [vmem:[%s1351 + $0x1] sm:$0xff]
  %v1379 = vsel %vm112, %v1377, 0
  %1381 = vmatpush.msra.mxu0 0.0
  %1382 = vmatpush.msra.mxu0 0.0
  %1383 = vmatpush.msra.mxu0 0.0
  %1384 = vmatpush.msra.mxu0 0.0
  %1385 = vmatpush.msra.mxu0 0.0
  %1386 = vmatpush.msra.mxu0 0.0
  %1387 = vmatpush.msra.mxu0 0.0
  %1388 = vmatpush.msra.mxu0 0.0
  %1389 = vmatpush.msra.mxu0 0.0
  %1390 = vmatpush.msra.mxu0 0.0
  %1391 = vmatpush.msra.mxu0 0.0
  %1392 = vmatpush.msra.mxu0 0.0
  %1393 = vmatpush.msra.mxu0 0.0
  %1394 = vmatpush.msra.mxu0 0.0
  %1395 = vmatpush.msra.mxu0 0.0
  %1396 = vmatpush.msra.mxu0 %v48
  %1397 = vmatmul.f32.gmra.mxu0 %v1379
  %v1398 = vpop.f32.mrf.mxu0
  %v1399 = vadd.f32 0.0, %v1398
  %1400 = vdwg.mxu0
  %v1401 = vadd.f32 %v1376, %v1399
  %v1402 = vld [vmem:[%s1351 + $0x2] sm:$0xff]
  %v1404 = vsel %vm112, %v1402, 0
  %1406 = vmatpush.msra.mxu0 0.0
  %1407 = vmatpush.msra.mxu0 0.0
  %1408 = vmatpush.msra.mxu0 0.0
  %1409 = vmatpush.msra.mxu0 0.0
  %1410 = vmatpush.msra.mxu0 0.0
  %1411 = vmatpush.msra.mxu0 0.0
  %1412 = vmatpush.msra.mxu0 0.0
  %1413 = vmatpush.msra.mxu0 0.0
  %1414 = vmatpush.msra.mxu0 0.0
  %1415 = vmatpush.msra.mxu0 0.0
  %1416 = vmatpush.msra.mxu0 0.0
  %1417 = vmatpush.msra.mxu0 0.0
  %1418 = vmatpush.msra.mxu0 0.0
  %1419 = vmatpush.msra.mxu0 0.0
  %1420 = vmatpush.msra.mxu0 0.0
  %1421 = vmatpush.msra.mxu0 %v50
  %1422 = vmatmul.f32.gmra.mxu0 %v1404
  %v1423 = vpop.f32.mrf.mxu0
  %v1424 = vadd.f32 0.0, %v1423
  %1425 = vdwg.mxu0
  %v1426 = vadd.f32 %v1401, %v1424
  %v1427 = vmax.f32 %v1226, %v1426
  %v1429 = vrot.slane %v1427, 1
  %v1431 = vmax.f32 %v1427, %v1429
  %v1432 = vadd.f32 %v1431, %v95
  %vm1433 = vcmp.ge.f32.partialorder %v1432, 0.0
  %v1434 = vmul.f32 %v1432, 0.01
  %v1435 = vsel %vm1433, %v1432, %v1434
  %s1436 = scalar_lea.vmem [#allocation2], 24
  %1437 = vst.msk [vmem:[%s1436 + $0x1] sm:$0x1] %vm546, %v1435
  %v1438 = vadd.f32 %v1431, %v549
  %vm1439 = vcmp.ge.f32.partialorder %v1438, 0.0
  %v1440 = vmul.f32 %v1438, 0.01
  %v1441 = vsel %vm1439, %v1438, %v1440
  %1442 = vst.msk [vmem:[%s1436] sm:$0x4] %vm555, %v1441
  %1443 = vst.msk [vmem:[%s1436 - $0x1] sm:$0x10] %vm557, %v1441
  %1444 = vst.msk [vmem:[%s1436 - $0x2] sm:$0x40] %vm559, %v1441
  %v1445 = vld [vmem:[%s1151] sm:$0xff]
  %v1446 = vld [vmem:[%s1151 + $0x1] sm:$0xff]
  %v1448 = vsel %vm112, %v1446, 0
  %1450 = vmatpush.msra.mxu0 0.0
  %1451 = vmatpush.msra.mxu0 0.0
  %1452 = vmatpush.msra.mxu0 0.0
  %1453 = vmatpush.msra.mxu0 0.0
  %1454 = vmatpush.msra.mxu0 0.0
  %1455 = vmatpush.msra.mxu0 0.0
  %1456 = vmatpush.msra.mxu0 0.0
  %1457 = vmatpush.msra.mxu0 0.0
  %1458 = vmatpush.msra.mxu0 0.0
  %1459 = vmatpush.msra.mxu0 0.0
  %1460 = vmatpush.msra.mxu0 0.0
  %1461 = vmatpush.msra.mxu0 0.0
  %1462 = vmatpush.msra.mxu0 0.0
  %1463 = vmatpush.msra.mxu0 0.0
  %1464 = vmatpush.msra.mxu0 0.0
  %1465 = vmatpush.msra.mxu0 %v36
  %1466 = vmatmul.f32.gmra.mxu0 %v1448
  %v1467 = vpop.f32.mrf.mxu0
  %v1468 = vadd.f32 0.0, %v1467
  %1469 = vdwg.mxu0
  %v1471 = vsel %vm112, %v1445, 0
  %1473 = vmatpush.msra.mxu0 0.0
  %1474 = vmatpush.msra.mxu0 0.0
  %1475 = vmatpush.msra.mxu0 0.0
  %1476 = vmatpush.msra.mxu0 0.0
  %1477 = vmatpush.msra.mxu0 0.0
  %1478 = vmatpush.msra.mxu0 0.0
  %1479 = vmatpush.msra.mxu0 0.0
  %1480 = vmatpush.msra.mxu0 0.0
  %1481 = vmatpush.msra.mxu0 0.0
  %1482 = vmatpush.msra.mxu0 0.0
  %1483 = vmatpush.msra.mxu0 0.0
  %1484 = vmatpush.msra.mxu0 0.0
  %1485 = vmatpush.msra.mxu0 0.0
  %1486 = vmatpush.msra.mxu0 0.0
  %1487 = vmatpush.msra.mxu0 0.0
  %1488 = vmatpush.msra.mxu0 %v34
  %1489 = vmatmul.f32.gmra.mxu0 %v1471
  %v1490 = vpop.f32.mrf.mxu0
  %v1491 = vadd.f32 %v1468, %v1490
  %1492 = vdwg.mxu0
  %v1493 = vld [vmem:[%s1151 + $0x2] sm:$0xff]
  %v1495 = vsel %vm112, %v1493, 0
  %1497 = vmatpush.msra.mxu0 0.0
  %1498 = vmatpush.msra.mxu0 0.0
  %1499 = vmatpush.msra.mxu0 0.0
  %1500 = vmatpush.msra.mxu0 0.0
  %1501 = vmatpush.msra.mxu0 0.0
  %1502 = vmatpush.msra.mxu0 0.0
  %1503 = vmatpush.msra.mxu0 0.0
  %1504 = vmatpush.msra.mxu0 0.0
  %1505 = vmatpush.msra.mxu0 0.0
  %1506 = vmatpush.msra.mxu0 0.0
  %1507 = vmatpush.msra.mxu0 0.0
  %1508 = vmatpush.msra.mxu0 0.0
  %1509 = vmatpush.msra.mxu0 0.0
  %1510 = vmatpush.msra.mxu0 0.0
  %1511 = vmatpush.msra.mxu0 0.0
  %1512 = vmatpush.msra.mxu0 %v38
  %1513 = vmatmul.f32.gmra.mxu0 %v1495
  %v1514 = vpop.f32.mrf.mxu0
  %v1515 = vadd.f32 0.0, %v1514
  %1516 = vdwg.mxu0
  %v1517 = vadd.f32 %v1491, %v1515
  %v1518 = vld [vmem:[%s1351] sm:$0xff]
  %v1520 = vsel %vm112, %v1518, 0
  %1522 = vmatpush.msra.mxu0 0.0
  %1523 = vmatpush.msra.mxu0 0.0
  %1524 = vmatpush.msra.mxu0 0.0
  %1525 = vmatpush.msra.mxu0 0.0
  %1526 = vmatpush.msra.mxu0 0.0
  %1527 = vmatpush.msra.mxu0 0.0
  %1528 = vmatpush.msra.mxu0 0.0
  %1529 = vmatpush.msra.mxu0 0.0
  %1530 = vmatpush.msra.mxu0 0.0
  %1531 = vmatpush.msra.mxu0 0.0
  %1532 = vmatpush.msra.mxu0 0.0
  %1533 = vmatpush.msra.mxu0 0.0
  %1534 = vmatpush.msra.mxu0 0.0
  %1535 = vmatpush.msra.mxu0 0.0
  %1536 = vmatpush.msra.mxu0 0.0
  %1537 = vmatpush.msra.mxu0 %v40
  %1538 = vmatmul.f32.gmra.mxu0 %v1520
  %v1539 = vpop.f32.mrf.mxu0
  %v1540 = vadd.f32 0.0, %v1539
  %1541 = vdwg.mxu0
  %v1542 = vadd.f32 %v1517, %v1540
  %v1543 = vld [vmem:[%s1351 + $0x1] sm:$0xff]
  %v1545 = vsel %vm112, %v1543, 0
  %1547 = vmatpush.msra.mxu0 0.0
  %1548 = vmatpush.msra.mxu0 0.0
  %1549 = vmatpush.msra.mxu0 0.0
  %1550 = vmatpush.msra.mxu0 0.0
  %1551 = vmatpush.msra.mxu0 0.0
  %1552 = vmatpush.msra.mxu0 0.0
  %1553 = vmatpush.msra.mxu0 0.0
  %1554 = vmatpush.msra.mxu0 0.0
  %1555 = vmatpush.msra.mxu0 0.0
  %1556 = vmatpush.msra.mxu0 0.0
  %1557 = vmatpush.msra.mxu0 0.0
  %1558 = vmatpush.msra.mxu0 0.0
  %1559 = vmatpush.msra.mxu0 0.0
  %1560 = vmatpush.msra.mxu0 0.0
  %1561 = vmatpush.msra.mxu0 0.0
  %1562 = vmatpush.msra.mxu0 %v42
  %1563 = vmatmul.f32.gmra.mxu0 %v1545
  %v1564 = vpop.f32.mrf.mxu0
  %v1565 = vadd.f32 0.0, %v1564
  %1566 = vdwg.mxu0
  %v1567 = vadd.f32 %v1542, %v1565
  %v1568 = vld [vmem:[%s1351 + $0x2] sm:$0xff]
  %v1570 = vsel %vm112, %v1568, 0
  %1572 = vmatpush.msra.mxu0 0.0
  %1573 = vmatpush.msra.mxu0 0.0
  %1574 = vmatpush.msra.mxu0 0.0
  %1575 = vmatpush.msra.mxu0 0.0
  %1576 = vmatpush.msra.mxu0 0.0
  %1577 = vmatpush.msra.mxu0 0.0
  %1578 = vmatpush.msra.mxu0 0.0
  %1579 = vmatpush.msra.mxu0 0.0
  %1580 = vmatpush.msra.mxu0 0.0
  %1581 = vmatpush.msra.mxu0 0.0
  %1582 = vmatpush.msra.mxu0 0.0
  %1583 = vmatpush.msra.mxu0 0.0
  %1584 = vmatpush.msra.mxu0 0.0
  %1585 = vmatpush.msra.mxu0 0.0
  %1586 = vmatpush.msra.mxu0 0.0
  %1587 = vmatpush.msra.mxu0 %v44
  %1588 = vmatmul.f32.gmra.mxu0 %v1570
  %v1589 = vpop.f32.mrf.mxu0
  %v1590 = vadd.f32 0.0, %v1589
  %1591 = vdwg.mxu0
  %v1592 = vadd.f32 %v1567, %v1590
  %s1593 = scalar_lea.vmem %s0, 128
  %v1594 = vld [vmem:[%s1593] sm:$0xff]
  %v1596 = vsel %vm112, %v1594, 0
  %1598 = vmatpush.msra.mxu0 0.0
  %1599 = vmatpush.msra.mxu0 0.0
  %1600 = vmatpush.msra.mxu0 0.0
  %1601 = vmatpush.msra.mxu0 0.0
  %1602 = vmatpush.msra.mxu0 0.0
  %1603 = vmatpush.msra.mxu0 0.0
  %1604 = vmatpush.msra.mxu0 0.0
  %1605 = vmatpush.msra.mxu0 0.0
  %1606 = vmatpush.msra.mxu0 0.0
  %1607 = vmatpush.msra.mxu0 0.0
  %1608 = vmatpush.msra.mxu0 0.0
  %1609 = vmatpush.msra.mxu0 0.0
  %1610 = vmatpush.msra.mxu0 0.0
  %1611 = vmatpush.msra.mxu0 0.0
  %1612 = vmatpush.msra.mxu0 0.0
  %1613 = vmatpush.msra.mxu0 %v46
  %1614 = vmatmul.f32.gmra.mxu0 %v1596
  %v1615 = vpop.f32.mrf.mxu0
  %v1616 = vadd.f32 0.0, %v1615
  %1617 = vdwg.mxu0
  %v1618 = vadd.f32 %v1592, %v1616
  %v1619 = vld [vmem:[%s1593 + $0x1] sm:$0xff]
  %v1621 = vsel %vm112, %v1619, 0
  %1623 = vmatpush.msra.mxu0 0.0
  %1624 = vmatpush.msra.mxu0 0.0
  %1625 = vmatpush.msra.mxu0 0.0
  %1626 = vmatpush.msra.mxu0 0.0
  %1627 = vmatpush.msra.mxu0 0.0
  %1628 = vmatpush.msra.mxu0 0.0
  %1629 = vmatpush.msra.mxu0 0.0
  %1630 = vmatpush.msra.mxu0 0.0
  %1631 = vmatpush.msra.mxu0 0.0
  %1632 = vmatpush.msra.mxu0 0.0
  %1633 = vmatpush.msra.mxu0 0.0
  %1634 = vmatpush.msra.mxu0 0.0
  %1635 = vmatpush.msra.mxu0 0.0
  %1636 = vmatpush.msra.mxu0 0.0
  %1637 = vmatpush.msra.mxu0 0.0
  %1638 = vmatpush.msra.mxu0 %v48
  %1639 = vmatmul.f32.gmra.mxu0 %v1621
  %v1640 = vpop.f32.mrf.mxu0
  %v1641 = vadd.f32 0.0, %v1640
  %1642 = vdwg.mxu0
  %v1643 = vadd.f32 %v1618, %v1641
  %v1644 = vld [vmem:[%s1593 + $0x2] sm:$0xff]
  %v1646 = vsel %vm112, %v1644, 0
  %1648 = vmatpush.msra.mxu0 0.0
  %1649 = vmatpush.msra.mxu0 0.0
  %1650 = vmatpush.msra.mxu0 0.0
  %1651 = vmatpush.msra.mxu0 0.0
  %1652 = vmatpush.msra.mxu0 0.0
  %1653 = vmatpush.msra.mxu0 0.0
  %1654 = vmatpush.msra.mxu0 0.0
  %1655 = vmatpush.msra.mxu0 0.0
  %1656 = vmatpush.msra.mxu0 0.0
  %1657 = vmatpush.msra.mxu0 0.0
  %1658 = vmatpush.msra.mxu0 0.0
  %1659 = vmatpush.msra.mxu0 0.0
  %1660 = vmatpush.msra.mxu0 0.0
  %1661 = vmatpush.msra.mxu0 0.0
  %1662 = vmatpush.msra.mxu0 0.0
  %1663 = vmatpush.msra.mxu0 %v50
  %1664 = vmatmul.f32.gmra.mxu0 %v1646
  %v1665 = vpop.f32.mrf.mxu0
  %v1666 = vadd.f32 0.0, %v1665
  %1667 = vdwg.mxu0
  %v1668 = vadd.f32 %v1643, %v1666
  %1669 = vmatpush.msra.mxu0 0.0
  %1670 = vmatpush.msra.mxu0 0.0
  %1671 = vmatpush.msra.mxu0 0.0
  %1672 = vmatpush.msra.mxu0 0.0
  %1673 = vmatpush.msra.mxu0 0.0
  %1674 = vmatpush.msra.mxu0 0.0
  %1675 = vmatpush.msra.mxu0 0.0
  %1676 = vmatpush.msra.mxu0 0.0
  %1677 = vmatpush.msra.mxu0 0.0
  %1678 = vmatpush.msra.mxu0 0.0
  %1679 = vmatpush.msra.mxu0 0.0
  %1680 = vmatpush.msra.mxu0 0.0
  %1681 = vmatpush.msra.mxu0 0.0
  %1682 = vmatpush.msra.mxu0 0.0
  %1683 = vmatpush.msra.mxu0 0.0
  %1684 = vmatpush.msra.mxu0 %v36
  %1685 = vmatmul.f32.gmra.mxu0 %v1545
  %v1686 = vpop.f32.mrf.mxu0
  %v1687 = vadd.f32 0.0, %v1686
  %1688 = vdwg.mxu0
  %1689 = vmatpush.msra.mxu0 0.0
  %1690 = vmatpush.msra.mxu0 0.0
  %1691 = vmatpush.msra.mxu0 0.0
  %1692 = vmatpush.msra.mxu0 0.0
  %1693 = vmatpush.msra.mxu0 0.0
  %1694 = vmatpush.msra.mxu0 0.0
  %1695 = vmatpush.msra.mxu0 0.0
  %1696 = vmatpush.msra.mxu0 0.0
  %1697 = vmatpush.msra.mxu0 0.0
  %1698 = vmatpush.msra.mxu0 0.0
  %1699 = vmatpush.msra.mxu0 0.0
  %1700 = vmatpush.msra.mxu0 0.0
  %1701 = vmatpush.msra.mxu0 0.0
  %1702 = vmatpush.msra.mxu0 0.0
  %1703 = vmatpush.msra.mxu0 0.0
  %1704 = vmatpush.msra.mxu0 %v34
  %1705 = vmatmul.f32.gmra.mxu0 %v1520
  %v1706 = vpop.f32.mrf.mxu0
  %v1707 = vadd.f32 %v1687, %v1706
  %1708 = vdwg.mxu0
  %1709 = vmatpush.msra.mxu0 0.0
  %1710 = vmatpush.msra.mxu0 0.0
  %1711 = vmatpush.msra.mxu0 0.0
  %1712 = vmatpush.msra.mxu0 0.0
  %1713 = vmatpush.msra.mxu0 0.0
  %1714 = vmatpush.msra.mxu0 0.0
  %1715 = vmatpush.msra.mxu0 0.0
  %1716 = vmatpush.msra.mxu0 0.0
  %1717 = vmatpush.msra.mxu0 0.0
  %1718 = vmatpush.msra.mxu0 0.0
  %1719 = vmatpush.msra.mxu0 0.0
  %1720 = vmatpush.msra.mxu0 0.0
  %1721 = vmatpush.msra.mxu0 0.0
  %1722 = vmatpush.msra.mxu0 0.0
  %1723 = vmatpush.msra.mxu0 0.0
  %1724 = vmatpush.msra.mxu0 %v38
  %1725 = vmatmul.f32.gmra.mxu0 %v1570
  %v1726 = vpop.f32.mrf.mxu0
  %v1727 = vadd.f32 0.0, %v1726
  %1728 = vdwg.mxu0
  %v1729 = vadd.f32 %v1707, %v1727
  %1730 = vmatpush.msra.mxu0 0.0
  %1731 = vmatpush.msra.mxu0 0.0
  %1732 = vmatpush.msra.mxu0 0.0
  %1733 = vmatpush.msra.mxu0 0.0
  %1734 = vmatpush.msra.mxu0 0.0
  %1735 = vmatpush.msra.mxu0 0.0
  %1736 = vmatpush.msra.mxu0 0.0
  %1737 = vmatpush.msra.mxu0 0.0
  %1738 = vmatpush.msra.mxu0 0.0
  %1739 = vmatpush.msra.mxu0 0.0
  %1740 = vmatpush.msra.mxu0 0.0
  %1741 = vmatpush.msra.mxu0 0.0
  %1742 = vmatpush.msra.mxu0 0.0
  %1743 = vmatpush.msra.mxu0 0.0
  %1744 = vmatpush.msra.mxu0 0.0
  %1745 = vmatpush.msra.mxu0 %v40
  %1746 = vmatmul.f32.gmra.mxu0 %v1596
  %v1747 = vpop.f32.mrf.mxu0
  %v1748 = vadd.f32 0.0, %v1747
  %1749 = vdwg.mxu0
  %v1750 = vadd.f32 %v1729, %v1748
  %1751 = vmatpush.msra.mxu0 0.0
  %1752 = vmatpush.msra.mxu0 0.0
  %1753 = vmatpush.msra.mxu0 0.0
  %1754 = vmatpush.msra.mxu0 0.0
  %1755 = vmatpush.msra.mxu0 0.0
  %1756 = vmatpush.msra.mxu0 0.0
  %1757 = vmatpush.msra.mxu0 0.0
  %1758 = vmatpush.msra.mxu0 0.0
  %1759 = vmatpush.msra.mxu0 0.0
  %1760 = vmatpush.msra.mxu0 0.0
  %1761 = vmatpush.msra.mxu0 0.0
  %1762 = vmatpush.msra.mxu0 0.0
  %1763 = vmatpush.msra.mxu0 0.0
  %1764 = vmatpush.msra.mxu0 0.0
  %1765 = vmatpush.msra.mxu0 0.0
  %1766 = vmatpush.msra.mxu0 %v42
  %1767 = vmatmul.f32.gmra.mxu0 %v1621
  %v1768 = vpop.f32.mrf.mxu0
  %v1769 = vadd.f32 0.0, %v1768
  %1770 = vdwg.mxu0
  %v1771 = vadd.f32 %v1750, %v1769
  %1772 = vmatpush.msra.mxu0 0.0
  %1773 = vmatpush.msra.mxu0 0.0
  %1774 = vmatpush.msra.mxu0 0.0
  %1775 = vmatpush.msra.mxu0 0.0
  %1776 = vmatpush.msra.mxu0 0.0
  %1777 = vmatpush.msra.mxu0 0.0
  %1778 = vmatpush.msra.mxu0 0.0
  %1779 = vmatpush.msra.mxu0 0.0
  %1780 = vmatpush.msra.mxu0 0.0
  %1781 = vmatpush.msra.mxu0 0.0
  %1782 = vmatpush.msra.mxu0 0.0
  %1783 = vmatpush.msra.mxu0 0.0
  %1784 = vmatpush.msra.mxu0 0.0
  %1785 = vmatpush.msra.mxu0 0.0
  %1786 = vmatpush.msra.mxu0 0.0
  %1787 = vmatpush.msra.mxu0 %v44
  %1788 = vmatmul.f32.gmra.mxu0 %v1646
  %v1789 = vpop.f32.mrf.mxu0
  %v1790 = vadd.f32 0.0, %v1789
  %1791 = vdwg.mxu0
  %v1792 = vadd.f32 %v1771, %v1790
  %s1793 = scalar_lea.vmem %s0, 144
  %v1794 = vld [vmem:[%s1793] sm:$0xff]
  %v1796 = vsel %vm112, %v1794, 0
  %1798 = vmatpush.msra.mxu0 0.0
  %1799 = vmatpush.msra.mxu0 0.0
  %1800 = vmatpush.msra.mxu0 0.0
  %1801 = vmatpush.msra.mxu0 0.0
  %1802 = vmatpush.msra.mxu0 0.0
  %1803 = vmatpush.msra.mxu0 0.0
  %1804 = vmatpush.msra.mxu0 0.0
  %1805 = vmatpush.msra.mxu0 0.0
  %1806 = vmatpush.msra.mxu0 0.0
  %1807 = vmatpush.msra.mxu0 0.0
  %1808 = vmatpush.msra.mxu0 0.0
  %1809 = vmatpush.msra.mxu0 0.0
  %1810 = vmatpush.msra.mxu0 0.0
  %1811 = vmatpush.msra.mxu0 0.0
  %1812 = vmatpush.msra.mxu0 0.0
  %1813 = vmatpush.msra.mxu0 %v46
  %1814 = vmatmul.f32.gmra.mxu0 %v1796
  %v1815 = vpop.f32.mrf.mxu0
  %v1816 = vadd.f32 0.0, %v1815
  %1817 = vdwg.mxu0
  %v1818 = vadd.f32 %v1792, %v1816
  %v1819 = vld [vmem:[%s1793 + $0x1] sm:$0xff]
  %v1821 = vsel %vm112, %v1819, 0
  %1823 = vmatpush.msra.mxu0 0.0
  %1824 = vmatpush.msra.mxu0 0.0
  %1825 = vmatpush.msra.mxu0 0.0
  %1826 = vmatpush.msra.mxu0 0.0
  %1827 = vmatpush.msra.mxu0 0.0
  %1828 = vmatpush.msra.mxu0 0.0
  %1829 = vmatpush.msra.mxu0 0.0
  %1830 = vmatpush.msra.mxu0 0.0
  %1831 = vmatpush.msra.mxu0 0.0
  %1832 = vmatpush.msra.mxu0 0.0
  %1833 = vmatpush.msra.mxu0 0.0
  %1834 = vmatpush.msra.mxu0 0.0
  %1835 = vmatpush.msra.mxu0 0.0
  %1836 = vmatpush.msra.mxu0 0.0
  %1837 = vmatpush.msra.mxu0 0.0
  %1838 = vmatpush.msra.mxu0 %v48
  %1839 = vmatmul.f32.gmra.mxu0 %v1821
  %v1840 = vpop.f32.mrf.mxu0
  %v1841 = vadd.f32 0.0, %v1840
  %1842 = vdwg.mxu0
  %v1843 = vadd.f32 %v1818, %v1841
  %v1844 = vld [vmem:[%s1793 + $0x2] sm:$0xff]
  %v1846 = vsel %vm112, %v1844, 0
  %1848 = vmatpush.msra.mxu0 0.0
  %1849 = vmatpush.msra.mxu0 0.0
  %1850 = vmatpush.msra.mxu0 0.0
  %1851 = vmatpush.msra.mxu0 0.0
  %1852 = vmatpush.msra.mxu0 0.0
  %1853 = vmatpush.msra.mxu0 0.0
  %1854 = vmatpush.msra.mxu0 0.0
  %1855 = vmatpush.msra.mxu0 0.0
  %1856 = vmatpush.msra.mxu0 0.0
  %1857 = vmatpush.msra.mxu0 0.0
  %1858 = vmatpush.msra.mxu0 0.0
  %1859 = vmatpush.msra.mxu0 0.0
  %1860 = vmatpush.msra.mxu0 0.0
  %1861 = vmatpush.msra.mxu0 0.0
  %1862 = vmatpush.msra.mxu0 0.0
  %1863 = vmatpush.msra.mxu0 %v50
  %1864 = vmatmul.f32.gmra.mxu0 %v1846
  %v1865 = vpop.f32.mrf.mxu0
  %v1866 = vadd.f32 0.0, %v1865
  %1867 = vdwg.mxu0
  %v1868 = vadd.f32 %v1843, %v1866
  %v1869 = vmax.f32 %v1668, %v1868
  %v1871 = vrot.slane %v1869, 1
  %v1873 = vmax.f32 %v1869, %v1871
  %v1874 = vadd.f32 %v1873, %v95
  %vm1875 = vcmp.ge.f32.partialorder %v1874, 0.0
  %v1876 = vmul.f32 %v1874, 0.01
  %v1877 = vsel %vm1875, %v1874, %v1876
  %s1878 = scalar_lea.vmem [#allocation2], 32
  %1879 = vst.msk [vmem:[%s1878 + $0x1] sm:$0x1] %vm546, %v1877
  %v1880 = vadd.f32 %v1873, %v549
  %vm1881 = vcmp.ge.f32.partialorder %v1880, 0.0
  %v1882 = vmul.f32 %v1880, 0.01
  %v1883 = vsel %vm1881, %v1880, %v1882
  %1884 = vst.msk [vmem:[%s1878] sm:$0x4] %vm555, %v1883
  %1885 = vst.msk [vmem:[%s1878 - $0x1] sm:$0x10] %vm557, %v1883
  %1886 = vst.msk [vmem:[%s1878 - $0x2] sm:$0x40] %vm559, %v1883
  %s1887 = scalar_lea.vmem %s0, 160
  %v1888 = vld [vmem:[%s1887] sm:$0xff]
  %v1889 = vld [vmem:[%s1887 + $0x1] sm:$0xff]
  %v1891 = vsel %vm112, %v1889, 0
  %1893 = vmatpush.msra.mxu0 0.0
  %1894 = vmatpush.msra.mxu0 0.0
  %1895 = vmatpush.msra.mxu0 0.0
  %1896 = vmatpush.msra.mxu0 0.0
  %1897 = vmatpush.msra.mxu0 0.0
  %1898 = vmatpush.msra.mxu0 0.0
  %1899 = vmatpush.msra.mxu0 0.0
  %1900 = vmatpush.msra.mxu0 0.0
  %1901 = vmatpush.msra.mxu0 0.0
  %1902 = vmatpush.msra.mxu0 0.0
  %1903 = vmatpush.msra.mxu0 0.0
  %1904 = vmatpush.msra.mxu0 0.0
  %1905 = vmatpush.msra.mxu0 0.0
  %1906 = vmatpush.msra.mxu0 0.0
  %1907 = vmatpush.msra.mxu0 0.0
  %1908 = vmatpush.msra.mxu0 %v36
  %1909 = vmatmul.f32.gmra.mxu0 %v1891
  %v1910 = vpop.f32.mrf.mxu0
  %v1911 = vadd.f32 0.0, %v1910
  %1912 = vdwg.mxu0
  %v1914 = vsel %vm112, %v1888, 0
  %1916 = vmatpush.msra.mxu0 0.0
  %1917 = vmatpush.msra.mxu0 0.0
  %1918 = vmatpush.msra.mxu0 0.0
  %1919 = vmatpush.msra.mxu0 0.0
  %1920 = vmatpush.msra.mxu0 0.0
  %1921 = vmatpush.msra.mxu0 0.0
  %1922 = vmatpush.msra.mxu0 0.0
  %1923 = vmatpush.msra.mxu0 0.0
  %1924 = vmatpush.msra.mxu0 0.0
  %1925 = vmatpush.msra.mxu0 0.0
  %1926 = vmatpush.msra.mxu0 0.0
  %1927 = vmatpush.msra.mxu0 0.0
  %1928 = vmatpush.msra.mxu0 0.0
  %1929 = vmatpush.msra.mxu0 0.0
  %1930 = vmatpush.msra.mxu0 0.0
  %1931 = vmatpush.msra.mxu0 %v34
  %1932 = vmatmul.f32.gmra.mxu0 %v1914
  %v1933 = vpop.f32.mrf.mxu0
  %v1934 = vadd.f32 %v1911, %v1933
  %1935 = vdwg.mxu0
  %v1936 = vld [vmem:[%s1887 + $0x2] sm:$0xff]
  %v1938 = vsel %vm112, %v1936, 0
  %1940 = vmatpush.msra.mxu0 0.0
  %1941 = vmatpush.msra.mxu0 0.0
  %1942 = vmatpush.msra.mxu0 0.0
  %1943 = vmatpush.msra.mxu0 0.0
  %1944 = vmatpush.msra.mxu0 0.0
  %1945 = vmatpush.msra.mxu0 0.0
  %1946 = vmatpush.msra.mxu0 0.0
  %1947 = vmatpush.msra.mxu0 0.0
  %1948 = vmatpush.msra.mxu0 0.0
  %1949 = vmatpush.msra.mxu0 0.0
  %1950 = vmatpush.msra.mxu0 0.0
  %1951 = vmatpush.msra.mxu0 0.0
  %1952 = vmatpush.msra.mxu0 0.0
  %1953 = vmatpush.msra.mxu0 0.0
  %1954 = vmatpush.msra.mxu0 0.0
  %1955 = vmatpush.msra.mxu0 %v38
  %1956 = vmatmul.f32.gmra.mxu0 %v1938
  %v1957 = vpop.f32.mrf.mxu0
  %v1958 = vadd.f32 0.0, %v1957
  %1959 = vdwg.mxu0
  %v1960 = vadd.f32 %v1934, %v1958
  %s1961 = scalar_lea.vmem %s0, 176
  %v1962 = vld [vmem:[%s1961] sm:$0xff]
  %v1964 = vsel %vm112, %v1962, 0
  %1966 = vmatpush.msra.mxu0 0.0
  %1967 = vmatpush.msra.mxu0 0.0
  %1968 = vmatpush.msra.mxu0 0.0
  %1969 = vmatpush.msra.mxu0 0.0
  %1970 = vmatpush.msra.mxu0 0.0
  %1971 = vmatpush.msra.mxu0 0.0
  %1972 = vmatpush.msra.mxu0 0.0
  %1973 = vmatpush.msra.mxu0 0.0
  %1974 = vmatpush.msra.mxu0 0.0
  %1975 = vmatpush.msra.mxu0 0.0
  %1976 = vmatpush.msra.mxu0 0.0
  %1977 = vmatpush.msra.mxu0 0.0
  %1978 = vmatpush.msra.mxu0 0.0
  %1979 = vmatpush.msra.mxu0 0.0
  %1980 = vmatpush.msra.mxu0 0.0
  %1981 = vmatpush.msra.mxu0 %v40
  %1982 = vmatmul.f32.gmra.mxu0 %v1964
  %v1983 = vpop.f32.mrf.mxu0
  %v1984 = vadd.f32 0.0, %v1983
  %1985 = vdwg.mxu0
  %v1986 = vadd.f32 %v1960, %v1984
  %v1987 = vld [vmem:[%s1961 + $0x1] sm:$0xff]
  %v1989 = vsel %vm112, %v1987, 0
  %1991 = vmatpush.msra.mxu0 0.0
  %1992 = vmatpush.msra.mxu0 0.0
  %1993 = vmatpush.msra.mxu0 0.0
  %1994 = vmatpush.msra.mxu0 0.0
  %1995 = vmatpush.msra.mxu0 0.0
  %1996 = vmatpush.msra.mxu0 0.0
  %1997 = vmatpush.msra.mxu0 0.0
  %1998 = vmatpush.msra.mxu0 0.0
  %1999 = vmatpush.msra.mxu0 0.0
  %2000 = vmatpush.msra.mxu0 0.0
  %2001 = vmatpush.msra.mxu0 0.0
  %2002 = vmatpush.msra.mxu0 0.0
  %2003 = vmatpush.msra.mxu0 0.0
  %2004 = vmatpush.msra.mxu0 0.0
  %2005 = vmatpush.msra.mxu0 0.0
  %2006 = vmatpush.msra.mxu0 %v42
  %2007 = vmatmul.f32.gmra.mxu0 %v1989
  %v2008 = vpop.f32.mrf.mxu0
  %v2009 = vadd.f32 0.0, %v2008
  %2010 = vdwg.mxu0
  %v2011 = vadd.f32 %v1986, %v2009
  %v2012 = vld [vmem:[%s1961 + $0x2] sm:$0xff]
  %v2014 = vsel %vm112, %v2012, 0
  %2016 = vmatpush.msra.mxu0 0.0
  %2017 = vmatpush.msra.mxu0 0.0
  %2018 = vmatpush.msra.mxu0 0.0
  %2019 = vmatpush.msra.mxu0 0.0
  %2020 = vmatpush.msra.mxu0 0.0
  %2021 = vmatpush.msra.mxu0 0.0
  %2022 = vmatpush.msra.mxu0 0.0
  %2023 = vmatpush.msra.mxu0 0.0
  %2024 = vmatpush.msra.mxu0 0.0
  %2025 = vmatpush.msra.mxu0 0.0
  %2026 = vmatpush.msra.mxu0 0.0
  %2027 = vmatpush.msra.mxu0 0.0
  %2028 = vmatpush.msra.mxu0 0.0
  %2029 = vmatpush.msra.mxu0 0.0
  %2030 = vmatpush.msra.mxu0 0.0
  %2031 = vmatpush.msra.mxu0 %v44
  %2032 = vmatmul.f32.gmra.mxu0 %v2014
  %v2033 = vpop.f32.mrf.mxu0
  %v2034 = vadd.f32 0.0, %v2033
  %2035 = vdwg.mxu0
  %v2036 = vadd.f32 %v2011, %v2034
  %s2037 = scalar_lea.vmem %s0, 192
  %v2038 = vld [vmem:[%s2037] sm:$0xff]
  %v2040 = vsel %vm112, %v2038, 0
  %2042 = vmatpush.msra.mxu0 0.0
  %2043 = vmatpush.msra.mxu0 0.0
  %2044 = vmatpush.msra.mxu0 0.0
  %2045 = vmatpush.msra.mxu0 0.0
  %2046 = vmatpush.msra.mxu0 0.0
  %2047 = vmatpush.msra.mxu0 0.0
  %2048 = vmatpush.msra.mxu0 0.0
  %2049 = vmatpush.msra.mxu0 0.0
  %2050 = vmatpush.msra.mxu0 0.0
  %2051 = vmatpush.msra.mxu0 0.0
  %2052 = vmatpush.msra.mxu0 0.0
  %2053 = vmatpush.msra.mxu0 0.0
  %2054 = vmatpush.msra.mxu0 0.0
  %2055 = vmatpush.msra.mxu0 0.0
  %2056 = vmatpush.msra.mxu0 0.0
  %2057 = vmatpush.msra.mxu0 %v46
  %2058 = vmatmul.f32.gmra.mxu0 %v2040
  %v2059 = vpop.f32.mrf.mxu0
  %v2060 = vadd.f32 0.0, %v2059
  %2061 = vdwg.mxu0
  %v2062 = vadd.f32 %v2036, %v2060
  %v2063 = vld [vmem:[%s2037 + $0x1] sm:$0xff]
  %v2065 = vsel %vm112, %v2063, 0
  %2067 = vmatpush.msra.mxu0 0.0
  %2068 = vmatpush.msra.mxu0 0.0
  %2069 = vmatpush.msra.mxu0 0.0
  %2070 = vmatpush.msra.mxu0 0.0
  %2071 = vmatpush.msra.mxu0 0.0
  %2072 = vmatpush.msra.mxu0 0.0
  %2073 = vmatpush.msra.mxu0 0.0
  %2074 = vmatpush.msra.mxu0 0.0
  %2075 = vmatpush.msra.mxu0 0.0
  %2076 = vmatpush.msra.mxu0 0.0
  %2077 = vmatpush.msra.mxu0 0.0
  %2078 = vmatpush.msra.mxu0 0.0
  %2079 = vmatpush.msra.mxu0 0.0
  %2080 = vmatpush.msra.mxu0 0.0
  %2081 = vmatpush.msra.mxu0 0.0
  %2082 = vmatpush.msra.mxu0 %v48
  %2083 = vmatmul.f32.gmra.mxu0 %v2065
  %v2084 = vpop.f32.mrf.mxu0
  %v2085 = vadd.f32 0.0, %v2084
  %2086 = vdwg.mxu0
  %v2087 = vadd.f32 %v2062, %v2085
  %v2088 = vld [vmem:[%s2037 + $0x2] sm:$0xff]
  %v2090 = vsel %vm112, %v2088, 0
  %2092 = vmatpush.msra.mxu0 0.0
  %2093 = vmatpush.msra.mxu0 0.0
  %2094 = vmatpush.msra.mxu0 0.0
  %2095 = vmatpush.msra.mxu0 0.0
  %2096 = vmatpush.msra.mxu0 0.0
  %2097 = vmatpush.msra.mxu0 0.0
  %2098 = vmatpush.msra.mxu0 0.0
  %2099 = vmatpush.msra.mxu0 0.0
  %2100 = vmatpush.msra.mxu0 0.0
  %2101 = vmatpush.msra.mxu0 0.0
  %2102 = vmatpush.msra.mxu0 0.0
  %2103 = vmatpush.msra.mxu0 0.0
  %2104 = vmatpush.msra.mxu0 0.0
  %2105 = vmatpush.msra.mxu0 0.0
  %2106 = vmatpush.msra.mxu0 0.0
  %2107 = vmatpush.msra.mxu0 %v50
  %2108 = vmatmul.f32.gmra.mxu0 %v2090
  %v2109 = vpop.f32.mrf.mxu0
  %v2110 = vadd.f32 0.0, %v2109
  %2111 = vdwg.mxu0
  %v2112 = vadd.f32 %v2087, %v2110
  %2113 = vmatpush.msra.mxu0 0.0
  %2114 = vmatpush.msra.mxu0 0.0
  %2115 = vmatpush.msra.mxu0 0.0
  %2116 = vmatpush.msra.mxu0 0.0
  %2117 = vmatpush.msra.mxu0 0.0
  %2118 = vmatpush.msra.mxu0 0.0
  %2119 = vmatpush.msra.mxu0 0.0
  %2120 = vmatpush.msra.mxu0 0.0
  %2121 = vmatpush.msra.mxu0 0.0
  %2122 = vmatpush.msra.mxu0 0.0
  %2123 = vmatpush.msra.mxu0 0.0
  %2124 = vmatpush.msra.mxu0 0.0
  %2125 = vmatpush.msra.mxu0 0.0
  %2126 = vmatpush.msra.mxu0 0.0
  %2127 = vmatpush.msra.mxu0 0.0
  %2128 = vmatpush.msra.mxu0 %v36
  %2129 = vmatmul.f32.gmra.mxu0 %v1989
  %v2130 = vpop.f32.mrf.mxu0
  %v2131 = vadd.f32 0.0, %v2130
  %2132 = vdwg.mxu0
  %2133 = vmatpush.msra.mxu0 0.0
  %2134 = vmatpush.msra.mxu0 0.0
  %2135 = vmatpush.msra.mxu0 0.0
  %2136 = vmatpush.msra.mxu0 0.0
  %2137 = vmatpush.msra.mxu0 0.0
  %2138 = vmatpush.msra.mxu0 0.0
  %2139 = vmatpush.msra.mxu0 0.0
  %2140 = vmatpush.msra.mxu0 0.0
  %2141 = vmatpush.msra.mxu0 0.0
  %2142 = vmatpush.msra.mxu0 0.0
  %2143 = vmatpush.msra.mxu0 0.0
  %2144 = vmatpush.msra.mxu0 0.0
  %2145 = vmatpush.msra.mxu0 0.0
  %2146 = vmatpush.msra.mxu0 0.0
  %2147 = vmatpush.msra.mxu0 0.0
  %2148 = vmatpush.msra.mxu0 %v34
  %2149 = vmatmul.f32.gmra.mxu0 %v1964
  %v2150 = vpop.f32.mrf.mxu0
  %v2151 = vadd.f32 %v2131, %v2150
  %2152 = vdwg.mxu0
  %2153 = vmatpush.msra.mxu0 0.0
  %2154 = vmatpush.msra.mxu0 0.0
  %2155 = vmatpush.msra.mxu0 0.0
  %2156 = vmatpush.msra.mxu0 0.0
  %2157 = vmatpush.msra.mxu0 0.0
  %2158 = vmatpush.msra.mxu0 0.0
  %2159 = vmatpush.msra.mxu0 0.0
  %2160 = vmatpush.msra.mxu0 0.0
  %2161 = vmatpush.msra.mxu0 0.0
  %2162 = vmatpush.msra.mxu0 0.0
  %2163 = vmatpush.msra.mxu0 0.0
  %2164 = vmatpush.msra.mxu0 0.0
  %2165 = vmatpush.msra.mxu0 0.0
  %2166 = vmatpush.msra.mxu0 0.0
  %2167 = vmatpush.msra.mxu0 0.0
  %2168 = vmatpush.msra.mxu0 %v38
  %2169 = vmatmul.f32.gmra.mxu0 %v2014
  %v2170 = vpop.f32.mrf.mxu0
  %v2171 = vadd.f32 0.0, %v2170
  %2172 = vdwg.mxu0
  %v2173 = vadd.f32 %v2151, %v2171
  %2174 = vmatpush.msra.mxu0 0.0
  %2175 = vmatpush.msra.mxu0 0.0
  %2176 = vmatpush.msra.mxu0 0.0
  %2177 = vmatpush.msra.mxu0 0.0
  %2178 = vmatpush.msra.mxu0 0.0
  %2179 = vmatpush.msra.mxu0 0.0
  %2180 = vmatpush.msra.mxu0 0.0
  %2181 = vmatpush.msra.mxu0 0.0
  %2182 = vmatpush.msra.mxu0 0.0
  %2183 = vmatpush.msra.mxu0 0.0
  %2184 = vmatpush.msra.mxu0 0.0
  %2185 = vmatpush.msra.mxu0 0.0
  %2186 = vmatpush.msra.mxu0 0.0
  %2187 = vmatpush.msra.mxu0 0.0
  %2188 = vmatpush.msra.mxu0 0.0
  %2189 = vmatpush.msra.mxu0 %v40
  %2190 = vmatmul.f32.gmra.mxu0 %v2040
  %v2191 = vpop.f32.mrf.mxu0
  %v2192 = vadd.f32 0.0, %v2191
  %2193 = vdwg.mxu0
  %v2194 = vadd.f32 %v2173, %v2192
  %2195 = vmatpush.msra.mxu0 0.0
  %2196 = vmatpush.msra.mxu0 0.0
  %2197 = vmatpush.msra.mxu0 0.0
  %2198 = vmatpush.msra.mxu0 0.0
  %2199 = vmatpush.msra.mxu0 0.0
  %2200 = vmatpush.msra.mxu0 0.0
  %2201 = vmatpush.msra.mxu0 0.0
  %2202 = vmatpush.msra.mxu0 0.0
  %2203 = vmatpush.msra.mxu0 0.0
  %2204 = vmatpush.msra.mxu0 0.0
  %2205 = vmatpush.msra.mxu0 0.0
  %2206 = vmatpush.msra.mxu0 0.0
  %2207 = vmatpush.msra.mxu0 0.0
  %2208 = vmatpush.msra.mxu0 0.0
  %2209 = vmatpush.msra.mxu0 0.0
  %2210 = vmatpush.msra.mxu0 %v42
  %2211 = vmatmul.f32.gmra.mxu0 %v2065
  %v2212 = vpop.f32.mrf.mxu0
  %v2213 = vadd.f32 0.0, %v2212
  %2214 = vdwg.mxu0
  %v2215 = vadd.f32 %v2194, %v2213
  %2216 = vmatpush.msra.mxu0 0.0
  %2217 = vmatpush.msra.mxu0 0.0
  %2218 = vmatpush.msra.mxu0 0.0
  %2219 = vmatpush.msra.mxu0 0.0
  %2220 = vmatpush.msra.mxu0 0.0
  %2221 = vmatpush.msra.mxu0 0.0
  %2222 = vmatpush.msra.mxu0 0.0
  %2223 = vmatpush.msra.mxu0 0.0
  %2224 = vmatpush.msra.mxu0 0.0
  %2225 = vmatpush.msra.mxu0 0.0
  %2226 = vmatpush.msra.mxu0 0.0
  %2227 = vmatpush.msra.mxu0 0.0
  %2228 = vmatpush.msra.mxu0 0.0
  %2229 = vmatpush.msra.mxu0 0.0
  %2230 = vmatpush.msra.mxu0 0.0
  %2231 = vmatpush.msra.mxu0 %v44
  %2232 = vmatmul.f32.gmra.mxu0 %v2090
  %v2233 = vpop.f32.mrf.mxu0
  %v2234 = vadd.f32 0.0, %v2233
  %2235 = vdwg.mxu0
  %v2236 = vadd.f32 %v2215, %v2234
  %s2237 = scalar_lea.vmem %s0, 208
  %v2238 = vld [vmem:[%s2237] sm:$0xff]
  %v2240 = vsel %vm112, %v2238, 0
  %2242 = vmatpush.msra.mxu0 0.0
  %2243 = vmatpush.msra.mxu0 0.0
  %2244 = vmatpush.msra.mxu0 0.0
  %2245 = vmatpush.msra.mxu0 0.0
  %2246 = vmatpush.msra.mxu0 0.0
  %2247 = vmatpush.msra.mxu0 0.0
  %2248 = vmatpush.msra.mxu0 0.0
  %2249 = vmatpush.msra.mxu0 0.0
  %2250 = vmatpush.msra.mxu0 0.0
  %2251 = vmatpush.msra.mxu0 0.0
  %2252 = vmatpush.msra.mxu0 0.0
  %2253 = vmatpush.msra.mxu0 0.0
  %2254 = vmatpush.msra.mxu0 0.0
  %2255 = vmatpush.msra.mxu0 0.0
  %2256 = vmatpush.msra.mxu0 0.0
  %2257 = vmatpush.msra.mxu0 %v46
  %2258 = vmatmul.f32.gmra.mxu0 %v2240
  %v2259 = vpop.f32.mrf.mxu0
  %v2260 = vadd.f32 0.0, %v2259
  %2261 = vdwg.mxu0
  %v2262 = vadd.f32 %v2236, %v2260
  %v2263 = vld [vmem:[%s2237 + $0x1] sm:$0xff]
  %v2265 = vsel %vm112, %v2263, 0
  %2267 = vmatpush.msra.mxu0 0.0
  %2268 = vmatpush.msra.mxu0 0.0
  %2269 = vmatpush.msra.mxu0 0.0
  %2270 = vmatpush.msra.mxu0 0.0
  %2271 = vmatpush.msra.mxu0 0.0
  %2272 = vmatpush.msra.mxu0 0.0
  %2273 = vmatpush.msra.mxu0 0.0
  %2274 = vmatpush.msra.mxu0 0.0
  %2275 = vmatpush.msra.mxu0 0.0
  %2276 = vmatpush.msra.mxu0 0.0
  %2277 = vmatpush.msra.mxu0 0.0
  %2278 = vmatpush.msra.mxu0 0.0
  %2279 = vmatpush.msra.mxu0 0.0
  %2280 = vmatpush.msra.mxu0 0.0
  %2281 = vmatpush.msra.mxu0 0.0
  %2282 = vmatpush.msra.mxu0 %v48
  %2283 = vmatmul.f32.gmra.mxu0 %v2265
  %v2284 = vpop.f32.mrf.mxu0
  %v2285 = vadd.f32 0.0, %v2284
  %2286 = vdwg.mxu0
  %v2287 = vadd.f32 %v2262, %v2285
  %v2288 = vld [vmem:[%s2237 + $0x2] sm:$0xff]
  %v2290 = vsel %vm112, %v2288, 0
  %2292 = vmatpush.msra.mxu0 0.0
  %2293 = vmatpush.msra.mxu0 0.0
  %2294 = vmatpush.msra.mxu0 0.0
  %2295 = vmatpush.msra.mxu0 0.0
  %2296 = vmatpush.msra.mxu0 0.0
  %2297 = vmatpush.msra.mxu0 0.0
  %2298 = vmatpush.msra.mxu0 0.0
  %2299 = vmatpush.msra.mxu0 0.0
  %2300 = vmatpush.msra.mxu0 0.0
  %2301 = vmatpush.msra.mxu0 0.0
  %2302 = vmatpush.msra.mxu0 0.0
  %2303 = vmatpush.msra.mxu0 0.0
  %2304 = vmatpush.msra.mxu0 0.0
  %2305 = vmatpush.msra.mxu0 0.0
  %2306 = vmatpush.msra.mxu0 0.0
  %2307 = vmatpush.msra.mxu0 %v50
  %2308 = vmatmul.f32.gmra.mxu0 %v2290
  %v2309 = vpop.f32.mrf.mxu0
  %v2310 = vadd.f32 0.0, %v2309
  %2311 = vdwg.mxu0
  %v2312 = vadd.f32 %v2287, %v2310
  %v2313 = vmax.f32 %v2112, %v2312
  %v2315 = vrot.slane %v2313, 1
  %v2317 = vmax.f32 %v2313, %v2315
  %v2318 = vadd.f32 %v2317, %v95
  %vm2319 = vcmp.ge.f32.partialorder %v2318, 0.0
  %v2320 = vmul.f32 %v2318, 0.01
  %v2321 = vsel %vm2319, %v2318, %v2320
  %s2322 = scalar_lea.vmem [#allocation2], 56
  %2323 = vst.msk [vmem:[%s2322 + $0x1] sm:$0x1] %vm546, %v2321
  %v2324 = vadd.f32 %v2317, %v549
  %vm2325 = vcmp.ge.f32.partialorder %v2324, 0.0
  %v2326 = vmul.f32 %v2324, 0.01
  %v2327 = vsel %vm2325, %v2324, %v2326
  %2328 = vst.msk [vmem:[%s2322] sm:$0x4] %vm555, %v2327
  %2329 = vst.msk [vmem:[%s2322 - $0x1] sm:$0x10] %vm557, %v2327
  %2330 = vst.msk [vmem:[%s2322 - $0x2] sm:$0x40] %vm559, %v2327
  %v2331 = vld [vmem:[%s2037] sm:$0xff]
  %v2332 = vld [vmem:[%s2037 + $0x1] sm:$0xff]
  %v2334 = vsel %vm112, %v2332, 0
  %2336 = vmatpush.msra.mxu0 0.0
  %2337 = vmatpush.msra.mxu0 0.0
  %2338 = vmatpush.msra.mxu0 0.0
  %2339 = vmatpush.msra.mxu0 0.0
  %2340 = vmatpush.msra.mxu0 0.0
  %2341 = vmatpush.msra.mxu0 0.0
  %2342 = vmatpush.msra.mxu0 0.0
  %2343 = vmatpush.msra.mxu0 0.0
  %2344 = vmatpush.msra.mxu0 0.0
  %2345 = vmatpush.msra.mxu0 0.0
  %2346 = vmatpush.msra.mxu0 0.0
  %2347 = vmatpush.msra.mxu0 0.0
  %2348 = vmatpush.msra.mxu0 0.0
  %2349 = vmatpush.msra.mxu0 0.0
  %2350 = vmatpush.msra.mxu0 0.0
  %2351 = vmatpush.msra.mxu0 %v36
  %2352 = vmatmul.f32.gmra.mxu0 %v2334
  %v2353 = vpop.f32.mrf.mxu0
  %v2354 = vadd.f32 0.0, %v2353
  %2355 = vdwg.mxu0
  %v2357 = vsel %vm112, %v2331, 0
  %2359 = vmatpush.msra.mxu0 0.0
  %2360 = vmatpush.msra.mxu0 0.0
  %2361 = vmatpush.msra.mxu0 0.0
  %2362 = vmatpush.msra.mxu0 0.0
  %2363 = vmatpush.msra.mxu0 0.0
  %2364 = vmatpush.msra.mxu0 0.0
  %2365 = vmatpush.msra.mxu0 0.0
  %2366 = vmatpush.msra.mxu0 0.0
  %2367 = vmatpush.msra.mxu0 0.0
  %2368 = vmatpush.msra.mxu0 0.0
  %2369 = vmatpush.msra.mxu0 0.0
  %2370 = vmatpush.msra.mxu0 0.0
  %2371 = vmatpush.msra.mxu0 0.0
  %2372 = vmatpush.msra.mxu0 0.0
  %2373 = vmatpush.msra.mxu0 0.0
  %2374 = vmatpush.msra.mxu0 %v34
  %2375 = vmatmul.f32.gmra.mxu0 %v2357
  %v2376 = vpop.f32.mrf.mxu0
  %v2377 = vadd.f32 %v2354, %v2376
  %2378 = vdwg.mxu0
  %v2379 = vld [vmem:[%s2037 + $0x2] sm:$0xff]
  %v2381 = vsel %vm112, %v2379, 0
  %2383 = vmatpush.msra.mxu0 0.0
  %2384 = vmatpush.msra.mxu0 0.0
  %2385 = vmatpush.msra.mxu0 0.0
  %2386 = vmatpush.msra.mxu0 0.0
  %2387 = vmatpush.msra.mxu0 0.0
  %2388 = vmatpush.msra.mxu0 0.0
  %2389 = vmatpush.msra.mxu0 0.0
  %2390 = vmatpush.msra.mxu0 0.0
  %2391 = vmatpush.msra.mxu0 0.0
  %2392 = vmatpush.msra.mxu0 0.0
  %2393 = vmatpush.msra.mxu0 0.0
  %2394 = vmatpush.msra.mxu0 0.0
  %2395 = vmatpush.msra.mxu0 0.0
  %2396 = vmatpush.msra.mxu0 0.0
  %2397 = vmatpush.msra.mxu0 0.0
  %2398 = vmatpush.msra.mxu0 %v38
  %2399 = vmatmul.f32.gmra.mxu0 %v2381
  %v2400 = vpop.f32.mrf.mxu0
  %v2401 = vadd.f32 0.0, %v2400
  %2402 = vdwg.mxu0
  %v2403 = vadd.f32 %v2377, %v2401
  %v2404 = vld [vmem:[%s2237] sm:$0xff]
  %v2406 = vsel %vm112, %v2404, 0
  %2408 = vmatpush.msra.mxu0 0.0
  %2409 = vmatpush.msra.mxu0 0.0
  %2410 = vmatpush.msra.mxu0 0.0
  %2411 = vmatpush.msra.mxu0 0.0
  %2412 = vmatpush.msra.mxu0 0.0
  %2413 = vmatpush.msra.mxu0 0.0
  %2414 = vmatpush.msra.mxu0 0.0
  %2415 = vmatpush.msra.mxu0 0.0
  %2416 = vmatpush.msra.mxu0 0.0
  %2417 = vmatpush.msra.mxu0 0.0
  %2418 = vmatpush.msra.mxu0 0.0
  %2419 = vmatpush.msra.mxu0 0.0
  %2420 = vmatpush.msra.mxu0 0.0
  %2421 = vmatpush.msra.mxu0 0.0
  %2422 = vmatpush.msra.mxu0 0.0
  %2423 = vmatpush.msra.mxu0 %v40
  %2424 = vmatmul.f32.gmra.mxu0 %v2406
  %v2425 = vpop.f32.mrf.mxu0
  %v2426 = vadd.f32 0.0, %v2425
  %2427 = vdwg.mxu0
  %v2428 = vadd.f32 %v2403, %v2426
  %v2429 = vld [vmem:[%s2237 + $0x1] sm:$0xff]
  %v2431 = vsel %vm112, %v2429, 0
  %2433 = vmatpush.msra.mxu0 0.0
  %2434 = vmatpush.msra.mxu0 0.0
  %2435 = vmatpush.msra.mxu0 0.0
  %2436 = vmatpush.msra.mxu0 0.0
  %2437 = vmatpush.msra.mxu0 0.0
  %2438 = vmatpush.msra.mxu0 0.0
  %2439 = vmatpush.msra.mxu0 0.0
  %2440 = vmatpush.msra.mxu0 0.0
  %2441 = vmatpush.msra.mxu0 0.0
  %2442 = vmatpush.msra.mxu0 0.0
  %2443 = vmatpush.msra.mxu0 0.0
  %2444 = vmatpush.msra.mxu0 0.0
  %2445 = vmatpush.msra.mxu0 0.0
  %2446 = vmatpush.msra.mxu0 0.0
  %2447 = vmatpush.msra.mxu0 0.0
  %2448 = vmatpush.msra.mxu0 %v42
  %2449 = vmatmul.f32.gmra.mxu0 %v2431
  %v2450 = vpop.f32.mrf.mxu0
  %v2451 = vadd.f32 0.0, %v2450
  %2452 = vdwg.mxu0
  %v2453 = vadd.f32 %v2428, %v2451
  %v2454 = vld [vmem:[%s2237 + $0x2] sm:$0xff]
  %v2456 = vsel %vm112, %v2454, 0
  %2458 = vmatpush.msra.mxu0 0.0
  %2459 = vmatpush.msra.mxu0 0.0
  %2460 = vmatpush.msra.mxu0 0.0
  %2461 = vmatpush.msra.mxu0 0.0
  %2462 = vmatpush.msra.mxu0 0.0
  %2463 = vmatpush.msra.mxu0 0.0
  %2464 = vmatpush.msra.mxu0 0.0
  %2465 = vmatpush.msra.mxu0 0.0
  %2466 = vmatpush.msra.mxu0 0.0
  %2467 = vmatpush.msra.mxu0 0.0
  %2468 = vmatpush.msra.mxu0 0.0
  %2469 = vmatpush.msra.mxu0 0.0
  %2470 = vmatpush.msra.mxu0 0.0
  %2471 = vmatpush.msra.mxu0 0.0
  %2472 = vmatpush.msra.mxu0 0.0
  %2473 = vmatpush.msra.mxu0 %v44
  %2474 = vmatmul.f32.gmra.mxu0 %v2456
  %v2475 = vpop.f32.mrf.mxu0
  %v2476 = vadd.f32 0.0, %v2475
  %2477 = vdwg.mxu0
  %v2478 = vadd.f32 %v2453, %v2476
  %s2479 = scalar_lea.vmem %s0, 224
  %v2480 = vld [vmem:[%s2479] sm:$0xff]
  %v2482 = vsel %vm112, %v2480, 0
  %2484 = vmatpush.msra.mxu0 0.0
  %2485 = vmatpush.msra.mxu0 0.0
  %2486 = vmatpush.msra.mxu0 0.0
  %2487 = vmatpush.msra.mxu0 0.0
  %2488 = vmatpush.msra.mxu0 0.0
  %2489 = vmatpush.msra.mxu0 0.0
  %2490 = vmatpush.msra.mxu0 0.0
  %2491 = vmatpush.msra.mxu0 0.0
  %2492 = vmatpush.msra.mxu0 0.0
  %2493 = vmatpush.msra.mxu0 0.0
  %2494 = vmatpush.msra.mxu0 0.0
  %2495 = vmatpush.msra.mxu0 0.0
  %2496 = vmatpush.msra.mxu0 0.0
  %2497 = vmatpush.msra.mxu0 0.0
  %2498 = vmatpush.msra.mxu0 0.0
  %2499 = vmatpush.msra.mxu0 %v46
  %2500 = vmatmul.f32.gmra.mxu0 %v2482
  %v2501 = vpop.f32.mrf.mxu0
  %v2502 = vadd.f32 0.0, %v2501
  %2503 = vdwg.mxu0
  %v2504 = vadd.f32 %v2478, %v2502
  %v2505 = vld [vmem:[%s2479 + $0x1] sm:$0xff]
  %v2507 = vsel %vm112, %v2505, 0
  %2509 = vmatpush.msra.mxu0 0.0
  %2510 = vmatpush.msra.mxu0 0.0
  %2511 = vmatpush.msra.mxu0 0.0
  %2512 = vmatpush.msra.mxu0 0.0
  %2513 = vmatpush.msra.mxu0 0.0
  %2514 = vmatpush.msra.mxu0 0.0
  %2515 = vmatpush.msra.mxu0 0.0
  %2516 = vmatpush.msra.mxu0 0.0
  %2517 = vmatpush.msra.mxu0 0.0
  %2518 = vmatpush.msra.mxu0 0.0
  %2519 = vmatpush.msra.mxu0 0.0
  %2520 = vmatpush.msra.mxu0 0.0
  %2521 = vmatpush.msra.mxu0 0.0
  %2522 = vmatpush.msra.mxu0 0.0
  %2523 = vmatpush.msra.mxu0 0.0
  %2524 = vmatpush.msra.mxu0 %v48
  %2525 = vmatmul.f32.gmra.mxu0 %v2507
  %v2526 = vpop.f32.mrf.mxu0
  %v2527 = vadd.f32 0.0, %v2526
  %2528 = vdwg.mxu0
  %v2529 = vadd.f32 %v2504, %v2527
  %v2530 = vld [vmem:[%s2479 + $0x2] sm:$0xff]
  %v2532 = vsel %vm112, %v2530, 0
  %2534 = vmatpush.msra.mxu0 0.0
  %2535 = vmatpush.msra.mxu0 0.0
  %2536 = vmatpush.msra.mxu0 0.0
  %2537 = vmatpush.msra.mxu0 0.0
  %2538 = vmatpush.msra.mxu0 0.0
  %2539 = vmatpush.msra.mxu0 0.0
  %2540 = vmatpush.msra.mxu0 0.0
  %2541 = vmatpush.msra.mxu0 0.0
  %2542 = vmatpush.msra.mxu0 0.0
  %2543 = vmatpush.msra.mxu0 0.0
  %2544 = vmatpush.msra.mxu0 0.0
  %2545 = vmatpush.msra.mxu0 0.0
  %2546 = vmatpush.msra.mxu0 0.0
  %2547 = vmatpush.msra.mxu0 0.0
  %2548 = vmatpush.msra.mxu0 0.0
  %2549 = vmatpush.msra.mxu0 %v50
  %2550 = vmatmul.f32.gmra.mxu0 %v2532
  %v2551 = vpop.f32.mrf.mxu0
  %v2552 = vadd.f32 0.0, %v2551
  %2553 = vdwg.mxu0
  %v2554 = vadd.f32 %v2529, %v2552
  %2555 = vmatpush.msra.mxu0 0.0
  %2556 = vmatpush.msra.mxu0 0.0
  %2557 = vmatpush.msra.mxu0 0.0
  %2558 = vmatpush.msra.mxu0 0.0
  %2559 = vmatpush.msra.mxu0 0.0
  %2560 = vmatpush.msra.mxu0 0.0
  %2561 = vmatpush.msra.mxu0 0.0
  %2562 = vmatpush.msra.mxu0 0.0
  %2563 = vmatpush.msra.mxu0 0.0
  %2564 = vmatpush.msra.mxu0 0.0
  %2565 = vmatpush.msra.mxu0 0.0
  %2566 = vmatpush.msra.mxu0 0.0
  %2567 = vmatpush.msra.mxu0 0.0
  %2568 = vmatpush.msra.mxu0 0.0
  %2569 = vmatpush.msra.mxu0 0.0
  %2570 = vmatpush.msra.mxu0 %v36
  %2571 = vmatmul.f32.gmra.mxu0 %v2431
  %v2572 = vpop.f32.mrf.mxu0
  %v2573 = vadd.f32 0.0, %v2572
  %2574 = vdwg.mxu0
  %2575 = vmatpush.msra.mxu0 0.0
  %2576 = vmatpush.msra.mxu0 0.0
  %2577 = vmatpush.msra.mxu0 0.0
  %2578 = vmatpush.msra.mxu0 0.0
  %2579 = vmatpush.msra.mxu0 0.0
  %2580 = vmatpush.msra.mxu0 0.0
  %2581 = vmatpush.msra.mxu0 0.0
  %2582 = vmatpush.msra.mxu0 0.0
  %2583 = vmatpush.msra.mxu0 0.0
  %2584 = vmatpush.msra.mxu0 0.0
  %2585 = vmatpush.msra.mxu0 0.0
  %2586 = vmatpush.msra.mxu0 0.0
  %2587 = vmatpush.msra.mxu0 0.0
  %2588 = vmatpush.msra.mxu0 0.0
  %2589 = vmatpush.msra.mxu0 0.0
  %2590 = vmatpush.msra.mxu0 %v34
  %2591 = vmatmul.f32.gmra.mxu0 %v2406
  %v2592 = vpop.f32.mrf.mxu0
  %v2593 = vadd.f32 %v2573, %v2592
  %2594 = vdwg.mxu0
  %2595 = vmatpush.msra.mxu0 0.0
  %2596 = vmatpush.msra.mxu0 0.0
  %2597 = vmatpush.msra.mxu0 0.0
  %2598 = vmatpush.msra.mxu0 0.0
  %2599 = vmatpush.msra.mxu0 0.0
  %2600 = vmatpush.msra.mxu0 0.0
  %2601 = vmatpush.msra.mxu0 0.0
  %2602 = vmatpush.msra.mxu0 0.0
  %2603 = vmatpush.msra.mxu0 0.0
  %2604 = vmatpush.msra.mxu0 0.0
  %2605 = vmatpush.msra.mxu0 0.0
  %2606 = vmatpush.msra.mxu0 0.0
  %2607 = vmatpush.msra.mxu0 0.0
  %2608 = vmatpush.msra.mxu0 0.0
  %2609 = vmatpush.msra.mxu0 0.0
  %2610 = vmatpush.msra.mxu0 %v38
  %2611 = vmatmul.f32.gmra.mxu0 %v2456
  %v2612 = vpop.f32.mrf.mxu0
  %v2613 = vadd.f32 0.0, %v2612
  %2614 = vdwg.mxu0
  %v2615 = vadd.f32 %v2593, %v2613
  %2616 = vmatpush.msra.mxu0 0.0
  %2617 = vmatpush.msra.mxu0 0.0
  %2618 = vmatpush.msra.mxu0 0.0
  %2619 = vmatpush.msra.mxu0 0.0
  %2620 = vmatpush.msra.mxu0 0.0
  %2621 = vmatpush.msra.mxu0 0.0
  %2622 = vmatpush.msra.mxu0 0.0
  %2623 = vmatpush.msra.mxu0 0.0
  %2624 = vmatpush.msra.mxu0 0.0
  %2625 = vmatpush.msra.mxu0 0.0
  %2626 = vmatpush.msra.mxu0 0.0
  %2627 = vmatpush.msra.mxu0 0.0
  %2628 = vmatpush.msra.mxu0 0.0
  %2629 = vmatpush.msra.mxu0 0.0
  %2630 = vmatpush.msra.mxu0 0.0
  %2631 = vmatpush.msra.mxu0 %v40
  %2632 = vmatmul.f32.gmra.mxu0 %v2482
  %v2633 = vpop.f32.mrf.mxu0
  %v2634 = vadd.f32 0.0, %v2633
  %2635 = vdwg.mxu0
  %v2636 = vadd.f32 %v2615, %v2634
  %2637 = vmatpush.msra.mxu0 0.0
  %2638 = vmatpush.msra.mxu0 0.0
  %2639 = vmatpush.msra.mxu0 0.0
  %2640 = vmatpush.msra.mxu0 0.0
  %2641 = vmatpush.msra.mxu0 0.0
  %2642 = vmatpush.msra.mxu0 0.0
  %2643 = vmatpush.msra.mxu0 0.0
  %2644 = vmatpush.msra.mxu0 0.0
  %2645 = vmatpush.msra.mxu0 0.0
  %2646 = vmatpush.msra.mxu0 0.0
  %2647 = vmatpush.msra.mxu0 0.0
  %2648 = vmatpush.msra.mxu0 0.0
  %2649 = vmatpush.msra.mxu0 0.0
  %2650 = vmatpush.msra.mxu0 0.0
  %2651 = vmatpush.msra.mxu0 0.0
  %2652 = vmatpush.msra.mxu0 %v42
  %2653 = vmatmul.f32.gmra.mxu0 %v2507
  %v2654 = vpop.f32.mrf.mxu0
  %v2655 = vadd.f32 0.0, %v2654
  %2656 = vdwg.mxu0
  %v2657 = vadd.f32 %v2636, %v2655
  %2658 = vmatpush.msra.mxu0 0.0
  %2659 = vmatpush.msra.mxu0 0.0
  %2660 = vmatpush.msra.mxu0 0.0
  %2661 = vmatpush.msra.mxu0 0.0
  %2662 = vmatpush.msra.mxu0 0.0
  %2663 = vmatpush.msra.mxu0 0.0
  %2664 = vmatpush.msra.mxu0 0.0
  %2665 = vmatpush.msra.mxu0 0.0
  %2666 = vmatpush.msra.mxu0 0.0
  %2667 = vmatpush.msra.mxu0 0.0
  %2668 = vmatpush.msra.mxu0 0.0
  %2669 = vmatpush.msra.mxu0 0.0
  %2670 = vmatpush.msra.mxu0 0.0
  %2671 = vmatpush.msra.mxu0 0.0
  %2672 = vmatpush.msra.mxu0 0.0
  %2673 = vmatpush.msra.mxu0 %v44
  %2674 = vmatmul.f32.gmra.mxu0 %v2532
  %v2675 = vpop.f32.mrf.mxu0
  %v2676 = vadd.f32 0.0, %v2675
  %2677 = vdwg.mxu0
  %v2678 = vadd.f32 %v2657, %v2676
  %s2679 = scalar_lea.vmem %s0, 240
  %v2680 = vld [vmem:[%s2679] sm:$0xff]
  %v2682 = vsel %vm112, %v2680, 0
  %2684 = vmatpush.msra.mxu0 0.0
  %2685 = vmatpush.msra.mxu0 0.0
  %2686 = vmatpush.msra.mxu0 0.0
  %2687 = vmatpush.msra.mxu0 0.0
  %2688 = vmatpush.msra.mxu0 0.0
  %2689 = vmatpush.msra.mxu0 0.0
  %2690 = vmatpush.msra.mxu0 0.0
  %2691 = vmatpush.msra.mxu0 0.0
  %2692 = vmatpush.msra.mxu0 0.0
  %2693 = vmatpush.msra.mxu0 0.0
  %2694 = vmatpush.msra.mxu0 0.0
  %2695 = vmatpush.msra.mxu0 0.0
  %2696 = vmatpush.msra.mxu0 0.0
  %2697 = vmatpush.msra.mxu0 0.0
  %2698 = vmatpush.msra.mxu0 0.0
  %2699 = vmatpush.msra.mxu0 %v46
  %2700 = vmatmul.f32.gmra.mxu0 %v2682
  %v2701 = vpop.f32.mrf.mxu0
  %v2702 = vadd.f32 0.0, %v2701
  %2703 = vdwg.mxu0
  %v2704 = vadd.f32 %v2678, %v2702
  %v2705 = vld [vmem:[%s2679 + $0x1] sm:$0xff]
  %v2707 = vsel %vm112, %v2705, 0
  %2709 = vmatpush.msra.mxu0 0.0
  %2710 = vmatpush.msra.mxu0 0.0
  %2711 = vmatpush.msra.mxu0 0.0
  %2712 = vmatpush.msra.mxu0 0.0
  %2713 = vmatpush.msra.mxu0 0.0
  %2714 = vmatpush.msra.mxu0 0.0
  %2715 = vmatpush.msra.mxu0 0.0
  %2716 = vmatpush.msra.mxu0 0.0
  %2717 = vmatpush.msra.mxu0 0.0
  %2718 = vmatpush.msra.mxu0 0.0
  %2719 = vmatpush.msra.mxu0 0.0
  %2720 = vmatpush.msra.mxu0 0.0
  %2721 = vmatpush.msra.mxu0 0.0
  %2722 = vmatpush.msra.mxu0 0.0
  %2723 = vmatpush.msra.mxu0 0.0
  %2724 = vmatpush.msra.mxu0 %v48
  %2725 = vmatmul.f32.gmra.mxu0 %v2707
  %v2726 = vpop.f32.mrf.mxu0
  %v2727 = vadd.f32 0.0, %v2726
  %2728 = vdwg.mxu0
  %v2729 = vadd.f32 %v2704, %v2727
  %v2730 = vld [vmem:[%s2679 + $0x2] sm:$0xff]
  %v2732 = vsel %vm112, %v2730, 0
  %2734 = vmatpush.msra.mxu0 0.0
  %2735 = vmatpush.msra.mxu0 0.0
  %2736 = vmatpush.msra.mxu0 0.0
  %2737 = vmatpush.msra.mxu0 0.0
  %2738 = vmatpush.msra.mxu0 0.0
  %2739 = vmatpush.msra.mxu0 0.0
  %2740 = vmatpush.msra.mxu0 0.0
  %2741 = vmatpush.msra.mxu0 0.0
  %2742 = vmatpush.msra.mxu0 0.0
  %2743 = vmatpush.msra.mxu0 0.0
  %2744 = vmatpush.msra.mxu0 0.0
  %2745 = vmatpush.msra.mxu0 0.0
  %2746 = vmatpush.msra.mxu0 0.0
  %2747 = vmatpush.msra.mxu0 0.0
  %2748 = vmatpush.msra.mxu0 0.0
  %2749 = vmatpush.msra.mxu0 %v50
  %2750 = vmatmul.f32.gmra.mxu0 %v2732
  %v2751 = vpop.f32.mrf.mxu0
  %v2752 = vadd.f32 0.0, %v2751
  %2753 = vdwg.mxu0
  %v2754 = vadd.f32 %v2729, %v2752
  %v2755 = vmax.f32 %v2554, %v2754
  %v2757 = vrot.slane %v2755, 1
  %v2759 = vmax.f32 %v2755, %v2757
  %v2760 = vadd.f32 %v2759, %v95
  %vm2761 = vcmp.ge.f32.partialorder %v2760, 0.0
  %v2762 = vmul.f32 %v2760, 0.01
  %v2763 = vsel %vm2761, %v2760, %v2762
  %s2764 = scalar_lea.vmem [#allocation2], 64
  %2765 = vst.msk [vmem:[%s2764 + $0x1] sm:$0x1] %vm546, %v2763
  %v2766 = vadd.f32 %v2759, %v549
  %vm2767 = vcmp.ge.f32.partialorder %v2766, 0.0
  %v2768 = vmul.f32 %v2766, 0.01
  %v2769 = vsel %vm2767, %v2766, %v2768
  %2770 = vst.msk [vmem:[%s2764] sm:$0x4] %vm555, %v2769
  %2771 = vst.msk [vmem:[%s2764 - $0x1] sm:$0x10] %vm557, %v2769
  %2772 = vst.msk [vmem:[%s2764 - $0x2] sm:$0x40] %vm559, %v2769
  %v2773 = vld [vmem:[%s2479] sm:$0xff]
  %v2774 = vld [vmem:[%s2479 + $0x1] sm:$0xff]
  %v2776 = vsel %vm112, %v2774, 0
  %2778 = vmatpush.msra.mxu0 0.0
  %2779 = vmatpush.msra.mxu0 0.0
  %2780 = vmatpush.msra.mxu0 0.0
  %2781 = vmatpush.msra.mxu0 0.0
  %2782 = vmatpush.msra.mxu0 0.0
  %2783 = vmatpush.msra.mxu0 0.0
  %2784 = vmatpush.msra.mxu0 0.0
  %2785 = vmatpush.msra.mxu0 0.0
  %2786 = vmatpush.msra.mxu0 0.0
  %2787 = vmatpush.msra.mxu0 0.0
  %2788 = vmatpush.msra.mxu0 0.0
  %2789 = vmatpush.msra.mxu0 0.0
  %2790 = vmatpush.msra.mxu0 0.0
  %2791 = vmatpush.msra.mxu0 0.0
  %2792 = vmatpush.msra.mxu0 0.0
  %2793 = vmatpush.msra.mxu0 %v36
  %2794 = vmatmul.f32.gmra.mxu0 %v2776
  %v2795 = vpop.f32.mrf.mxu0
  %v2796 = vadd.f32 0.0, %v2795
  %2797 = vdwg.mxu0
  %v2799 = vsel %vm112, %v2773, 0
  %2801 = vmatpush.msra.mxu0 0.0
  %2802 = vmatpush.msra.mxu0 0.0
  %2803 = vmatpush.msra.mxu0 0.0
  %2804 = vmatpush.msra.mxu0 0.0
  %2805 = vmatpush.msra.mxu0 0.0
  %2806 = vmatpush.msra.mxu0 0.0
  %2807 = vmatpush.msra.mxu0 0.0
  %2808 = vmatpush.msra.mxu0 0.0
  %2809 = vmatpush.msra.mxu0 0.0
  %2810 = vmatpush.msra.mxu0 0.0
  %2811 = vmatpush.msra.mxu0 0.0
  %2812 = vmatpush.msra.mxu0 0.0
  %2813 = vmatpush.msra.mxu0 0.0
  %2814 = vmatpush.msra.mxu0 0.0
  %2815 = vmatpush.msra.mxu0 0.0
  %2816 = vmatpush.msra.mxu0 %v34
  %2817 = vmatmul.f32.gmra.mxu0 %v2799
  %v2818 = vpop.f32.mrf.mxu0
  %v2819 = vadd.f32 %v2796, %v2818
  %2820 = vdwg.mxu0
  %v2821 = vld [vmem:[%s2479 + $0x2] sm:$0xff]
  %v2823 = vsel %vm112, %v2821, 0
  %2825 = vmatpush.msra.mxu0 0.0
  %2826 = vmatpush.msra.mxu0 0.0
  %2827 = vmatpush.msra.mxu0 0.0
  %2828 = vmatpush.msra.mxu0 0.0
  %2829 = vmatpush.msra.mxu0 0.0
  %2830 = vmatpush.msra.mxu0 0.0
  %2831 = vmatpush.msra.mxu0 0.0
  %2832 = vmatpush.msra.mxu0 0.0
  %2833 = vmatpush.msra.mxu0 0.0
  %2834 = vmatpush.msra.mxu0 0.0
  %2835 = vmatpush.msra.mxu0 0.0
  %2836 = vmatpush.msra.mxu0 0.0
  %2837 = vmatpush.msra.mxu0 0.0
  %2838 = vmatpush.msra.mxu0 0.0
  %2839 = vmatpush.msra.mxu0 0.0
  %2840 = vmatpush.msra.mxu0 %v38
  %2841 = vmatmul.f32.gmra.mxu0 %v2823
  %v2842 = vpop.f32.mrf.mxu0
  %v2843 = vadd.f32 0.0, %v2842
  %2844 = vdwg.mxu0
  %v2845 = vadd.f32 %v2819, %v2843
  %v2846 = vld [vmem:[%s2679] sm:$0xff]
  %v2848 = vsel %vm112, %v2846, 0
  %2850 = vmatpush.msra.mxu0 0.0
  %2851 = vmatpush.msra.mxu0 0.0
  %2852 = vmatpush.msra.mxu0 0.0
  %2853 = vmatpush.msra.mxu0 0.0
  %2854 = vmatpush.msra.mxu0 0.0
  %2855 = vmatpush.msra.mxu0 0.0
  %2856 = vmatpush.msra.mxu0 0.0
  %2857 = vmatpush.msra.mxu0 0.0
  %2858 = vmatpush.msra.mxu0 0.0
  %2859 = vmatpush.msra.mxu0 0.0
  %2860 = vmatpush.msra.mxu0 0.0
  %2861 = vmatpush.msra.mxu0 0.0
  %2862 = vmatpush.msra.mxu0 0.0
  %2863 = vmatpush.msra.mxu0 0.0
  %2864 = vmatpush.msra.mxu0 0.0
  %2865 = vmatpush.msra.mxu0 %v40
  %2866 = vmatmul.f32.gmra.mxu0 %v2848
  %v2867 = vpop.f32.mrf.mxu0
  %v2868 = vadd.f32 0.0, %v2867
  %2869 = vdwg.mxu0
  %v2870 = vadd.f32 %v2845, %v2868
  %v2871 = vld [vmem:[%s2679 + $0x1] sm:$0xff]
  %v2873 = vsel %vm112, %v2871, 0
  %2875 = vmatpush.msra.mxu0 0.0
  %2876 = vmatpush.msra.mxu0 0.0
  %2877 = vmatpush.msra.mxu0 0.0
  %2878 = vmatpush.msra.mxu0 0.0
  %2879 = vmatpush.msra.mxu0 0.0
  %2880 = vmatpush.msra.mxu0 0.0
  %2881 = vmatpush.msra.mxu0 0.0
  %2882 = vmatpush.msra.mxu0 0.0
  %2883 = vmatpush.msra.mxu0 0.0
  %2884 = vmatpush.msra.mxu0 0.0
  %2885 = vmatpush.msra.mxu0 0.0
  %2886 = vmatpush.msra.mxu0 0.0
  %2887 = vmatpush.msra.mxu0 0.0
  %2888 = vmatpush.msra.mxu0 0.0
  %2889 = vmatpush.msra.mxu0 0.0
  %2890 = vmatpush.msra.mxu0 %v42
  %2891 = vmatmul.f32.gmra.mxu0 %v2873
  %v2892 = vpop.f32.mrf.mxu0
  %v2893 = vadd.f32 0.0, %v2892
  %2894 = vdwg.mxu0
  %v2895 = vadd.f32 %v2870, %v2893
  %v2896 = vld [vmem:[%s2679 + $0x2] sm:$0xff]
  %v2898 = vsel %vm112, %v2896, 0
  %2900 = vmatpush.msra.mxu0 0.0
  %2901 = vmatpush.msra.mxu0 0.0
  %2902 = vmatpush.msra.mxu0 0.0
  %2903 = vmatpush.msra.mxu0 0.0
  %2904 = vmatpush.msra.mxu0 0.0
  %2905 = vmatpush.msra.mxu0 0.0
  %2906 = vmatpush.msra.mxu0 0.0
  %2907 = vmatpush.msra.mxu0 0.0
  %2908 = vmatpush.msra.mxu0 0.0
  %2909 = vmatpush.msra.mxu0 0.0
  %2910 = vmatpush.msra.mxu0 0.0
  %2911 = vmatpush.msra.mxu0 0.0
  %2912 = vmatpush.msra.mxu0 0.0
  %2913 = vmatpush.msra.mxu0 0.0
  %2914 = vmatpush.msra.mxu0 0.0
  %2915 = vmatpush.msra.mxu0 %v44
  %2916 = vmatmul.f32.gmra.mxu0 %v2898
  %v2917 = vpop.f32.mrf.mxu0
  %v2918 = vadd.f32 0.0, %v2917
  %2919 = vdwg.mxu0
  %v2920 = vadd.f32 %v2895, %v2918
  %s2921 = scalar_lea.vmem %s0, 256
  %v2922 = vld [vmem:[%s2921] sm:$0xff]
  %v2924 = vsel %vm112, %v2922, 0
  %2926 = vmatpush.msra.mxu0 0.0
  %2927 = vmatpush.msra.mxu0 0.0
  %2928 = vmatpush.msra.mxu0 0.0
  %2929 = vmatpush.msra.mxu0 0.0
  %2930 = vmatpush.msra.mxu0 0.0
  %2931 = vmatpush.msra.mxu0 0.0
  %2932 = vmatpush.msra.mxu0 0.0
  %2933 = vmatpush.msra.mxu0 0.0
  %2934 = vmatpush.msra.mxu0 0.0
  %2935 = vmatpush.msra.mxu0 0.0
  %2936 = vmatpush.msra.mxu0 0.0
  %2937 = vmatpush.msra.mxu0 0.0
  %2938 = vmatpush.msra.mxu0 0.0
  %2939 = vmatpush.msra.mxu0 0.0
  %2940 = vmatpush.msra.mxu0 0.0
  %2941 = vmatpush.msra.mxu0 %v46
  %2942 = vmatmul.f32.gmra.mxu0 %v2924
  %v2943 = vpop.f32.mrf.mxu0
  %v2944 = vadd.f32 0.0, %v2943
  %2945 = vdwg.mxu0
  %v2946 = vadd.f32 %v2920, %v2944
  %v2947 = vld [vmem:[%s2921 + $0x1] sm:$0xff]
  %v2949 = vsel %vm112, %v2947, 0
  %2951 = vmatpush.msra.mxu0 0.0
  %2952 = vmatpush.msra.mxu0 0.0
  %2953 = vmatpush.msra.mxu0 0.0
  %2954 = vmatpush.msra.mxu0 0.0
  %2955 = vmatpush.msra.mxu0 0.0
  %2956 = vmatpush.msra.mxu0 0.0
  %2957 = vmatpush.msra.mxu0 0.0
  %2958 = vmatpush.msra.mxu0 0.0
  %2959 = vmatpush.msra.mxu0 0.0
  %2960 = vmatpush.msra.mxu0 0.0
  %2961 = vmatpush.msra.mxu0 0.0
  %2962 = vmatpush.msra.mxu0 0.0
  %2963 = vmatpush.msra.mxu0 0.0
  %2964 = vmatpush.msra.mxu0 0.0
  %2965 = vmatpush.msra.mxu0 0.0
  %2966 = vmatpush.msra.mxu0 %v48
  %2967 = vmatmul.f32.gmra.mxu0 %v2949
  %v2968 = vpop.f32.mrf.mxu0
  %v2969 = vadd.f32 0.0, %v2968
  %2970 = vdwg.mxu0
  %v2971 = vadd.f32 %v2946, %v2969
  %v2972 = vld [vmem:[%s2921 + $0x2] sm:$0xff]
  %v2974 = vsel %vm112, %v2972, 0
  %2976 = vmatpush.msra.mxu0 0.0
  %2977 = vmatpush.msra.mxu0 0.0
  %2978 = vmatpush.msra.mxu0 0.0
  %2979 = vmatpush.msra.mxu0 0.0
  %2980 = vmatpush.msra.mxu0 0.0
  %2981 = vmatpush.msra.mxu0 0.0
  %2982 = vmatpush.msra.mxu0 0.0
  %2983 = vmatpush.msra.mxu0 0.0
  %2984 = vmatpush.msra.mxu0 0.0
  %2985 = vmatpush.msra.mxu0 0.0
  %2986 = vmatpush.msra.mxu0 0.0
  %2987 = vmatpush.msra.mxu0 0.0
  %2988 = vmatpush.msra.mxu0 0.0
  %2989 = vmatpush.msra.mxu0 0.0
  %2990 = vmatpush.msra.mxu0 0.0
  %2991 = vmatpush.msra.mxu0 %v50
  %2992 = vmatmul.f32.gmra.mxu0 %v2974
  %v2993 = vpop.f32.mrf.mxu0
  %v2994 = vadd.f32 0.0, %v2993
  %2995 = vdwg.mxu0
  %v2996 = vadd.f32 %v2971, %v2994
  %2997 = vmatpush.msra.mxu0 0.0
  %2998 = vmatpush.msra.mxu0 0.0
  %2999 = vmatpush.msra.mxu0 0.0
  %3000 = vmatpush.msra.mxu0 0.0
  %3001 = vmatpush.msra.mxu0 0.0
  %3002 = vmatpush.msra.mxu0 0.0
  %3003 = vmatpush.msra.mxu0 0.0
  %3004 = vmatpush.msra.mxu0 0.0
  %3005 = vmatpush.msra.mxu0 0.0
  %3006 = vmatpush.msra.mxu0 0.0
  %3007 = vmatpush.msra.mxu0 0.0
  %3008 = vmatpush.msra.mxu0 0.0
  %3009 = vmatpush.msra.mxu0 0.0
  %3010 = vmatpush.msra.mxu0 0.0
  %3011 = vmatpush.msra.mxu0 0.0
  %3012 = vmatpush.msra.mxu0 %v36
  %3013 = vmatmul.f32.gmra.mxu0 %v2873
  %v3014 = vpop.f32.mrf.mxu0
  %v3015 = vadd.f32 0.0, %v3014
  %3016 = vdwg.mxu0
  %3017 = vmatpush.msra.mxu0 0.0
  %3018 = vmatpush.msra.mxu0 0.0
  %3019 = vmatpush.msra.mxu0 0.0
  %3020 = vmatpush.msra.mxu0 0.0
  %3021 = vmatpush.msra.mxu0 0.0
  %3022 = vmatpush.msra.mxu0 0.0
  %3023 = vmatpush.msra.mxu0 0.0
  %3024 = vmatpush.msra.mxu0 0.0
  %3025 = vmatpush.msra.mxu0 0.0
  %3026 = vmatpush.msra.mxu0 0.0
  %3027 = vmatpush.msra.mxu0 0.0
  %3028 = vmatpush.msra.mxu0 0.0
  %3029 = vmatpush.msra.mxu0 0.0
  %3030 = vmatpush.msra.mxu0 0.0
  %3031 = vmatpush.msra.mxu0 0.0
  %3032 = vmatpush.msra.mxu0 %v34
  %3033 = vmatmul.f32.gmra.mxu0 %v2848
  %v3034 = vpop.f32.mrf.mxu0
  %v3035 = vadd.f32 %v3015, %v3034
  %3036 = vdwg.mxu0
  %3037 = vmatpush.msra.mxu0 0.0
  %3038 = vmatpush.msra.mxu0 0.0
  %3039 = vmatpush.msra.mxu0 0.0
  %3040 = vmatpush.msra.mxu0 0.0
  %3041 = vmatpush.msra.mxu0 0.0
  %3042 = vmatpush.msra.mxu0 0.0
  %3043 = vmatpush.msra.mxu0 0.0
  %3044 = vmatpush.msra.mxu0 0.0
  %3045 = vmatpush.msra.mxu0 0.0
  %3046 = vmatpush.msra.mxu0 0.0
  %3047 = vmatpush.msra.mxu0 0.0
  %3048 = vmatpush.msra.mxu0 0.0
  %3049 = vmatpush.msra.mxu0 0.0
  %3050 = vmatpush.msra.mxu0 0.0
  %3051 = vmatpush.msra.mxu0 0.0
  %3052 = vmatpush.msra.mxu0 %v38
  %3053 = vmatmul.f32.gmra.mxu0 %v2898
  %v3054 = vpop.f32.mrf.mxu0
  %v3055 = vadd.f32 0.0, %v3054
  %3056 = vdwg.mxu0
  %v3057 = vadd.f32 %v3035, %v3055
  %3058 = vmatpush.msra.mxu0 0.0
  %3059 = vmatpush.msra.mxu0 0.0
  %3060 = vmatpush.msra.mxu0 0.0
  %3061 = vmatpush.msra.mxu0 0.0
  %3062 = vmatpush.msra.mxu0 0.0
  %3063 = vmatpush.msra.mxu0 0.0
  %3064 = vmatpush.msra.mxu0 0.0
  %3065 = vmatpush.msra.mxu0 0.0
  %3066 = vmatpush.msra.mxu0 0.0
  %3067 = vmatpush.msra.mxu0 0.0
  %3068 = vmatpush.msra.mxu0 0.0
  %3069 = vmatpush.msra.mxu0 0.0
  %3070 = vmatpush.msra.mxu0 0.0
  %3071 = vmatpush.msra.mxu0 0.0
  %3072 = vmatpush.msra.mxu0 0.0
  %3073 = vmatpush.msra.mxu0 %v40
  %3074 = vmatmul.f32.gmra.mxu0 %v2924
  %v3075 = vpop.f32.mrf.mxu0
  %v3076 = vadd.f32 0.0, %v3075
  %3077 = vdwg.mxu0
  %v3078 = vadd.f32 %v3057, %v3076
  %3079 = vmatpush.msra.mxu0 0.0
  %3080 = vmatpush.msra.mxu0 0.0
  %3081 = vmatpush.msra.mxu0 0.0
  %3082 = vmatpush.msra.mxu0 0.0
  %3083 = vmatpush.msra.mxu0 0.0
  %3084 = vmatpush.msra.mxu0 0.0
  %3085 = vmatpush.msra.mxu0 0.0
  %3086 = vmatpush.msra.mxu0 0.0
  %3087 = vmatpush.msra.mxu0 0.0
  %3088 = vmatpush.msra.mxu0 0.0
  %3089 = vmatpush.msra.mxu0 0.0
  %3090 = vmatpush.msra.mxu0 0.0
  %3091 = vmatpush.msra.mxu0 0.0
  %3092 = vmatpush.msra.mxu0 0.0
  %3093 = vmatpush.msra.mxu0 0.0
  %3094 = vmatpush.msra.mxu0 %v42
  %3095 = vmatmul.f32.gmra.mxu0 %v2949
  %v3096 = vpop.f32.mrf.mxu0
  %v3097 = vadd.f32 0.0, %v3096
  %3098 = vdwg.mxu0
  %v3099 = vadd.f32 %v3078, %v3097
  %3100 = vmatpush.msra.mxu0 0.0
  %3101 = vmatpush.msra.mxu0 0.0
  %3102 = vmatpush.msra.mxu0 0.0
  %3103 = vmatpush.msra.mxu0 0.0
  %3104 = vmatpush.msra.mxu0 0.0
  %3105 = vmatpush.msra.mxu0 0.0
  %3106 = vmatpush.msra.mxu0 0.0
  %3107 = vmatpush.msra.mxu0 0.0
  %3108 = vmatpush.msra.mxu0 0.0
  %3109 = vmatpush.msra.mxu0 0.0
  %3110 = vmatpush.msra.mxu0 0.0
  %3111 = vmatpush.msra.mxu0 0.0
  %3112 = vmatpush.msra.mxu0 0.0
  %3113 = vmatpush.msra.mxu0 0.0
  %3114 = vmatpush.msra.mxu0 0.0
  %3115 = vmatpush.msra.mxu0 %v44
  %3116 = vmatmul.f32.gmra.mxu0 %v2974
  %v3117 = vpop.f32.mrf.mxu0
  %v3118 = vadd.f32 0.0, %v3117
  %3119 = vdwg.mxu0
  %v3120 = vadd.f32 %v3099, %v3118
  %s3121 = scalar_lea.vmem %s0, 272
  %v3122 = vld [vmem:[%s3121] sm:$0xff]
  %v3124 = vsel %vm112, %v3122, 0
  %3126 = vmatpush.msra.mxu0 0.0
  %3127 = vmatpush.msra.mxu0 0.0
  %3128 = vmatpush.msra.mxu0 0.0
  %3129 = vmatpush.msra.mxu0 0.0
  %3130 = vmatpush.msra.mxu0 0.0
  %3131 = vmatpush.msra.mxu0 0.0
  %3132 = vmatpush.msra.mxu0 0.0
  %3133 = vmatpush.msra.mxu0 0.0
  %3134 = vmatpush.msra.mxu0 0.0
  %3135 = vmatpush.msra.mxu0 0.0
  %3136 = vmatpush.msra.mxu0 0.0
  %3137 = vmatpush.msra.mxu0 0.0
  %3138 = vmatpush.msra.mxu0 0.0
  %3139 = vmatpush.msra.mxu0 0.0
  %3140 = vmatpush.msra.mxu0 0.0
  %3141 = vmatpush.msra.mxu0 %v46
  %3142 = vmatmul.f32.gmra.mxu0 %v3124
  %v3143 = vpop.f32.mrf.mxu0
  %v3144 = vadd.f32 0.0, %v3143
  %3145 = vdwg.mxu0
  %v3146 = vadd.f32 %v3120, %v3144
  %v3147 = vld [vmem:[%s3121 + $0x1] sm:$0xff]
  %v3149 = vsel %vm112, %v3147, 0
  %3151 = vmatpush.msra.mxu0 0.0
  %3152 = vmatpush.msra.mxu0 0.0
  %3153 = vmatpush.msra.mxu0 0.0
  %3154 = vmatpush.msra.mxu0 0.0
  %3155 = vmatpush.msra.mxu0 0.0
  %3156 = vmatpush.msra.mxu0 0.0
  %3157 = vmatpush.msra.mxu0 0.0
  %3158 = vmatpush.msra.mxu0 0.0
  %3159 = vmatpush.msra.mxu0 0.0
  %3160 = vmatpush.msra.mxu0 0.0
  %3161 = vmatpush.msra.mxu0 0.0
  %3162 = vmatpush.msra.mxu0 0.0
  %3163 = vmatpush.msra.mxu0 0.0
  %3164 = vmatpush.msra.mxu0 0.0
  %3165 = vmatpush.msra.mxu0 0.0
  %3166 = vmatpush.msra.mxu0 %v48
  %3167 = vmatmul.f32.gmra.mxu0 %v3149
  %v3168 = vpop.f32.mrf.mxu0
  %v3169 = vadd.f32 0.0, %v3168
  %3170 = vdwg.mxu0
  %v3171 = vadd.f32 %v3146, %v3169
  %v3172 = vld [vmem:[%s3121 + $0x2] sm:$0xff]
  %v3174 = vsel %vm112, %v3172, 0
  %3176 = vmatpush.msra.mxu0 0.0
  %3177 = vmatpush.msra.mxu0 0.0
  %3178 = vmatpush.msra.mxu0 0.0
  %3179 = vmatpush.msra.mxu0 0.0
  %3180 = vmatpush.msra.mxu0 0.0
  %3181 = vmatpush.msra.mxu0 0.0
  %3182 = vmatpush.msra.mxu0 0.0
  %3183 = vmatpush.msra.mxu0 0.0
  %3184 = vmatpush.msra.mxu0 0.0
  %3185 = vmatpush.msra.mxu0 0.0
  %3186 = vmatpush.msra.mxu0 0.0
  %3187 = vmatpush.msra.mxu0 0.0
  %3188 = vmatpush.msra.mxu0 0.0
  %3189 = vmatpush.msra.mxu0 0.0
  %3190 = vmatpush.msra.mxu0 0.0
  %3191 = vmatpush.msra.mxu0 %v50
  %3192 = vmatmul.f32.gmra.mxu0 %v3174
  %v3193 = vpop.f32.mrf.mxu0
  %v3194 = vadd.f32 0.0, %v3193
  %3195 = vdwg.mxu0
  %v3196 = vadd.f32 %v3171, %v3194
  %v3197 = vmax.f32 %v2996, %v3196
  %v3199 = vrot.slane %v3197, 1
  %v3201 = vmax.f32 %v3197, %v3199
  %v3202 = vadd.f32 %v3201, %v95
  %vm3203 = vcmp.ge.f32.partialorder %v3202, 0.0
  %v3204 = vmul.f32 %v3202, 0.01
  %v3205 = vsel %vm3203, %v3202, %v3204
  %s3206 = scalar_lea.vmem [#allocation2], 72
  %3207 = vst.msk [vmem:[%s3206 + $0x1] sm:$0x1] %vm546, %v3205
  %v3208 = vadd.f32 %v3201, %v549
  %vm3209 = vcmp.ge.f32.partialorder %v3208, 0.0
  %v3210 = vmul.f32 %v3208, 0.01
  %v3211 = vsel %vm3209, %v3208, %v3210
  %3212 = vst.msk [vmem:[%s3206] sm:$0x4] %vm555, %v3211
  %3213 = vst.msk [vmem:[%s3206 - $0x1] sm:$0x10] %vm557, %v3211
  %3214 = vst.msk [vmem:[%s3206 - $0x2] sm:$0x40] %vm559, %v3211
  %v3215 = vld [vmem:[%s2921] sm:$0xff]
  %v3216 = vld [vmem:[%s2921 + $0x1] sm:$0xff]
  %v3218 = vsel %vm112, %v3216, 0
  %3220 = vmatpush.msra.mxu0 0.0
  %3221 = vmatpush.msra.mxu0 0.0
  %3222 = vmatpush.msra.mxu0 0.0
  %3223 = vmatpush.msra.mxu0 0.0
  %3224 = vmatpush.msra.mxu0 0.0
  %3225 = vmatpush.msra.mxu0 0.0
  %3226 = vmatpush.msra.mxu0 0.0
  %3227 = vmatpush.msra.mxu0 0.0
  %3228 = vmatpush.msra.mxu0 0.0
  %3229 = vmatpush.msra.mxu0 0.0
  %3230 = vmatpush.msra.mxu0 0.0
  %3231 = vmatpush.msra.mxu0 0.0
  %3232 = vmatpush.msra.mxu0 0.0
  %3233 = vmatpush.msra.mxu0 0.0
  %3234 = vmatpush.msra.mxu0 0.0
  %3235 = vmatpush.msra.mxu0 %v36
  %3236 = vmatmul.f32.gmra.mxu0 %v3218
  %v3237 = vpop.f32.mrf.mxu0
  %v3238 = vadd.f32 0.0, %v3237
  %3239 = vdwg.mxu0
  %v3241 = vsel %vm112, %v3215, 0
  %3243 = vmatpush.msra.mxu0 0.0
  %3244 = vmatpush.msra.mxu0 0.0
  %3245 = vmatpush.msra.mxu0 0.0
  %3246 = vmatpush.msra.mxu0 0.0
  %3247 = vmatpush.msra.mxu0 0.0
  %3248 = vmatpush.msra.mxu0 0.0
  %3249 = vmatpush.msra.mxu0 0.0
  %3250 = vmatpush.msra.mxu0 0.0
  %3251 = vmatpush.msra.mxu0 0.0
  %3252 = vmatpush.msra.mxu0 0.0
  %3253 = vmatpush.msra.mxu0 0.0
  %3254 = vmatpush.msra.mxu0 0.0
  %3255 = vmatpush.msra.mxu0 0.0
  %3256 = vmatpush.msra.mxu0 0.0
  %3257 = vmatpush.msra.mxu0 0.0
  %3258 = vmatpush.msra.mxu0 %v34
  %3259 = vmatmul.f32.gmra.mxu0 %v3241
  %v3260 = vpop.f32.mrf.mxu0
  %v3261 = vadd.f32 %v3238, %v3260
  %3262 = vdwg.mxu0
  %v3263 = vld [vmem:[%s2921 + $0x2] sm:$0xff]
  %v3265 = vsel %vm112, %v3263, 0
  %3267 = vmatpush.msra.mxu0 0.0
  %3268 = vmatpush.msra.mxu0 0.0
  %3269 = vmatpush.msra.mxu0 0.0
  %3270 = vmatpush.msra.mxu0 0.0
  %3271 = vmatpush.msra.mxu0 0.0
  %3272 = vmatpush.msra.mxu0 0.0
  %3273 = vmatpush.msra.mxu0 0.0
  %3274 = vmatpush.msra.mxu0 0.0
  %3275 = vmatpush.msra.mxu0 0.0
  %3276 = vmatpush.msra.mxu0 0.0
  %3277 = vmatpush.msra.mxu0 0.0
  %3278 = vmatpush.msra.mxu0 0.0
  %3279 = vmatpush.msra.mxu0 0.0
  %3280 = vmatpush.msra.mxu0 0.0
  %3281 = vmatpush.msra.mxu0 0.0
  %3282 = vmatpush.msra.mxu0 %v38
  %3283 = vmatmul.f32.gmra.mxu0 %v3265
  %v3284 = vpop.f32.mrf.mxu0
  %v3285 = vadd.f32 0.0, %v3284
  %3286 = vdwg.mxu0
  %v3287 = vadd.f32 %v3261, %v3285
  %v3288 = vld [vmem:[%s3121] sm:$0xff]
  %v3290 = vsel %vm112, %v3288, 0
  %3292 = vmatpush.msra.mxu0 0.0
  %3293 = vmatpush.msra.mxu0 0.0
  %3294 = vmatpush.msra.mxu0 0.0
  %3295 = vmatpush.msra.mxu0 0.0
  %3296 = vmatpush.msra.mxu0 0.0
  %3297 = vmatpush.msra.mxu0 0.0
  %3298 = vmatpush.msra.mxu0 0.0
  %3299 = vmatpush.msra.mxu0 0.0
  %3300 = vmatpush.msra.mxu0 0.0
  %3301 = vmatpush.msra.mxu0 0.0
  %3302 = vmatpush.msra.mxu0 0.0
  %3303 = vmatpush.msra.mxu0 0.0
  %3304 = vmatpush.msra.mxu0 0.0
  %3305 = vmatpush.msra.mxu0 0.0
  %3306 = vmatpush.msra.mxu0 0.0
  %3307 = vmatpush.msra.mxu0 %v40
  %3308 = vmatmul.f32.gmra.mxu0 %v3290
  %v3309 = vpop.f32.mrf.mxu0
  %v3310 = vadd.f32 0.0, %v3309
  %3311 = vdwg.mxu0
  %v3312 = vadd.f32 %v3287, %v3310
  %v3313 = vld [vmem:[%s3121 + $0x1] sm:$0xff]
  %v3315 = vsel %vm112, %v3313, 0
  %3317 = vmatpush.msra.mxu0 0.0
  %3318 = vmatpush.msra.mxu0 0.0
  %3319 = vmatpush.msra.mxu0 0.0
  %3320 = vmatpush.msra.mxu0 0.0
  %3321 = vmatpush.msra.mxu0 0.0
  %3322 = vmatpush.msra.mxu0 0.0
  %3323 = vmatpush.msra.mxu0 0.0
  %3324 = vmatpush.msra.mxu0 0.0
  %3325 = vmatpush.msra.mxu0 0.0
  %3326 = vmatpush.msra.mxu0 0.0
  %3327 = vmatpush.msra.mxu0 0.0
  %3328 = vmatpush.msra.mxu0 0.0
  %3329 = vmatpush.msra.mxu0 0.0
  %3330 = vmatpush.msra.mxu0 0.0
  %3331 = vmatpush.msra.mxu0 0.0
  %3332 = vmatpush.msra.mxu0 %v42
  %3333 = vmatmul.f32.gmra.mxu0 %v3315
  %v3334 = vpop.f32.mrf.mxu0
  %v3335 = vadd.f32 0.0, %v3334
  %3336 = vdwg.mxu0
  %v3337 = vadd.f32 %v3312, %v3335
  %v3338 = vld [vmem:[%s3121 + $0x2] sm:$0xff]
  %v3340 = vsel %vm112, %v3338, 0
  %3342 = vmatpush.msra.mxu0 0.0
  %3343 = vmatpush.msra.mxu0 0.0
  %3344 = vmatpush.msra.mxu0 0.0
  %3345 = vmatpush.msra.mxu0 0.0
  %3346 = vmatpush.msra.mxu0 0.0
  %3347 = vmatpush.msra.mxu0 0.0
  %3348 = vmatpush.msra.mxu0 0.0
  %3349 = vmatpush.msra.mxu0 0.0
  %3350 = vmatpush.msra.mxu0 0.0
  %3351 = vmatpush.msra.mxu0 0.0
  %3352 = vmatpush.msra.mxu0 0.0
  %3353 = vmatpush.msra.mxu0 0.0
  %3354 = vmatpush.msra.mxu0 0.0
  %3355 = vmatpush.msra.mxu0 0.0
  %3356 = vmatpush.msra.mxu0 0.0
  %3357 = vmatpush.msra.mxu0 %v44
  %3358 = vmatmul.f32.gmra.mxu0 %v3340
  %v3359 = vpop.f32.mrf.mxu0
  %v3360 = vadd.f32 0.0, %v3359
  %3361 = vdwg.mxu0
  %v3362 = vadd.f32 %v3337, %v3360
  %s3363 = scalar_lea.vmem %s0, 288
  %v3364 = vld [vmem:[%s3363] sm:$0xff]
  %v3366 = vsel %vm112, %v3364, 0
  %3368 = vmatpush.msra.mxu0 0.0
  %3369 = vmatpush.msra.mxu0 0.0
  %3370 = vmatpush.msra.mxu0 0.0
  %3371 = vmatpush.msra.mxu0 0.0
  %3372 = vmatpush.msra.mxu0 0.0
  %3373 = vmatpush.msra.mxu0 0.0
  %3374 = vmatpush.msra.mxu0 0.0
  %3375 = vmatpush.msra.mxu0 0.0
  %3376 = vmatpush.msra.mxu0 0.0
  %3377 = vmatpush.msra.mxu0 0.0
  %3378 = vmatpush.msra.mxu0 0.0
  %3379 = vmatpush.msra.mxu0 0.0
  %3380 = vmatpush.msra.mxu0 0.0
  %3381 = vmatpush.msra.mxu0 0.0
  %3382 = vmatpush.msra.mxu0 0.0
  %3383 = vmatpush.msra.mxu0 %v46
  %3384 = vmatmul.f32.gmra.mxu0 %v3366
  %v3385 = vpop.f32.mrf.mxu0
  %v3386 = vadd.f32 0.0, %v3385
  %3387 = vdwg.mxu0
  %v3388 = vadd.f32 %v3362, %v3386
  %v3389 = vld [vmem:[%s3363 + $0x1] sm:$0xff]
  %v3391 = vsel %vm112, %v3389, 0
  %3393 = vmatpush.msra.mxu0 0.0
  %3394 = vmatpush.msra.mxu0 0.0
  %3395 = vmatpush.msra.mxu0 0.0
  %3396 = vmatpush.msra.mxu0 0.0
  %3397 = vmatpush.msra.mxu0 0.0
  %3398 = vmatpush.msra.mxu0 0.0
  %3399 = vmatpush.msra.mxu0 0.0
  %3400 = vmatpush.msra.mxu0 0.0
  %3401 = vmatpush.msra.mxu0 0.0
  %3402 = vmatpush.msra.mxu0 0.0
  %3403 = vmatpush.msra.mxu0 0.0
  %3404 = vmatpush.msra.mxu0 0.0
  %3405 = vmatpush.msra.mxu0 0.0
  %3406 = vmatpush.msra.mxu0 0.0
  %3407 = vmatpush.msra.mxu0 0.0
  %3408 = vmatpush.msra.mxu0 %v48
  %3409 = vmatmul.f32.gmra.mxu0 %v3391
  %v3410 = vpop.f32.mrf.mxu0
  %v3411 = vadd.f32 0.0, %v3410
  %3412 = vdwg.mxu0
  %v3413 = vadd.f32 %v3388, %v3411
  %v3414 = vld [vmem:[%s3363 + $0x2] sm:$0xff]
  %v3416 = vsel %vm112, %v3414, 0
  %3418 = vmatpush.msra.mxu0 0.0
  %3419 = vmatpush.msra.mxu0 0.0
  %3420 = vmatpush.msra.mxu0 0.0
  %3421 = vmatpush.msra.mxu0 0.0
  %3422 = vmatpush.msra.mxu0 0.0
  %3423 = vmatpush.msra.mxu0 0.0
  %3424 = vmatpush.msra.mxu0 0.0
  %3425 = vmatpush.msra.mxu0 0.0
  %3426 = vmatpush.msra.mxu0 0.0
  %3427 = vmatpush.msra.mxu0 0.0
  %3428 = vmatpush.msra.mxu0 0.0
  %3429 = vmatpush.msra.mxu0 0.0
  %3430 = vmatpush.msra.mxu0 0.0
  %3431 = vmatpush.msra.mxu0 0.0
  %3432 = vmatpush.msra.mxu0 0.0
  %3433 = vmatpush.msra.mxu0 %v50
  %3434 = vmatmul.f32.gmra.mxu0 %v3416
  %v3435 = vpop.f32.mrf.mxu0
  %v3436 = vadd.f32 0.0, %v3435
  %3437 = vdwg.mxu0
  %v3438 = vadd.f32 %v3413, %v3436
  %3439 = vmatpush.msra.mxu0 0.0
  %3440 = vmatpush.msra.mxu0 0.0
  %3441 = vmatpush.msra.mxu0 0.0
  %3442 = vmatpush.msra.mxu0 0.0
  %3443 = vmatpush.msra.mxu0 0.0
  %3444 = vmatpush.msra.mxu0 0.0
  %3445 = vmatpush.msra.mxu0 0.0
  %3446 = vmatpush.msra.mxu0 0.0
  %3447 = vmatpush.msra.mxu0 0.0
  %3448 = vmatpush.msra.mxu0 0.0
  %3449 = vmatpush.msra.mxu0 0.0
  %3450 = vmatpush.msra.mxu0 0.0
  %3451 = vmatpush.msra.mxu0 0.0
  %3452 = vmatpush.msra.mxu0 0.0
  %3453 = vmatpush.msra.mxu0 0.0
  %3454 = vmatpush.msra.mxu0 %v36
  %3455 = vmatmul.f32.gmra.mxu0 %v3315
  %v3456 = vpop.f32.mrf.mxu0
  %v3457 = vadd.f32 0.0, %v3456
  %3458 = vdwg.mxu0
  %3459 = vmatpush.msra.mxu0 0.0
  %3460 = vmatpush.msra.mxu0 0.0
  %3461 = vmatpush.msra.mxu0 0.0
  %3462 = vmatpush.msra.mxu0 0.0
  %3463 = vmatpush.msra.mxu0 0.0
  %3464 = vmatpush.msra.mxu0 0.0
  %3465 = vmatpush.msra.mxu0 0.0
  %3466 = vmatpush.msra.mxu0 0.0
  %3467 = vmatpush.msra.mxu0 0.0
  %3468 = vmatpush.msra.mxu0 0.0
  %3469 = vmatpush.msra.mxu0 0.0
  %3470 = vmatpush.msra.mxu0 0.0
  %3471 = vmatpush.msra.mxu0 0.0
  %3472 = vmatpush.msra.mxu0 0.0
  %3473 = vmatpush.msra.mxu0 0.0
  %3474 = vmatpush.msra.mxu0 %v34
  %3475 = vmatmul.f32.gmra.mxu0 %v3290
  %v3476 = vpop.f32.mrf.mxu0
  %v3477 = vadd.f32 %v3457, %v3476
  %3478 = vdwg.mxu0
  %3479 = vmatpush.msra.mxu0 0.0
  %3480 = vmatpush.msra.mxu0 0.0
  %3481 = vmatpush.msra.mxu0 0.0
  %3482 = vmatpush.msra.mxu0 0.0
  %3483 = vmatpush.msra.mxu0 0.0
  %3484 = vmatpush.msra.mxu0 0.0
  %3485 = vmatpush.msra.mxu0 0.0
  %3486 = vmatpush.msra.mxu0 0.0
  %3487 = vmatpush.msra.mxu0 0.0
  %3488 = vmatpush.msra.mxu0 0.0
  %3489 = vmatpush.msra.mxu0 0.0
  %3490 = vmatpush.msra.mxu0 0.0
  %3491 = vmatpush.msra.mxu0 0.0
  %3492 = vmatpush.msra.mxu0 0.0
  %3493 = vmatpush.msra.mxu0 0.0
  %3494 = vmatpush.msra.mxu0 %v38
  %3495 = vmatmul.f32.gmra.mxu0 %v3340
  %v3496 = vpop.f32.mrf.mxu0
  %v3497 = vadd.f32 0.0, %v3496
  %3498 = vdwg.mxu0
  %v3499 = vadd.f32 %v3477, %v3497
  %3500 = vmatpush.msra.mxu0 0.0
  %3501 = vmatpush.msra.mxu0 0.0
  %3502 = vmatpush.msra.mxu0 0.0
  %3503 = vmatpush.msra.mxu0 0.0
  %3504 = vmatpush.msra.mxu0 0.0
  %3505 = vmatpush.msra.mxu0 0.0
  %3506 = vmatpush.msra.mxu0 0.0
  %3507 = vmatpush.msra.mxu0 0.0
  %3508 = vmatpush.msra.mxu0 0.0
  %3509 = vmatpush.msra.mxu0 0.0
  %3510 = vmatpush.msra.mxu0 0.0
  %3511 = vmatpush.msra.mxu0 0.0
  %3512 = vmatpush.msra.mxu0 0.0
  %3513 = vmatpush.msra.mxu0 0.0
  %3514 = vmatpush.msra.mxu0 0.0
  %3515 = vmatpush.msra.mxu0 %v40
  %3516 = vmatmul.f32.gmra.mxu0 %v3366
  %v3517 = vpop.f32.mrf.mxu0
  %v3518 = vadd.f32 0.0, %v3517
  %3519 = vdwg.mxu0
  %v3520 = vadd.f32 %v3499, %v3518
  %3521 = vmatpush.msra.mxu0 0.0
  %3522 = vmatpush.msra.mxu0 0.0
  %3523 = vmatpush.msra.mxu0 0.0
  %3524 = vmatpush.msra.mxu0 0.0
  %3525 = vmatpush.msra.mxu0 0.0
  %3526 = vmatpush.msra.mxu0 0.0
  %3527 = vmatpush.msra.mxu0 0.0
  %3528 = vmatpush.msra.mxu0 0.0
  %3529 = vmatpush.msra.mxu0 0.0
  %3530 = vmatpush.msra.mxu0 0.0
  %3531 = vmatpush.msra.mxu0 0.0
  %3532 = vmatpush.msra.mxu0 0.0
  %3533 = vmatpush.msra.mxu0 0.0
  %3534 = vmatpush.msra.mxu0 0.0
  %3535 = vmatpush.msra.mxu0 0.0
  %3536 = vmatpush.msra.mxu0 %v42
  %3537 = vmatmul.f32.gmra.mxu0 %v3391
  %v3538 = vpop.f32.mrf.mxu0
  %v3539 = vadd.f32 0.0, %v3538
  %3540 = vdwg.mxu0
  %v3541 = vadd.f32 %v3520, %v3539
  %3542 = vmatpush.msra.mxu0 0.0
  %3543 = vmatpush.msra.mxu0 0.0
  %3544 = vmatpush.msra.mxu0 0.0
  %3545 = vmatpush.msra.mxu0 0.0
  %3546 = vmatpush.msra.mxu0 0.0
  %3547 = vmatpush.msra.mxu0 0.0
  %3548 = vmatpush.msra.mxu0 0.0
  %3549 = vmatpush.msra.mxu0 0.0
  %3550 = vmatpush.msra.mxu0 0.0
  %3551 = vmatpush.msra.mxu0 0.0
  %3552 = vmatpush.msra.mxu0 0.0
  %3553 = vmatpush.msra.mxu0 0.0
  %3554 = vmatpush.msra.mxu0 0.0
  %3555 = vmatpush.msra.mxu0 0.0
  %3556 = vmatpush.msra.mxu0 0.0
  %3557 = vmatpush.msra.mxu0 %v44
  %3558 = vmatmul.f32.gmra.mxu0 %v3416
  %v3559 = vpop.f32.mrf.mxu0
  %v3560 = vadd.f32 0.0, %v3559
  %3561 = vdwg.mxu0
  %v3562 = vadd.f32 %v3541, %v3560
  %s3563 = scalar_lea.vmem %s0, 304
  %v3564 = vld [vmem:[%s3563] sm:$0xff]
  %v3566 = vsel %vm112, %v3564, 0
  %3568 = vmatpush.msra.mxu0 0.0
  %3569 = vmatpush.msra.mxu0 0.0
  %3570 = vmatpush.msra.mxu0 0.0
  %3571 = vmatpush.msra.mxu0 0.0
  %3572 = vmatpush.msra.mxu0 0.0
  %3573 = vmatpush.msra.mxu0 0.0
  %3574 = vmatpush.msra.mxu0 0.0
  %3575 = vmatpush.msra.mxu0 0.0
  %3576 = vmatpush.msra.mxu0 0.0
  %3577 = vmatpush.msra.mxu0 0.0
  %3578 = vmatpush.msra.mxu0 0.0
  %3579 = vmatpush.msra.mxu0 0.0
  %3580 = vmatpush.msra.mxu0 0.0
  %3581 = vmatpush.msra.mxu0 0.0
  %3582 = vmatpush.msra.mxu0 0.0
  %3583 = vmatpush.msra.mxu0 %v46
  %3584 = vmatmul.f32.gmra.mxu0 %v3566
  %v3585 = vpop.f32.mrf.mxu0
  %v3586 = vadd.f32 0.0, %v3585
  %3587 = vdwg.mxu0
  %v3588 = vadd.f32 %v3562, %v3586
  %v3589 = vld [vmem:[%s3563 + $0x1] sm:$0xff]
  %v3591 = vsel %vm112, %v3589, 0
  %3593 = vmatpush.msra.mxu0 0.0
  %3594 = vmatpush.msra.mxu0 0.0
  %3595 = vmatpush.msra.mxu0 0.0
  %3596 = vmatpush.msra.mxu0 0.0
  %3597 = vmatpush.msra.mxu0 0.0
  %3598 = vmatpush.msra.mxu0 0.0
  %3599 = vmatpush.msra.mxu0 0.0
  %3600 = vmatpush.msra.mxu0 0.0
  %3601 = vmatpush.msra.mxu0 0.0
  %3602 = vmatpush.msra.mxu0 0.0
  %3603 = vmatpush.msra.mxu0 0.0
  %3604 = vmatpush.msra.mxu0 0.0
  %3605 = vmatpush.msra.mxu0 0.0
  %3606 = vmatpush.msra.mxu0 0.0
  %3607 = vmatpush.msra.mxu0 0.0
  %3608 = vmatpush.msra.mxu0 %v48
  %3609 = vmatmul.f32.gmra.mxu0 %v3591
  %v3610 = vpop.f32.mrf.mxu0
  %v3611 = vadd.f32 0.0, %v3610
  %3612 = vdwg.mxu0
  %v3613 = vadd.f32 %v3588, %v3611
  %v3614 = vld [vmem:[%s3563 + $0x2] sm:$0xff]
  %v3616 = vsel %vm112, %v3614, 0
  %3618 = vmatpush.msra.mxu0 0.0
  %3619 = vmatpush.msra.mxu0 0.0
  %3620 = vmatpush.msra.mxu0 0.0
  %3621 = vmatpush.msra.mxu0 0.0
  %3622 = vmatpush.msra.mxu0 0.0
  %3623 = vmatpush.msra.mxu0 0.0
  %3624 = vmatpush.msra.mxu0 0.0
  %3625 = vmatpush.msra.mxu0 0.0
  %3626 = vmatpush.msra.mxu0 0.0
  %3627 = vmatpush.msra.mxu0 0.0
  %3628 = vmatpush.msra.mxu0 0.0
  %3629 = vmatpush.msra.mxu0 0.0
  %3630 = vmatpush.msra.mxu0 0.0
  %3631 = vmatpush.msra.mxu0 0.0
  %3632 = vmatpush.msra.mxu0 0.0
  %3633 = vmatpush.msra.mxu0 %v50
  %3634 = vmatmul.f32.gmra.mxu0 %v3616
  %v3635 = vpop.f32.mrf.mxu0
  %v3636 = vadd.f32 0.0, %v3635
  %3637 = vdwg.mxu0
  %v3638 = vadd.f32 %v3613, %v3636
  %v3639 = vmax.f32 %v3438, %v3638
  %v3641 = vrot.slane %v3639, 1
  %v3643 = vmax.f32 %v3639, %v3641
  %v3644 = vadd.f32 %v3643, %v95
  %vm3645 = vcmp.ge.f32.partialorder %v3644, 0.0
  %v3646 = vmul.f32 %v3644, 0.01
  %v3647 = vsel %vm3645, %v3644, %v3646
  %s3648 = scalar_lea.vmem [#allocation2], 80
  %3649 = vst.msk [vmem:[%s3648 + $0x1] sm:$0x1] %vm546, %v3647
  %v3650 = vadd.f32 %v3643, %v549
  %vm3651 = vcmp.ge.f32.partialorder %v3650, 0.0
  %v3652 = vmul.f32 %v3650, 0.01
  %v3653 = vsel %vm3651, %v3650, %v3652
  %3654 = vst.msk [vmem:[%s3648] sm:$0x4] %vm555, %v3653
  %3655 = vst.msk [vmem:[%s3648 - $0x1] sm:$0x10] %vm557, %v3653
  %3656 = vst.msk [vmem:[%s3648 - $0x2] sm:$0x40] %vm559, %v3653
  %v3657 = vld [vmem:[#allocation2] sm:$0xf]
  %v3658 = vld [vmem:[#allocation2 + $0x1] sm:$0xf]
  %vm3659 = vcmask 261120
  %v3661 = vsel %vm3659, %v3658, 0
  %3663 = vmatpush.msra.mxu0 0.0
  %3664 = vmatpush.msra.mxu0 0.0
  %3665 = vmatpush.msra.mxu0 0.0
  %3666 = vmatpush.msra.mxu0 0.0
  %3667 = vmatpush.msra.mxu0 0.0
  %3668 = vmatpush.msra.mxu0 0.0
  %3669 = vmatpush.msra.mxu0 0.0
  %3670 = vmatpush.msra.mxu0 0.0
  %3671 = vmatpush.msra.mxu0 0.0
  %3672 = vmatpush.msra.mxu0 0.0
  %3673 = vmatpush.msra.mxu0 0.0
  %3674 = vmatpush.msra.mxu0 0.0
  %3675 = vmatpush.msra.mxu0 %v59
  %3676 = vmatpush.msra.mxu0 %v58
  %3677 = vmatpush.msra.mxu0 %v57
  %3678 = vmatpush.msra.mxu0 %v56
  %3679 = vmatmul.f32.gmra.mxu0 %v3661
  %v3680 = vpop.f32.mrf.mxu0
  %v3681 = vadd.f32 0.0, %v3680
  %3682 = vdwg.mxu0
  %v3684 = vsel %vm3659, %v3657, 0
  %3686 = vmatpush.msra.mxu0 0.0
  %3687 = vmatpush.msra.mxu0 0.0
  %3688 = vmatpush.msra.mxu0 0.0
  %3689 = vmatpush.msra.mxu0 0.0
  %3690 = vmatpush.msra.mxu0 0.0
  %3691 = vmatpush.msra.mxu0 0.0
  %3692 = vmatpush.msra.mxu0 0.0
  %3693 = vmatpush.msra.mxu0 0.0
  %3694 = vmatpush.msra.mxu0 0.0
  %3695 = vmatpush.msra.mxu0 0.0
  %3696 = vmatpush.msra.mxu0 0.0
  %3697 = vmatpush.msra.mxu0 0.0
  %3698 = vmatpush.msra.mxu0 %v54
  %3699 = vmatpush.msra.mxu0 %v53
  %3700 = vmatpush.msra.mxu0 %v52
  %3701 = vmatpush.msra.mxu0 %v51
  %3702 = vmatmul.f32.gmra.mxu0 %v3684
  %v3703 = vpop.f32.mrf.mxu0
  %v3704 = vadd.f32 %v3681, %v3703
  %3705 = vdwg.mxu0
  %v3706 = vld [vmem:[#allocation2 + $0x2] sm:$0xf]
  %v3708 = vsel %vm3659, %v3706, 0
  %3710 = vmatpush.msra.mxu0 0.0
  %3711 = vmatpush.msra.mxu0 0.0
  %3712 = vmatpush.msra.mxu0 0.0
  %3713 = vmatpush.msra.mxu0 0.0
  %3714 = vmatpush.msra.mxu0 0.0
  %3715 = vmatpush.msra.mxu0 0.0
  %3716 = vmatpush.msra.mxu0 0.0
  %3717 = vmatpush.msra.mxu0 0.0
  %3718 = vmatpush.msra.mxu0 0.0
  %3719 = vmatpush.msra.mxu0 0.0
  %3720 = vmatpush.msra.mxu0 0.0
  %3721 = vmatpush.msra.mxu0 0.0
  %3722 = vmatpush.msra.mxu0 %v64
  %3723 = vmatpush.msra.mxu0 %v63
  %3724 = vmatpush.msra.mxu0 %v62
  %3725 = vmatpush.msra.mxu0 %v61
  %3726 = vmatmul.f32.gmra.mxu0 %v3708
  %v3727 = vpop.f32.mrf.mxu0
  %v3728 = vadd.f32 0.0, %v3727
  %3729 = vdwg.mxu0
  %v3730 = vadd.f32 %v3704, %v3728
  %v3731 = vld [vmem:[%s545] sm:$0xf]
  %v3733 = vsel %vm3659, %v3731, 0
  %3735 = vmatpush.msra.mxu0 0.0
  %3736 = vmatpush.msra.mxu0 0.0
  %3737 = vmatpush.msra.mxu0 0.0
  %3738 = vmatpush.msra.mxu0 0.0
  %3739 = vmatpush.msra.mxu0 0.0
  %3740 = vmatpush.msra.mxu0 0.0
  %3741 = vmatpush.msra.mxu0 0.0
  %3742 = vmatpush.msra.mxu0 0.0
  %3743 = vmatpush.msra.mxu0 0.0
  %3744 = vmatpush.msra.mxu0 0.0
  %3745 = vmatpush.msra.mxu0 0.0
  %3746 = vmatpush.msra.mxu0 0.0
  %3747 = vmatpush.msra.mxu0 %v69
  %3748 = vmatpush.msra.mxu0 %v68
  %3749 = vmatpush.msra.mxu0 %v67
  %3750 = vmatpush.msra.mxu0 %v66
  %3751 = vmatmul.f32.gmra.mxu0 %v3733
  %v3752 = vpop.f32.mrf.mxu0
  %v3753 = vadd.f32 0.0, %v3752
  %3754 = vdwg.mxu0
  %v3755 = vadd.f32 %v3730, %v3753
  %v3756 = vld [vmem:[%s545 + $0x1] sm:$0xf]
  %v3758 = vsel %vm3659, %v3756, 0
  %3760 = vmatpush.msra.mxu0 0.0
  %3761 = vmatpush.msra.mxu0 0.0
  %3762 = vmatpush.msra.mxu0 0.0
  %3763 = vmatpush.msra.mxu0 0.0
  %3764 = vmatpush.msra.mxu0 0.0
  %3765 = vmatpush.msra.mxu0 0.0
  %3766 = vmatpush.msra.mxu0 0.0
  %3767 = vmatpush.msra.mxu0 0.0
  %3768 = vmatpush.msra.mxu0 0.0
  %3769 = vmatpush.msra.mxu0 0.0
  %3770 = vmatpush.msra.mxu0 0.0
  %3771 = vmatpush.msra.mxu0 0.0
  %3772 = vmatpush.msra.mxu0 %v74
  %3773 = vmatpush.msra.mxu0 %v73
  %3774 = vmatpush.msra.mxu0 %v72
  %3775 = vmatpush.msra.mxu0 %v71
  %3776 = vmatmul.f32.gmra.mxu0 %v3758
  %v3777 = vpop.f32.mrf.mxu0
  %v3778 = vadd.f32 0.0, %v3777
  %3779 = vdwg.mxu0
  %v3780 = vadd.f32 %v3755, %v3778
  %v3781 = vld [vmem:[%s545 + $0x2] sm:$0xf]
  %v3783 = vsel %vm3659, %v3781, 0
  %3785 = vmatpush.msra.mxu0 0.0
  %3786 = vmatpush.msra.mxu0 0.0
  %3787 = vmatpush.msra.mxu0 0.0
  %3788 = vmatpush.msra.mxu0 0.0
  %3789 = vmatpush.msra.mxu0 0.0
  %3790 = vmatpush.msra.mxu0 0.0
  %3791 = vmatpush.msra.mxu0 0.0
  %3792 = vmatpush.msra.mxu0 0.0
  %3793 = vmatpush.msra.mxu0 0.0
  %3794 = vmatpush.msra.mxu0 0.0
  %3795 = vmatpush.msra.mxu0 0.0
  %3796 = vmatpush.msra.mxu0 0.0
  %3797 = vmatpush.msra.mxu0 %v79
  %3798 = vmatpush.msra.mxu0 %v78
  %3799 = vmatpush.msra.mxu0 %v77
  %3800 = vmatpush.msra.mxu0 %v76
  %3801 = vmatmul.f32.gmra.mxu0 %v3783
  %v3802 = vpop.f32.mrf.mxu0
  %v3803 = vadd.f32 0.0, %v3802
  %3804 = vdwg.mxu0
  %v3805 = vadd.f32 %v3780, %v3803
  %v3806 = vld [vmem:[%s994] sm:$0xf]
  %v3808 = vsel %vm3659, %v3806, 0
  %3810 = vmatpush.msra.mxu0 0.0
  %3811 = vmatpush.msra.mxu0 0.0
  %3812 = vmatpush.msra.mxu0 0.0
  %3813 = vmatpush.msra.mxu0 0.0
  %3814 = vmatpush.msra.mxu0 0.0
  %3815 = vmatpush.msra.mxu0 0.0
  %3816 = vmatpush.msra.mxu0 0.0
  %3817 = vmatpush.msra.mxu0 0.0
  %3818 = vmatpush.msra.mxu0 0.0
  %3819 = vmatpush.msra.mxu0 0.0
  %3820 = vmatpush.msra.mxu0 0.0
  %3821 = vmatpush.msra.mxu0 0.0
  %3822 = vmatpush.msra.mxu0 %v84
  %3823 = vmatpush.msra.mxu0 %v83
  %3824 = vmatpush.msra.mxu0 %v82
  %3825 = vmatpush.msra.mxu0 %v81
  %3826 = vmatmul.f32.gmra.mxu0 %v3808
  %v3827 = vpop.f32.mrf.mxu0
  %v3828 = vadd.f32 0.0, %v3827
  %3829 = vdwg.mxu0
  %v3830 = vadd.f32 %v3805, %v3828
  %v3831 = vld [vmem:[%s994 + $0x1] sm:$0xf]
  %v3833 = vsel %vm3659, %v3831, 0
  %3835 = vmatpush.msra.mxu0 0.0
  %3836 = vmatpush.msra.mxu0 0.0
  %3837 = vmatpush.msra.mxu0 0.0
  %3838 = vmatpush.msra.mxu0 0.0
  %3839 = vmatpush.msra.mxu0 0.0
  %3840 = vmatpush.msra.mxu0 0.0
  %3841 = vmatpush.msra.mxu0 0.0
  %3842 = vmatpush.msra.mxu0 0.0
  %3843 = vmatpush.msra.mxu0 0.0
  %3844 = vmatpush.msra.mxu0 0.0
  %3845 = vmatpush.msra.mxu0 0.0
  %3846 = vmatpush.msra.mxu0 0.0
  %3847 = vmatpush.msra.mxu0 %v89
  %3848 = vmatpush.msra.mxu0 %v88
  %3849 = vmatpush.msra.mxu0 %v87
  %3850 = vmatpush.msra.mxu0 %v86
  %3851 = vmatmul.f32.gmra.mxu0 %v3833
  %v3852 = vpop.f32.mrf.mxu0
  %v3853 = vadd.f32 0.0, %v3852
  %3854 = vdwg.mxu0
  %v3855 = vadd.f32 %v3830, %v3853
  %v3856 = vld [vmem:[%s994 + $0x2] sm:$0xf]
  %v3858 = vsel %vm3659, %v3856, 0
  %3860 = vmatpush.msra.mxu0 0.0
  %3861 = vmatpush.msra.mxu0 0.0
  %3862 = vmatpush.msra.mxu0 0.0
  %3863 = vmatpush.msra.mxu0 0.0
  %3864 = vmatpush.msra.mxu0 0.0
  %3865 = vmatpush.msra.mxu0 0.0
  %3866 = vmatpush.msra.mxu0 0.0
  %3867 = vmatpush.msra.mxu0 0.0
  %3868 = vmatpush.msra.mxu0 0.0
  %3869 = vmatpush.msra.mxu0 0.0
  %3870 = vmatpush.msra.mxu0 0.0
  %3871 = vmatpush.msra.mxu0 0.0
  %3872 = vmatpush.msra.mxu0 %v94
  %3873 = vmatpush.msra.mxu0 %v93
  %3874 = vmatpush.msra.mxu0 %v92
  %3875 = vmatpush.msra.mxu0 %v91
  %3876 = vmatmul.f32.gmra.mxu0 %v3858
  %v3877 = vpop.f32.mrf.mxu0
  %v3878 = vadd.f32 0.0, %v3877
  %3879 = vdwg.mxu0
  %v3880 = vadd.f32 %v3855, %v3878
  %3881 = vmatpush.msra.mxu0 0.0
  %3882 = vmatpush.msra.mxu0 0.0
  %3883 = vmatpush.msra.mxu0 0.0
  %3884 = vmatpush.msra.mxu0 0.0
  %3885 = vmatpush.msra.mxu0 0.0
  %3886 = vmatpush.msra.mxu0 0.0
  %3887 = vmatpush.msra.mxu0 0.0
  %3888 = vmatpush.msra.mxu0 0.0
  %3889 = vmatpush.msra.mxu0 0.0
  %3890 = vmatpush.msra.mxu0 0.0
  %3891 = vmatpush.msra.mxu0 0.0
  %3892 = vmatpush.msra.mxu0 0.0
  %3893 = vmatpush.msra.mxu0 %v59
  %3894 = vmatpush.msra.mxu0 %v58
  %3895 = vmatpush.msra.mxu0 %v57
  %3896 = vmatpush.msra.mxu0 %v56
  %3897 = vmatmul.f32.gmra.mxu0 %v3758
  %v3898 = vpop.f32.mrf.mxu0
  %v3899 = vadd.f32 0.0, %v3898
  %3900 = vdwg.mxu0
  %3901 = vmatpush.msra.mxu0 0.0
  %3902 = vmatpush.msra.mxu0 0.0
  %3903 = vmatpush.msra.mxu0 0.0
  %3904 = vmatpush.msra.mxu0 0.0
  %3905 = vmatpush.msra.mxu0 0.0
  %3906 = vmatpush.msra.mxu0 0.0
  %3907 = vmatpush.msra.mxu0 0.0
  %3908 = vmatpush.msra.mxu0 0.0
  %3909 = vmatpush.msra.mxu0 0.0
  %3910 = vmatpush.msra.mxu0 0.0
  %3911 = vmatpush.msra.mxu0 0.0
  %3912 = vmatpush.msra.mxu0 0.0
  %3913 = vmatpush.msra.mxu0 %v54
  %3914 = vmatpush.msra.mxu0 %v53
  %3915 = vmatpush.msra.mxu0 %v52
  %3916 = vmatpush.msra.mxu0 %v51
  %3917 = vmatmul.f32.gmra.mxu0 %v3733
  %v3918 = vpop.f32.mrf.mxu0
  %v3919 = vadd.f32 %v3899, %v3918
  %3920 = vdwg.mxu0
  %3921 = vmatpush.msra.mxu0 0.0
  %3922 = vmatpush.msra.mxu0 0.0
  %3923 = vmatpush.msra.mxu0 0.0
  %3924 = vmatpush.msra.mxu0 0.0
  %3925 = vmatpush.msra.mxu0 0.0
  %3926 = vmatpush.msra.mxu0 0.0
  %3927 = vmatpush.msra.mxu0 0.0
  %3928 = vmatpush.msra.mxu0 0.0
  %3929 = vmatpush.msra.mxu0 0.0
  %3930 = vmatpush.msra.mxu0 0.0
  %3931 = vmatpush.msra.mxu0 0.0
  %3932 = vmatpush.msra.mxu0 0.0
  %3933 = vmatpush.msra.mxu0 %v64
  %3934 = vmatpush.msra.mxu0 %v63
  %3935 = vmatpush.msra.mxu0 %v62
  %3936 = vmatpush.msra.mxu0 %v61
  %3937 = vmatmul.f32.gmra.mxu0 %v3783
  %v3938 = vpop.f32.mrf.mxu0
  %v3939 = vadd.f32 0.0, %v3938
  %3940 = vdwg.mxu0
  %v3941 = vadd.f32 %v3919, %v3939
  %3942 = vmatpush.msra.mxu0 0.0
  %3943 = vmatpush.msra.mxu0 0.0
  %3944 = vmatpush.msra.mxu0 0.0
  %3945 = vmatpush.msra.mxu0 0.0
  %3946 = vmatpush.msra.mxu0 0.0
  %3947 = vmatpush.msra.mxu0 0.0
  %3948 = vmatpush.msra.mxu0 0.0
  %3949 = vmatpush.msra.mxu0 0.0
  %3950 = vmatpush.msra.mxu0 0.0
  %3951 = vmatpush.msra.mxu0 0.0
  %3952 = vmatpush.msra.mxu0 0.0
  %3953 = vmatpush.msra.mxu0 0.0
  %3954 = vmatpush.msra.mxu0 %v69
  %3955 = vmatpush.msra.mxu0 %v68
  %3956 = vmatpush.msra.mxu0 %v67
  %3957 = vmatpush.msra.mxu0 %v66
  %3958 = vmatmul.f32.gmra.mxu0 %v3808
  %v3959 = vpop.f32.mrf.mxu0
  %v3960 = vadd.f32 0.0, %v3959
  %3961 = vdwg.mxu0
  %v3962 = vadd.f32 %v3941, %v3960
  %3963 = vmatpush.msra.mxu0 0.0
  %3964 = vmatpush.msra.mxu0 0.0
  %3965 = vmatpush.msra.mxu0 0.0
  %3966 = vmatpush.msra.mxu0 0.0
  %3967 = vmatpush.msra.mxu0 0.0
  %3968 = vmatpush.msra.mxu0 0.0
  %3969 = vmatpush.msra.mxu0 0.0
  %3970 = vmatpush.msra.mxu0 0.0
  %3971 = vmatpush.msra.mxu0 0.0
  %3972 = vmatpush.msra.mxu0 0.0
  %3973 = vmatpush.msra.mxu0 0.0
  %3974 = vmatpush.msra.mxu0 0.0
  %3975 = vmatpush.msra.mxu0 %v74
  %3976 = vmatpush.msra.mxu0 %v73
  %3977 = vmatpush.msra.mxu0 %v72
  %3978 = vmatpush.msra.mxu0 %v71
  %3979 = vmatmul.f32.gmra.mxu0 %v3833
  %v3980 = vpop.f32.mrf.mxu0
  %v3981 = vadd.f32 0.0, %v3980
  %3982 = vdwg.mxu0
  %v3983 = vadd.f32 %v3962, %v3981
  %3984 = vmatpush.msra.mxu0 0.0
  %3985 = vmatpush.msra.mxu0 0.0
  %3986 = vmatpush.msra.mxu0 0.0
  %3987 = vmatpush.msra.mxu0 0.0
  %3988 = vmatpush.msra.mxu0 0.0
  %3989 = vmatpush.msra.mxu0 0.0
  %3990 = vmatpush.msra.mxu0 0.0
  %3991 = vmatpush.msra.mxu0 0.0
  %3992 = vmatpush.msra.mxu0 0.0
  %3993 = vmatpush.msra.mxu0 0.0
  %3994 = vmatpush.msra.mxu0 0.0
  %3995 = vmatpush.msra.mxu0 0.0
  %3996 = vmatpush.msra.mxu0 %v79
  %3997 = vmatpush.msra.mxu0 %v78
  %3998 = vmatpush.msra.mxu0 %v77
  %3999 = vmatpush.msra.mxu0 %v76
  %4000 = vmatmul.f32.gmra.mxu0 %v3858
  %v4001 = vpop.f32.mrf.mxu0
  %v4002 = vadd.f32 0.0, %v4001
  %4003 = vdwg.mxu0
  %v4004 = vadd.f32 %v3983, %v4002
  %v4005 = vld [vmem:[%s1436] sm:$0xf]
  %v4007 = vsel %vm3659, %v4005, 0
  %4009 = vmatpush.msra.mxu0 0.0
  %4010 = vmatpush.msra.mxu0 0.0
  %4011 = vmatpush.msra.mxu0 0.0
  %4012 = vmatpush.msra.mxu0 0.0
  %4013 = vmatpush.msra.mxu0 0.0
  %4014 = vmatpush.msra.mxu0 0.0
  %4015 = vmatpush.msra.mxu0 0.0
  %4016 = vmatpush.msra.mxu0 0.0
  %4017 = vmatpush.msra.mxu0 0.0
  %4018 = vmatpush.msra.mxu0 0.0
  %4019 = vmatpush.msra.mxu0 0.0
  %4020 = vmatpush.msra.mxu0 0.0
  %4021 = vmatpush.msra.mxu0 %v84
  %4022 = vmatpush.msra.mxu0 %v83
  %4023 = vmatpush.msra.mxu0 %v82
  %4024 = vmatpush.msra.mxu0 %v81
  %4025 = vmatmul.f32.gmra.mxu0 %v4007
  %v4026 = vpop.f32.mrf.mxu0
  %v4027 = vadd.f32 0.0, %v4026
  %4028 = vdwg.mxu0
  %v4029 = vadd.f32 %v4004, %v4027
  %v4030 = vld [vmem:[%s1436 + $0x1] sm:$0xf]
  %v4032 = vsel %vm3659, %v4030, 0
  %4034 = vmatpush.msra.mxu0 0.0
  %4035 = vmatpush.msra.mxu0 0.0
  %4036 = vmatpush.msra.mxu0 0.0
  %4037 = vmatpush.msra.mxu0 0.0
  %4038 = vmatpush.msra.mxu0 0.0
  %4039 = vmatpush.msra.mxu0 0.0
  %4040 = vmatpush.msra.mxu0 0.0
  %4041 = vmatpush.msra.mxu0 0.0
  %4042 = vmatpush.msra.mxu0 0.0
  %4043 = vmatpush.msra.mxu0 0.0
  %4044 = vmatpush.msra.mxu0 0.0
  %4045 = vmatpush.msra.mxu0 0.0
  %4046 = vmatpush.msra.mxu0 %v89
  %4047 = vmatpush.msra.mxu0 %v88
  %4048 = vmatpush.msra.mxu0 %v87
  %4049 = vmatpush.msra.mxu0 %v86
  %4050 = vmatmul.f32.gmra.mxu0 %v4032
  %v4051 = vpop.f32.mrf.mxu0
  %v4052 = vadd.f32 0.0, %v4051
  %4053 = vdwg.mxu0
  %v4054 = vadd.f32 %v4029, %v4052
  %v4055 = vld [vmem:[%s1436 + $0x2] sm:$0xf]
  %v4057 = vsel %vm3659, %v4055, 0
  %4059 = vmatpush.msra.mxu0 0.0
  %4060 = vmatpush.msra.mxu0 0.0
  %4061 = vmatpush.msra.mxu0 0.0
  %4062 = vmatpush.msra.mxu0 0.0
  %4063 = vmatpush.msra.mxu0 0.0
  %4064 = vmatpush.msra.mxu0 0.0
  %4065 = vmatpush.msra.mxu0 0.0
  %4066 = vmatpush.msra.mxu0 0.0
  %4067 = vmatpush.msra.mxu0 0.0
  %4068 = vmatpush.msra.mxu0 0.0
  %4069 = vmatpush.msra.mxu0 0.0
  %4070 = vmatpush.msra.mxu0 0.0
  %4071 = vmatpush.msra.mxu0 %v94
  %4072 = vmatpush.msra.mxu0 %v93
  %4073 = vmatpush.msra.mxu0 %v92
  %4074 = vmatpush.msra.mxu0 %v91
  %4075 = vmatmul.f32.gmra.mxu0 %v4057
  %v4076 = vpop.f32.mrf.mxu0
  %v4077 = vadd.f32 0.0, %v4076
  %4078 = vdwg.mxu0
  %v4079 = vadd.f32 %v4054, %v4077
  %v4080 = vmax.f32 %v3880, %v4079
  %v4082 = vrot.slane %v4080, 1
  %v4084 = vmax.f32 %v4080, %v4082
  %v4085 = vadd.f32 %v4084, %v96
  %vm4086 = vcmp.ge.f32.partialorder %v4085, 0.0
  %v4087 = vmul.f32 %v4085, 0.01
  %v4088 = vsel %vm4086, %v4085, %v4087
  %vm4089 = vcmask 516096
  %4090 = vst.msk [vmem:[#allocation3] sm:$0x1] %vm4089, %v4088
  %v4092 = vperm.slane %v96, 0
  %v4094 = vadd.f32 %v4084, %v4092
  %vm4095 = vcmp.ge.f32.partialorder %v4094, 0.0
  %v4096 = vmul.f32 %v4094, 0.01
  %v4097 = vsel %vm4095, %v4094, %v4096
  %s4098 = scalar_lea.vmem [#allocation3], 2
  %vm4099 = vcmask 518146
  %4100 = vst.msk [vmem:[%s4098 - $0x2] sm:$0x4] %vm4099, %v4097
  %v4101 = vld [vmem:[%s994] sm:$0xf]
  %v4102 = vld [vmem:[%s994 + $0x1] sm:$0xf]
  %v4104 = vsel %vm3659, %v4102, 0
  %4106 = vmatpush.msra.mxu0 0.0
  %4107 = vmatpush.msra.mxu0 0.0
  %4108 = vmatpush.msra.mxu0 0.0
  %4109 = vmatpush.msra.mxu0 0.0
  %4110 = vmatpush.msra.mxu0 0.0
  %4111 = vmatpush.msra.mxu0 0.0
  %4112 = vmatpush.msra.mxu0 0.0
  %4113 = vmatpush.msra.mxu0 0.0
  %4114 = vmatpush.msra.mxu0 0.0
  %4115 = vmatpush.msra.mxu0 0.0
  %4116 = vmatpush.msra.mxu0 0.0
  %4117 = vmatpush.msra.mxu0 0.0
  %4118 = vmatpush.msra.mxu0 %v59
  %4119 = vmatpush.msra.mxu0 %v58
  %4120 = vmatpush.msra.mxu0 %v57
  %4121 = vmatpush.msra.mxu0 %v56
  %4122 = vmatmul.f32.gmra.mxu0 %v4104
  %v4123 = vpop.f32.mrf.mxu0
  %v4124 = vadd.f32 0.0, %v4123
  %4125 = vdwg.mxu0
  %v4127 = vsel %vm3659, %v4101, 0
  %4129 = vmatpush.msra.mxu0 0.0
  %4130 = vmatpush.msra.mxu0 0.0
  %4131 = vmatpush.msra.mxu0 0.0
  %4132 = vmatpush.msra.mxu0 0.0
  %4133 = vmatpush.msra.mxu0 0.0
  %4134 = vmatpush.msra.mxu0 0.0
  %4135 = vmatpush.msra.mxu0 0.0
  %4136 = vmatpush.msra.mxu0 0.0
  %4137 = vmatpush.msra.mxu0 0.0
  %4138 = vmatpush.msra.mxu0 0.0
  %4139 = vmatpush.msra.mxu0 0.0
  %4140 = vmatpush.msra.mxu0 0.0
  %4141 = vmatpush.msra.mxu0 %v54
  %4142 = vmatpush.msra.mxu0 %v53
  %4143 = vmatpush.msra.mxu0 %v52
  %4144 = vmatpush.msra.mxu0 %v51
  %4145 = vmatmul.f32.gmra.mxu0 %v4127
  %v4146 = vpop.f32.mrf.mxu0
  %v4147 = vadd.f32 %v4124, %v4146
  %4148 = vdwg.mxu0
  %v4149 = vld [vmem:[%s994 + $0x2] sm:$0xf]
  %v4151 = vsel %vm3659, %v4149, 0
  %4153 = vmatpush.msra.mxu0 0.0
  %4154 = vmatpush.msra.mxu0 0.0
  %4155 = vmatpush.msra.mxu0 0.0
  %4156 = vmatpush.msra.mxu0 0.0
  %4157 = vmatpush.msra.mxu0 0.0
  %4158 = vmatpush.msra.mxu0 0.0
  %4159 = vmatpush.msra.mxu0 0.0
  %4160 = vmatpush.msra.mxu0 0.0
  %4161 = vmatpush.msra.mxu0 0.0
  %4162 = vmatpush.msra.mxu0 0.0
  %4163 = vmatpush.msra.mxu0 0.0
  %4164 = vmatpush.msra.mxu0 0.0
  %4165 = vmatpush.msra.mxu0 %v64
  %4166 = vmatpush.msra.mxu0 %v63
  %4167 = vmatpush.msra.mxu0 %v62
  %4168 = vmatpush.msra.mxu0 %v61
  %4169 = vmatmul.f32.gmra.mxu0 %v4151
  %v4170 = vpop.f32.mrf.mxu0
  %v4171 = vadd.f32 0.0, %v4170
  %4172 = vdwg.mxu0
  %v4173 = vadd.f32 %v4147, %v4171
  %v4174 = vld [vmem:[%s1436] sm:$0xf]
  %v4176 = vsel %vm3659, %v4174, 0
  %4178 = vmatpush.msra.mxu0 0.0
  %4179 = vmatpush.msra.mxu0 0.0
  %4180 = vmatpush.msra.mxu0 0.0
  %4181 = vmatpush.msra.mxu0 0.0
  %4182 = vmatpush.msra.mxu0 0.0
  %4183 = vmatpush.msra.mxu0 0.0
  %4184 = vmatpush.msra.mxu0 0.0
  %4185 = vmatpush.msra.mxu0 0.0
  %4186 = vmatpush.msra.mxu0 0.0
  %4187 = vmatpush.msra.mxu0 0.0
  %4188 = vmatpush.msra.mxu0 0.0
  %4189 = vmatpush.msra.mxu0 0.0
  %4190 = vmatpush.msra.mxu0 %v69
  %4191 = vmatpush.msra.mxu0 %v68
  %4192 = vmatpush.msra.mxu0 %v67
  %4193 = vmatpush.msra.mxu0 %v66
  %4194 = vmatmul.f32.gmra.mxu0 %v4176
  %v4195 = vpop.f32.mrf.mxu0
  %v4196 = vadd.f32 0.0, %v4195
  %4197 = vdwg.mxu0
  %v4198 = vadd.f32 %v4173, %v4196
  %v4199 = vld [vmem:[%s1436 + $0x1] sm:$0xf]
  %v4201 = vsel %vm3659, %v4199, 0
  %4203 = vmatpush.msra.mxu0 0.0
  %4204 = vmatpush.msra.mxu0 0.0
  %4205 = vmatpush.msra.mxu0 0.0
  %4206 = vmatpush.msra.mxu0 0.0
  %4207 = vmatpush.msra.mxu0 0.0
  %4208 = vmatpush.msra.mxu0 0.0
  %4209 = vmatpush.msra.mxu0 0.0
  %4210 = vmatpush.msra.mxu0 0.0
  %4211 = vmatpush.msra.mxu0 0.0
  %4212 = vmatpush.msra.mxu0 0.0
  %4213 = vmatpush.msra.mxu0 0.0
  %4214 = vmatpush.msra.mxu0 0.0
  %4215 = vmatpush.msra.mxu0 %v74
  %4216 = vmatpush.msra.mxu0 %v73
  %4217 = vmatpush.msra.mxu0 %v72
  %4218 = vmatpush.msra.mxu0 %v71
  %4219 = vmatmul.f32.gmra.mxu0 %v4201
  %v4220 = vpop.f32.mrf.mxu0
  %v4221 = vadd.f32 0.0, %v4220
  %4222 = vdwg.mxu0
  %v4223 = vadd.f32 %v4198, %v4221
  %v4224 = vld [vmem:[%s1436 + $0x2] sm:$0xf]
  %v4226 = vsel %vm3659, %v4224, 0
  %4228 = vmatpush.msra.mxu0 0.0
  %4229 = vmatpush.msra.mxu0 0.0
  %4230 = vmatpush.msra.mxu0 0.0
  %4231 = vmatpush.msra.mxu0 0.0
  %4232 = vmatpush.msra.mxu0 0.0
  %4233 = vmatpush.msra.mxu0 0.0
  %4234 = vmatpush.msra.mxu0 0.0
  %4235 = vmatpush.msra.mxu0 0.0
  %4236 = vmatpush.msra.mxu0 0.0
  %4237 = vmatpush.msra.mxu0 0.0
  %4238 = vmatpush.msra.mxu0 0.0
  %4239 = vmatpush.msra.mxu0 0.0
  %4240 = vmatpush.msra.mxu0 %v79
  %4241 = vmatpush.msra.mxu0 %v78
  %4242 = vmatpush.msra.mxu0 %v77
  %4243 = vmatpush.msra.mxu0 %v76
  %4244 = vmatmul.f32.gmra.mxu0 %v4226
  %v4245 = vpop.f32.mrf.mxu0
  %v4246 = vadd.f32 0.0, %v4245
  %4247 = vdwg.mxu0
  %v4248 = vadd.f32 %v4223, %v4246
  %v4249 = vld [vmem:[%s1878] sm:$0xf]
  %v4251 = vsel %vm3659, %v4249, 0
  %4253 = vmatpush.msra.mxu0 0.0
  %4254 = vmatpush.msra.mxu0 0.0
  %4255 = vmatpush.msra.mxu0 0.0
  %4256 = vmatpush.msra.mxu0 0.0
  %4257 = vmatpush.msra.mxu0 0.0
  %4258 = vmatpush.msra.mxu0 0.0
  %4259 = vmatpush.msra.mxu0 0.0
  %4260 = vmatpush.msra.mxu0 0.0
  %4261 = vmatpush.msra.mxu0 0.0
  %4262 = vmatpush.msra.mxu0 0.0
  %4263 = vmatpush.msra.mxu0 0.0
  %4264 = vmatpush.msra.mxu0 0.0
  %4265 = vmatpush.msra.mxu0 %v84
  %4266 = vmatpush.msra.mxu0 %v83
  %4267 = vmatpush.msra.mxu0 %v82
  %4268 = vmatpush.msra.mxu0 %v81
  %4269 = vmatmul.f32.gmra.mxu0 %v4251
  %v4270 = vpop.f32.mrf.mxu0
  %v4271 = vadd.f32 0.0, %v4270
  %4272 = vdwg.mxu0
  %v4273 = vadd.f32 %v4248, %v4271
  %v4274 = vld [vmem:[%s1878 + $0x1] sm:$0xf]
  %v4276 = vsel %vm3659, %v4274, 0
  %4278 = vmatpush.msra.mxu0 0.0
  %4279 = vmatpush.msra.mxu0 0.0
  %4280 = vmatpush.msra.mxu0 0.0
  %4281 = vmatpush.msra.mxu0 0.0
  %4282 = vmatpush.msra.mxu0 0.0
  %4283 = vmatpush.msra.mxu0 0.0
  %4284 = vmatpush.msra.mxu0 0.0
  %4285 = vmatpush.msra.mxu0 0.0
  %4286 = vmatpush.msra.mxu0 0.0
  %4287 = vmatpush.msra.mxu0 0.0
  %4288 = vmatpush.msra.mxu0 0.0
  %4289 = vmatpush.msra.mxu0 0.0
  %4290 = vmatpush.msra.mxu0 %v89
  %4291 = vmatpush.msra.mxu0 %v88
  %4292 = vmatpush.msra.mxu0 %v87
  %4293 = vmatpush.msra.mxu0 %v86
  %4294 = vmatmul.f32.gmra.mxu0 %v4276
  %v4295 = vpop.f32.mrf.mxu0
  %v4296 = vadd.f32 0.0, %v4295
  %4297 = vdwg.mxu0
  %v4298 = vadd.f32 %v4273, %v4296
  %v4299 = vld [vmem:[%s1878 + $0x2] sm:$0xf]
  %v4301 = vsel %vm3659, %v4299, 0
  %4303 = vmatpush.msra.mxu0 0.0
  %4304 = vmatpush.msra.mxu0 0.0
  %4305 = vmatpush.msra.mxu0 0.0
  %4306 = vmatpush.msra.mxu0 0.0
  %4307 = vmatpush.msra.mxu0 0.0
  %4308 = vmatpush.msra.mxu0 0.0
  %4309 = vmatpush.msra.mxu0 0.0
  %4310 = vmatpush.msra.mxu0 0.0
  %4311 = vmatpush.msra.mxu0 0.0
  %4312 = vmatpush.msra.mxu0 0.0
  %4313 = vmatpush.msra.mxu0 0.0
  %4314 = vmatpush.msra.mxu0 0.0
  %4315 = vmatpush.msra.mxu0 %v94
  %4316 = vmatpush.msra.mxu0 %v93
  %4317 = vmatpush.msra.mxu0 %v92
  %4318 = vmatpush.msra.mxu0 %v91
  %4319 = vmatmul.f32.gmra.mxu0 %v4301
  %v4320 = vpop.f32.mrf.mxu0
  %v4321 = vadd.f32 0.0, %v4320
  %4322 = vdwg.mxu0
  %v4323 = vadd.f32 %v4298, %v4321
  %4324 = vmatpush.msra.mxu0 0.0
  %4325 = vmatpush.msra.mxu0 0.0
  %4326 = vmatpush.msra.mxu0 0.0
  %4327 = vmatpush.msra.mxu0 0.0
  %4328 = vmatpush.msra.mxu0 0.0
  %4329 = vmatpush.msra.mxu0 0.0
  %4330 = vmatpush.msra.mxu0 0.0
  %4331 = vmatpush.msra.mxu0 0.0
  %4332 = vmatpush.msra.mxu0 0.0
  %4333 = vmatpush.msra.mxu0 0.0
  %4334 = vmatpush.msra.mxu0 0.0
  %4335 = vmatpush.msra.mxu0 0.0
  %4336 = vmatpush.msra.mxu0 %v59
  %4337 = vmatpush.msra.mxu0 %v58
  %4338 = vmatpush.msra.mxu0 %v57
  %4339 = vmatpush.msra.mxu0 %v56
  %4340 = vmatmul.f32.gmra.mxu0 %v4201
  %v4341 = vpop.f32.mrf.mxu0
  %v4342 = vadd.f32 0.0, %v4341
  %4343 = vdwg.mxu0
  %4344 = vmatpush.msra.mxu0 0.0
  %4345 = vmatpush.msra.mxu0 0.0
  %4346 = vmatpush.msra.mxu0 0.0
  %4347 = vmatpush.msra.mxu0 0.0
  %4348 = vmatpush.msra.mxu0 0.0
  %4349 = vmatpush.msra.mxu0 0.0
  %4350 = vmatpush.msra.mxu0 0.0
  %4351 = vmatpush.msra.mxu0 0.0
  %4352 = vmatpush.msra.mxu0 0.0
  %4353 = vmatpush.msra.mxu0 0.0
  %4354 = vmatpush.msra.mxu0 0.0
  %4355 = vmatpush.msra.mxu0 0.0
  %4356 = vmatpush.msra.mxu0 %v54
  %4357 = vmatpush.msra.mxu0 %v53
  %4358 = vmatpush.msra.mxu0 %v52
  %4359 = vmatpush.msra.mxu0 %v51
  %4360 = vmatmul.f32.gmra.mxu0 %v4176
  %v4361 = vpop.f32.mrf.mxu0
  %v4362 = vadd.f32 %v4342, %v4361
  %4363 = vdwg.mxu0
  %4364 = vmatpush.msra.mxu0 0.0
  %4365 = vmatpush.msra.mxu0 0.0
  %4366 = vmatpush.msra.mxu0 0.0
  %4367 = vmatpush.msra.mxu0 0.0
  %4368 = vmatpush.msra.mxu0 0.0
  %4369 = vmatpush.msra.mxu0 0.0
  %4370 = vmatpush.msra.mxu0 0.0
  %4371 = vmatpush.msra.mxu0 0.0
  %4372 = vmatpush.msra.mxu0 0.0
  %4373 = vmatpush.msra.mxu0 0.0
  %4374 = vmatpush.msra.mxu0 0.0
  %4375 = vmatpush.msra.mxu0 0.0
  %4376 = vmatpush.msra.mxu0 %v64
  %4377 = vmatpush.msra.mxu0 %v63
  %4378 = vmatpush.msra.mxu0 %v62
  %4379 = vmatpush.msra.mxu0 %v61
  %4380 = vmatmul.f32.gmra.mxu0 %v4226
  %v4381 = vpop.f32.mrf.mxu0
  %v4382 = vadd.f32 0.0, %v4381
  %4383 = vdwg.mxu0
  %v4384 = vadd.f32 %v4362, %v4382
  %4385 = vmatpush.msra.mxu0 0.0
  %4386 = vmatpush.msra.mxu0 0.0
  %4387 = vmatpush.msra.mxu0 0.0
  %4388 = vmatpush.msra.mxu0 0.0
  %4389 = vmatpush.msra.mxu0 0.0
  %4390 = vmatpush.msra.mxu0 0.0
  %4391 = vmatpush.msra.mxu0 0.0
  %4392 = vmatpush.msra.mxu0 0.0
  %4393 = vmatpush.msra.mxu0 0.0
  %4394 = vmatpush.msra.mxu0 0.0
  %4395 = vmatpush.msra.mxu0 0.0
  %4396 = vmatpush.msra.mxu0 0.0
  %4397 = vmatpush.msra.mxu0 %v69
  %4398 = vmatpush.msra.mxu0 %v68
  %4399 = vmatpush.msra.mxu0 %v67
  %4400 = vmatpush.msra.mxu0 %v66
  %4401 = vmatmul.f32.gmra.mxu0 %v4251
  %v4402 = vpop.f32.mrf.mxu0
  %v4403 = vadd.f32 0.0, %v4402
  %4404 = vdwg.mxu0
  %v4405 = vadd.f32 %v4384, %v4403
  %4406 = vmatpush.msra.mxu0 0.0
  %4407 = vmatpush.msra.mxu0 0.0
  %4408 = vmatpush.msra.mxu0 0.0
  %4409 = vmatpush.msra.mxu0 0.0
  %4410 = vmatpush.msra.mxu0 0.0
  %4411 = vmatpush.msra.mxu0 0.0
  %4412 = vmatpush.msra.mxu0 0.0
  %4413 = vmatpush.msra.mxu0 0.0
  %4414 = vmatpush.msra.mxu0 0.0
  %4415 = vmatpush.msra.mxu0 0.0
  %4416 = vmatpush.msra.mxu0 0.0
  %4417 = vmatpush.msra.mxu0 0.0
  %4418 = vmatpush.msra.mxu0 %v74
  %4419 = vmatpush.msra.mxu0 %v73
  %4420 = vmatpush.msra.mxu0 %v72
  %4421 = vmatpush.msra.mxu0 %v71
  %4422 = vmatmul.f32.gmra.mxu0 %v4276
  %v4423 = vpop.f32.mrf.mxu0
  %v4424 = vadd.f32 0.0, %v4423
  %4425 = vdwg.mxu0
  %v4426 = vadd.f32 %v4405, %v4424
  %4427 = vmatpush.msra.mxu0 0.0
  %4428 = vmatpush.msra.mxu0 0.0
  %4429 = vmatpush.msra.mxu0 0.0
  %4430 = vmatpush.msra.mxu0 0.0
  %4431 = vmatpush.msra.mxu0 0.0
  %4432 = vmatpush.msra.mxu0 0.0
  %4433 = vmatpush.msra.mxu0 0.0
  %4434 = vmatpush.msra.mxu0 0.0
  %4435 = vmatpush.msra.mxu0 0.0
  %4436 = vmatpush.msra.mxu0 0.0
  %4437 = vmatpush.msra.mxu0 0.0
  %4438 = vmatpush.msra.mxu0 0.0
  %4439 = vmatpush.msra.mxu0 %v79
  %4440 = vmatpush.msra.mxu0 %v78
  %4441 = vmatpush.msra.mxu0 %v77
  %4442 = vmatpush.msra.mxu0 %v76
  %4443 = vmatmul.f32.gmra.mxu0 %v4301
  %v4444 = vpop.f32.mrf.mxu0
  %v4445 = vadd.f32 0.0, %v4444
  %4446 = vdwg.mxu0
  %v4447 = vadd.f32 %v4426, %v4445
  %s4448 = scalar_lea.vmem [#allocation2], 40
  %v4449 = vld [vmem:[%s4448] sm:$0xf]
  %v4451 = vsel %vm3659, %v4449, 0
  %4453 = vmatpush.msra.mxu0 0.0
  %4454 = vmatpush.msra.mxu0 0.0
  %4455 = vmatpush.msra.mxu0 0.0
  %4456 = vmatpush.msra.mxu0 0.0
  %4457 = vmatpush.msra.mxu0 0.0
  %4458 = vmatpush.msra.mxu0 0.0
  %4459 = vmatpush.msra.mxu0 0.0
  %4460 = vmatpush.msra.mxu0 0.0
  %4461 = vmatpush.msra.mxu0 0.0
  %4462 = vmatpush.msra.mxu0 0.0
  %4463 = vmatpush.msra.mxu0 0.0
  %4464 = vmatpush.msra.mxu0 0.0
  %4465 = vmatpush.msra.mxu0 %v84
  %4466 = vmatpush.msra.mxu0 %v83
  %4467 = vmatpush.msra.mxu0 %v82
  %4468 = vmatpush.msra.mxu0 %v81
  %4469 = vmatmul.f32.gmra.mxu0 %v4451
  %v4470 = vpop.f32.mrf.mxu0
  %v4471 = vadd.f32 0.0, %v4470
  %4472 = vdwg.mxu0
  %v4473 = vadd.f32 %v4447, %v4471
  %v4474 = vld [vmem:[%s4448 + $0x1] sm:$0xf]
  %v4476 = vsel %vm3659, %v4474, 0
  %4478 = vmatpush.msra.mxu0 0.0
  %4479 = vmatpush.msra.mxu0 0.0
  %4480 = vmatpush.msra.mxu0 0.0
  %4481 = vmatpush.msra.mxu0 0.0
  %4482 = vmatpush.msra.mxu0 0.0
  %4483 = vmatpush.msra.mxu0 0.0
  %4484 = vmatpush.msra.mxu0 0.0
  %4485 = vmatpush.msra.mxu0 0.0
  %4486 = vmatpush.msra.mxu0 0.0
  %4487 = vmatpush.msra.mxu0 0.0
  %4488 = vmatpush.msra.mxu0 0.0
  %4489 = vmatpush.msra.mxu0 0.0
  %4490 = vmatpush.msra.mxu0 %v89
  %4491 = vmatpush.msra.mxu0 %v88
  %4492 = vmatpush.msra.mxu0 %v87
  %4493 = vmatpush.msra.mxu0 %v86
  %4494 = vmatmul.f32.gmra.mxu0 %v4476
  %v4495 = vpop.f32.mrf.mxu0
  %v4496 = vadd.f32 0.0, %v4495
  %4497 = vdwg.mxu0
  %v4498 = vadd.f32 %v4473, %v4496
  %v4499 = vld [vmem:[%s4448 + $0x2] sm:$0xf]
  %v4501 = vsel %vm3659, %v4499, 0
  %4503 = vmatpush.msra.mxu0 0.0
  %4504 = vmatpush.msra.mxu0 0.0
  %4505 = vmatpush.msra.mxu0 0.0
  %4506 = vmatpush.msra.mxu0 0.0
  %4507 = vmatpush.msra.mxu0 0.0
  %4508 = vmatpush.msra.mxu0 0.0
  %4509 = vmatpush.msra.mxu0 0.0
  %4510 = vmatpush.msra.mxu0 0.0
  %4511 = vmatpush.msra.mxu0 0.0
  %4512 = vmatpush.msra.mxu0 0.0
  %4513 = vmatpush.msra.mxu0 0.0
  %4514 = vmatpush.msra.mxu0 0.0
  %4515 = vmatpush.msra.mxu0 %v94
  %4516 = vmatpush.msra.mxu0 %v93
  %4517 = vmatpush.msra.mxu0 %v92
  %4518 = vmatpush.msra.mxu0 %v91
  %4519 = vmatmul.f32.gmra.mxu0 %v4501
  %v4520 = vpop.f32.mrf.mxu0
  %v4521 = vadd.f32 0.0, %v4520
  %4522 = vdwg.mxu0
  %v4523 = vadd.f32 %v4498, %v4521
  %v4524 = vmax.f32 %v4323, %v4523
  %v4526 = vrot.slane %v4524, 1
  %v4528 = vmax.f32 %v4524, %v4526
  %v4529 = vadd.f32 %v4528, %v96
  %vm4530 = vcmp.ge.f32.partialorder %v4529, 0.0
  %v4531 = vmul.f32 %v4529, 0.01
  %v4532 = vsel %vm4530, %v4529, %v4531
  %s4533 = scalar_lea.vmem [#allocation3], 4
  %4534 = vst.msk [vmem:[%s4533] sm:$0x1] %vm4089, %v4532
  %v4535 = vadd.f32 %v4528, %v4092
  %vm4536 = vcmp.ge.f32.partialorder %v4535, 0.0
  %v4537 = vmul.f32 %v4535, 0.01
  %v4538 = vsel %vm4536, %v4535, %v4537
  %s4539 = scalar_lea.vmem [#allocation3], 6
  %4540 = vst.msk [vmem:[%s4539 - $0x2] sm:$0x4] %vm4099, %v4538
  %s4541 = scalar_lea.vmem [#allocation2], 48
  %v4542 = vld [vmem:[%s4541] sm:$0xf]
  %v4543 = vld [vmem:[%s4541 + $0x1] sm:$0xf]
  %v4545 = vsel %vm3659, %v4543, 0
  %4547 = vmatpush.msra.mxu0 0.0
  %4548 = vmatpush.msra.mxu0 0.0
  %4549 = vmatpush.msra.mxu0 0.0
  %4550 = vmatpush.msra.mxu0 0.0
  %4551 = vmatpush.msra.mxu0 0.0
  %4552 = vmatpush.msra.mxu0 0.0
  %4553 = vmatpush.msra.mxu0 0.0
  %4554 = vmatpush.msra.mxu0 0.0
  %4555 = vmatpush.msra.mxu0 0.0
  %4556 = vmatpush.msra.mxu0 0.0
  %4557 = vmatpush.msra.mxu0 0.0
  %4558 = vmatpush.msra.mxu0 0.0
  %4559 = vmatpush.msra.mxu0 %v59
  %4560 = vmatpush.msra.mxu0 %v58
  %4561 = vmatpush.msra.mxu0 %v57
  %4562 = vmatpush.msra.mxu0 %v56
  %4563 = vmatmul.f32.gmra.mxu0 %v4545
  %v4564 = vpop.f32.mrf.mxu0
  %v4565 = vadd.f32 0.0, %v4564
  %4566 = vdwg.mxu0
  %v4568 = vsel %vm3659, %v4542, 0
  %4570 = vmatpush.msra.mxu0 0.0
  %4571 = vmatpush.msra.mxu0 0.0
  %4572 = vmatpush.msra.mxu0 0.0
  %4573 = vmatpush.msra.mxu0 0.0
  %4574 = vmatpush.msra.mxu0 0.0
  %4575 = vmatpush.msra.mxu0 0.0
  %4576 = vmatpush.msra.mxu0 0.0
  %4577 = vmatpush.msra.mxu0 0.0
  %4578 = vmatpush.msra.mxu0 0.0
  %4579 = vmatpush.msra.mxu0 0.0
  %4580 = vmatpush.msra.mxu0 0.0
  %4581 = vmatpush.msra.mxu0 0.0
  %4582 = vmatpush.msra.mxu0 %v54
  %4583 = vmatpush.msra.mxu0 %v53
  %4584 = vmatpush.msra.mxu0 %v52
  %4585 = vmatpush.msra.mxu0 %v51
  %4586 = vmatmul.f32.gmra.mxu0 %v4568
  %v4587 = vpop.f32.mrf.mxu0
  %v4588 = vadd.f32 %v4565, %v4587
  %4589 = vdwg.mxu0
  %v4590 = vld [vmem:[%s4541 + $0x2] sm:$0xf]
  %v4592 = vsel %vm3659, %v4590, 0
  %4594 = vmatpush.msra.mxu0 0.0
  %4595 = vmatpush.msra.mxu0 0.0
  %4596 = vmatpush.msra.mxu0 0.0
  %4597 = vmatpush.msra.mxu0 0.0
  %4598 = vmatpush.msra.mxu0 0.0
  %4599 = vmatpush.msra.mxu0 0.0
  %4600 = vmatpush.msra.mxu0 0.0
  %4601 = vmatpush.msra.mxu0 0.0
  %4602 = vmatpush.msra.mxu0 0.0
  %4603 = vmatpush.msra.mxu0 0.0
  %4604 = vmatpush.msra.mxu0 0.0
  %4605 = vmatpush.msra.mxu0 0.0
  %4606 = vmatpush.msra.mxu0 %v64
  %4607 = vmatpush.msra.mxu0 %v63
  %4608 = vmatpush.msra.mxu0 %v62
  %4609 = vmatpush.msra.mxu0 %v61
  %4610 = vmatmul.f32.gmra.mxu0 %v4592
  %v4611 = vpop.f32.mrf.mxu0
  %v4612 = vadd.f32 0.0, %v4611
  %4613 = vdwg.mxu0
  %v4614 = vadd.f32 %v4588, %v4612
  %v4615 = vld [vmem:[%s2322] sm:$0xf]
  %v4617 = vsel %vm3659, %v4615, 0
  %4619 = vmatpush.msra.mxu0 0.0
  %4620 = vmatpush.msra.mxu0 0.0
  %4621 = vmatpush.msra.mxu0 0.0
  %4622 = vmatpush.msra.mxu0 0.0
  %4623 = vmatpush.msra.mxu0 0.0
  %4624 = vmatpush.msra.mxu0 0.0
  %4625 = vmatpush.msra.mxu0 0.0
  %4626 = vmatpush.msra.mxu0 0.0
  %4627 = vmatpush.msra.mxu0 0.0
  %4628 = vmatpush.msra.mxu0 0.0
  %4629 = vmatpush.msra.mxu0 0.0
  %4630 = vmatpush.msra.mxu0 0.0
  %4631 = vmatpush.msra.mxu0 %v69
  %4632 = vmatpush.msra.mxu0 %v68
  %4633 = vmatpush.msra.mxu0 %v67
  %4634 = vmatpush.msra.mxu0 %v66
  %4635 = vmatmul.f32.gmra.mxu0 %v4617
  %v4636 = vpop.f32.mrf.mxu0
  %v4637 = vadd.f32 0.0, %v4636
  %4638 = vdwg.mxu0
  %v4639 = vadd.f32 %v4614, %v4637
  %v4640 = vld [vmem:[%s2322 + $0x1] sm:$0xf]
  %v4642 = vsel %vm3659, %v4640, 0
  %4644 = vmatpush.msra.mxu0 0.0
  %4645 = vmatpush.msra.mxu0 0.0
  %4646 = vmatpush.msra.mxu0 0.0
  %4647 = vmatpush.msra.mxu0 0.0
  %4648 = vmatpush.msra.mxu0 0.0
  %4649 = vmatpush.msra.mxu0 0.0
  %4650 = vmatpush.msra.mxu0 0.0
  %4651 = vmatpush.msra.mxu0 0.0
  %4652 = vmatpush.msra.mxu0 0.0
  %4653 = vmatpush.msra.mxu0 0.0
  %4654 = vmatpush.msra.mxu0 0.0
  %4655 = vmatpush.msra.mxu0 0.0
  %4656 = vmatpush.msra.mxu0 %v74
  %4657 = vmatpush.msra.mxu0 %v73
  %4658 = vmatpush.msra.mxu0 %v72
  %4659 = vmatpush.msra.mxu0 %v71
  %4660 = vmatmul.f32.gmra.mxu0 %v4642
  %v4661 = vpop.f32.mrf.mxu0
  %v4662 = vadd.f32 0.0, %v4661
  %4663 = vdwg.mxu0
  %v4664 = vadd.f32 %v4639, %v4662
  %v4665 = vld [vmem:[%s2322 + $0x2] sm:$0xf]
  %v4667 = vsel %vm3659, %v4665, 0
  %4669 = vmatpush.msra.mxu0 0.0
  %4670 = vmatpush.msra.mxu0 0.0
  %4671 = vmatpush.msra.mxu0 0.0
  %4672 = vmatpush.msra.mxu0 0.0
  %4673 = vmatpush.msra.mxu0 0.0
  %4674 = vmatpush.msra.mxu0 0.0
  %4675 = vmatpush.msra.mxu0 0.0
  %4676 = vmatpush.msra.mxu0 0.0
  %4677 = vmatpush.msra.mxu0 0.0
  %4678 = vmatpush.msra.mxu0 0.0
  %4679 = vmatpush.msra.mxu0 0.0
  %4680 = vmatpush.msra.mxu0 0.0
  %4681 = vmatpush.msra.mxu0 %v79
  %4682 = vmatpush.msra.mxu0 %v78
  %4683 = vmatpush.msra.mxu0 %v77
  %4684 = vmatpush.msra.mxu0 %v76
  %4685 = vmatmul.f32.gmra.mxu0 %v4667
  %v4686 = vpop.f32.mrf.mxu0
  %v4687 = vadd.f32 0.0, %v4686
  %4688 = vdwg.mxu0
  %v4689 = vadd.f32 %v4664, %v4687
  %v4690 = vld [vmem:[%s2764] sm:$0xf]
  %v4692 = vsel %vm3659, %v4690, 0
  %4694 = vmatpush.msra.mxu0 0.0
  %4695 = vmatpush.msra.mxu0 0.0
  %4696 = vmatpush.msra.mxu0 0.0
  %4697 = vmatpush.msra.mxu0 0.0
  %4698 = vmatpush.msra.mxu0 0.0
  %4699 = vmatpush.msra.mxu0 0.0
  %4700 = vmatpush.msra.mxu0 0.0
  %4701 = vmatpush.msra.mxu0 0.0
  %4702 = vmatpush.msra.mxu0 0.0
  %4703 = vmatpush.msra.mxu0 0.0
  %4704 = vmatpush.msra.mxu0 0.0
  %4705 = vmatpush.msra.mxu0 0.0
  %4706 = vmatpush.msra.mxu0 %v84
  %4707 = vmatpush.msra.mxu0 %v83
  %4708 = vmatpush.msra.mxu0 %v82
  %4709 = vmatpush.msra.mxu0 %v81
  %4710 = vmatmul.f32.gmra.mxu0 %v4692
  %v4711 = vpop.f32.mrf.mxu0
  %v4712 = vadd.f32 0.0, %v4711
  %4713 = vdwg.mxu0
  %v4714 = vadd.f32 %v4689, %v4712
  %v4715 = vld [vmem:[%s2764 + $0x1] sm:$0xf]
  %v4717 = vsel %vm3659, %v4715, 0
  %4719 = vmatpush.msra.mxu0 0.0
  %4720 = vmatpush.msra.mxu0 0.0
  %4721 = vmatpush.msra.mxu0 0.0
  %4722 = vmatpush.msra.mxu0 0.0
  %4723 = vmatpush.msra.mxu0 0.0
  %4724 = vmatpush.msra.mxu0 0.0
  %4725 = vmatpush.msra.mxu0 0.0
  %4726 = vmatpush.msra.mxu0 0.0
  %4727 = vmatpush.msra.mxu0 0.0
  %4728 = vmatpush.msra.mxu0 0.0
  %4729 = vmatpush.msra.mxu0 0.0
  %4730 = vmatpush.msra.mxu0 0.0
  %4731 = vmatpush.msra.mxu0 %v89
  %4732 = vmatpush.msra.mxu0 %v88
  %4733 = vmatpush.msra.mxu0 %v87
  %4734 = vmatpush.msra.mxu0 %v86
  %4735 = vmatmul.f32.gmra.mxu0 %v4717
  %v4736 = vpop.f32.mrf.mxu0
  %v4737 = vadd.f32 0.0, %v4736
  %4738 = vdwg.mxu0
  %v4739 = vadd.f32 %v4714, %v4737
  %v4740 = vld [vmem:[%s2764 + $0x2] sm:$0xf]
  %v4742 = vsel %vm3659, %v4740, 0
  %4744 = vmatpush.msra.mxu0 0.0
  %4745 = vmatpush.msra.mxu0 0.0
  %4746 = vmatpush.msra.mxu0 0.0
  %4747 = vmatpush.msra.mxu0 0.0
  %4748 = vmatpush.msra.mxu0 0.0
  %4749 = vmatpush.msra.mxu0 0.0
  %4750 = vmatpush.msra.mxu0 0.0
  %4751 = vmatpush.msra.mxu0 0.0
  %4752 = vmatpush.msra.mxu0 0.0
  %4753 = vmatpush.msra.mxu0 0.0
  %4754 = vmatpush.msra.mxu0 0.0
  %4755 = vmatpush.msra.mxu0 0.0
  %4756 = vmatpush.msra.mxu0 %v94
  %4757 = vmatpush.msra.mxu0 %v93
  %4758 = vmatpush.msra.mxu0 %v92
  %4759 = vmatpush.msra.mxu0 %v91
  %4760 = vmatmul.f32.gmra.mxu0 %v4742
  %v4761 = vpop.f32.mrf.mxu0
  %v4762 = vadd.f32 0.0, %v4761
  %4763 = vdwg.mxu0
  %v4764 = vadd.f32 %v4739, %v4762
  %4765 = vmatpush.msra.mxu0 0.0
  %4766 = vmatpush.msra.mxu0 0.0
  %4767 = vmatpush.msra.mxu0 0.0
  %4768 = vmatpush.msra.mxu0 0.0
  %4769 = vmatpush.msra.mxu0 0.0
  %4770 = vmatpush.msra.mxu0 0.0
  %4771 = vmatpush.msra.mxu0 0.0
  %4772 = vmatpush.msra.mxu0 0.0
  %4773 = vmatpush.msra.mxu0 0.0
  %4774 = vmatpush.msra.mxu0 0.0
  %4775 = vmatpush.msra.mxu0 0.0
  %4776 = vmatpush.msra.mxu0 0.0
  %4777 = vmatpush.msra.mxu0 %v59
  %4778 = vmatpush.msra.mxu0 %v58
  %4779 = vmatpush.msra.mxu0 %v57
  %4780 = vmatpush.msra.mxu0 %v56
  %4781 = vmatmul.f32.gmra.mxu0 %v4642
  %v4782 = vpop.f32.mrf.mxu0
  %v4783 = vadd.f32 0.0, %v4782
  %4784 = vdwg.mxu0
  %4785 = vmatpush.msra.mxu0 0.0
  %4786 = vmatpush.msra.mxu0 0.0
  %4787 = vmatpush.msra.mxu0 0.0
  %4788 = vmatpush.msra.mxu0 0.0
  %4789 = vmatpush.msra.mxu0 0.0
  %4790 = vmatpush.msra.mxu0 0.0
  %4791 = vmatpush.msra.mxu0 0.0
  %4792 = vmatpush.msra.mxu0 0.0
  %4793 = vmatpush.msra.mxu0 0.0
  %4794 = vmatpush.msra.mxu0 0.0
  %4795 = vmatpush.msra.mxu0 0.0
  %4796 = vmatpush.msra.mxu0 0.0
  %4797 = vmatpush.msra.mxu0 %v54
  %4798 = vmatpush.msra.mxu0 %v53
  %4799 = vmatpush.msra.mxu0 %v52
  %4800 = vmatpush.msra.mxu0 %v51
  %4801 = vmatmul.f32.gmra.mxu0 %v4617
  %v4802 = vpop.f32.mrf.mxu0
  %v4803 = vadd.f32 %v4783, %v4802
  %4804 = vdwg.mxu0
  %4805 = vmatpush.msra.mxu0 0.0
  %4806 = vmatpush.msra.mxu0 0.0
  %4807 = vmatpush.msra.mxu0 0.0
  %4808 = vmatpush.msra.mxu0 0.0
  %4809 = vmatpush.msra.mxu0 0.0
  %4810 = vmatpush.msra.mxu0 0.0
  %4811 = vmatpush.msra.mxu0 0.0
  %4812 = vmatpush.msra.mxu0 0.0
  %4813 = vmatpush.msra.mxu0 0.0
  %4814 = vmatpush.msra.mxu0 0.0
  %4815 = vmatpush.msra.mxu0 0.0
  %4816 = vmatpush.msra.mxu0 0.0
  %4817 = vmatpush.msra.mxu0 %v64
  %4818 = vmatpush.msra.mxu0 %v63
  %4819 = vmatpush.msra.mxu0 %v62
  %4820 = vmatpush.msra.mxu0 %v61
  %4821 = vmatmul.f32.gmra.mxu0 %v4667
  %v4822 = vpop.f32.mrf.mxu0
  %v4823 = vadd.f32 0.0, %v4822
  %4824 = vdwg.mxu0
  %v4825 = vadd.f32 %v4803, %v4823
  %4826 = vmatpush.msra.mxu0 0.0
  %4827 = vmatpush.msra.mxu0 0.0
  %4828 = vmatpush.msra.mxu0 0.0
  %4829 = vmatpush.msra.mxu0 0.0
  %4830 = vmatpush.msra.mxu0 0.0
  %4831 = vmatpush.msra.mxu0 0.0
  %4832 = vmatpush.msra.mxu0 0.0
  %4833 = vmatpush.msra.mxu0 0.0
  %4834 = vmatpush.msra.mxu0 0.0
  %4835 = vmatpush.msra.mxu0 0.0
  %4836 = vmatpush.msra.mxu0 0.0
  %4837 = vmatpush.msra.mxu0 0.0
  %4838 = vmatpush.msra.mxu0 %v69
  %4839 = vmatpush.msra.mxu0 %v68
  %4840 = vmatpush.msra.mxu0 %v67
  %4841 = vmatpush.msra.mxu0 %v66
  %4842 = vmatmul.f32.gmra.mxu0 %v4692
  %v4843 = vpop.f32.mrf.mxu0
  %v4844 = vadd.f32 0.0, %v4843
  %4845 = vdwg.mxu0
  %v4846 = vadd.f32 %v4825, %v4844
  %4847 = vmatpush.msra.mxu0 0.0
  %4848 = vmatpush.msra.mxu0 0.0
  %4849 = vmatpush.msra.mxu0 0.0
  %4850 = vmatpush.msra.mxu0 0.0
  %4851 = vmatpush.msra.mxu0 0.0
  %4852 = vmatpush.msra.mxu0 0.0
  %4853 = vmatpush.msra.mxu0 0.0
  %4854 = vmatpush.msra.mxu0 0.0
  %4855 = vmatpush.msra.mxu0 0.0
  %4856 = vmatpush.msra.mxu0 0.0
  %4857 = vmatpush.msra.mxu0 0.0
  %4858 = vmatpush.msra.mxu0 0.0
  %4859 = vmatpush.msra.mxu0 %v74
  %4860 = vmatpush.msra.mxu0 %v73
  %4861 = vmatpush.msra.mxu0 %v72
  %4862 = vmatpush.msra.mxu0 %v71
  %4863 = vmatmul.f32.gmra.mxu0 %v4717
  %v4864 = vpop.f32.mrf.mxu0
  %v4865 = vadd.f32 0.0, %v4864
  %4866 = vdwg.mxu0
  %v4867 = vadd.f32 %v4846, %v4865
  %4868 = vmatpush.msra.mxu0 0.0
  %4869 = vmatpush.msra.mxu0 0.0
  %4870 = vmatpush.msra.mxu0 0.0
  %4871 = vmatpush.msra.mxu0 0.0
  %4872 = vmatpush.msra.mxu0 0.0
  %4873 = vmatpush.msra.mxu0 0.0
  %4874 = vmatpush.msra.mxu0 0.0
  %4875 = vmatpush.msra.mxu0 0.0
  %4876 = vmatpush.msra.mxu0 0.0
  %4877 = vmatpush.msra.mxu0 0.0
  %4878 = vmatpush.msra.mxu0 0.0
  %4879 = vmatpush.msra.mxu0 0.0
  %4880 = vmatpush.msra.mxu0 %v79
  %4881 = vmatpush.msra.mxu0 %v78
  %4882 = vmatpush.msra.mxu0 %v77
  %4883 = vmatpush.msra.mxu0 %v76
  %4884 = vmatmul.f32.gmra.mxu0 %v4742
  %v4885 = vpop.f32.mrf.mxu0
  %v4886 = vadd.f32 0.0, %v4885
  %4887 = vdwg.mxu0
  %v4888 = vadd.f32 %v4867, %v4886
  %v4889 = vld [vmem:[%s3206] sm:$0xf]
  %v4891 = vsel %vm3659, %v4889, 0
  %4893 = vmatpush.msra.mxu0 0.0
  %4894 = vmatpush.msra.mxu0 0.0
  %4895 = vmatpush.msra.mxu0 0.0
  %4896 = vmatpush.msra.mxu0 0.0
  %4897 = vmatpush.msra.mxu0 0.0
  %4898 = vmatpush.msra.mxu0 0.0
  %4899 = vmatpush.msra.mxu0 0.0
  %4900 = vmatpush.msra.mxu0 0.0
  %4901 = vmatpush.msra.mxu0 0.0
  %4902 = vmatpush.msra.mxu0 0.0
  %4903 = vmatpush.msra.mxu0 0.0
  %4904 = vmatpush.msra.mxu0 0.0
  %4905 = vmatpush.msra.mxu0 %v84
  %4906 = vmatpush.msra.mxu0 %v83
  %4907 = vmatpush.msra.mxu0 %v82
  %4908 = vmatpush.msra.mxu0 %v81
  %4909 = vmatmul.f32.gmra.mxu0 %v4891
  %v4910 = vpop.f32.mrf.mxu0
  %v4911 = vadd.f32 0.0, %v4910
  %4912 = vdwg.mxu0
  %v4913 = vadd.f32 %v4888, %v4911
  %v4914 = vld [vmem:[%s3206 + $0x1] sm:$0xf]
  %v4916 = vsel %vm3659, %v4914, 0
  %4918 = vmatpush.msra.mxu0 0.0
  %4919 = vmatpush.msra.mxu0 0.0
  %4920 = vmatpush.msra.mxu0 0.0
  %4921 = vmatpush.msra.mxu0 0.0
  %4922 = vmatpush.msra.mxu0 0.0
  %4923 = vmatpush.msra.mxu0 0.0
  %4924 = vmatpush.msra.mxu0 0.0
  %4925 = vmatpush.msra.mxu0 0.0
  %4926 = vmatpush.msra.mxu0 0.0
  %4927 = vmatpush.msra.mxu0 0.0
  %4928 = vmatpush.msra.mxu0 0.0
  %4929 = vmatpush.msra.mxu0 0.0
  %4930 = vmatpush.msra.mxu0 %v89
  %4931 = vmatpush.msra.mxu0 %v88
  %4932 = vmatpush.msra.mxu0 %v87
  %4933 = vmatpush.msra.mxu0 %v86
  %4934 = vmatmul.f32.gmra.mxu0 %v4916
  %v4935 = vpop.f32.mrf.mxu0
  %v4936 = vadd.f32 0.0, %v4935
  %4937 = vdwg.mxu0
  %v4938 = vadd.f32 %v4913, %v4936
  %v4939 = vld [vmem:[%s3206 + $0x2] sm:$0xf]
  %v4941 = vsel %vm3659, %v4939, 0
  %4943 = vmatpush.msra.mxu0 0.0
  %4944 = vmatpush.msra.mxu0 0.0
  %4945 = vmatpush.msra.mxu0 0.0
  %4946 = vmatpush.msra.mxu0 0.0
  %4947 = vmatpush.msra.mxu0 0.0
  %4948 = vmatpush.msra.mxu0 0.0
  %4949 = vmatpush.msra.mxu0 0.0
  %4950 = vmatpush.msra.mxu0 0.0
  %4951 = vmatpush.msra.mxu0 0.0
  %4952 = vmatpush.msra.mxu0 0.0
  %4953 = vmatpush.msra.mxu0 0.0
  %4954 = vmatpush.msra.mxu0 0.0
  %4955 = vmatpush.msra.mxu0 %v94
  %4956 = vmatpush.msra.mxu0 %v93
  %4957 = vmatpush.msra.mxu0 %v92
  %4958 = vmatpush.msra.mxu0 %v91
  %4959 = vmatmul.f32.gmra.mxu0 %v4941
  %v4960 = vpop.f32.mrf.mxu0
  %v4961 = vadd.f32 0.0, %v4960
  %4962 = vdwg.mxu0
  %v4963 = vadd.f32 %v4938, %v4961
  %v4964 = vmax.f32 %v4764, %v4963
  %v4966 = vrot.slane %v4964, 1
  %v4968 = vmax.f32 %v4964, %v4966
  %v4969 = vadd.f32 %v4968, %v96
  %vm4970 = vcmp.ge.f32.partialorder %v4969, 0.0
  %v4971 = vmul.f32 %v4969, 0.01
  %v4972 = vsel %vm4970, %v4969, %v4971
  %4973 = vst.msk [vmem:[#allocation3 + $0x1] sm:$0x1] %vm4089, %v4972
  %v4974 = vadd.f32 %v4968, %v4092
  %vm4975 = vcmp.ge.f32.partialorder %v4974, 0.0
  %v4976 = vmul.f32 %v4974, 0.01
  %v4977 = vsel %vm4975, %v4974, %v4976
  %4978 = vst.msk [vmem:[%s4098 - $0x1] sm:$0x4] %vm4099, %v4977
  %v4979 = vld [vmem:[%s2764] sm:$0xf]
  %v4980 = vld [vmem:[%s2764 + $0x1] sm:$0xf]
  %v4982 = vsel %vm3659, %v4980, 0
  %4984 = vmatpush.msra.mxu0 0.0
  %4985 = vmatpush.msra.mxu0 0.0
  %4986 = vmatpush.msra.mxu0 0.0
  %4987 = vmatpush.msra.mxu0 0.0
  %4988 = vmatpush.msra.mxu0 0.0
  %4989 = vmatpush.msra.mxu0 0.0
  %4990 = vmatpush.msra.mxu0 0.0
  %4991 = vmatpush.msra.mxu0 0.0
  %4992 = vmatpush.msra.mxu0 0.0
  %4993 = vmatpush.msra.mxu0 0.0
  %4994 = vmatpush.msra.mxu0 0.0
  %4995 = vmatpush.msra.mxu0 0.0
  %4996 = vmatpush.msra.mxu0 %v59
  %4997 = vmatpush.msra.mxu0 %v58
  %4998 = vmatpush.msra.mxu0 %v57
  %4999 = vmatpush.msra.mxu0 %v56
  %5000 = vmatmul.f32.gmra.mxu0 %v4982
  %v5001 = vpop.f32.mrf.mxu0
  %v5002 = vadd.f32 0.0, %v5001
  %5003 = vdwg.mxu0
  %v5005 = vsel %vm3659, %v4979, 0
  %5007 = vmatpush.msra.mxu0 0.0
  %5008 = vmatpush.msra.mxu0 0.0
  %5009 = vmatpush.msra.mxu0 0.0
  %5010 = vmatpush.msra.mxu0 0.0
  %5011 = vmatpush.msra.mxu0 0.0
  %5012 = vmatpush.msra.mxu0 0.0
  %5013 = vmatpush.msra.mxu0 0.0
  %5014 = vmatpush.msra.mxu0 0.0
  %5015 = vmatpush.msra.mxu0 0.0
  %5016 = vmatpush.msra.mxu0 0.0
  %5017 = vmatpush.msra.mxu0 0.0
  %5018 = vmatpush.msra.mxu0 0.0
  %5019 = vmatpush.msra.mxu0 %v54
  %5020 = vmatpush.msra.mxu0 %v53
  %5021 = vmatpush.msra.mxu0 %v52
  %5022 = vmatpush.msra.mxu0 %v51
  %5023 = vmatmul.f32.gmra.mxu0 %v5005
  %v5024 = vpop.f32.mrf.mxu0
  %v5025 = vadd.f32 %v5002, %v5024
  %5026 = vdwg.mxu0
  %v5027 = vld [vmem:[%s2764 + $0x2] sm:$0xf]
  %v5029 = vsel %vm3659, %v5027, 0
  %5031 = vmatpush.msra.mxu0 0.0
  %5032 = vmatpush.msra.mxu0 0.0
  %5033 = vmatpush.msra.mxu0 0.0
  %5034 = vmatpush.msra.mxu0 0.0
  %5035 = vmatpush.msra.mxu0 0.0
  %5036 = vmatpush.msra.mxu0 0.0
  %5037 = vmatpush.msra.mxu0 0.0
  %5038 = vmatpush.msra.mxu0 0.0
  %5039 = vmatpush.msra.mxu0 0.0
  %5040 = vmatpush.msra.mxu0 0.0
  %5041 = vmatpush.msra.mxu0 0.0
  %5042 = vmatpush.msra.mxu0 0.0
  %5043 = vmatpush.msra.mxu0 %v64
  %5044 = vmatpush.msra.mxu0 %v63
  %5045 = vmatpush.msra.mxu0 %v62
  %5046 = vmatpush.msra.mxu0 %v61
  %5047 = vmatmul.f32.gmra.mxu0 %v5029
  %v5048 = vpop.f32.mrf.mxu0
  %v5049 = vadd.f32 0.0, %v5048
  %5050 = vdwg.mxu0
  %v5051 = vadd.f32 %v5025, %v5049
  %v5052 = vld [vmem:[%s3206] sm:$0xf]
  %v5054 = vsel %vm3659, %v5052, 0
  %5056 = vmatpush.msra.mxu0 0.0
  %5057 = vmatpush.msra.mxu0 0.0
  %5058 = vmatpush.msra.mxu0 0.0
  %5059 = vmatpush.msra.mxu0 0.0
  %5060 = vmatpush.msra.mxu0 0.0
  %5061 = vmatpush.msra.mxu0 0.0
  %5062 = vmatpush.msra.mxu0 0.0
  %5063 = vmatpush.msra.mxu0 0.0
  %5064 = vmatpush.msra.mxu0 0.0
  %5065 = vmatpush.msra.mxu0 0.0
  %5066 = vmatpush.msra.mxu0 0.0
  %5067 = vmatpush.msra.mxu0 0.0
  %5068 = vmatpush.msra.mxu0 %v69
  %5069 = vmatpush.msra.mxu0 %v68
  %5070 = vmatpush.msra.mxu0 %v67
  %5071 = vmatpush.msra.mxu0 %v66
  %5072 = vmatmul.f32.gmra.mxu0 %v5054
  %v5073 = vpop.f32.mrf.mxu0
  %v5074 = vadd.f32 0.0, %v5073
  %5075 = vdwg.mxu0
  %v5076 = vadd.f32 %v5051, %v5074
  %v5077 = vld [vmem:[%s3206 + $0x1] sm:$0xf]
  %v5079 = vsel %vm3659, %v5077, 0
  %5081 = vmatpush.msra.mxu0 0.0
  %5082 = vmatpush.msra.mxu0 0.0
  %5083 = vmatpush.msra.mxu0 0.0
  %5084 = vmatpush.msra.mxu0 0.0
  %5085 = vmatpush.msra.mxu0 0.0
  %5086 = vmatpush.msra.mxu0 0.0
  %5087 = vmatpush.msra.mxu0 0.0
  %5088 = vmatpush.msra.mxu0 0.0
  %5089 = vmatpush.msra.mxu0 0.0
  %5090 = vmatpush.msra.mxu0 0.0
  %5091 = vmatpush.msra.mxu0 0.0
  %5092 = vmatpush.msra.mxu0 0.0
  %5093 = vmatpush.msra.mxu0 %v74
  %5094 = vmatpush.msra.mxu0 %v73
  %5095 = vmatpush.msra.mxu0 %v72
  %5096 = vmatpush.msra.mxu0 %v71
  %5097 = vmatmul.f32.gmra.mxu0 %v5079
  %v5098 = vpop.f32.mrf.mxu0
  %v5099 = vadd.f32 0.0, %v5098
  %5100 = vdwg.mxu0
  %v5101 = vadd.f32 %v5076, %v5099
  %v5102 = vld [vmem:[%s3206 + $0x2] sm:$0xf]
  %v5104 = vsel %vm3659, %v5102, 0
  %5106 = vmatpush.msra.mxu0 0.0
  %5107 = vmatpush.msra.mxu0 0.0
  %5108 = vmatpush.msra.mxu0 0.0
  %5109 = vmatpush.msra.mxu0 0.0
  %5110 = vmatpush.msra.mxu0 0.0
  %5111 = vmatpush.msra.mxu0 0.0
  %5112 = vmatpush.msra.mxu0 0.0
  %5113 = vmatpush.msra.mxu0 0.0
  %5114 = vmatpush.msra.mxu0 0.0
  %5115 = vmatpush.msra.mxu0 0.0
  %5116 = vmatpush.msra.mxu0 0.0
  %5117 = vmatpush.msra.mxu0 0.0
  %5118 = vmatpush.msra.mxu0 %v79
  %5119 = vmatpush.msra.mxu0 %v78
  %5120 = vmatpush.msra.mxu0 %v77
  %5121 = vmatpush.msra.mxu0 %v76
  %5122 = vmatmul.f32.gmra.mxu0 %v5104
  %v5123 = vpop.f32.mrf.mxu0
  %v5124 = vadd.f32 0.0, %v5123
  %5125 = vdwg.mxu0
  %v5126 = vadd.f32 %v5101, %v5124
  %v5127 = vld [vmem:[%s3648] sm:$0xf]
  %v5129 = vsel %vm3659, %v5127, 0
  %5131 = vmatpush.msra.mxu0 0.0
  %5132 = vmatpush.msra.mxu0 0.0
  %5133 = vmatpush.msra.mxu0 0.0
  %5134 = vmatpush.msra.mxu0 0.0
  %5135 = vmatpush.msra.mxu0 0.0
  %5136 = vmatpush.msra.mxu0 0.0
  %5137 = vmatpush.msra.mxu0 0.0
  %5138 = vmatpush.msra.mxu0 0.0
  %5139 = vmatpush.msra.mxu0 0.0
  %5140 = vmatpush.msra.mxu0 0.0
  %5141 = vmatpush.msra.mxu0 0.0
  %5142 = vmatpush.msra.mxu0 0.0
  %5143 = vmatpush.msra.mxu0 %v84
  %5144 = vmatpush.msra.mxu0 %v83
  %5145 = vmatpush.msra.mxu0 %v82
  %5146 = vmatpush.msra.mxu0 %v81
  %5147 = vmatmul.f32.gmra.mxu0 %v5129
  %v5148 = vpop.f32.mrf.mxu0
  %v5149 = vadd.f32 0.0, %v5148
  %5150 = vdwg.mxu0
  %v5151 = vadd.f32 %v5126, %v5149
  %v5152 = vld [vmem:[%s3648 + $0x1] sm:$0xf]
  %v5154 = vsel %vm3659, %v5152, 0
  %5156 = vmatpush.msra.mxu0 0.0
  %5157 = vmatpush.msra.mxu0 0.0
  %5158 = vmatpush.msra.mxu0 0.0
  %5159 = vmatpush.msra.mxu0 0.0
  %5160 = vmatpush.msra.mxu0 0.0
  %5161 = vmatpush.msra.mxu0 0.0
  %5162 = vmatpush.msra.mxu0 0.0
  %5163 = vmatpush.msra.mxu0 0.0
  %5164 = vmatpush.msra.mxu0 0.0
  %5165 = vmatpush.msra.mxu0 0.0
  %5166 = vmatpush.msra.mxu0 0.0
  %5167 = vmatpush.msra.mxu0 0.0
  %5168 = vmatpush.msra.mxu0 %v89
  %5169 = vmatpush.msra.mxu0 %v88
  %5170 = vmatpush.msra.mxu0 %v87
  %5171 = vmatpush.msra.mxu0 %v86
  %5172 = vmatmul.f32.gmra.mxu0 %v5154
  %v5173 = vpop.f32.mrf.mxu0
  %v5174 = vadd.f32 0.0, %v5173
  %5175 = vdwg.mxu0
  %v5176 = vadd.f32 %v5151, %v5174
  %v5177 = vld [vmem:[%s3648 + $0x2] sm:$0xf]
  %v5179 = vsel %vm3659, %v5177, 0
  %5181 = vmatpush.msra.mxu0 0.0
  %5182 = vmatpush.msra.mxu0 0.0
  %5183 = vmatpush.msra.mxu0 0.0
  %5184 = vmatpush.msra.mxu0 0.0
  %5185 = vmatpush.msra.mxu0 0.0
  %5186 = vmatpush.msra.mxu0 0.0
  %5187 = vmatpush.msra.mxu0 0.0
  %5188 = vmatpush.msra.mxu0 0.0
  %5189 = vmatpush.msra.mxu0 0.0
  %5190 = vmatpush.msra.mxu0 0.0
  %5191 = vmatpush.msra.mxu0 0.0
  %5192 = vmatpush.msra.mxu0 0.0
  %5193 = vmatpush.msra.mxu0 %v94
  %5194 = vmatpush.msra.mxu0 %v93
  %5195 = vmatpush.msra.mxu0 %v92
  %5196 = vmatpush.msra.mxu0 %v91
  %5197 = vmatmul.f32.gmra.mxu0 %v5179
  %v5198 = vpop.f32.mrf.mxu0
  %v5199 = vadd.f32 0.0, %v5198
  %5200 = vdwg.mxu0
  %v5201 = vadd.f32 %v5176, %v5199
  %5202 = vmatpush.msra.mxu0 0.0
  %5203 = vmatpush.msra.mxu0 0.0
  %5204 = vmatpush.msra.mxu0 0.0
  %5205 = vmatpush.msra.mxu0 0.0
  %5206 = vmatpush.msra.mxu0 0.0
  %5207 = vmatpush.msra.mxu0 0.0
  %5208 = vmatpush.msra.mxu0 0.0
  %5209 = vmatpush.msra.mxu0 0.0
  %5210 = vmatpush.msra.mxu0 0.0
  %5211 = vmatpush.msra.mxu0 0.0
  %5212 = vmatpush.msra.mxu0 0.0
  %5213 = vmatpush.msra.mxu0 0.0
  %5214 = vmatpush.msra.mxu0 %v59
  %5215 = vmatpush.msra.mxu0 %v58
  %5216 = vmatpush.msra.mxu0 %v57
  %5217 = vmatpush.msra.mxu0 %v56
  %5218 = vmatmul.f32.gmra.mxu0 %v5079
  %v5219 = vpop.f32.mrf.mxu0
  %v5220 = vadd.f32 0.0, %v5219
  %5221 = vdwg.mxu0
  %5222 = vmatpush.msra.mxu0 0.0
  %5223 = vmatpush.msra.mxu0 0.0
  %5224 = vmatpush.msra.mxu0 0.0
  %5225 = vmatpush.msra.mxu0 0.0
  %5226 = vmatpush.msra.mxu0 0.0
  %5227 = vmatpush.msra.mxu0 0.0
  %5228 = vmatpush.msra.mxu0 0.0
  %5229 = vmatpush.msra.mxu0 0.0
  %5230 = vmatpush.msra.mxu0 0.0
  %5231 = vmatpush.msra.mxu0 0.0
  %5232 = vmatpush.msra.mxu0 0.0
  %5233 = vmatpush.msra.mxu0 0.0
  %5234 = vmatpush.msra.mxu0 %v54
  %5235 = vmatpush.msra.mxu0 %v53
  %5236 = vmatpush.msra.mxu0 %v52
  %5237 = vmatpush.msra.mxu0 %v51
  %5238 = vmatmul.f32.gmra.mxu0 %v5054
  %v5239 = vpop.f32.mrf.mxu0
  %v5240 = vadd.f32 %v5220, %v5239
  %5241 = vdwg.mxu0
  %5242 = vmatpush.msra.mxu0 0.0
  %5243 = vmatpush.msra.mxu0 0.0
  %5244 = vmatpush.msra.mxu0 0.0
  %5245 = vmatpush.msra.mxu0 0.0
  %5246 = vmatpush.msra.mxu0 0.0
  %5247 = vmatpush.msra.mxu0 0.0
  %5248 = vmatpush.msra.mxu0 0.0
  %5249 = vmatpush.msra.mxu0 0.0
  %5250 = vmatpush.msra.mxu0 0.0
  %5251 = vmatpush.msra.mxu0 0.0
  %5252 = vmatpush.msra.mxu0 0.0
  %5253 = vmatpush.msra.mxu0 0.0
  %5254 = vmatpush.msra.mxu0 %v64
  %5255 = vmatpush.msra.mxu0 %v63
  %5256 = vmatpush.msra.mxu0 %v62
  %5257 = vmatpush.msra.mxu0 %v61
  %5258 = vmatmul.f32.gmra.mxu0 %v5104
  %v5259 = vpop.f32.mrf.mxu0
  %v5260 = vadd.f32 0.0, %v5259
  %5261 = vdwg.mxu0
  %v5262 = vadd.f32 %v5240, %v5260
  %5263 = vmatpush.msra.mxu0 0.0
  %5264 = vmatpush.msra.mxu0 0.0
  %5265 = vmatpush.msra.mxu0 0.0
  %5266 = vmatpush.msra.mxu0 0.0
  %5267 = vmatpush.msra.mxu0 0.0
  %5268 = vmatpush.msra.mxu0 0.0
  %5269 = vmatpush.msra.mxu0 0.0
  %5270 = vmatpush.msra.mxu0 0.0
  %5271 = vmatpush.msra.mxu0 0.0
  %5272 = vmatpush.msra.mxu0 0.0
  %5273 = vmatpush.msra.mxu0 0.0
  %5274 = vmatpush.msra.mxu0 0.0
  %5275 = vmatpush.msra.mxu0 %v69
  %5276 = vmatpush.msra.mxu0 %v68
  %5277 = vmatpush.msra.mxu0 %v67
  %5278 = vmatpush.msra.mxu0 %v66
  %5279 = vmatmul.f32.gmra.mxu0 %v5129
  %v5280 = vpop.f32.mrf.mxu0
  %v5281 = vadd.f32 0.0, %v5280
  %5282 = vdwg.mxu0
  %v5283 = vadd.f32 %v5262, %v5281
  %5284 = vmatpush.msra.mxu0 0.0
  %5285 = vmatpush.msra.mxu0 0.0
  %5286 = vmatpush.msra.mxu0 0.0
  %5287 = vmatpush.msra.mxu0 0.0
  %5288 = vmatpush.msra.mxu0 0.0
  %5289 = vmatpush.msra.mxu0 0.0
  %5290 = vmatpush.msra.mxu0 0.0
  %5291 = vmatpush.msra.mxu0 0.0
  %5292 = vmatpush.msra.mxu0 0.0
  %5293 = vmatpush.msra.mxu0 0.0
  %5294 = vmatpush.msra.mxu0 0.0
  %5295 = vmatpush.msra.mxu0 0.0
  %5296 = vmatpush.msra.mxu0 %v74
  %5297 = vmatpush.msra.mxu0 %v73
  %5298 = vmatpush.msra.mxu0 %v72
  %5299 = vmatpush.msra.mxu0 %v71
  %5300 = vmatmul.f32.gmra.mxu0 %v5154
  %v5301 = vpop.f32.mrf.mxu0
  %v5302 = vadd.f32 0.0, %v5301
  %5303 = vdwg.mxu0
  %v5304 = vadd.f32 %v5283, %v5302
  %5305 = vmatpush.msra.mxu0 0.0
  %5306 = vmatpush.msra.mxu0 0.0
  %5307 = vmatpush.msra.mxu0 0.0
  %5308 = vmatpush.msra.mxu0 0.0
  %5309 = vmatpush.msra.mxu0 0.0
  %5310 = vmatpush.msra.mxu0 0.0
  %5311 = vmatpush.msra.mxu0 0.0
  %5312 = vmatpush.msra.mxu0 0.0
  %5313 = vmatpush.msra.mxu0 0.0
  %5314 = vmatpush.msra.mxu0 0.0
  %5315 = vmatpush.msra.mxu0 0.0
  %5316 = vmatpush.msra.mxu0 0.0
  %5317 = vmatpush.msra.mxu0 %v79
  %5318 = vmatpush.msra.mxu0 %v78
  %5319 = vmatpush.msra.mxu0 %v77
  %5320 = vmatpush.msra.mxu0 %v76
  %5321 = vmatmul.f32.gmra.mxu0 %v5179
  %v5322 = vpop.f32.mrf.mxu0
  %v5323 = vadd.f32 0.0, %v5322
  %5324 = vdwg.mxu0
  %v5325 = vadd.f32 %v5304, %v5323
  %s5326 = scalar_lea.vmem [#allocation2], 88
  %v5327 = vld [vmem:[%s5326] sm:$0xf]
  %v5329 = vsel %vm3659, %v5327, 0
  %5331 = vmatpush.msra.mxu0 0.0
  %5332 = vmatpush.msra.mxu0 0.0
  %5333 = vmatpush.msra.mxu0 0.0
  %5334 = vmatpush.msra.mxu0 0.0
  %5335 = vmatpush.msra.mxu0 0.0
  %5336 = vmatpush.msra.mxu0 0.0
  %5337 = vmatpush.msra.mxu0 0.0
  %5338 = vmatpush.msra.mxu0 0.0
  %5339 = vmatpush.msra.mxu0 0.0
  %5340 = vmatpush.msra.mxu0 0.0
  %5341 = vmatpush.msra.mxu0 0.0
  %5342 = vmatpush.msra.mxu0 0.0
  %5343 = vmatpush.msra.mxu0 %v84
  %5344 = vmatpush.msra.mxu0 %v83
  %5345 = vmatpush.msra.mxu0 %v82
  %5346 = vmatpush.msra.mxu0 %v81
  %5347 = vmatmul.f32.gmra.mxu0 %v5329
  %v5348 = vpop.f32.mrf.mxu0
  %v5349 = vadd.f32 0.0, %v5348
  %5350 = vdwg.mxu0
  %v5351 = vadd.f32 %v5325, %v5349
  %v5352 = vld [vmem:[%s5326 + $0x1] sm:$0xf]
  %v5354 = vsel %vm3659, %v5352, 0
  %5356 = vmatpush.msra.mxu0 0.0
  %5357 = vmatpush.msra.mxu0 0.0
  %5358 = vmatpush.msra.mxu0 0.0
  %5359 = vmatpush.msra.mxu0 0.0
  %5360 = vmatpush.msra.mxu0 0.0
  %5361 = vmatpush.msra.mxu0 0.0
  %5362 = vmatpush.msra.mxu0 0.0
  %5363 = vmatpush.msra.mxu0 0.0
  %5364 = vmatpush.msra.mxu0 0.0
  %5365 = vmatpush.msra.mxu0 0.0
  %5366 = vmatpush.msra.mxu0 0.0
  %5367 = vmatpush.msra.mxu0 0.0
  %5368 = vmatpush.msra.mxu0 %v89
  %5369 = vmatpush.msra.mxu0 %v88
  %5370 = vmatpush.msra.mxu0 %v87
  %5371 = vmatpush.msra.mxu0 %v86
  %5372 = vmatmul.f32.gmra.mxu0 %v5354
  %v5373 = vpop.f32.mrf.mxu0
  %v5374 = vadd.f32 0.0, %v5373
  %5375 = vdwg.mxu0
  %v5376 = vadd.f32 %v5351, %v5374
  %v5377 = vld [vmem:[%s5326 + $0x2] sm:$0xf]
  %v5379 = vsel %vm3659, %v5377, 0
  %5381 = vmatpush.msra.mxu0 0.0
  %5382 = vmatpush.msra.mxu0 0.0
  %5383 = vmatpush.msra.mxu0 0.0
  %5384 = vmatpush.msra.mxu0 0.0
  %5385 = vmatpush.msra.mxu0 0.0
  %5386 = vmatpush.msra.mxu0 0.0
  %5387 = vmatpush.msra.mxu0 0.0
  %5388 = vmatpush.msra.mxu0 0.0
  %5389 = vmatpush.msra.mxu0 0.0
  %5390 = vmatpush.msra.mxu0 0.0
  %5391 = vmatpush.msra.mxu0 0.0
  %5392 = vmatpush.msra.mxu0 0.0
  %5393 = vmatpush.msra.mxu0 %v94
  %5394 = vmatpush.msra.mxu0 %v93
  %5395 = vmatpush.msra.mxu0 %v92
  %5396 = vmatpush.msra.mxu0 %v91
  %5397 = vmatmul.f32.gmra.mxu0 %v5379
  %v5398 = vpop.f32.mrf.mxu0
  %v5399 = vadd.f32 0.0, %v5398
  %5400 = vdwg.mxu0
  %v5401 = vadd.f32 %v5376, %v5399
  %v5402 = vmax.f32 %v5201, %v5401
  %v5404 = vrot.slane %v5402, 1
  %v5406 = vmax.f32 %v5402, %v5404
  %v5407 = vadd.f32 %v5406, %v96
  %vm5408 = vcmp.ge.f32.partialorder %v5407, 0.0
  %v5409 = vmul.f32 %v5407, 0.01
  %v5410 = vsel %vm5408, %v5407, %v5409
  %5411 = vst.msk [vmem:[%s4533 + $0x1] sm:$0x1] %vm4089, %v5410
  %v5412 = vadd.f32 %v5406, %v4092
  %vm5413 = vcmp.ge.f32.partialorder %v5412, 0.0
  %v5414 = vmul.f32 %v5412, 0.01
  %v5415 = vsel %vm5413, %v5412, %v5414
  %5416 = vst.msk [vmem:[%s4539 - $0x1] sm:$0x4] %vm4099, %v5415
  %v5417 = vld [vmem:[#allocation3] sm:$0x3]
  %v5418 = vld [vmem:[%s5] sm:$0xff]
  %v5419 = vld [vmem:[%s5 + $0x8] sm:$0xff]
  %v5420 = vld [vmem:[%s5 + $0x10] sm:$0xff]
  %v5421 = vld [vmem:[%s5 + $0x18] sm:$0xff]
  %v5422 = vld [vmem:[%s5 + $0x20] sm:$0xff]
  %v5423 = vld [vmem:[%s5 + $0x28] sm:$0xff]
  %v5424 = vld [vmem:[%s5 + $0x30] sm:$0xff]
  %v5425 = vld [vmem:[%s5 + $0x38] sm:$0xff]
  %v5426 = vld [vmem:[%s4098] sm:$0x3]
  %s5427 = scalar_lea.vmem %s5, 64
  %v5428 = vld [vmem:[%s5427] sm:$0xff]
  %v5429 = vld [vmem:[%s5427 + $0x8] sm:$0xff]
  %v5430 = vld [vmem:[%s5427 + $0x10] sm:$0xff]
  %v5431 = vld [vmem:[%s5427 + $0x18] sm:$0xff]
  %v5432 = vld [vmem:[%s5427 + $0x20] sm:$0xff]
  %v5433 = vld [vmem:[%s5427 + $0x28] sm:$0xff]
  %v5434 = vld [vmem:[%s5427 + $0x30] sm:$0xff]
  %v5435 = vld [vmem:[%s5427 + $0x38] sm:$0xff]
  %vm5436 = vcmask 523264
  %v5438 = vsel %vm5436, %v5426, 0
  %5440 = vmatpush.msra.mxu0 0.0
  %5441 = vmatpush.msra.mxu0 0.0
  %5442 = vmatpush.msra.mxu0 0.0
  %5443 = vmatpush.msra.mxu0 0.0
  %5444 = vmatpush.msra.mxu0 0.0
  %5445 = vmatpush.msra.mxu0 0.0
  %5446 = vmatpush.msra.mxu0 0.0
  %5447 = vmatpush.msra.mxu0 0.0
  %5448 = vmatpush.msra.mxu0 %v5435
  %5449 = vmatpush.msra.mxu0 %v5434
  %5450 = vmatpush.msra.mxu0 %v5433
  %5451 = vmatpush.msra.mxu0 %v5432
  %5452 = vmatpush.msra.mxu0 %v5431
  %5453 = vmatpush.msra.mxu0 %v5430
  %5454 = vmatpush.msra.mxu0 %v5429
  %5455 = vmatpush.msra.mxu0 %v5428
  %5456 = vmatmul.f32.gmra.mxu0 %v5438
  %v5457 = vpop.f32.mrf.mxu0
  %v5458 = vadd.f32 0.0, %v5457
  %5459 = vdwg.mxu0
  %v5461 = vsel %vm5436, %v5417, 0
  %5463 = vmatpush.msra.mxu0 0.0
  %5464 = vmatpush.msra.mxu0 0.0
  %5465 = vmatpush.msra.mxu0 0.0
  %5466 = vmatpush.msra.mxu0 0.0
  %5467 = vmatpush.msra.mxu0 0.0
  %5468 = vmatpush.msra.mxu0 0.0
  %5469 = vmatpush.msra.mxu0 0.0
  %5470 = vmatpush.msra.mxu0 0.0
  %5471 = vmatpush.msra.mxu0 %v5425
  %5472 = vmatpush.msra.mxu0 %v5424
  %5473 = vmatpush.msra.mxu0 %v5423
  %5474 = vmatpush.msra.mxu0 %v5422
  %5475 = vmatpush.msra.mxu0 %v5421
  %5476 = vmatpush.msra.mxu0 %v5420
  %5477 = vmatpush.msra.mxu0 %v5419
  %5478 = vmatpush.msra.mxu0 %v5418
  %5479 = vmatmul.f32.gmra.mxu0 %v5461
  %v5480 = vpop.f32.mrf.mxu0
  %v5481 = vadd.f32 %v5458, %v5480
  %5482 = vdwg.mxu0
  %v5483 = vld [vmem:[%s4533] sm:$0x3]
  %s5484 = scalar_lea.vmem %s5, 128
  %v5485 = vld [vmem:[%s5484] sm:$0xff]
  %v5486 = vld [vmem:[%s5484 + $0x8] sm:$0xff]
  %v5487 = vld [vmem:[%s5484 + $0x10] sm:$0xff]
  %v5488 = vld [vmem:[%s5484 + $0x18] sm:$0xff]
  %v5489 = vld [vmem:[%s5484 + $0x20] sm:$0xff]
  %v5490 = vld [vmem:[%s5484 + $0x28] sm:$0xff]
  %v5491 = vld [vmem:[%s5484 + $0x30] sm:$0xff]
  %v5492 = vld [vmem:[%s5484 + $0x38] sm:$0xff]
  %v5494 = vsel %vm5436, %v5483, 0
  %5496 = vmatpush.msra.mxu0 0.0
  %5497 = vmatpush.msra.mxu0 0.0
  %5498 = vmatpush.msra.mxu0 0.0
  %5499 = vmatpush.msra.mxu0 0.0
  %5500 = vmatpush.msra.mxu0 0.0
  %5501 = vmatpush.msra.mxu0 0.0
  %5502 = vmatpush.msra.mxu0 0.0
  %5503 = vmatpush.msra.mxu0 0.0
  %5504 = vmatpush.msra.mxu0 %v5492
  %5505 = vmatpush.msra.mxu0 %v5491
  %5506 = vmatpush.msra.mxu0 %v5490
  %5507 = vmatpush.msra.mxu0 %v5489
  %5508 = vmatpush.msra.mxu0 %v5488
  %5509 = vmatpush.msra.mxu0 %v5487
  %5510 = vmatpush.msra.mxu0 %v5486
  %5511 = vmatpush.msra.mxu0 %v5485
  %5512 = vmatmul.f32.gmra.mxu0 %v5494
  %v5513 = vpop.f32.mrf.mxu0
  %v5514 = vadd.f32 0.0, %v5513
  %5515 = vdwg.mxu0
  %v5516 = vadd.f32 %v5481, %v5514
  %v5517 = vld [vmem:[%s4539] sm:$0x3]
  %s5518 = scalar_lea.vmem %s5, 192
  %v5519 = vld [vmem:[%s5518] sm:$0xff]
  %v5520 = vld [vmem:[%s5518 + $0x8] sm:$0xff]
  %v5521 = vld [vmem:[%s5518 + $0x10] sm:$0xff]
  %v5522 = vld [vmem:[%s5518 + $0x18] sm:$0xff]
  %v5523 = vld [vmem:[%s5518 + $0x20] sm:$0xff]
  %v5524 = vld [vmem:[%s5518 + $0x28] sm:$0xff]
  %v5525 = vld [vmem:[%s5518 + $0x30] sm:$0xff]
  %v5526 = vld [vmem:[%s5518 + $0x38] sm:$0xff]
  %v5528 = vsel %vm5436, %v5517, 0
  %5530 = vmatpush.msra.mxu0 0.0
  %5531 = vmatpush.msra.mxu0 0.0
  %5532 = vmatpush.msra.mxu0 0.0
  %5533 = vmatpush.msra.mxu0 0.0
  %5534 = vmatpush.msra.mxu0 0.0
  %5535 = vmatpush.msra.mxu0 0.0
  %5536 = vmatpush.msra.mxu0 0.0
  %5537 = vmatpush.msra.mxu0 0.0
  %5538 = vmatpush.msra.mxu0 %v5526
  %5539 = vmatpush.msra.mxu0 %v5525
  %5540 = vmatpush.msra.mxu0 %v5524
  %5541 = vmatpush.msra.mxu0 %v5523
  %5542 = vmatpush.msra.mxu0 %v5522
  %5543 = vmatpush.msra.mxu0 %v5521
  %5544 = vmatpush.msra.mxu0 %v5520
  %5545 = vmatpush.msra.mxu0 %v5519
  %5546 = vmatmul.f32.gmra.mxu0 %v5528
  %v5547 = vpop.f32.mrf.mxu0
  %v5548 = vadd.f32 0.0, %v5547
  %5549 = vdwg.mxu0
  %v5550 = vadd.f32 %v5516, %v5548
  %v5551 = vld [vmem:[%s6] sm:$0x1]
  %v5553 = vperm.slane %v5551, 0
  %v5555 = vadd.f32 %v5550, %v5553
  %vm5556 = vcmp.ge.f32.partialorder %v5555, 0.0
  %v5557 = vmul.f32 %v5555, 0.01
  %v5558 = vsel %vm5556, %v5555, %v5557
  %v5559 = vld [vmem:[%s7] sm:$0x1]
  %v5561 = vperm.slane %v5559, 0
  %v5563 = vmul.f32 %v5558, %v5561
  %vm5564 = vcmask 1041408
  %v5565 = vsel %vm5564, %v5563, 0.0
  %5566 = vadd.xlane.f32.xlu0 %v5565
  %v5567 = vpop.xlane.xlu0 %5566
  %v5568 = vld [vmem:[#allocation4] sm:$0x1]
  %v5570 = vperm.slane %v5568, 0
  %v5572 = vadd.f32 %v5567, %v5570
  %vm5573 = vcmask 1024
  %5574 = vst.msk [vmem:[%s9] sm:$0x3] %vm5573, %v5572
  // Predicated region
  $region38: #{cnn_forward.1} parent=0 // pred_check
    _
  $region39: #{cnn_forward.1} parent=0 // pred_check_branch
    %5576 = sbr.rel (0) target = $region41
  $region40: #{cnn_forward.1} parent=0 // pred_region
    _
  $region41: #{cnn_forward.1} parent=0 // pred_fallthru
    _
  // Predicated region
  $region42: #{cnn_forward.1} parent=0 // pred_check
    _
  $region43: #{cnn_forward.1} parent=0 // pred_check_branch
    %5578 = sbr.rel (0) target = $region45
  $region44: #{cnn_forward.1} parent=0 // pred_region
    _
  $region45: #{cnn_forward.1} parent=0 // pred_fallthru
    _

</llo_original>
